<compile_context>
chip_gen: v5e
topology: v5e:2x2
jax: 0.10.0
libtpu: 0.0.40
codegen_flags: <defaults>
</compile_context>

<pallas_src>
import functools
import math

import jax
import jax.numpy as jnp
from jax import lax
from jax.experimental import pallas as pl
from jax.experimental.pallas import tpu as pltpu

LANE = 128


def _round_up(x, m):
    return ((x + m - 1) // m) * m


# ---------------------------------------------------------------------------
# Pallas kernels
# ---------------------------------------------------------------------------

def _conv3x3_kernel(x_ref, w_ref, b_ref, o_ref, *, H, W, C_out):
    """3x3 / stride-1 / pad-1 conv + bias + ReLU for one image.

    x_ref: (1, H+2, W+2, Cin)  bf16 (spatially zero-padded, channel-padded)
    w_ref: (9, Cin, C_out)     bf16
    b_ref: (1, C_out)          f32
    o_ref: (1, H, W, C_out)    bf16
    """
    def row_body(y, carry):
        rows = x_ref[0, pl.ds(y, 3)]                       # (3, W+2, Cin)
        acc = jnp.zeros((W, C_out), jnp.float32)
        for dy in range(3):
            r = rows[dy]                                   # (W+2, Cin) bf16
            for dx in range(3):
                # full-width product, then shift the f32 result by dx
                f = jnp.dot(r, w_ref[dy * 3 + dx],
                            preferred_element_type=jnp.float32)  # (W+2, C_out)
                acc = acc + f[dx:dx + W, :]
        acc = jnp.maximum(acc + b_ref[...], 0.0)
        o_ref[0, pl.ds(y, 1)] = acc[None].astype(o_ref.dtype)
        return carry

    lax.fori_loop(0, H, row_body, 0)


def conv3x3_relu(x_p, w, b):
    """x_p: (N, H, W, Cp) bf16 NHWC, channels already padded to LANE multiple."""
    N, H, W, Cp = x_p.shape
    _, _, c_in, c_out = w.shape
    cop = _round_up(c_out, LANE)
    w_p = jnp.pad(w, ((0, 0), (0, 0), (0, Cp - c_in), (0, cop - c_out)))
    w_p = w_p.reshape(9, Cp, cop).astype(jnp.bfloat16)
    b_p = jnp.pad(b, (0, cop - c_out)).reshape(1, cop).astype(jnp.float32)
    xp = jnp.pad(x_p, ((0, 0), (1, 1), (1, 1), (0, 0)))    # spatial halo only

    return pl.pallas_call(
        functools.partial(_conv3x3_kernel, H=H, W=W, C_out=cop),
        out_shape=jax.ShapeDtypeStruct((N, H, W, cop), jnp.bfloat16),
        grid=(N,),
        in_specs=[
            pl.BlockSpec((1, H + 2, W + 2, Cp), lambda n: (n, 0, 0, 0)),
            pl.BlockSpec((9, Cp, cop), lambda n: (0, 0, 0)),
            pl.BlockSpec((1, cop), lambda n: (0, 0)),
        ],
        out_specs=pl.BlockSpec((1, H, W, cop), lambda n: (n, 0, 0, 0)),
        compiler_params=pltpu.CompilerParams(
            dimension_semantics=("parallel",)),
    )(xp, w_p, b_p)


def _maxpool_kernel(x_ref, o_ref):
    x = x_ref[...]                        # (2, Wout, 2, C): row-pair, W-pairs
    m = jnp.maximum(x[0], x[1])           # (Wout, 2, C)
    o_ref[0] = jnp.max(m, axis=1)         # (Wout, C)


def maxpool2x2(x_p):
    """2x2 / stride-2 max pool on channel-padded NHWC, single Pallas pass."""
    N, H, W, Cp = x_p.shape
    Ho, Wo = H // 2, W // 2
    xr = x_p.reshape(N * H, Wo, 2, Cp)    # free, contiguous reshape (no copy)
    out = pl.pallas_call(
        _maxpool_kernel,
        out_shape=jax.ShapeDtypeStruct((N * Ho, Wo, Cp), x_p.dtype),
        grid=(N * Ho,),
        in_specs=[pl.BlockSpec((2, Wo, 2, Cp), lambda i: (i, 0, 0, 0))],
        out_specs=pl.BlockSpec((1, Wo, Cp), lambda i: (i, 0, 0)),
        compiler_params=pltpu.CompilerParams(
            dimension_semantics=("parallel",)),
    )(xr)
    return out.reshape(N, Ho, Wo, Cp)


def _linear_kernel(x_ref, w_ref, b_ref, o_ref, *, relu):
    acc = jnp.dot(x_ref[...], w_ref[...], preferred_element_type=jnp.float32)
    acc = acc + b_ref[...]
    if relu:
        acc = jnp.maximum(acc, 0.0)
    o_ref[...] = acc.astype(o_ref.dtype)


def linear_bias_act(x, w, b, relu=False):
    """y = act(x @ w + b). Pads M to 8 rows and K/N to 128 lanes; bf16 MXU in."""
    M, K = x.shape
    _, Nd = w.shape
    Mp = _round_up(M, 8)
    Kp = _round_up(K, LANE)
    Np = _round_up(Nd, LANE)
    tm = min(128, Mp)
    xp = jnp.pad(x, ((0, Mp - M), (0, Kp - K))).astype(jnp.bfloat16)
    wp = jnp.pad(w, ((0, Kp - K), (0, Np - Nd))).astype(jnp.bfloat16)
    bp = jnp.pad(b, (0, Np - Nd)).reshape(1, Np).astype(jnp.float32)
    out = pl.pallas_call(
        functools.partial(_linear_kernel, relu=relu),
        out_shape=jax.ShapeDtypeStruct((Mp, Np), jnp.float32),
        grid=(Mp // tm,),
        in_specs=[
            pl.BlockSpec((tm, Kp), lambda i: (i, 0)),
            pl.BlockSpec((Kp, Np), lambda i: (0, 0)),
            pl.BlockSpec((1, Np), lambda i: (0, 0)),
        ],
        out_specs=pl.BlockSpec((tm, Np), lambda i: (i, 0)),
        compiler_params=pltpu.CompilerParams(
            dimension_semantics=("parallel",)),
    )(xp, wp, bp)
    return out[:M, :Nd]


# ---------------------------------------------------------------------------
# Module definition (VGG16 structure, width-scaled for small shapes)
# ---------------------------------------------------------------------------

# VGG16 config 'D' scaled by 1/8: 13 convs, 5 maxpools.
VGG_CFG = [8, 8, 'M', 16, 16, 'M', 32, 32, 32, 'M', 64, 64, 64, 'M', 64, 64, 64, 'M']
HIDDEN = 128  # stands in for 4096 of the real classifier


def init_params(key, in_ch=3, hidden=HIDDEN):
    # TODO(synk): torchvision pretrained VGG16 weights cannot be loaded here;
    # weights are synthetic deterministic normals with matching structure.
    params = {'convs': [], 'fc': []}
    c = in_ch
    for v in VGG_CFG:
        if v == 'M':
            continue
        key, k1, k2 = jax.random.split(key, 3)
        w = jax.random.normal(k1, (3, 3, c, v), jnp.float32) / math.sqrt(9 * c)
        bb = 0.01 * jax.random.normal(k2, (v,), jnp.float32)
        params['convs'].append((w, bb))
        c = v
    flat = c * 1 * 1  # 32x32 input -> 1x1 spatial after 5 pools
    for din, dout in [(flat, hidden), (hidden, hidden)]:
        key, k1, k2 = jax.random.split(key, 3)
        w = jax.random.normal(k1, (din, dout), jnp.float32) / math.sqrt(din)
        bb = 0.01 * jax.random.normal(k2, (dout,), jnp.float32)
        params['fc'].append((w, bb))
    return params


def features_encoding(params, x_nchw):
    """forward: classifier(features(x).view(N, -1))"""
    x = jnp.transpose(x_nchw, (0, 2, 3, 1)).astype(jnp.float32)  # NCHW -> NHWC
    c_real = x.shape[-1]
    cp = _round_up(c_real, LANE)
    x = jnp.pad(x, ((0, 0), (0, 0), (0, 0), (0, cp - c_real)))
    x = x.astype(jnp.bfloat16)

    ci = 0
    for v in VGG_CFG:
        if v == 'M':
            x = maxpool2x2(x)
        else:
            w, b = params['convs'][ci]
            ci += 1
            x = conv3x3_relu(x, w, b)
            c_real = v

    # drop channel padding, go back to torch layout for the flatten
    feat = x[..., :c_real].astype(jnp.float32)
    feat = jnp.transpose(feat, (0, 3, 1, 2))               # NHWC -> NCHW
    flat = feat.reshape(feat.shape[0], -1)                 # features(x).view(N, -1)

    w0, b0 = params['fc'][0]
    h = linear_bias_act(flat, w0, b0, relu=True)           # classifier: Linear + ReLU
    # classifier[2] is Dropout -> identity at inference.
    # TODO(synk): training-mode dropout randomness not reproduced.
    w1, b1 = params['fc'][1]
    return linear_bias_act(h, w1, b1, relu=False)          # classifier: Linear


if __name__ == "__main__":
    key = jax.random.PRNGKey(0)
    kp, kx = jax.random.split(key)
    params = init_params(kp)
    x = jax.random.normal(kx, (2, 3, 32, 32), jnp.float32)  # NCHW like PyTorch

    fwd = jax.jit(features_encoding)
    out = jax.block_until_ready(fwd(params, x))
    assert out.shape == (2, HIDDEN), out.shape
    assert bool(jnp.all(jnp.isfinite(out)))
    print("KERNEL_OK")
</pallas_src>

<mosaic_0001>
module attributes {stable_mosaic.version = 11 : i64} {
  func.func @_conv3x3_kernel(%arg0: i32, %arg1: memref<1x34x34x128xbf16, #tpu.memory_space<vmem>>, %arg2: memref<9x128x128xbf16, #tpu.memory_space<vmem>>, %arg3: memref<1x128xf32, #tpu.memory_space<vmem>>, %arg4: memref<1x32x32x128xbf16, #tpu.memory_space<vmem>>) attributes {dimension_semantics = [#tpu.dimension_semantics<parallel>], iteration_bounds = array<i64: 2>, scalar_prefetch = 0 : i64, scratch_operands = 0 : i64, tpu.core_type = #tpu.core_type<tc>, window_params = [{transform_indices = @transform_0, window_bounds = array<i64: 1, 34, 34, 128>}, {pipeline_mode = #tpu.pipeline_mode<synchronous>, transform_indices = @transform_1, window_bounds = array<i64: 9, 128, 128>}, {pipeline_mode = #tpu.pipeline_mode<synchronous>, transform_indices = @transform_2, window_bounds = array<i64: 1, 128>}, {transform_indices = @transform_3, window_bounds = array<i64: 1, 32, 32, 128>}]} {
    %c0_i32 = arith.constant 0 : i32
    %c32_i32 = arith.constant 32 : i32
    %0 = arith.addi %c0_i32, %c32_i32 : i32
    %c1_i32 = arith.constant 1 : i32
    scf.for %arg5 = %c0_i32 to %0 step %c1_i32  : i32 {
      %c0 = arith.constant 0 : index
      %1 = arith.index_cast %arg5 : i32 to index
      %c0_1 = arith.constant 0 : index
      %c0_2 = arith.constant 0 : index
      %2 = vector.load %arg1[%c0, %1, %c0_1, %c0_2] : memref<1x34x34x128xbf16, #tpu.memory_space<vmem>>, vector<1x3x34x128xbf16>
      %3 = vector.shape_cast %2 : vector<1x3x34x128xbf16> to vector<3x34x128xbf16>
      %cst = arith.constant 0.000000e+00 : f32
      %4 = vector.broadcast %cst : f32 to vector<32x128xf32>
      %5 = vector.extract_strided_slice %3 {offsets = [0, 0, 0], sizes = [1, 34, 128], strides = [1, 1, 1]} : vector<3x34x128xbf16> to vector<1x34x128xbf16>
      %6 = vector.shape_cast %5 : vector<1x34x128xbf16> to vector<34x128xbf16>
      %c0_3 = arith.constant 0 : index
      %c0_4 = arith.constant 0 : index
      %c0_5 = arith.constant 0 : index
      %7 = vector.load %arg2[%c0_3, %c0_4, %c0_5] : memref<9x128x128xbf16, #tpu.memory_space<vmem>>, vector<1x128x128xbf16>
      %8 = vector.shape_cast %7 : vector<1x128x128xbf16> to vector<128x128xbf16>
      %cst_6 = arith.constant dense<0.000000e+00> : vector<34x128xf32>
      %9 = tpu.matmul %6, %8, %cst_6 {dimension_numbers = #tpu.dot_dimension_numbers<[1], [0], [0], [1], [0, 0, 1, 1], [], []>} : vector<34x128xbf16>, vector<128x128xbf16>, vector<34x128xf32> -> vector<34x128xf32>
      %10 = vector.extract_strided_slice %9 {offsets = [0, 0], sizes = [32, 128], strides = [1, 1]} : vector<34x128xf32> to vector<32x128xf32>
      %11 = arith.addf %4, %10 : vector<32x128xf32>
      %c1 = arith.constant 1 : index
      %c0_7 = arith.constant 0 : index
      %c0_8 = arith.constant 0 : index
      %12 = vector.load %arg2[%c1, %c0_7, %c0_8] : memref<9x128x128xbf16, #tpu.memory_space<vmem>>, vector<1x128x128xbf16>
      %13 = vector.shape_cast %12 : vector<1x128x128xbf16> to vector<128x128xbf16>
      %cst_9 = arith.constant dense<0.000000e+00> : vector<34x128xf32>
      %14 = tpu.matmul %6, %13, %cst_9 {dimension_numbers = #tpu.dot_dimension_numbers<[1], [0], [0], [1], [0, 0, 1, 1], [], []>} : vector<34x128xbf16>, vector<128x128xbf16>, vector<34x128xf32> -> vector<34x128xf32>
      %15 = vector.extract_strided_slice %14 {offsets = [1, 0], sizes = [32, 128], strides = [1, 1]} : vector<34x128xf32> to vector<32x128xf32>
      %16 = arith.addf %11, %15 : vector<32x128xf32>
      %c2 = arith.constant 2 : index
      %c0_10 = arith.constant 0 : index
      %c0_11 = arith.constant 0 : index
      %17 = vector.load %arg2[%c2, %c0_10, %c0_11] : memref<9x128x128xbf16, #tpu.memory_space<vmem>>, vector<1x128x128xbf16>
      %18 = vector.shape_cast %17 : vector<1x128x128xbf16> to vector<128x128xbf16>
      %cst_12 = arith.constant dense<0.000000e+00> : vector<34x128xf32>
      %19 = tpu.matmul %6, %18, %cst_12 {dimension_numbers = #tpu.dot_dimension_numbers<[1], [0], [0], [1], [0, 0, 1, 1], [], []>} : vector<34x128xbf16>, vector<128x128xbf16>, vector<34x128xf32> -> vector<34x128xf32>
      %20 = vector.extract_strided_slice %19 {offsets = [2, 0], sizes = [32, 128], strides = [1, 1]} : vector<34x128xf32> to vector<32x128xf32>
      %21 = arith.addf %16, %20 : vector<32x128xf32>
      %22 = vector.extract_strided_slice %3 {offsets = [1, 0, 0], sizes = [1, 34, 128], strides = [1, 1, 1]} : vector<3x34x128xbf16> to vector<1x34x128xbf16>
      %23 = vector.shape_cast %22 : vector<1x34x128xbf16> to vector<34x128xbf16>
      %c3 = arith.constant 3 : index
      %c0_13 = arith.constant 0 : index
      %c0_14 = arith.constant 0 : index
      %24 = vector.load %arg2[%c3, %c0_13, %c0_14] : memref<9x128x128xbf16, #tpu.memory_space<vmem>>, vector<1x128x128xbf16>
      %25 = vector.shape_cast %24 : vector<1x128x128xbf16> to vector<128x128xbf16>
      %cst_15 = arith.constant dense<0.000000e+00> : vector<34x128xf32>
      %26 = tpu.matmul %23, %25, %cst_15 {dimension_numbers = #tpu.dot_dimension_numbers<[1], [0], [0], [1], [0, 0, 1, 1], [], []>} : vector<34x128xbf16>, vector<128x128xbf16>, vector<34x128xf32> -> vector<34x128xf32>
      %27 = vector.extract_strided_slice %26 {offsets = [0, 0], sizes = [32, 128], strides = [1, 1]} : vector<34x128xf32> to vector<32x128xf32>
      %28 = arith.addf %21, %27 : vector<32x128xf32>
      %c4 = arith.constant 4 : index
      %c0_16 = arith.constant 0 : index
      %c0_17 = arith.constant 0 : index
      %29 = vector.load %arg2[%c4, %c0_16, %c0_17] : memref<9x128x128xbf16, #tpu.memory_space<vmem>>, vector<1x128x128xbf16>
      %30 = vector.shape_cast %29 : vector<1x128x128xbf16> to vector<128x128xbf16>
      %cst_18 = arith.constant dense<0.000000e+00> : vector<34x128xf32>
      %31 = tpu.matmul %23, %30, %cst_18 {dimension_numbers = #tpu.dot_dimension_numbers<[1], [0], [0], [1], [0, 0, 1, 1], [], []>} : vector<34x128xbf16>, vector<128x128xbf16>, vector<34x128xf32> -> vector<34x128xf32>
      %32 = vector.extract_strided_slice %31 {offsets = [1, 0], sizes = [32, 128], strides = [1, 1]} : vector<34x128xf32> to vector<32x128xf32>
      %33 = arith.addf %28, %32 : vector<32x128xf32>
      %c5 = arith.constant 5 : index
      %c0_19 = arith.constant 0 : index
      %c0_20 = arith.constant 0 : index
      %34 = vector.load %arg2[%c5, %c0_19, %c0_20] : memref<9x128x128xbf16, #tpu.memory_space<vmem>>, vector<1x128x128xbf16>
      %35 = vector.shape_cast %34 : vector<1x128x128xbf16> to vector<128x128xbf16>
      %cst_21 = arith.constant dense<0.000000e+00> : vector<34x128xf32>
      %36 = tpu.matmul %23, %35, %cst_21 {dimension_numbers = #tpu.dot_dimension_numbers<[1], [0], [0], [1], [0, 0, 1, 1], [], []>} : vector<34x128xbf16>, vector<128x128xbf16>, vector<34x128xf32> -> vector<34x128xf32>
      %37 = vector.extract_strided_slice %36 {offsets = [2, 0], sizes = [32, 128], strides = [1, 1]} : vector<34x128xf32> to vector<32x128xf32>
      %38 = arith.addf %33, %37 : vector<32x128xf32>
      %39 = vector.extract_strided_slice %3 {offsets = [2, 0, 0], sizes = [1, 34, 128], strides = [1, 1, 1]} : vector<3x34x128xbf16> to vector<1x34x128xbf16>
      %40 = vector.shape_cast %39 : vector<1x34x128xbf16> to vector<34x128xbf16>
      %c6 = arith.constant 6 : index
      %c0_22 = arith.constant 0 : index
      %c0_23 = arith.constant 0 : index
      %41 = vector.load %arg2[%c6, %c0_22, %c0_23] : memref<9x128x128xbf16, #tpu.memory_space<vmem>>, vector<1x128x128xbf16>
      %42 = vector.shape_cast %41 : vector<1x128x128xbf16> to vector<128x128xbf16>
      %cst_24 = arith.constant dense<0.000000e+00> : vector<34x128xf32>
      %43 = tpu.matmul %40, %42, %cst_24 {dimension_numbers = #tpu.dot_dimension_numbers<[1], [0], [0], [1], [0, 0, 1, 1], [], []>} : vector<34x128xbf16>, vector<128x128xbf16>, vector<34x128xf32> -> vector<34x128xf32>
      %44 = vector.extract_strided_slice %43 {offsets = [0, 0], sizes = [32, 128], strides = [1, 1]} : vector<34x128xf32> to vector<32x128xf32>
      %45 = arith.addf %38, %44 : vector<32x128xf32>
      %c7 = arith.constant 7 : index
      %c0_25 = arith.constant 0 : index
      %c0_26 = arith.constant 0 : index
      %46 = vector.load %arg2[%c7, %c0_25, %c0_26] : memref<9x128x128xbf16, #tpu.memory_space<vmem>>, vector<1x128x128xbf16>
      %47 = vector.shape_cast %46 : vector<1x128x128xbf16> to vector<128x128xbf16>
      %cst_27 = arith.constant dense<0.000000e+00> : vector<34x128xf32>
      %48 = tpu.matmul %40, %47, %cst_27 {dimension_numbers = #tpu.dot_dimension_numbers<[1], [0], [0], [1], [0, 0, 1, 1], [], []>} : vector<34x128xbf16>, vector<128x128xbf16>, vector<34x128xf32> -> vector<34x128xf32>
      %49 = vector.extract_strided_slice %48 {offsets = [1, 0], sizes = [32, 128], strides = [1, 1]} : vector<34x128xf32> to vector<32x128xf32>
      %50 = arith.addf %45, %49 : vector<32x128xf32>
      %c8 = arith.constant 8 : index
      %c0_28 = arith.constant 0 : index
      %c0_29 = arith.constant 0 : index
      %51 = vector.load %arg2[%c8, %c0_28, %c0_29] : memref<9x128x128xbf16, #tpu.memory_space<vmem>>, vector<1x128x128xbf16>
      %52 = vector.shape_cast %51 : vector<1x128x128xbf16> to vector<128x128xbf16>
      %cst_30 = arith.constant dense<0.000000e+00> : vector<34x128xf32>
      %53 = tpu.matmul %40, %52, %cst_30 {dimension_numbers = #tpu.dot_dimension_numbers<[1], [0], [0], [1], [0, 0, 1, 1], [], []>} : vector<34x128xbf16>, vector<128x128xbf16>, vector<34x128xf32> -> vector<34x128xf32>
      %54 = vector.extract_strided_slice %53 {offsets = [2, 0], sizes = [32, 128], strides = [1, 1]} : vector<34x128xf32> to vector<32x128xf32>
      %55 = arith.addf %50, %54 : vector<32x128xf32>
      %c0_31 = arith.constant 0 : index
      %c0_32 = arith.constant 0 : index
      %56 = vector.load %arg3[%c0_31, %c0_32] : memref<1x128xf32, #tpu.memory_space<vmem>>, vector<1x128xf32>
      %57 = vector.broadcast %56 : vector<1x128xf32> to vector<32x128xf32>
      %58 = arith.addf %55, %57 : vector<32x128xf32>
      %cst_33 = arith.constant 0.000000e+00 : f32
      %59 = vector.broadcast %cst_33 : f32 to vector<32x128xf32>
      %60 = arith.maximumf %58, %59 : vector<32x128xf32>
      %61 = vector.shape_cast %60 : vector<32x128xf32> to vector<1x32x128xf32>
      %62 = arith.truncf %61 : vector<1x32x128xf32> to vector<1x32x128xbf16>
      %c0_34 = arith.constant 0 : index
      %63 = arith.index_cast %arg5 : i32 to index
      %c0_35 = arith.constant 0 : index
      %c0_36 = arith.constant 0 : index
      %64 = vector.load %arg4[%c0_34, %63, %c0_35, %c0_36] : memref<1x32x32x128xbf16, #tpu.memory_space<vmem>>, vector<1x1x32x128xbf16>
      %65 = vector.shape_cast %64 : vector<1x1x32x128xbf16> to vector<1x32x128xbf16>
      %66 = vector.shape_cast %62 : vector<1x32x128xbf16> to vector<1x1x32x128xbf16>
      tpu.vector_store %arg4[%c0_34, %63, %c0_35, %c0_36], %66 {strides = array<i32>} : memref<1x32x32x128xbf16, #tpu.memory_space<vmem>>, vector<1x1x32x128xbf16>,
    }
    %c32_i32_0 = arith.constant 32 : i32
    return
  }
  func.func @transform_0(%arg0: i32) -> (i32, i32, i32, i32) {
    %c0_i32 = arith.constant 0 : i32
    %c0_i32_0 = arith.constant 0 : i32
    %c0_i32_1 = arith.constant 0 : i32
    %c0_i32_2 = arith.constant 0 : i32
    return %arg0, %c0_i32, %c0_i32_0, %c0_i32_1 : i32, i32, i32, i32
  }
  func.func @transform_1(%arg0: i32) -> (i32, i32, i32) {
    %c0_i32 = arith.constant 0 : i32
    %c0_i32_0 = arith.constant 0 : i32
    %c0_i32_1 = arith.constant 0 : i32
    %c0_i32_2 = arith.constant 0 : i32
    return %c0_i32, %c0_i32_0, %c0_i32_1 : i32, i32, i32
  }
  func.func @transform_2(%arg0: i32) -> (i32, i32) {
    %c0_i32 = arith.constant 0 : i32
    %c0_i32_0 = arith.constant 0 : i32
    %c0_i32_1 = arith.constant 0 : i32
    return %c0_i32, %c0_i32_0 : i32, i32
  }
  func.func @transform_3(%arg0: i32) -> (i32, i32, i32, i32) {
    %c0_i32 = arith.constant 0 : i32
    %c0_i32_0 = arith.constant 0 : i32
    %c0_i32_1 = arith.constant 0 : i32
    %c0_i32_2 = arith.constant 0 : i32
    return %arg0, %c0_i32, %c0_i32_0, %c0_i32_1 : i32, i32, i32, i32
  }
}

module attributes {stable_mosaic.version = 11 : i64} {
  func.func @_maxpool_kernel(%arg0: i32, %arg1: memref<2x16x2x128xbf16, #tpu.memory_space<vmem>>, %arg2: memref<1x16x128xbf16, #tpu.memory_space<vmem>>) attributes {dimension_semantics = [#tpu.dimension_semantics<parallel>], iteration_bounds = array<i64: 32>, scalar_prefetch = 0 : i64, scratch_operands = 0 : i64, tpu.core_type = #tpu.core_type<tc>, window_params = [{transform_indices = @transform_0, window_bounds = array<i64: 2, 16, 2, 128>}, {transform_indices = @transform_1, window_bounds = array<i64: 1, 16, 128>}]} {
    %c0 = arith.constant 0 : index
    %c0_0 = arith.constant 0 : index
    %c0_1 = arith.constant 0 : index
    %c0_2 = arith.constant 0 : index
    %0 = vector.load %arg1[%c0, %c0_0, %c0_1, %c0_2] : memref<2x16x2x128xbf16, #tpu.memory_space<vmem>>, vector<2x16x2x128xbf16>
    %1 = vector.extract_strided_slice %0 {offsets = [0, 0, 0, 0], sizes = [1, 16, 2, 128], strides = [1, 1, 1, 1]} : vector<2x16x2x128xbf16> to vector<1x16x2x128xbf16>
    %2 = vector.shape_cast %1 : vector<1x16x2x128xbf16> to vector<16x2x128xbf16>
    %3 = vector.extract_strided_slice %0 {offsets = [1, 0, 0, 0], sizes = [1, 16, 2, 128], strides = [1, 1, 1, 1]} : vector<2x16x2x128xbf16> to vector<1x16x2x128xbf16>
    %4 = vector.shape_cast %3 : vector<1x16x2x128xbf16> to vector<16x2x128xbf16>
    %5 = arith.maximumf %2, %4 : vector<16x2x128xbf16>
    %cst = arith.constant dense<0xFF80> : vector<16x128xbf16>
    %6 = vector.multi_reduction <maximumf>, %5, %cst [1] : vector<16x2x128xbf16> to vector<16x128xbf16>
    %c0_3 = arith.constant 0 : index
    %c0_4 = arith.constant 0 : index
    %c0_5 = arith.constant 0 : index
    %7 = vector.load %arg2[%c0_3, %c0_4, %c0_5] : memref<1x16x128xbf16, #tpu.memory_space<vmem>>, vector<1x16x128xbf16>
    %8 = vector.shape_cast %7 : vector<1x16x128xbf16> to vector<16x128xbf16>
    %9 = vector.shape_cast %6 : vector<16x128xbf16> to vector<1x16x128xbf16>
    tpu.vector_store %arg2[%c0_3, %c0_4, %c0_5], %9 {strides = array<i32>} : memref<1x16x128xbf16, #tpu.memory_space<vmem>>, vector<1x16x128xbf16>,
    return
  }
  func.func @transform_0(%arg0: i32) -> (i32, i32, i32, i32) {
    %c0_i32 = arith.constant 0 : i32
    %c0_i32_0 = arith.constant 0 : i32
    %c0_i32_1 = arith.constant 0 : i32
    %c0_i32_2 = arith.constant 0 : i32
    return %arg0, %c0_i32, %c0_i32_0, %c0_i32_1 : i32, i32, i32, i32
  }
  func.func @transform_1(%arg0: i32) -> (i32, i32, i32) {
    %c0_i32 = arith.constant 0 : i32
    %c0_i32_0 = arith.constant 0 : i32
    %c0_i32_1 = arith.constant 0 : i32
    return %arg0, %c0_i32, %c0_i32_0 : i32, i32, i32
  }
}

module attributes {stable_mosaic.version = 11 : i64} {
  func.func @_conv3x3_kernel(%arg0: i32, %arg1: memref<1x18x18x128xbf16, #tpu.memory_space<vmem>>, %arg2: memref<9x128x128xbf16, #tpu.memory_space<vmem>>, %arg3: memref<1x128xf32, #tpu.memory_space<vmem>>, %arg4: memref<1x16x16x128xbf16, #tpu.memory_space<vmem>>) attributes {dimension_semantics = [#tpu.dimension_semantics<parallel>], iteration_bounds = array<i64: 2>, scalar_prefetch = 0 : i64, scratch_operands = 0 : i64, tpu.core_type = #tpu.core_type<tc>, window_params = [{transform_indices = @transform_0, window_bounds = array<i64: 1, 18, 18, 128>}, {pipeline_mode = #tpu.pipeline_mode<synchronous>, transform_indices = @transform_1, window_bounds = array<i64: 9, 128, 128>}, {pipeline_mode = #tpu.pipeline_mode<synchronous>, transform_indices = @transform_2, window_bounds = array<i64: 1, 128>}, {transform_indices = @transform_3, window_bounds = array<i64: 1, 16, 16, 128>}]} {
    %c0_i32 = arith.constant 0 : i32
    %c16_i32 = arith.constant 16 : i32
    %0 = arith.addi %c0_i32, %c16_i32 : i32
    %c1_i32 = arith.constant 1 : i32
    scf.for %arg5 = %c0_i32 to %0 step %c1_i32  : i32 {
      %c0 = arith.constant 0 : index
      %1 = arith.index_cast %arg5 : i32 to index
      %c0_1 = arith.constant 0 : index
      %c0_2 = arith.constant 0 : index
      %2 = vector.load %arg1[%c0, %1, %c0_1, %c0_2] : memref<1x18x18x128xbf16, #tpu.memory_space<vmem>>, vector<1x3x18x128xbf16>
      %3 = vector.shape_cast %2 : vector<1x3x18x128xbf16> to vector<3x18x128xbf16>
      %cst = arith.constant 0.000000e+00 : f32
      %4 = vector.broadcast %cst : f32 to vector<16x128xf32>
      %5 = vector.extract_strided_slice %3 {offsets = [0, 0, 0], sizes = [1, 18, 128], strides = [1, 1, 1]} : vector<3x18x128xbf16> to vector<1x18x128xbf16>
      %6 = vector.shape_cast %5 : vector<1x18x128xbf16> to vector<18x128xbf16>
      %c0_3 = arith.constant 0 : index
      %c0_4 = arith.constant 0 : index
      %c0_5 = arith.constant 0 : index
      %7 = vector.load %arg2[%c0_3, %c0_4, %c0_5] : memref<9x128x128xbf16, #tpu.memory_space<vmem>>, vector<1x128x128xbf16>
      %8 = vector.shape_cast %7 : vector<1x128x128xbf16> to vector<128x128xbf16>
      %cst_6 = arith.constant dense<0.000000e+00> : vector<18x128xf32>
      %9 = tpu.matmul %6, %8, %cst_6 {dimension_numbers = #tpu.dot_dimension_numbers<[1], [0], [0], [1], [0, 0, 1, 1], [], []>} : vector<18x128xbf16>, vector<128x128xbf16>, vector<18x128xf32> -> vector<18x128xf32>
      %10 = vector.extract_strided_slice %9 {offsets = [0, 0], sizes = [16, 128], strides = [1, 1]} : vector<18x128xf32> to vector<16x128xf32>
      %11 = arith.addf %4, %10 : vector<16x128xf32>
      %c1 = arith.constant 1 : index
      %c0_7 = arith.constant 0 : index
      %c0_8 = arith.constant 0 : index
      %12 = vector.load %arg2[%c1, %c0_7, %c0_8] : memref<9x128x128xbf16, #tpu.memory_space<vmem>>, vector<1x128x128xbf16>
      %13 = vector.shape_cast %12 : vector<1x128x128xbf16> to vector<128x128xbf16>
      %cst_9 = arith.constant dense<0.000000e+00> : vector<18x128xf32>
      %14 = tpu.matmul %6, %13, %cst_9 {dimension_numbers = #tpu.dot_dimension_numbers<[1], [0], [0], [1], [0, 0, 1, 1], [], []>} : vector<18x128xbf16>, vector<128x128xbf16>, vector<18x128xf32> -> vector<18x128xf32>
      %15 = vector.extract_strided_slice %14 {offsets = [1, 0], sizes = [16, 128], strides = [1, 1]} : vector<18x128xf32> to vector<16x128xf32>
      %16 = arith.addf %11, %15 : vector<16x128xf32>
      %c2 = arith.constant 2 : index
      %c0_10 = arith.constant 0 : index
      %c0_11 = arith.constant 0 : index
      %17 = vector.load %arg2[%c2, %c0_10, %c0_11] : memref<9x128x128xbf16, #tpu.memory_space<vmem>>, vector<1x128x128xbf16>
      %18 = vector.shape_cast %17 : vector<1x128x128xbf16> to vector<128x128xbf16>
      %cst_12 = arith.constant dense<0.000000e+00> : vector<18x128xf32>
      %19 = tpu.matmul %6, %18, %cst_12 {dimension_numbers = #tpu.dot_dimension_numbers<[1], [0], [0], [1], [0, 0, 1, 1], [], []>} : vector<18x128xbf16>, vector<128x128xbf16>, vector<18x128xf32> -> vector<18x128xf32>
      %20 = vector.extract_strided_slice %19 {offsets = [2, 0], sizes = [16, 128], strides = [1, 1]} : vector<18x128xf32> to vector<16x128xf32>
      %21 = arith.addf %16, %20 : vector<16x128xf32>
      %22 = vector.extract_strided_slice %3 {offsets = [1, 0, 0], sizes = [1, 18, 128], strides = [1, 1, 1]} : vector<3x18x128xbf16> to vector<1x18x128xbf16>
      %23 = vector.shape_cast %22 : vector<1x18x128xbf16> to vector<18x128xbf16>
      %c3 = arith.constant 3 : index
      %c0_13 = arith.constant 0 : index
      %c0_14 = arith.constant 0 : index
      %24 = vector.load %arg2[%c3, %c0_13, %c0_14] : memref<9x128x128xbf16, #tpu.memory_space<vmem>>, vector<1x128x128xbf16>
      %25 = vector.shape_cast %24 : vector<1x128x128xbf16> to vector<128x128xbf16>
      %cst_15 = arith.constant dense<0.000000e+00> : vector<18x128xf32>
      %26 = tpu.matmul %23, %25, %cst_15 {dimension_numbers = #tpu.dot_dimension_numbers<[1], [0], [0], [1], [0, 0, 1, 1], [], []>} : vector<18x128xbf16>, vector<128x128xbf16>, vector<18x128xf32> -> vector<18x128xf32>
      %27 = vector.extract_strided_slice %26 {offsets = [0, 0], sizes = [16, 128], strides = [1, 1]} : vector<18x128xf32> to vector<16x128xf32>
      %28 = arith.addf %21, %27 : vector<16x128xf32>
      %c4 = arith.constant 4 : index
      %c0_16 = arith.constant 0 : index
      %c0_17 = arith.constant 0 : index
      %29 = vector.load %arg2[%c4, %c0_16, %c0_17] : memref<9x128x128xbf16, #tpu.memory_space<vmem>>, vector<1x128x128xbf16>
      %30 = vector.shape_cast %29 : vector<1x128x128xbf16> to vector<128x128xbf16>
      %cst_18 = arith.constant dense<0.000000e+00> : vector<18x128xf32>
      %31 = tpu.matmul %23, %30, %cst_18 {dimension_numbers = #tpu.dot_dimension_numbers<[1], [0], [0], [1], [0, 0, 1, 1], [], []>} : vector<18x128xbf16>, vector<128x128xbf16>, vector<18x128xf32> -> vector<18x128xf32>
      %32 = vector.extract_strided_slice %31 {offsets = [1, 0], sizes = [16, 128], strides = [1, 1]} : vector<18x128xf32> to vector<16x128xf32>
      %33 = arith.addf %28, %32 : vector<16x128xf32>
      %c5 = arith.constant 5 : index
      %c0_19 = arith.constant 0 : index
      %c0_20 = arith.constant 0 : index
      %34 = vector.load %arg2[%c5, %c0_19, %c0_20] : memref<9x128x128xbf16, #tpu.memory_space<vmem>>, vector<1x128x128xbf16>
      %35 = vector.shape_cast %34 : vector<1x128x128xbf16> to vector<128x128xbf16>
      %cst_21 = arith.constant dense<0.000000e+00> : vector<18x128xf32>
      %36 = tpu.matmul %23, %35, %cst_21 {dimension_numbers = #tpu.dot_dimension_numbers<[1], [0], [0], [1], [0, 0, 1, 1], [], []>} : vector<18x128xbf16>, vector<128x128xbf16>, vector<18x128xf32> -> vector<18x128xf32>
      %37 = vector.extract_strided_slice %36 {offsets = [2, 0], sizes = [16, 128], strides = [1, 1]} : vector<18x128xf32> to vector<16x128xf32>
      %38 = arith.addf %33, %37 : vector<16x128xf32>
      %39 = vector.extract_strided_slice %3 {offsets = [2, 0, 0], sizes = [1, 18, 128], strides = [1, 1, 1]} : vector<3x18x128xbf16> to vector<1x18x128xbf16>
      %40 = vector.shape_cast %39 : vector<1x18x128xbf16> to vector<18x128xbf16>
      %c6 = arith.constant 6 : index
      %c0_22 = arith.constant 0 : index
      %c0_23 = arith.constant 0 : index
      %41 = vector.load %arg2[%c6, %c0_22, %c0_23] : memref<9x128x128xbf16, #tpu.memory_space<vmem>>, vector<1x128x128xbf16>
      %42 = vector.shape_cast %41 : vector<1x128x128xbf16> to vector<128x128xbf16>
      %cst_24 = arith.constant dense<0.000000e+00> : vector<18x128xf32>
      %43 = tpu.matmul %40, %42, %cst_24 {dimension_numbers = #tpu.dot_dimension_numbers<[1], [0], [0], [1], [0, 0, 1, 1], [], []>} : vector<18x128xbf16>, vector<128x128xbf16>, vector<18x128xf32> -> vector<18x128xf32>
      %44 = vector.extract_strided_slice %43 {offsets = [0, 0], sizes = [16, 128], strides = [1, 1]} : vector<18x128xf32> to vector<16x128xf32>
      %45 = arith.addf %38, %44 : vector<16x128xf32>
      %c7 = arith.constant 7 : index
      %c0_25 = arith.constant 0 : index
      %c0_26 = arith.constant 0 : index
      %46 = vector.load %arg2[%c7, %c0_25, %c0_26] : memref<9x128x128xbf16, #tpu.memory_space<vmem>>, vector<1x128x128xbf16>
      %47 = vector.shape_cast %46 : vector<1x128x128xbf16> to vector<128x128xbf16>
      %cst_27 = arith.constant dense<0.000000e+00> : vector<18x128xf32>
      %48 = tpu.matmul %40, %47, %cst_27 {dimension_numbers = #tpu.dot_dimension_numbers<[1], [0], [0], [1], [0, 0, 1, 1], [], []>} : vector<18x128xbf16>, vector<128x128xbf16>, vector<18x128xf32> -> vector<18x128xf32>
      %49 = vector.extract_strided_slice %48 {offsets = [1, 0], sizes = [16, 128], strides = [1, 1]} : vector<18x128xf32> to vector<16x128xf32>
      %50 = arith.addf %45, %49 : vector<16x128xf32>
      %c8 = arith.constant 8 : index
      %c0_28 = arith.constant 0 : index
      %c0_29 = arith.constant 0 : index
      %51 = vector.load %arg2[%c8, %c0_28, %c0_29] : memref<9x128x128xbf16, #tpu.memory_space<vmem>>, vector<1x128x128xbf16>
      %52 = vector.shape_cast %51 : vector<1x128x128xbf16> to vector<128x128xbf16>
      %cst_30 = arith.constant dense<0.000000e+00> : vector<18x128xf32>
      %53 = tpu.matmul %40, %52, %cst_30 {dimension_numbers = #tpu.dot_dimension_numbers<[1], [0], [0], [1], [0, 0, 1, 1], [], []>} : vector<18x128xbf16>, vector<128x128xbf16>, vector<18x128xf32> -> vector<18x128xf32>
      %54 = vector.extract_strided_slice %53 {offsets = [2, 0], sizes = [16, 128], strides = [1, 1]} : vector<18x128xf32> to vector<16x128xf32>
      %55 = arith.addf %50, %54 : vector<16x128xf32>
      %c0_31 = arith.constant 0 : index
      %c0_32 = arith.constant 0 : index
      %56 = vector.load %arg3[%c0_31, %c0_32] : memref<1x128xf32, #tpu.memory_space<vmem>>, vector<1x128xf32>
      %57 = vector.broadcast %56 : vector<1x128xf32> to vector<16x128xf32>
      %58 = arith.addf %55, %57 : vector<16x128xf32>
      %cst_33 = arith.constant 0.000000e+00 : f32
      %59 = vector.broadcast %cst_33 : f32 to vector<16x128xf32>
      %60 = arith.maximumf %58, %59 : vector<16x128xf32>
      %61 = vector.shape_cast %60 : vector<16x128xf32> to vector<1x16x128xf32>
      %62 = arith.truncf %61 : vector<1x16x128xf32> to vector<1x16x128xbf16>
      %c0_34 = arith.constant 0 : index
      %63 = arith.index_cast %arg5 : i32 to index
      %c0_35 = arith.constant 0 : index
      %c0_36 = arith.constant 0 : index
      %64 = vector.load %arg4[%c0_34, %63, %c0_35, %c0_36] : memref<1x16x16x128xbf16, #tpu.memory_space<vmem>>, vector<1x1x16x128xbf16>
      %65 = vector.shape_cast %64 : vector<1x1x16x128xbf16> to vector<1x16x128xbf16>
      %66 = vector.shape_cast %62 : vector<1x16x128xbf16> to vector<1x1x16x128xbf16>
      tpu.vector_store %arg4[%c0_34, %63, %c0_35, %c0_36], %66 {strides = array<i32>} : memref<1x16x16x128xbf16, #tpu.memory_space<vmem>>, vector<1x1x16x128xbf16>,
    }
    %c16_i32_0 = arith.constant 16 : i32
    return
  }
  func.func @transform_0(%arg0: i32) -> (i32, i32, i32, i32) {
    %c0_i32 = arith.constant 0 : i32
    %c0_i32_0 = arith.constant 0 : i32
    %c0_i32_1 = arith.constant 0 : i32
    %c0_i32_2 = arith.constant 0 : i32
    return %arg0, %c0_i32, %c0_i32_0, %c0_i32_1 : i32, i32, i32, i32
  }
  func.func @transform_1(%arg0: i32) -> (i32, i32, i32) {
    %c0_i32 = arith.constant 0 : i32
    %c0_i32_0 = arith.constant 0 : i32
    %c0_i32_1 = arith.constant 0 : i32
    %c0_i32_2 = arith.constant 0 : i32
    return %c0_i32, %c0_i32_0, %c0_i32_1 : i32, i32, i32
  }
  func.func @transform_2(%arg0: i32) -> (i32, i32) {
    %c0_i32 = arith.constant 0 : i32
    %c0_i32_0 = arith.constant 0 : i32
    %c0_i32_1 = arith.constant 0 : i32
    return %c0_i32, %c0_i32_0 : i32, i32
  }
  func.func @transform_3(%arg0: i32) -> (i32, i32, i32, i32) {
    %c0_i32 = arith.constant 0 : i32
    %c0_i32_0 = arith.constant 0 : i32
    %c0_i32_1 = arith.constant 0 : i32
    %c0_i32_2 = arith.constant 0 : i32
    return %arg0, %c0_i32, %c0_i32_0, %c0_i32_1 : i32, i32, i32, i32
  }
}

module attributes {stable_mosaic.version = 11 : i64} {
  func.func @_maxpool_kernel(%arg0: i32, %arg1: memref<2x8x2x128xbf16, #tpu.memory_space<vmem>>, %arg2: memref<1x8x128xbf16, #tpu.memory_space<vmem>>) attributes {dimension_semantics = [#tpu.dimension_semantics<parallel>], iteration_bounds = array<i64: 16>, scalar_prefetch = 0 : i64, scratch_operands = 0 : i64, tpu.core_type = #tpu.core_type<tc>, window_params = [{transform_indices = @transform_0, window_bounds = array<i64: 2, 8, 2, 128>}, {transform_indices = @transform_1, window_bounds = array<i64: 1, 8, 128>}]} {
    %c0 = arith.constant 0 : index
    %c0_0 = arith.constant 0 : index
    %c0_1 = arith.constant 0 : index
    %c0_2 = arith.constant 0 : index
    %0 = vector.load %arg1[%c0, %c0_0, %c0_1, %c0_2] : memref<2x8x2x128xbf16, #tpu.memory_space<vmem>>, vector<2x8x2x128xbf16>
    %1 = vector.extract_strided_slice %0 {offsets = [0, 0, 0, 0], sizes = [1, 8, 2, 128], strides = [1, 1, 1, 1]} : vector<2x8x2x128xbf16> to vector<1x8x2x128xbf16>
    %2 = vector.shape_cast %1 : vector<1x8x2x128xbf16> to vector<8x2x128xbf16>
    %3 = vector.extract_strided_slice %0 {offsets = [1, 0, 0, 0], sizes = [1, 8, 2, 128], strides = [1, 1, 1, 1]} : vector<2x8x2x128xbf16> to vector<1x8x2x128xbf16>
    %4 = vector.shape_cast %3 : vector<1x8x2x128xbf16> to vector<8x2x128xbf16>
    %5 = arith.maximumf %2, %4 : vector<8x2x128xbf16>
    %cst = arith.constant dense<0xFF80> : vector<8x128xbf16>
    %6 = vector.multi_reduction <maximumf>, %5, %cst [1] : vector<8x2x128xbf16> to vector<8x128xbf16>
    %c0_3 = arith.constant 0 : index
    %c0_4 = arith.constant 0 : index
    %c0_5 = arith.constant 0 : index
    %7 = vector.load %arg2[%c0_3, %c0_4, %c0_5] : memref<1x8x128xbf16, #tpu.memory_space<vmem>>, vector<1x8x128xbf16>
    %8 = vector.shape_cast %7 : vector<1x8x128xbf16> to vector<8x128xbf16>
    %9 = vector.shape_cast %6 : vector<8x128xbf16> to vector<1x8x128xbf16>
    tpu.vector_store %arg2[%c0_3, %c0_4, %c0_5], %9 {strides = array<i32>} : memref<1x8x128xbf16, #tpu.memory_space<vmem>>, vector<1x8x128xbf16>,
    return
  }
  func.func @transform_0(%arg0: i32) -> (i32, i32, i32, i32) {
    %c0_i32 = arith.constant 0 : i32
    %c0_i32_0 = arith.constant 0 : i32
    %c0_i32_1 = arith.constant 0 : i32
    %c0_i32_2 = arith.constant 0 : i32
    return %arg0, %c0_i32, %c0_i32_0, %c0_i32_1 : i32, i32, i32, i32
  }
  func.func @transform_1(%arg0: i32) -> (i32, i32, i32) {
    %c0_i32 = arith.constant 0 : i32
    %c0_i32_0 = arith.constant 0 : i32
    %c0_i32_1 = arith.constant 0 : i32
    return %arg0, %c0_i32, %c0_i32_0 : i32, i32, i32
  }
}

module attributes {stable_mosaic.version = 11 : i64} {
  func.func @_conv3x3_kernel(%arg0: i32, %arg1: memref<1x10x10x128xbf16, #tpu.memory_space<vmem>>, %arg2: memref<9x128x128xbf16, #tpu.memory_space<vmem>>, %arg3: memref<1x128xf32, #tpu.memory_space<vmem>>, %arg4: memref<1x8x8x128xbf16, #tpu.memory_space<vmem>>) attributes {dimension_semantics = [#tpu.dimension_semantics<parallel>], iteration_bounds = array<i64: 2>, scalar_prefetch = 0 : i64, scratch_operands = 0 : i64, tpu.core_type = #tpu.core_type<tc>, window_params = [{transform_indices = @transform_0, window_bounds = array<i64: 1, 10, 10, 128>}, {pipeline_mode = #tpu.pipeline_mode<synchronous>, transform_indices = @transform_1, window_bounds = array<i64: 9, 128, 128>}, {pipeline_mode = #tpu.pipeline_mode<synchronous>, transform_indices = @transform_2, window_bounds = array<i64: 1, 128>}, {transform_indices = @transform_3, window_bounds = array<i64: 1, 8, 8, 128>}]} {
    %c0_i32 = arith.constant 0 : i32
    %c8_i32 = arith.constant 8 : i32
    %0 = arith.addi %c0_i32, %c8_i32 : i32
    %c1_i32 = arith.constant 1 : i32
    scf.for %arg5 = %c0_i32 to %0 step %c1_i32  : i32 {
      %c0 = arith.constant 0 : index
      %1 = arith.index_cast %arg5 : i32 to index
      %c0_1 = arith.constant 0 : index
      %c0_2 = arith.constant 0 : index
      %2 = vector.load %arg1[%c0, %1, %c0_1, %c0_2] : memref<1x10x10x128xbf16, #tpu.memory_space<vmem>>, vector<1x3x10x128xbf16>
      %3 = vector.shape_cast %2 : vector<1x3x10x128xbf16> to vector<3x10x128xbf16>
      %cst = arith.constant 0.000000e+00 : f32
      %4 = vector.broadcast %cst : f32 to vector<8x128xf32>
      %5 = vector.extract_strided_slice %3 {offsets = [0, 0, 0], sizes = [1, 10, 128], strides = [1, 1, 1]} : vector<3x10x128xbf16> to vector<1x10x128xbf16>
      %6 = vector.shape_cast %5 : vector<1x10x128xbf16> to vector<10x128xbf16>
      %c0_3 = arith.constant 0 : index
      %c0_4 = arith.constant 0 : index
      %c0_5 = arith.constant 0 : index
      %7 = vector.load %arg2[%c0_3, %c0_4, %c0_5] : memref<9x128x128xbf16, #tpu.memory_space<vmem>>, vector<1x128x128xbf16>
      %8 = vector.shape_cast %7 : vector<1x128x128xbf16> to vector<128x128xbf16>
      %cst_6 = arith.constant dense<0.000000e+00> : vector<10x128xf32>
      %9 = tpu.matmul %6, %8, %cst_6 {dimension_numbers = #tpu.dot_dimension_numbers<[1], [0], [0], [1], [0, 0, 1, 1], [], []>} : vector<10x128xbf16>, vector<128x128xbf16>, vector<10x128xf32> -> vector<10x128xf32>
      %10 = vector.extract_strided_slice %9 {offsets = [0, 0], sizes = [8, 128], strides = [1, 1]} : vector<10x128xf32> to vector<8x128xf32>
      %11 = arith.addf %4, %10 : vector<8x128xf32>
      %c1 = arith.constant 1 : index
      %c0_7 = arith.constant 0 : index
      %c0_8 = arith.constant 0 : index
      %12 = vector.load %arg2[%c1, %c0_7, %c0_8] : memref<9x128x128xbf16, #tpu.memory_space<vmem>>, vector<1x128x128xbf16>
      %13 = vector.shape_cast %12 : vector<1x128x128xbf16> to vector<128x128xbf16>
      %cst_9 = arith.constant dense<0.000000e+00> : vector<10x128xf32>
      %14 = tpu.matmul %6, %13, %cst_9 {dimension_numbers = #tpu.dot_dimension_numbers<[1], [0], [0], [1], [0, 0, 1, 1], [], []>} : vector<10x128xbf16>, vector<128x128xbf16>, vector<10x128xf32> -> vector<10x128xf32>
      %15 = vector.extract_strided_slice %14 {offsets = [1, 0], sizes = [8, 128], strides = [1, 1]} : vector<10x128xf32> to vector<8x128xf32>
      %16 = arith.addf %11, %15 : vector<8x128xf32>
      %c2 = arith.constant 2 : index
      %c0_10 = arith.constant 0 : index
      %c0_11 = arith.constant 0 : index
      %17 = vector.load %arg2[%c2, %c0_10, %c0_11] : memref<9x128x128xbf16, #tpu.memory_space<vmem>>, vector<1x128x128xbf16>
      %18 = vector.shape_cast %17 : vector<1x128x128xbf16> to vector<128x128xbf16>
      %cst_12 = arith.constant dense<0.000000e+00> : vector<10x128xf32>
      %19 = tpu.matmul %6, %18, %cst_12 {dimension_numbers = #tpu.dot_dimension_numbers<[1], [0], [0], [1], [0, 0, 1, 1], [], []>} : vector<10x128xbf16>, vector<128x128xbf16>, vector<10x128xf32> -> vector<10x128xf32>
      %20 = vector.extract_strided_slice %19 {offsets = [2, 0], sizes = [8, 128], strides = [1, 1]} : vector<10x128xf32> to vector<8x128xf32>
      %21 = arith.addf %16, %20 : vector<8x128xf32>
      %22 = vector.extract_strided_slice %3 {offsets = [1, 0, 0], sizes = [1, 10, 128], strides = [1, 1, 1]} : vector<3x10x128xbf16> to vector<1x10x128xbf16>
      %23 = vector.shape_cast %22 : vector<1x10x128xbf16> to vector<10x128xbf16>
      %c3 = arith.constant 3 : index
      %c0_13 = arith.constant 0 : index
      %c0_14 = arith.constant 0 : index
      %24 = vector.load %arg2[%c3, %c0_13, %c0_14] : memref<9x128x128xbf16, #tpu.memory_space<vmem>>, vector<1x128x128xbf16>
      %25 = vector.shape_cast %24 : vector<1x128x128xbf16> to vector<128x128xbf16>
      %cst_15 = arith.constant dense<0.000000e+00> : vector<10x128xf32>
      %26 = tpu.matmul %23, %25, %cst_15 {dimension_numbers = #tpu.dot_dimension_numbers<[1], [0], [0], [1], [0, 0, 1, 1], [], []>} : vector<10x128xbf16>, vector<128x128xbf16>, vector<10x128xf32> -> vector<10x128xf32>
      %27 = vector.extract_strided_slice %26 {offsets = [0, 0], sizes = [8, 128], strides = [1, 1]} : vector<10x128xf32> to vector<8x128xf32>
      %28 = arith.addf %21, %27 : vector<8x128xf32>
      %c4 = arith.constant 4 : index
      %c0_16 = arith.constant 0 : index
      %c0_17 = arith.constant 0 : index
      %29 = vector.load %arg2[%c4, %c0_16, %c0_17] : memref<9x128x128xbf16, #tpu.memory_space<vmem>>, vector<1x128x128xbf16>
      %30 = vector.shape_cast %29 : vector<1x128x128xbf16> to vector<128x128xbf16>
      %cst_18 = arith.constant dense<0.000000e+00> : vector<10x128xf32>
      %31 = tpu.matmul %23, %30, %cst_18 {dimension_numbers = #tpu.dot_dimension_numbers<[1], [0], [0], [1], [0, 0, 1, 1], [], []>} : vector<10x128xbf16>, vector<128x128xbf16>, vector<10x128xf32> -> vector<10x128xf32>
      %32 = vector.extract_strided_slice %31 {offsets = [1, 0], sizes = [8, 128], strides = [1, 1]} : vector<10x128xf32> to vector<8x128xf32>
      %33 = arith.addf %28, %32 : vector<8x128xf32>
      %c5 = arith.constant 5 : index
      %c0_19 = arith.constant 0 : index
      %c0_20 = arith.constant 0 : index
      %34 = vector.load %arg2[%c5, %c0_19, %c0_20] : memref<9x128x128xbf16, #tpu.memory_space<vmem>>, vector<1x128x128xbf16>
      %35 = vector.shape_cast %34 : vector<1x128x128xbf16> to vector<128x128xbf16>
      %cst_21 = arith.constant dense<0.000000e+00> : vector<10x128xf32>
      %36 = tpu.matmul %23, %35, %cst_21 {dimension_numbers = #tpu.dot_dimension_numbers<[1], [0], [0], [1], [0, 0, 1, 1], [], []>} : vector<10x128xbf16>, vector<128x128xbf16>, vector<10x128xf32> -> vector<10x128xf32>
      %37 = vector.extract_strided_slice %36 {offsets = [2, 0], sizes = [8, 128], strides = [1, 1]} : vector<10x128xf32> to vector<8x128xf32>
      %38 = arith.addf %33, %37 : vector<8x128xf32>
      %39 = vector.extract_strided_slice %3 {offsets = [2, 0, 0], sizes = [1, 10, 128], strides = [1, 1, 1]} : vector<3x10x128xbf16> to vector<1x10x128xbf16>
      %40 = vector.shape_cast %39 : vector<1x10x128xbf16> to vector<10x128xbf16>
      %c6 = arith.constant 6 : index
      %c0_22 = arith.constant 0 : index
      %c0_23 = arith.constant 0 : index
      %41 = vector.load %arg2[%c6, %c0_22, %c0_23] : memref<9x128x128xbf16, #tpu.memory_space<vmem>>, vector<1x128x128xbf16>
      %42 = vector.shape_cast %41 : vector<1x128x128xbf16> to vector<128x128xbf16>
      %cst_24 = arith.constant dense<0.000000e+00> : vector<10x128xf32>
      %43 = tpu.matmul %40, %42, %cst_24 {dimension_numbers = #tpu.dot_dimension_numbers<[1], [0], [0], [1], [0, 0, 1, 1], [], []>} : vector<10x128xbf16>, vector<128x128xbf16>, vector<10x128xf32> -> vector<10x128xf32>
      %44 = vector.extract_strided_slice %43 {offsets = [0, 0], sizes = [8, 128], strides = [1, 1]} : vector<10x128xf32> to vector<8x128xf32>
      %45 = arith.addf %38, %44 : vector<8x128xf32>
      %c7 = arith.constant 7 : index
      %c0_25 = arith.constant 0 : index
      %c0_26 = arith.constant 0 : index
      %46 = vector.load %arg2[%c7, %c0_25, %c0_26] : memref<9x128x128xbf16, #tpu.memory_space<vmem>>, vector<1x128x128xbf16>
      %47 = vector.shape_cast %46 : vector<1x128x128xbf16> to vector<128x128xbf16>
      %cst_27 = arith.constant dense<0.000000e+00> : vector<10x128xf32>
      %48 = tpu.matmul %40, %47, %cst_27 {dimension_numbers = #tpu.dot_dimension_numbers<[1], [0], [0], [1], [0, 0, 1, 1], [], []>} : vector<10x128xbf16>, vector<128x128xbf16>, vector<10x128xf32> -> vector<10x128xf32>
      %49 = vector.extract_strided_slice %48 {offsets = [1, 0], sizes = [8, 128], strides = [1, 1]} : vector<10x128xf32> to vector<8x128xf32>
      %50 = arith.addf %45, %49 : vector<8x128xf32>
      %c8 = arith.constant 8 : index
      %c0_28 = arith.constant 0 : index
      %c0_29 = arith.constant 0 : index
      %51 = vector.load %arg2[%c8, %c0_28, %c0_29] : memref<9x128x128xbf16, #tpu.memory_space<vmem>>, vector<1x128x128xbf16>
      %52 = vector.shape_cast %51 : vector<1x128x128xbf16> to vector<128x128xbf16>
      %cst_30 = arith.constant dense<0.000000e+00> : vector<10x128xf32>
      %53 = tpu.matmul %40, %52, %cst_30 {dimension_numbers = #tpu.dot_dimension_numbers<[1], [0], [0], [1], [0, 0, 1, 1], [], []>} : vector<10x128xbf16>, vector<128x128xbf16>, vector<10x128xf32> -> vector<10x128xf32>
      %54 = vector.extract_strided_slice %53 {offsets = [2, 0], sizes = [8, 128], strides = [1, 1]} : vector<10x128xf32> to vector<8x128xf32>
      %55 = arith.addf %50, %54 : vector<8x128xf32>
      %c0_31 = arith.constant 0 : index
      %c0_32 = arith.constant 0 : index
      %56 = vector.load %arg3[%c0_31, %c0_32] : memref<1x128xf32, #tpu.memory_space<vmem>>, vector<1x128xf32>
      %57 = vector.broadcast %56 : vector<1x128xf32> to vector<8x128xf32>
      %58 = arith.addf %55, %57 : vector<8x128xf32>
      %cst_33 = arith.constant 0.000000e+00 : f32
      %59 = vector.broadcast %cst_33 : f32 to vector<8x128xf32>
      %60 = arith.maximumf %58, %59 : vector<8x128xf32>
      %61 = vector.shape_cast %60 : vector<8x128xf32> to vector<1x8x128xf32>
      %62 = arith.truncf %61 : vector<1x8x128xf32> to vector<1x8x128xbf16>
      %c0_34 = arith.constant 0 : index
      %63 = arith.index_cast %arg5 : i32 to index
      %c0_35 = arith.constant 0 : index
      %c0_36 = arith.constant 0 : index
      %64 = vector.load %arg4[%c0_34, %63, %c0_35, %c0_36] : memref<1x8x8x128xbf16, #tpu.memory_space<vmem>>, vector<1x1x8x128xbf16>
      %65 = vector.shape_cast %64 : vector<1x1x8x128xbf16> to vector<1x8x128xbf16>
      %66 = vector.shape_cast %62 : vector<1x8x128xbf16> to vector<1x1x8x128xbf16>
      tpu.vector_store %arg4[%c0_34, %63, %c0_35, %c0_36], %66 {strides = array<i32>} : memref<1x8x8x128xbf16, #tpu.memory_space<vmem>>, vector<1x1x8x128xbf16>,
    }
    %c8_i32_0 = arith.constant 8 : i32
    return
  }
  func.func @transform_0(%arg0: i32) -> (i32, i32, i32, i32) {
    %c0_i32 = arith.constant 0 : i32
    %c0_i32_0 = arith.constant 0 : i32
    %c0_i32_1 = arith.constant 0 : i32
    %c0_i32_2 = arith.constant 0 : i32
    return %arg0, %c0_i32, %c0_i32_0, %c0_i32_1 : i32, i32, i32, i32
  }
  func.func @transform_1(%arg0: i32) -> (i32, i32, i32) {
    %c0_i32 = arith.constant 0 : i32
    %c0_i32_0 = arith.constant 0 : i32
    %c0_i32_1 = arith.constant 0 : i32
    %c0_i32_2 = arith.constant 0 : i32
    return %c0_i32, %c0_i32_0, %c0_i32_1 : i32, i32, i32
  }
  func.func @transform_2(%arg0: i32) -> (i32, i32) {
    %c0_i32 = arith.constant 0 : i32
    %c0_i32_0 = arith.constant 0 : i32
    %c0_i32_1 = arith.constant 0 : i32
    return %c0_i32, %c0_i32_0 : i32, i32
  }
  func.func @transform_3(%arg0: i32) -> (i32, i32, i32, i32) {
    %c0_i32 = arith.constant 0 : i32
    %c0_i32_0 = arith.constant 0 : i32
    %c0_i32_1 = arith.constant 0 : i32
    %c0_i32_2 = arith.constant 0 : i32
    return %arg0, %c0_i32, %c0_i32_0, %c0_i32_1 : i32, i32, i32, i32
  }
}

module attributes {stable_mosaic.version = 11 : i64} {
  func.func @_maxpool_kernel(%arg0: i32, %arg1: memref<2x4x2x128xbf16, #tpu.memory_space<vmem>>, %arg2: memref<1x4x128xbf16, #tpu.memory_space<vmem>>) attributes {dimension_semantics = [#tpu.dimension_semantics<parallel>], iteration_bounds = array<i64: 8>, scalar_prefetch = 0 : i64, scratch_operands = 0 : i64, tpu.core_type = #tpu.core_type<tc>, window_params = [{transform_indices = @transform_0, window_bounds = array<i64: 2, 4, 2, 128>}, {transform_indices = @transform_1, window_bounds = array<i64: 1, 4, 128>}]} {
    %c0 = arith.constant 0 : index
    %c0_0 = arith.constant 0 : index
    %c0_1 = arith.constant 0 : index
    %c0_2 = arith.constant 0 : index
    %0 = vector.load %arg1[%c0, %c0_0, %c0_1, %c0_2] : memref<2x4x2x128xbf16, #tpu.memory_space<vmem>>, vector<2x4x2x128xbf16>
    %1 = vector.extract_strided_slice %0 {offsets = [0, 0, 0, 0], sizes = [1, 4, 2, 128], strides = [1, 1, 1, 1]} : vector<2x4x2x128xbf16> to vector<1x4x2x128xbf16>
    %2 = vector.shape_cast %1 : vector<1x4x2x128xbf16> to vector<4x2x128xbf16>
    %3 = vector.extract_strided_slice %0 {offsets = [1, 0, 0, 0], sizes = [1, 4, 2, 128], strides = [1, 1, 1, 1]} : vector<2x4x2x128xbf16> to vector<1x4x2x128xbf16>
    %4 = vector.shape_cast %3 : vector<1x4x2x128xbf16> to vector<4x2x128xbf16>
    %5 = arith.maximumf %2, %4 : vector<4x2x128xbf16>
    %cst = arith.constant dense<0xFF80> : vector<4x128xbf16>
    %6 = vector.multi_reduction <maximumf>, %5, %cst [1] : vector<4x2x128xbf16> to vector<4x128xbf16>
    %c0_3 = arith.constant 0 : index
    %c0_4 = arith.constant 0 : index
    %c0_5 = arith.constant 0 : index
    %7 = vector.load %arg2[%c0_3, %c0_4, %c0_5] : memref<1x4x128xbf16, #tpu.memory_space<vmem>>, vector<1x4x128xbf16>
    %8 = vector.shape_cast %7 : vector<1x4x128xbf16> to vector<4x128xbf16>
    %9 = vector.shape_cast %6 : vector<4x128xbf16> to vector<1x4x128xbf16>
    tpu.vector_store %arg2[%c0_3, %c0_4, %c0_5], %9 {strides = array<i32>} : memref<1x4x128xbf16, #tpu.memory_space<vmem>>, vector<1x4x128xbf16>,
    return
  }
  func.func @transform_0(%arg0: i32) -> (i32, i32, i32, i32) {
    %c0_i32 = arith.constant 0 : i32
    %c0_i32_0 = arith.constant 0 : i32
    %c0_i32_1 = arith.constant 0 : i32
    %c0_i32_2 = arith.constant 0 : i32
    return %arg0, %c0_i32, %c0_i32_0, %c0_i32_1 : i32, i32, i32, i32
  }
  func.func @transform_1(%arg0: i32) -> (i32, i32, i32) {
    %c0_i32 = arith.constant 0 : i32
    %c0_i32_0 = arith.constant 0 : i32
    %c0_i32_1 = arith.constant 0 : i32
    return %arg0, %c0_i32, %c0_i32_0 : i32, i32, i32
  }
}

module attributes {stable_mosaic.version = 11 : i64} {
  func.func @_conv3x3_kernel(%arg0: i32, %arg1: memref<1x6x6x128xbf16, #tpu.memory_space<vmem>>, %arg2: memref<9x128x128xbf16, #tpu.memory_space<vmem>>, %arg3: memref<1x128xf32, #tpu.memory_space<vmem>>, %arg4: memref<1x4x4x128xbf16, #tpu.memory_space<vmem>>) attributes {dimension_semantics = [#tpu.dimension_semantics<parallel>], iteration_bounds = array<i64: 2>, scalar_prefetch = 0 : i64, scratch_operands = 0 : i64, tpu.core_type = #tpu.core_type<tc>, window_params = [{transform_indices = @transform_0, window_bounds = array<i64: 1, 6, 6, 128>}, {pipeline_mode = #tpu.pipeline_mode<synchronous>, transform_indices = @transform_1, window_bounds = array<i64: 9, 128, 128>}, {pipeline_mode = #tpu.pipeline_mode<synchronous>, transform_indices = @transform_2, window_bounds = array<i64: 1, 128>}, {transform_indices = @transform_3, window_bounds = array<i64: 1, 4, 4, 128>}]} {
    %c0_i32 = arith.constant 0 : i32
    %c4_i32 = arith.constant 4 : i32
    %0 = arith.addi %c0_i32, %c4_i32 : i32
    %c1_i32 = arith.constant 1 : i32
    scf.for %arg5 = %c0_i32 to %0 step %c1_i32  : i32 {
      %c0 = arith.constant 0 : index
      %1 = arith.index_cast %arg5 : i32 to index
      %c0_1 = arith.constant 0 : index
      %c0_2 = arith.constant 0 : index
      %2 = vector.load %arg1[%c0, %1, %c0_1, %c0_2] : memref<1x6x6x128xbf16, #tpu.memory_space<vmem>>, vector<1x3x6x128xbf16>
      %3 = vector.shape_cast %2 : vector<1x3x6x128xbf16> to vector<3x6x128xbf16>
      %cst = arith.constant 0.000000e+00 : f32
      %4 = vector.broadcast %cst : f32 to vector<4x128xf32>
      %5 = vector.extract_strided_slice %3 {offsets = [0, 0, 0], sizes = [1, 6, 128], strides = [1, 1, 1]} : vector<3x6x128xbf16> to vector<1x6x128xbf16>
      %6 = vector.shape_cast %5 : vector<1x6x128xbf16> to vector<6x128xbf16>
      %c0_3 = arith.constant 0 : index
      %c0_4 = arith.constant 0 : index
      %c0_5 = arith.constant 0 : index
      %7 = vector.load %arg2[%c0_3, %c0_4, %c0_5] : memref<9x128x128xbf16, #tpu.memory_space<vmem>>, vector<1x128x128xbf16>
      %8 = vector.shape_cast %7 : vector<1x128x128xbf16> to vector<128x128xbf16>
      %cst_6 = arith.constant dense<0.000000e+00> : vector<6x128xf32>
      %9 = tpu.matmul %6, %8, %cst_6 {dimension_numbers = #tpu.dot_dimension_numbers<[1], [0], [0], [1], [0, 0, 1, 1], [], []>} : vector<6x128xbf16>, vector<128x128xbf16>, vector<6x128xf32> -> vector<6x128xf32>
      %10 = vector.extract_strided_slice %9 {offsets = [0, 0], sizes = [4, 128], strides = [1, 1]} : vector<6x128xf32> to vector<4x128xf32>
      %11 = arith.addf %4, %10 : vector<4x128xf32>
      %c1 = arith.constant 1 : index
      %c0_7 = arith.constant 0 : index
      %c0_8 = arith.constant 0 : index
      %12 = vector.load %arg2[%c1, %c0_7, %c0_8] : memref<9x128x128xbf16, #tpu.memory_space<vmem>>, vector<1x128x128xbf16>
      %13 = vector.shape_cast %12 : vector<1x128x128xbf16> to vector<128x128xbf16>
      %cst_9 = arith.constant dense<0.000000e+00> : vector<6x128xf32>
      %14 = tpu.matmul %6, %13, %cst_9 {dimension_numbers = #tpu.dot_dimension_numbers<[1], [0], [0], [1], [0, 0, 1, 1], [], []>} : vector<6x128xbf16>, vector<128x128xbf16>, vector<6x128xf32> -> vector<6x128xf32>
      %15 = vector.extract_strided_slice %14 {offsets = [1, 0], sizes = [4, 128], strides = [1, 1]} : vector<6x128xf32> to vector<4x128xf32>
      %16 = arith.addf %11, %15 : vector<4x128xf32>
      %c2 = arith.constant 2 : index
      %c0_10 = arith.constant 0 : index
      %c0_11 = arith.constant 0 : index
      %17 = vector.load %arg2[%c2, %c0_10, %c0_11] : memref<9x128x128xbf16, #tpu.memory_space<vmem>>, vector<1x128x128xbf16>
      %18 = vector.shape_cast %17 : vector<1x128x128xbf16> to vector<128x128xbf16>
      %cst_12 = arith.constant dense<0.000000e+00> : vector<6x128xf32>
      %19 = tpu.matmul %6, %18, %cst_12 {dimension_numbers = #tpu.dot_dimension_numbers<[1], [0], [0], [1], [0, 0, 1, 1], [], []>} : vector<6x128xbf16>, vector<128x128xbf16>, vector<6x128xf32> -> vector<6x128xf32>
      %20 = vector.extract_strided_slice %19 {offsets = [2, 0], sizes = [4, 128], strides = [1, 1]} : vector<6x128xf32> to vector<4x128xf32>
      %21 = arith.addf %16, %20 : vector<4x128xf32>
      %22 = vector.extract_strided_slice %3 {offsets = [1, 0, 0], sizes = [1, 6, 128], strides = [1, 1, 1]} : vector<3x6x128xbf16> to vector<1x6x128xbf16>
      %23 = vector.shape_cast %22 : vector<1x6x128xbf16> to vector<6x128xbf16>
      %c3 = arith.constant 3 : index
      %c0_13 = arith.constant 0 : index
      %c0_14 = arith.constant 0 : index
      %24 = vector.load %arg2[%c3, %c0_13, %c0_14] : memref<9x128x128xbf16, #tpu.memory_space<vmem>>, vector<1x128x128xbf16>
      %25 = vector.shape_cast %24 : vector<1x128x128xbf16> to vector<128x128xbf16>
      %cst_15 = arith.constant dense<0.000000e+00> : vector<6x128xf32>
      %26 = tpu.matmul %23, %25, %cst_15 {dimension_numbers = #tpu.dot_dimension_numbers<[1], [0], [0], [1], [0, 0, 1, 1], [], []>} : vector<6x128xbf16>, vector<128x128xbf16>, vector<6x128xf32> -> vector<6x128xf32>
      %27 = vector.extract_strided_slice %26 {offsets = [0, 0], sizes = [4, 128], strides = [1, 1]} : vector<6x128xf32> to vector<4x128xf32>
      %28 = arith.addf %21, %27 : vector<4x128xf32>
      %c4 = arith.constant 4 : index
      %c0_16 = arith.constant 0 : index
      %c0_17 = arith.constant 0 : index
      %29 = vector.load %arg2[%c4, %c0_16, %c0_17] : memref<9x128x128xbf16, #tpu.memory_space<vmem>>, vector<1x128x128xbf16>
      %30 = vector.shape_cast %29 : vector<1x128x128xbf16> to vector<128x128xbf16>
      %cst_18 = arith.constant dense<0.000000e+00> : vector<6x128xf32>
      %31 = tpu.matmul %23, %30, %cst_18 {dimension_numbers = #tpu.dot_dimension_numbers<[1], [0], [0], [1], [0, 0, 1, 1], [], []>} : vector<6x128xbf16>, vector<128x128xbf16>, vector<6x128xf32> -> vector<6x128xf32>
      %32 = vector.extract_strided_slice %31 {offsets = [1, 0], sizes = [4, 128], strides = [1, 1]} : vector<6x128xf32> to vector<4x128xf32>
      %33 = arith.addf %28, %32 : vector<4x128xf32>
      %c5 = arith.constant 5 : index
      %c0_19 = arith.constant 0 : index
      %c0_20 = arith.constant 0 : index
      %34 = vector.load %arg2[%c5, %c0_19, %c0_20] : memref<9x128x128xbf16, #tpu.memory_space<vmem>>, vector<1x128x128xbf16>
      %35 = vector.shape_cast %34 : vector<1x128x128xbf16> to vector<128x128xbf16>
      %cst_21 = arith.constant dense<0.000000e+00> : vector<6x128xf32>
      %36 = tpu.matmul %23, %35, %cst_21 {dimension_numbers = #tpu.dot_dimension_numbers<[1], [0], [0], [1], [0, 0, 1, 1], [], []>} : vector<6x128xbf16>, vector<128x128xbf16>, vector<6x128xf32> -> vector<6x128xf32>
      %37 = vector.extract_strided_slice %36 {offsets = [2, 0], sizes = [4, 128], strides = [1, 1]} : vector<6x128xf32> to vector<4x128xf32>
      %38 = arith.addf %33, %37 : vector<4x128xf32>
      %39 = vector.extract_strided_slice %3 {offsets = [2, 0, 0], sizes = [1, 6, 128], strides = [1, 1, 1]} : vector<3x6x128xbf16> to vector<1x6x128xbf16>
      %40 = vector.shape_cast %39 : vector<1x6x128xbf16> to vector<6x128xbf16>
      %c6 = arith.constant 6 : index
      %c0_22 = arith.constant 0 : index
      %c0_23 = arith.constant 0 : index
      %41 = vector.load %arg2[%c6, %c0_22, %c0_23] : memref<9x128x128xbf16, #tpu.memory_space<vmem>>, vector<1x128x128xbf16>
      %42 = vector.shape_cast %41 : vector<1x128x128xbf16> to vector<128x128xbf16>
      %cst_24 = arith.constant dense<0.000000e+00> : vector<6x128xf32>
      %43 = tpu.matmul %40, %42, %cst_24 {dimension_numbers = #tpu.dot_dimension_numbers<[1], [0], [0], [1], [0, 0, 1, 1], [], []>} : vector<6x128xbf16>, vector<128x128xbf16>, vector<6x128xf32> -> vector<6x128xf32>
      %44 = vector.extract_strided_slice %43 {offsets = [0, 0], sizes = [4, 128], strides = [1, 1]} : vector<6x128xf32> to vector<4x128xf32>
      %45 = arith.addf %38, %44 : vector<4x128xf32>
      %c7 = arith.constant 7 : index
      %c0_25 = arith.constant 0 : index
      %c0_26 = arith.constant 0 : index
      %46 = vector.load %arg2[%c7, %c0_25, %c0_26] : memref<9x128x128xbf16, #tpu.memory_space<vmem>>, vector<1x128x128xbf16>
      %47 = vector.shape_cast %46 : vector<1x128x128xbf16> to vector<128x128xbf16>
      %cst_27 = arith.constant dense<0.000000e+00> : vector<6x128xf32>
      %48 = tpu.matmul %40, %47, %cst_27 {dimension_numbers = #tpu.dot_dimension_numbers<[1], [0], [0], [1], [0, 0, 1, 1], [], []>} : vector<6x128xbf16>, vector<128x128xbf16>, vector<6x128xf32> -> vector<6x128xf32>
      %49 = vector.extract_strided_slice %48 {offsets = [1, 0], sizes = [4, 128], strides = [1, 1]} : vector<6x128xf32> to vector<4x128xf32>
      %50 = arith.addf %45, %49 : vector<4x128xf32>
      %c8 = arith.constant 8 : index
      %c0_28 = arith.constant 0 : index
      %c0_29 = arith.constant 0 : index
      %51 = vector.load %arg2[%c8, %c0_28, %c0_29] : memref<9x128x128xbf16, #tpu.memory_space<vmem>>, vector<1x128x128xbf16>
      %52 = vector.shape_cast %51 : vector<1x128x128xbf16> to vector<128x128xbf16>
      %cst_30 = arith.constant dense<0.000000e+00> : vector<6x128xf32>
      %53 = tpu.matmul %40, %52, %cst_30 {dimension_numbers = #tpu.dot_dimension_numbers<[1], [0], [0], [1], [0, 0, 1, 1], [], []>} : vector<6x128xbf16>, vector<128x128xbf16>, vector<6x128xf32> -> vector<6x128xf32>
      %54 = vector.extract_strided_slice %53 {offsets = [2, 0], sizes = [4, 128], strides = [1, 1]} : vector<6x128xf32> to vector<4x128xf32>
      %55 = arith.addf %50, %54 : vector<4x128xf32>
      %c0_31 = arith.constant 0 : index
      %c0_32 = arith.constant 0 : index
      %56 = vector.load %arg3[%c0_31, %c0_32] : memref<1x128xf32, #tpu.memory_space<vmem>>, vector<1x128xf32>
      %57 = vector.broadcast %56 : vector<1x128xf32> to vector<4x128xf32>
      %58 = arith.addf %55, %57 : vector<4x128xf32>
      %cst_33 = arith.constant 0.000000e+00 : f32
      %59 = vector.broadcast %cst_33 : f32 to vector<4x128xf32>
      %60 = arith.maximumf %58, %59 : vector<4x128xf32>
      %61 = vector.shape_cast %60 : vector<4x128xf32> to vector<1x4x128xf32>
      %62 = arith.truncf %61 : vector<1x4x128xf32> to vector<1x4x128xbf16>
      %c0_34 = arith.constant 0 : index
      %63 = arith.index_cast %arg5 : i32 to index
      %c0_35 = arith.constant 0 : index
      %c0_36 = arith.constant 0 : index
      %64 = vector.load %arg4[%c0_34, %63, %c0_35, %c0_36] : memref<1x4x4x128xbf16, #tpu.memory_space<vmem>>, vector<1x1x4x128xbf16>
      %65 = vector.shape_cast %64 : vector<1x1x4x128xbf16> to vector<1x4x128xbf16>
      %66 = vector.shape_cast %62 : vector<1x4x128xbf16> to vector<1x1x4x128xbf16>
      tpu.vector_store %arg4[%c0_34, %63, %c0_35, %c0_36], %66 {strides = array<i32>} : memref<1x4x4x128xbf16, #tpu.memory_space<vmem>>, vector<1x1x4x128xbf16>,
    }
    %c4_i32_0 = arith.constant 4 : i32
    return
  }
  func.func @transform_0(%arg0: i32) -> (i32, i32, i32, i32) {
    %c0_i32 = arith.constant 0 : i32
    %c0_i32_0 = arith.constant 0 : i32
    %c0_i32_1 = arith.constant 0 : i32
    %c0_i32_2 = arith.constant 0 : i32
    return %arg0, %c0_i32, %c0_i32_0, %c0_i32_1 : i32, i32, i32, i32
  }
  func.func @transform_1(%arg0: i32) -> (i32, i32, i32) {
    %c0_i32 = arith.constant 0 : i32
    %c0_i32_0 = arith.constant 0 : i32
    %c0_i32_1 = arith.constant 0 : i32
    %c0_i32_2 = arith.constant 0 : i32
    return %c0_i32, %c0_i32_0, %c0_i32_1 : i32, i32, i32
  }
  func.func @transform_2(%arg0: i32) -> (i32, i32) {
    %c0_i32 = arith.constant 0 : i32
    %c0_i32_0 = arith.constant 0 : i32
    %c0_i32_1 = arith.constant 0 : i32
    return %c0_i32, %c0_i32_0 : i32, i32
  }
  func.func @transform_3(%arg0: i32) -> (i32, i32, i32, i32) {
    %c0_i32 = arith.constant 0 : i32
    %c0_i32_0 = arith.constant 0 : i32
    %c0_i32_1 = arith.constant 0 : i32
    %c0_i32_2 = arith.constant 0 : i32
    return %arg0, %c0_i32, %c0_i32_0, %c0_i32_1 : i32, i32, i32, i32
  }
}

module attributes {stable_mosaic.version = 11 : i64} {
  func.func @_maxpool_kernel(%arg0: i32, %arg1: memref<2x2x2x128xbf16, #tpu.memory_space<vmem>>, %arg2: memref<1x2x128xbf16, #tpu.memory_space<vmem>>) attributes {dimension_semantics = [#tpu.dimension_semantics<parallel>], iteration_bounds = array<i64: 4>, scalar_prefetch = 0 : i64, scratch_operands = 0 : i64, tpu.core_type = #tpu.core_type<tc>, window_params = [{transform_indices = @transform_0, window_bounds = array<i64: 2, 2, 2, 128>}, {transform_indices = @transform_1, window_bounds = array<i64: 1, 2, 128>}]} {
    %c0 = arith.constant 0 : index
    %c0_0 = arith.constant 0 : index
    %c0_1 = arith.constant 0 : index
    %c0_2 = arith.constant 0 : index
    %0 = vector.load %arg1[%c0, %c0_0, %c0_1, %c0_2] : memref<2x2x2x128xbf16, #tpu.memory_space<vmem>>, vector<2x2x2x128xbf16>
    %1 = vector.extract_strided_slice %0 {offsets = [0, 0, 0, 0], sizes = [1, 2, 2, 128], strides = [1, 1, 1, 1]} : vector<2x2x2x128xbf16> to vector<1x2x2x128xbf16>
    %2 = vector.shape_cast %1 : vector<1x2x2x128xbf16> to vector<2x2x128xbf16>
    %3 = vector.extract_strided_slice %0 {offsets = [1, 0, 0, 0], sizes = [1, 2, 2, 128], strides = [1, 1, 1, 1]} : vector<2x2x2x128xbf16> to vector<1x2x2x128xbf16>
    %4 = vector.shape_cast %3 : vector<1x2x2x128xbf16> to vector<2x2x128xbf16>
    %5 = arith.maximumf %2, %4 : vector<2x2x128xbf16>
    %cst = arith.constant dense<0xFF80> : vector<2x128xbf16>
    %6 = vector.multi_reduction <maximumf>, %5, %cst [1] : vector<2x2x128xbf16> to vector<2x128xbf16>
    %c0_3 = arith.constant 0 : index
    %c0_4 = arith.constant 0 : index
    %c0_5 = arith.constant 0 : index
    %7 = vector.load %arg2[%c0_3, %c0_4, %c0_5] : memref<1x2x128xbf16, #tpu.memory_space<vmem>>, vector<1x2x128xbf16>
    %8 = vector.shape_cast %7 : vector<1x2x128xbf16> to vector<2x128xbf16>
    %9 = vector.shape_cast %6 : vector<2x128xbf16> to vector<1x2x128xbf16>
    tpu.vector_store %arg2[%c0_3, %c0_4, %c0_5], %9 {strides = array<i32>} : memref<1x2x128xbf16, #tpu.memory_space<vmem>>, vector<1x2x128xbf16>,
    return
  }
  func.func @transform_0(%arg0: i32) -> (i32, i32, i32, i32) {
    %c0_i32 = arith.constant 0 : i32
    %c0_i32_0 = arith.constant 0 : i32
    %c0_i32_1 = arith.constant 0 : i32
    %c0_i32_2 = arith.constant 0 : i32
    return %arg0, %c0_i32, %c0_i32_0, %c0_i32_1 : i32, i32, i32, i32
  }
  func.func @transform_1(%arg0: i32) -> (i32, i32, i32) {
    %c0_i32 = arith.constant 0 : i32
    %c0_i32_0 = arith.constant 0 : i32
    %c0_i32_1 = arith.constant 0 : i32
    return %arg0, %c0_i32, %c0_i32_0 : i32, i32, i32
  }
}

module attributes {stable_mosaic.version = 11 : i64} {
  func.func @_conv3x3_kernel(%arg0: i32, %arg1: memref<1x4x4x128xbf16, #tpu.memory_space<vmem>>, %arg2: memref<9x128x128xbf16, #tpu.memory_space<vmem>>, %arg3: memref<1x128xf32, #tpu.memory_space<vmem>>, %arg4: memref<1x2x2x128xbf16, #tpu.memory_space<vmem>>) attributes {dimension_semantics = [#tpu.dimension_semantics<parallel>], iteration_bounds = array<i64: 2>, scalar_prefetch = 0 : i64, scratch_operands = 0 : i64, tpu.core_type = #tpu.core_type<tc>, window_params = [{transform_indices = @transform_0, window_bounds = array<i64: 1, 4, 4, 128>}, {pipeline_mode = #tpu.pipeline_mode<synchronous>, transform_indices = @transform_1, window_bounds = array<i64: 9, 128, 128>}, {pipeline_mode = #tpu.pipeline_mode<synchronous>, transform_indices = @transform_2, window_bounds = array<i64: 1, 128>}, {transform_indices = @transform_3, window_bounds = array<i64: 1, 2, 2, 128>}]} {
    %c0_i32 = arith.constant 0 : i32
    %c2_i32 = arith.constant 2 : i32
    %0 = arith.addi %c0_i32, %c2_i32 : i32
    %c1_i32 = arith.constant 1 : i32
    scf.for %arg5 = %c0_i32 to %0 step %c1_i32  : i32 {
      %c0 = arith.constant 0 : index
      %1 = arith.index_cast %arg5 : i32 to index
      %c0_1 = arith.constant 0 : index
      %c0_2 = arith.constant 0 : index
      %2 = vector.load %arg1[%c0, %1, %c0_1, %c0_2] : memref<1x4x4x128xbf16, #tpu.memory_space<vmem>>, vector<1x3x4x128xbf16>
      %3 = vector.shape_cast %2 : vector<1x3x4x128xbf16> to vector<3x4x128xbf16>
      %cst = arith.constant 0.000000e+00 : f32
      %4 = vector.broadcast %cst : f32 to vector<2x128xf32>
      %5 = vector.extract_strided_slice %3 {offsets = [0, 0, 0], sizes = [1, 4, 128], strides = [1, 1, 1]} : vector<3x4x128xbf16> to vector<1x4x128xbf16>
      %6 = vector.shape_cast %5 : vector<1x4x128xbf16> to vector<4x128xbf16>
      %c0_3 = arith.constant 0 : index
      %c0_4 = arith.constant 0 : index
      %c0_5 = arith.constant 0 : index
      %7 = vector.load %arg2[%c0_3, %c0_4, %c0_5] : memref<9x128x128xbf16, #tpu.memory_space<vmem>>, vector<1x128x128xbf16>
      %8 = vector.shape_cast %7 : vector<1x128x128xbf16> to vector<128x128xbf16>
      %cst_6 = arith.constant dense<0.000000e+00> : vector<4x128xf32>
      %9 = tpu.matmul %6, %8, %cst_6 {dimension_numbers = #tpu.dot_dimension_numbers<[1], [0], [0], [1], [0, 0, 1, 1], [], []>} : vector<4x128xbf16>, vector<128x128xbf16>, vector<4x128xf32> -> vector<4x128xf32>
      %10 = vector.extract_strided_slice %9 {offsets = [0, 0], sizes = [2, 128], strides = [1, 1]} : vector<4x128xf32> to vector<2x128xf32>
      %11 = arith.addf %4, %10 : vector<2x128xf32>
      %c1 = arith.constant 1 : index
      %c0_7 = arith.constant 0 : index
      %c0_8 = arith.constant 0 : index
      %12 = vector.load %arg2[%c1, %c0_7, %c0_8] : memref<9x128x128xbf16, #tpu.memory_space<vmem>>, vector<1x128x128xbf16>
      %13 = vector.shape_cast %12 : vector<1x128x128xbf16> to vector<128x128xbf16>
      %cst_9 = arith.constant dense<0.000000e+00> : vector<4x128xf32>
      %14 = tpu.matmul %6, %13, %cst_9 {dimension_numbers = #tpu.dot_dimension_numbers<[1], [0], [0], [1], [0, 0, 1, 1], [], []>} : vector<4x128xbf16>, vector<128x128xbf16>, vector<4x128xf32> -> vector<4x128xf32>
      %15 = vector.extract_strided_slice %14 {offsets = [1, 0], sizes = [2, 128], strides = [1, 1]} : vector<4x128xf32> to vector<2x128xf32>
      %16 = arith.addf %11, %15 : vector<2x128xf32>
      %c2 = arith.constant 2 : index
      %c0_10 = arith.constant 0 : index
      %c0_11 = arith.constant 0 : index
      %17 = vector.load %arg2[%c2, %c0_10, %c0_11] : memref<9x128x128xbf16, #tpu.memory_space<vmem>>, vector<1x128x128xbf16>
      %18 = vector.shape_cast %17 : vector<1x128x128xbf16> to vector<128x128xbf16>
      %cst_12 = arith.constant dense<0.000000e+00> : vector<4x128xf32>
      %19 = tpu.matmul %6, %18, %cst_12 {dimension_numbers = #tpu.dot_dimension_numbers<[1], [0], [0], [1], [0, 0, 1, 1], [], []>} : vector<4x128xbf16>, vector<128x128xbf16>, vector<4x128xf32> -> vector<4x128xf32>
      %20 = vector.extract_strided_slice %19 {offsets = [2, 0], sizes = [2, 128], strides = [1, 1]} : vector<4x128xf32> to vector<2x128xf32>
      %21 = arith.addf %16, %20 : vector<2x128xf32>
      %22 = vector.extract_strided_slice %3 {offsets = [1, 0, 0], sizes = [1, 4, 128], strides = [1, 1, 1]} : vector<3x4x128xbf16> to vector<1x4x128xbf16>
      %23 = vector.shape_cast %22 : vector<1x4x128xbf16> to vector<4x128xbf16>
      %c3 = arith.constant 3 : index
      %c0_13 = arith.constant 0 : index
      %c0_14 = arith.constant 0 : index
      %24 = vector.load %arg2[%c3, %c0_13, %c0_14] : memref<9x128x128xbf16, #tpu.memory_space<vmem>>, vector<1x128x128xbf16>
      %25 = vector.shape_cast %24 : vector<1x128x128xbf16> to vector<128x128xbf16>
      %cst_15 = arith.constant dense<0.000000e+00> : vector<4x128xf32>
      %26 = tpu.matmul %23, %25, %cst_15 {dimension_numbers = #tpu.dot_dimension_numbers<[1], [0], [0], [1], [0, 0, 1, 1], [], []>} : vector<4x128xbf16>, vector<128x128xbf16>, vector<4x128xf32> -> vector<4x128xf32>
      %27 = vector.extract_strided_slice %26 {offsets = [0, 0], sizes = [2, 128], strides = [1, 1]} : vector<4x128xf32> to vector<2x128xf32>
      %28 = arith.addf %21, %27 : vector<2x128xf32>
      %c4 = arith.constant 4 : index
      %c0_16 = arith.constant 0 : index
      %c0_17 = arith.constant 0 : index
      %29 = vector.load %arg2[%c4, %c0_16, %c0_17] : memref<9x128x128xbf16, #tpu.memory_space<vmem>>, vector<1x128x128xbf16>
      %30 = vector.shape_cast %29 : vector<1x128x128xbf16> to vector<128x128xbf16>
      %cst_18 = arith.constant dense<0.000000e+00> : vector<4x128xf32>
      %31 = tpu.matmul %23, %30, %cst_18 {dimension_numbers = #tpu.dot_dimension_numbers<[1], [0], [0], [1], [0, 0, 1, 1], [], []>} : vector<4x128xbf16>, vector<128x128xbf16>, vector<4x128xf32> -> vector<4x128xf32>
      %32 = vector.extract_strided_slice %31 {offsets = [1, 0], sizes = [2, 128], strides = [1, 1]} : vector<4x128xf32> to vector<2x128xf32>
      %33 = arith.addf %28, %32 : vector<2x128xf32>
      %c5 = arith.constant 5 : index
      %c0_19 = arith.constant 0 : index
      %c0_20 = arith.constant 0 : index
      %34 = vector.load %arg2[%c5, %c0_19, %c0_20] : memref<9x128x128xbf16, #tpu.memory_space<vmem>>, vector<1x128x128xbf16>
      %35 = vector.shape_cast %34 : vector<1x128x128xbf16> to vector<128x128xbf16>
      %cst_21 = arith.constant dense<0.000000e+00> : vector<4x128xf32>
      %36 = tpu.matmul %23, %35, %cst_21 {dimension_numbers = #tpu.dot_dimension_numbers<[1], [0], [0], [1], [0, 0, 1, 1], [], []>} : vector<4x128xbf16>, vector<128x128xbf16>, vector<4x128xf32> -> vector<4x128xf32>
      %37 = vector.extract_strided_slice %36 {offsets = [2, 0], sizes = [2, 128], strides = [1, 1]} : vector<4x128xf32> to vector<2x128xf32>
      %38 = arith.addf %33, %37 : vector<2x128xf32>
      %39 = vector.extract_strided_slice %3 {offsets = [2, 0, 0], sizes = [1, 4, 128], strides = [1, 1, 1]} : vector<3x4x128xbf16> to vector<1x4x128xbf16>
      %40 = vector.shape_cast %39 : vector<1x4x128xbf16> to vector<4x128xbf16>
      %c6 = arith.constant 6 : index
      %c0_22 = arith.constant 0 : index
      %c0_23 = arith.constant 0 : index
      %41 = vector.load %arg2[%c6, %c0_22, %c0_23] : memref<9x128x128xbf16, #tpu.memory_space<vmem>>, vector<1x128x128xbf16>
      %42 = vector.shape_cast %41 : vector<1x128x128xbf16> to vector<128x128xbf16>
      %cst_24 = arith.constant dense<0.000000e+00> : vector<4x128xf32>
      %43 = tpu.matmul %40, %42, %cst_24 {dimension_numbers = #tpu.dot_dimension_numbers<[1], [0], [0], [1], [0, 0, 1, 1], [], []>} : vector<4x128xbf16>, vector<128x128xbf16>, vector<4x128xf32> -> vector<4x128xf32>
      %44 = vector.extract_strided_slice %43 {offsets = [0, 0], sizes = [2, 128], strides = [1, 1]} : vector<4x128xf32> to vector<2x128xf32>
      %45 = arith.addf %38, %44 : vector<2x128xf32>
      %c7 = arith.constant 7 : index
      %c0_25 = arith.constant 0 : index
      %c0_26 = arith.constant 0 : index
      %46 = vector.load %arg2[%c7, %c0_25, %c0_26] : memref<9x128x128xbf16, #tpu.memory_space<vmem>>, vector<1x128x128xbf16>
      %47 = vector.shape_cast %46 : vector<1x128x128xbf16> to vector<128x128xbf16>
      %cst_27 = arith.constant dense<0.000000e+00> : vector<4x128xf32>
      %48 = tpu.matmul %40, %47, %cst_27 {dimension_numbers = #tpu.dot_dimension_numbers<[1], [0], [0], [1], [0, 0, 1, 1], [], []>} : vector<4x128xbf16>, vector<128x128xbf16>, vector<4x128xf32> -> vector<4x128xf32>
      %49 = vector.extract_strided_slice %48 {offsets = [1, 0], sizes = [2, 128], strides = [1, 1]} : vector<4x128xf32> to vector<2x128xf32>
      %50 = arith.addf %45, %49 : vector<2x128xf32>
      %c8 = arith.constant 8 : index
      %c0_28 = arith.constant 0 : index
      %c0_29 = arith.constant 0 : index
      %51 = vector.load %arg2[%c8, %c0_28, %c0_29] : memref<9x128x128xbf16, #tpu.memory_space<vmem>>, vector<1x128x128xbf16>
      %52 = vector.shape_cast %51 : vector<1x128x128xbf16> to vector<128x128xbf16>
      %cst_30 = arith.constant dense<0.000000e+00> : vector<4x128xf32>
      %53 = tpu.matmul %40, %52, %cst_30 {dimension_numbers = #tpu.dot_dimension_numbers<[1], [0], [0], [1], [0, 0, 1, 1], [], []>} : vector<4x128xbf16>, vector<128x128xbf16>, vector<4x128xf32> -> vector<4x128xf32>
      %54 = vector.extract_strided_slice %53 {offsets = [2, 0], sizes = [2, 128], strides = [1, 1]} : vector<4x128xf32> to vector<2x128xf32>
      %55 = arith.addf %50, %54 : vector<2x128xf32>
      %c0_31 = arith.constant 0 : index
      %c0_32 = arith.constant 0 : index
      %56 = vector.load %arg3[%c0_31, %c0_32] : memref<1x128xf32, #tpu.memory_space<vmem>>, vector<1x128xf32>
      %57 = vector.broadcast %56 : vector<1x128xf32> to vector<2x128xf32>
      %58 = arith.addf %55, %57 : vector<2x128xf32>
      %cst_33 = arith.constant 0.000000e+00 : f32
      %59 = vector.broadcast %cst_33 : f32 to vector<2x128xf32>
      %60 = arith.maximumf %58, %59 : vector<2x128xf32>
      %61 = vector.shape_cast %60 : vector<2x128xf32> to vector<1x2x128xf32>
      %62 = arith.truncf %61 : vector<1x2x128xf32> to vector<1x2x128xbf16>
      %c0_34 = arith.constant 0 : index
      %63 = arith.index_cast %arg5 : i32 to index
      %c0_35 = arith.constant 0 : index
      %c0_36 = arith.constant 0 : index
      %64 = vector.load %arg4[%c0_34, %63, %c0_35, %c0_36] : memref<1x2x2x128xbf16, #tpu.memory_space<vmem>>, vector<1x1x2x128xbf16>
      %65 = vector.shape_cast %64 : vector<1x1x2x128xbf16> to vector<1x2x128xbf16>
      %66 = vector.shape_cast %62 : vector<1x2x128xbf16> to vector<1x1x2x128xbf16>
      tpu.vector_store %arg4[%c0_34, %63, %c0_35, %c0_36], %66 {strides = array<i32>} : memref<1x2x2x128xbf16, #tpu.memory_space<vmem>>, vector<1x1x2x128xbf16>,
    }
    %c2_i32_0 = arith.constant 2 : i32
    return
  }
  func.func @transform_0(%arg0: i32) -> (i32, i32, i32, i32) {
    %c0_i32 = arith.constant 0 : i32
    %c0_i32_0 = arith.constant 0 : i32
    %c0_i32_1 = arith.constant 0 : i32
    %c0_i32_2 = arith.constant 0 : i32
    return %arg0, %c0_i32, %c0_i32_0, %c0_i32_1 : i32, i32, i32, i32
  }
  func.func @transform_1(%arg0: i32) -> (i32, i32, i32) {
    %c0_i32 = arith.constant 0 : i32
    %c0_i32_0 = arith.constant 0 : i32
    %c0_i32_1 = arith.constant 0 : i32
    %c0_i32_2 = arith.constant 0 : i32
    return %c0_i32, %c0_i32_0, %c0_i32_1 : i32, i32, i32
  }
  func.func @transform_2(%arg0: i32) -> (i32, i32) {
    %c0_i32 = arith.constant 0 : i32
    %c0_i32_0 = arith.constant 0 : i32
    %c0_i32_1 = arith.constant 0 : i32
    return %c0_i32, %c0_i32_0 : i32, i32
  }
  func.func @transform_3(%arg0: i32) -> (i32, i32, i32, i32) {
    %c0_i32 = arith.constant 0 : i32
    %c0_i32_0 = arith.constant 0 : i32
    %c0_i32_1 = arith.constant 0 : i32
    %c0_i32_2 = arith.constant 0 : i32
    return %arg0, %c0_i32, %c0_i32_0, %c0_i32_1 : i32, i32, i32, i32
  }
}

module attributes {stable_mosaic.version = 11 : i64} {
  func.func @_maxpool_kernel(%arg0: i32, %arg1: memref<2x1x2x128xbf16, #tpu.memory_space<vmem>>, %arg2: memref<1x1x128xbf16, #tpu.memory_space<vmem>>) attributes {dimension_semantics = [#tpu.dimension_semantics<parallel>], iteration_bounds = array<i64: 2>, scalar_prefetch = 0 : i64, scratch_operands = 0 : i64, tpu.core_type = #tpu.core_type<tc>, window_params = [{transform_indices = @transform_0, window_bounds = array<i64: 2, 1, 2, 128>}, {transform_indices = @transform_1, window_bounds = array<i64: 1, 1, 128>}]} {
    %c0 = arith.constant 0 : index
    %c0_0 = arith.constant 0 : index
    %c0_1 = arith.constant 0 : index
    %c0_2 = arith.constant 0 : index
    %0 = vector.load %arg1[%c0, %c0_0, %c0_1, %c0_2] : memref<2x1x2x128xbf16, #tpu.memory_space<vmem>>, vector<2x1x2x128xbf16>
    %1 = vector.extract_strided_slice %0 {offsets = [0, 0, 0, 0], sizes = [1, 1, 2, 128], strides = [1, 1, 1, 1]} : vector<2x1x2x128xbf16> to vector<1x1x2x128xbf16>
    %2 = vector.shape_cast %1 : vector<1x1x2x128xbf16> to vector<1x2x128xbf16>
    %3 = vector.extract_strided_slice %0 {offsets = [1, 0, 0, 0], sizes = [1, 1, 2, 128], strides = [1, 1, 1, 1]} : vector<2x1x2x128xbf16> to vector<1x1x2x128xbf16>
    %4 = vector.shape_cast %3 : vector<1x1x2x128xbf16> to vector<1x2x128xbf16>
    %5 = arith.maximumf %2, %4 : vector<1x2x128xbf16>
    %cst = arith.constant dense<0xFF80> : vector<1x128xbf16>
    %6 = vector.multi_reduction <maximumf>, %5, %cst [1] : vector<1x2x128xbf16> to vector<1x128xbf16>
    %c0_3 = arith.constant 0 : index
    %c0_4 = arith.constant 0 : index
    %c0_5 = arith.constant 0 : index
    %7 = vector.load %arg2[%c0_3, %c0_4, %c0_5] : memref<1x1x128xbf16, #tpu.memory_space<vmem>>, vector<1x1x128xbf16>
    %8 = vector.shape_cast %7 : vector<1x1x128xbf16> to vector<1x128xbf16>
    %9 = vector.shape_cast %6 : vector<1x128xbf16> to vector<1x1x128xbf16>
    tpu.vector_store %arg2[%c0_3, %c0_4, %c0_5], %9 {strides = array<i32>} : memref<1x1x128xbf16, #tpu.memory_space<vmem>>, vector<1x1x128xbf16>,
    return
  }
  func.func @transform_0(%arg0: i32) -> (i32, i32, i32, i32) {
    %c0_i32 = arith.constant 0 : i32
    %c0_i32_0 = arith.constant 0 : i32
    %c0_i32_1 = arith.constant 0 : i32
    %c0_i32_2 = arith.constant 0 : i32
    return %arg0, %c0_i32, %c0_i32_0, %c0_i32_1 : i32, i32, i32, i32
  }
  func.func @transform_1(%arg0: i32) -> (i32, i32, i32) {
    %c0_i32 = arith.constant 0 : i32
    %c0_i32_0 = arith.constant 0 : i32
    %c0_i32_1 = arith.constant 0 : i32
    return %arg0, %c0_i32, %c0_i32_0 : i32, i32, i32
  }
}

module attributes {stable_mosaic.version = 11 : i64} {
  func.func @_linear_kernel(%arg0: i32, %arg1: memref<8x128xbf16, #tpu.memory_space<vmem>>, %arg2: memref<128x128xbf16, #tpu.memory_space<vmem>>, %arg3: memref<1x128xf32, #tpu.memory_space<vmem>>, %arg4: memref<8x128xf32, #tpu.memory_space<vmem>>) attributes {dimension_semantics = [#tpu.dimension_semantics<parallel>], iteration_bounds = array<i64: 1>, scalar_prefetch = 0 : i64, scratch_operands = 0 : i64, tpu.core_type = #tpu.core_type<tc>, window_params = [{transform_indices = @transform_0, window_bounds = array<i64: 8, 128>}, {pipeline_mode = #tpu.pipeline_mode<synchronous>, transform_indices = @transform_1, window_bounds = array<i64: 128, 128>}, {pipeline_mode = #tpu.pipeline_mode<synchronous>, transform_indices = @transform_2, window_bounds = array<i64: 1, 128>}, {transform_indices = @transform_3, window_bounds = array<i64: 8, 128>}]} {
    %c0 = arith.constant 0 : index
    %c0_0 = arith.constant 0 : index
    %0 = vector.load %arg1[%c0, %c0_0] : memref<8x128xbf16, #tpu.memory_space<vmem>>, vector<8x128xbf16>
    %c0_1 = arith.constant 0 : index
    %c0_2 = arith.constant 0 : index
    %1 = vector.load %arg2[%c0_1, %c0_2] : memref<128x128xbf16, #tpu.memory_space<vmem>>, vector<128x128xbf16>
    %cst = arith.constant dense<0.000000e+00> : vector<8x128xf32>
    %2 = tpu.matmul %0, %1, %cst {dimension_numbers = #tpu.dot_dimension_numbers<[1], [0], [0], [1], [0, 0, 1, 1], [], []>} : vector<8x128xbf16>, vector<128x128xbf16>, vector<8x128xf32> -> vector<8x128xf32>
    %c0_3 = arith.constant 0 : index
    %c0_4 = arith.constant 0 : index
    %3 = vector.load %arg3[%c0_3, %c0_4] : memref<1x128xf32, #tpu.memory_space<vmem>>, vector<1x128xf32>
    %4 = vector.broadcast %3 : vector<1x128xf32> to vector<8x128xf32>
    %5 = arith.addf %2, %4 : vector<8x128xf32>
    %cst_5 = arith.constant 0.000000e+00 : f32
    %6 = vector.broadcast %cst_5 : f32 to vector<8x128xf32>
    %7 = arith.maximumf %5, %6 : vector<8x128xf32>
    %c0_6 = arith.constant 0 : index
    %c0_7 = arith.constant 0 : index
    %8 = vector.load %arg4[%c0_6, %c0_7] : memref<8x128xf32, #tpu.memory_space<vmem>>, vector<8x128xf32>
    tpu.vector_store %arg4[%c0_6, %c0_7], %7 {strides = array<i32>} : memref<8x128xf32, #tpu.memory_space<vmem>>, vector<8x128xf32>,
    return
  }
  func.func @transform_0(%arg0: i32) -> (i32, i32) {
    %c0_i32 = arith.constant 0 : i32
    %c0_i32_0 = arith.constant 0 : i32
    return %arg0, %c0_i32 : i32, i32
  }
  func.func @transform_1(%arg0: i32) -> (i32, i32) {
    %c0_i32 = arith.constant 0 : i32
    %c0_i32_0 = arith.constant 0 : i32
    %c0_i32_1 = arith.constant 0 : i32
    return %c0_i32, %c0_i32_0 : i32, i32
  }
  func.func @transform_2(%arg0: i32) -> (i32, i32) {
    %c0_i32 = arith.constant 0 : i32
    %c0_i32_0 = arith.constant 0 : i32
    %c0_i32_1 = arith.constant 0 : i32
    return %c0_i32, %c0_i32_0 : i32, i32
  }
  func.func @transform_3(%arg0: i32) -> (i32, i32) {
    %c0_i32 = arith.constant 0 : i32
    %c0_i32_0 = arith.constant 0 : i32
    return %arg0, %c0_i32 : i32, i32
  }
}

module attributes {stable_mosaic.version = 11 : i64} {
  func.func @_linear_kernel(%arg0: i32, %arg1: memref<8x128xbf16, #tpu.memory_space<vmem>>, %arg2: memref<128x128xbf16, #tpu.memory_space<vmem>>, %arg3: memref<1x128xf32, #tpu.memory_space<vmem>>, %arg4: memref<8x128xf32, #tpu.memory_space<vmem>>) attributes {dimension_semantics = [#tpu.dimension_semantics<parallel>], iteration_bounds = array<i64: 1>, scalar_prefetch = 0 : i64, scratch_operands = 0 : i64, tpu.core_type = #tpu.core_type<tc>, window_params = [{transform_indices = @transform_0, window_bounds = array<i64: 8, 128>}, {pipeline_mode = #tpu.pipeline_mode<synchronous>, transform_indices = @transform_1, window_bounds = array<i64: 128, 128>}, {pipeline_mode = #tpu.pipeline_mode<synchronous>, transform_indices = @transform_2, window_bounds = array<i64: 1, 128>}, {transform_indices = @transform_3, window_bounds = array<i64: 8, 128>}]} {
    %c0 = arith.constant 0 : index
    %c0_0 = arith.constant 0 : index
    %0 = vector.load %arg1[%c0, %c0_0] : memref<8x128xbf16, #tpu.memory_space<vmem>>, vector<8x128xbf16>
    %c0_1 = arith.constant 0 : index
    %c0_2 = arith.constant 0 : index
    %1 = vector.load %arg2[%c0_1, %c0_2] : memref<128x128xbf16, #tpu.memory_space<vmem>>, vector<128x128xbf16>
    %cst = arith.constant dense<0.000000e+00> : vector<8x128xf32>
    %2 = tpu.matmul %0, %1, %cst {dimension_numbers = #tpu.dot_dimension_numbers<[1], [0], [0], [1], [0, 0, 1, 1], [], []>} : vector<8x128xbf16>, vector<128x128xbf16>, vector<8x128xf32> -> vector<8x128xf32>
    %c0_3 = arith.constant 0 : index
    %c0_4 = arith.constant 0 : index
    %3 = vector.load %arg3[%c0_3, %c0_4] : memref<1x128xf32, #tpu.memory_space<vmem>>, vector<1x128xf32>
    %4 = vector.broadcast %3 : vector<1x128xf32> to vector<8x128xf32>
    %5 = arith.addf %2, %4 : vector<8x128xf32>
    %c0_5 = arith.constant 0 : index
    %c0_6 = arith.constant 0 : index
    %6 = vector.load %arg4[%c0_5, %c0_6] : memref<8x128xf32, #tpu.memory_space<vmem>>, vector<8x128xf32>
    tpu.vector_store %arg4[%c0_5, %c0_6], %5 {strides = array<i32>} : memref<8x128xf32, #tpu.memory_space<vmem>>, vector<8x128xf32>,
    return
  }
  func.func @transform_0(%arg0: i32) -> (i32, i32) {
    %c0_i32 = arith.constant 0 : i32
    %c0_i32_0 = arith.constant 0 : i32
    return %arg0, %c0_i32 : i32, i32
  }
  func.func @transform_1(%arg0: i32) -> (i32, i32) {
    %c0_i32 = arith.constant 0 : i32
    %c0_i32_0 = arith.constant 0 : i32
    %c0_i32_1 = arith.constant 0 : i32
    return %c0_i32, %c0_i32_0 : i32, i32
  }
  func.func @transform_2(%arg0: i32) -> (i32, i32) {
    %c0_i32 = arith.constant 0 : i32
    %c0_i32_0 = arith.constant 0 : i32
    %c0_i32_1 = arith.constant 0 : i32
    return %c0_i32, %c0_i32_0 : i32, i32
  }
  func.func @transform_3(%arg0: i32) -> (i32, i32) {
    %c0_i32 = arith.constant 0 : i32
    %c0_i32_0 = arith.constant 0 : i32
    return %arg0, %c0_i32 : i32, i32
  }
}

</mosaic_0001>

<llo_original>
// kernel: features_encoding.20
$region0: #{features_encoding.20}
  #allocation0 [shape = 'u32[]', space=smem, size = 0x4, offset = 0x4, fixed_abs, tag = 'smem constant byte address 0x4 - core index']
  #allocation1 [shape = 'u32[72,128]{1,0:T(1,128)}', space=vmem, size = 0x9000, scoped, tag = 'internal scratch']
  %s0 = inlined_call_operand.vmem [shape: bf16[2,34,34,128], index: 0, kind: input, shape index: {}]
  %s1 = inlined_call_operand.vmem [shape: bf16[9,128,128], index: 1, kind: input, shape index: {}]
  %s2 = inlined_call_operand.vmem [shape: f32[1,128], index: 2, kind: input, shape index: {}]
  %s3 = inlined_call_operand.vmem [shape: bf16[2,32,32,128], index: 3, kind: output, shape index: {}]
  %s4 = sld [smem:[#allocation0]]
  $region52: #{features_encoding.20} parent=0
    _
  %s6 = ssub.s32 1, %s4
  %s7 = scalar_select 0, %s6, %s4
  loop: start=0, step=1, limit=4
  $region2: #{features_encoding.20} parent=0 // loop_pre_header
    _
  $region3: #{features_encoding.20} parent=0 // loop_header
    %s9 = sphi 0, %s13
    %p10 = scmp.ge.s32.totalorder %s9, 4
    %s19 = sphi 0, %s21
    %s22 = sphi 0, %s19
    %s23 = sphi 0, %s22
    %s39 = sphi 0, %s23
    %s43 = sphi 0, %s43
    %s45 = sphi 0, %s43
    %s46 = sphi 0, %s45
    %s60 = sphi 0, %s46
    %s64 = sphi 0, %s64
    %s66 = sphi 0, %s64
    %s67 = sphi 0, %s66
    %s81 = sphi 0, %s67
    %s87 = sphi 0, %s89
    %s90 = sphi 0, %s87
    %s91 = sphi 0, %s90
    %s107 = sphi 0, %s91
  $region4: #{features_encoding.20} parent=0 // loop_header_branch
    %12 = sbr.rel (%p10) target = $region8
  $region5: #{features_encoding.20} parent=0 // loop_body
    %s14 = ssub.s32 %s9, 1
    %s15 = ssub.s32 %s9, 2
    %s16 = sadd.s32 %s9, 1
    %s17 = ssub.s32 %s9, %s16
    %p18 = scmp.eq.s32.totalorder %s17, 0
    %s20 = sadd.s32 %s19, 1
    %s21 = scalar_select %p18, %s19, %s20
    %p24 = pneg %p18
    %p25 = scmp.eq.s32.totalorder %s9, 1
    %p26 = por %p24, %p25
    %p27 = scmp.ne.s32.totalorder %s19, %s22
    %p28 = scmp.eq.s32.totalorder %s9, 0
    %p29 = por %p27, %p28
    %p30 = scmp.ne.s32.totalorder %s19, %s22
    %p31 = scmp.eq.s32.totalorder %s14, 1
    %p32 = por %p30, %p31
    %p33 = scmp.ne.s32.totalorder %s22, %s23
    %p34 = scmp.eq.s32.totalorder %s14, 0
    %p35 = por %p33, %p34
    %p36 = scmp.ne.s32.totalorder %s22, %s23
    %p37 = scmp.eq.s32.totalorder %s15, 1
    %p38 = por %p36, %p37
    %p40 = scmp.ne.s32.totalorder %s23, %s39
    %p41 = scmp.eq.s32.totalorder %s15, 0
    %p42 = por %p40, %p41
    %s44 = sadd.s32 %s43, 1
    %p47 = scmp.eq.s32.totalorder %s9, 1
    %p48 = scmp.ne.s32.totalorder %s43, %s45
    %p49 = scmp.eq.s32.totalorder %s9, 0
    %p50 = por %p48, %p49
    %p51 = scmp.ne.s32.totalorder %s43, %s45
    %p52 = scmp.eq.s32.totalorder %s14, 1
    %p53 = por %p51, %p52
    %p54 = scmp.ne.s32.totalorder %s45, %s46
    %p55 = scmp.eq.s32.totalorder %s14, 0
    %p56 = por %p54, %p55
    %p57 = scmp.ne.s32.totalorder %s45, %s46
    %p58 = scmp.eq.s32.totalorder %s15, 1
    %p59 = por %p57, %p58
    %p61 = scmp.ne.s32.totalorder %s46, %s60
    %p62 = scmp.eq.s32.totalorder %s15, 0
    %p63 = por %p61, %p62
    %s65 = sadd.s32 %s64, 1
    %p68 = scmp.eq.s32.totalorder %s9, 1
    %p69 = scmp.ne.s32.totalorder %s64, %s66
    %p70 = scmp.eq.s32.totalorder %s9, 0
    %p71 = por %p69, %p70
    %p72 = scmp.ne.s32.totalorder %s64, %s66
    %p73 = scmp.eq.s32.totalorder %s14, 1
    %p74 = por %p72, %p73
    %p75 = scmp.ne.s32.totalorder %s66, %s67
    %p76 = scmp.eq.s32.totalorder %s14, 0
    %p77 = por %p75, %p76
    %p78 = scmp.ne.s32.totalorder %s66, %s67
    %p79 = scmp.eq.s32.totalorder %s15, 1
    %p80 = por %p78, %p79
    %p82 = scmp.ne.s32.totalorder %s67, %s81
    %p83 = scmp.eq.s32.totalorder %s15, 0
    %p84 = por %p82, %p83
    %s85 = ssub.s32 %s9, %s16
    %p86 = scmp.eq.s32.totalorder %s85, 0
    %s88 = sadd.s32 %s87, 1
    %s89 = scalar_select %p86, %s87, %s88
    %p92 = pneg %p86
    %p93 = scmp.eq.s32.totalorder %s9, 1
    %p94 = por %p92, %p93
    %p95 = scmp.ne.s32.totalorder %s87, %s90
    %p96 = scmp.eq.s32.totalorder %s9, 0
    %p97 = por %p95, %p96
    %p98 = scmp.ne.s32.totalorder %s87, %s90
    %p99 = scmp.eq.s32.totalorder %s14, 1
    %p100 = por %p98, %p99
    %p101 = scmp.ne.s32.totalorder %s90, %s91
    %p102 = scmp.eq.s32.totalorder %s14, 0
    %p103 = por %p101, %p102
    %p104 = scmp.ne.s32.totalorder %s90, %s91
    %p105 = scmp.eq.s32.totalorder %s15, 1
    %p106 = por %p104, %p105
    %p108 = scmp.ne.s32.totalorder %s91, %s107
    %p109 = scmp.eq.s32.totalorder %s15, 0
    %p110 = por %p108, %p109
    %p111 = scmp.le.s32.totalorder 1, %s9
    %p112 = scmp.lt.s32.totalorder %s9, 3
    %p113 = pnand %p111, %p112
    %p114 = pneg %p113
    // Predicated region
    $region9: #{features_encoding.20} parent=5 // pred_check
      _
    $region10: #{features_encoding.20} parent=5 // pred_check_branch
      %116 = sbr.rel (%p113) target = $region12
    $region11: #{features_encoding.20} parent=5 // pred_region
      %s117 = ssub.s32 %s9, 1
      // Predicated region
      $region13: #{features_encoding.20} parent=11 // pred_check
        %p118 = pneg %p56
      $region14: #{features_encoding.20} parent=11 // pred_check_branch
        %120 = sbr.rel (%p118) target = $region16
      $region15: #{features_encoding.20} parent=11 // pred_region
        _
      $region16: #{features_encoding.20} parent=11 // pred_fallthru
        _
      // Predicated region
      $region17: #{features_encoding.20} parent=11 // pred_check
        %p121 = pneg %p77
      $region18: #{features_encoding.20} parent=11 // pred_check_branch
        %123 = sbr.rel (%p121) target = $region20
      $region19: #{features_encoding.20} parent=11 // pred_region
        _
      $region20: #{features_encoding.20} parent=11 // pred_fallthru
        _
    $region12: #{features_encoding.20} parent=5 // pred_fallthru
      _
    %p124 = scmp.lt.s32.totalorder %s9, 2
    // Predicated region
    $region21: #{features_encoding.20} parent=5 // pred_check
      %p125 = pneg %p124
    $region22: #{features_encoding.20} parent=5 // pred_check_branch
      %127 = sbr.rel (%p125) target = $region24
    $region23: #{features_encoding.20} parent=5 // pred_region
      // Predicated region
      $region25: #{features_encoding.20} parent=23 // pred_check
        %p128 = pneg %p29
      $region26: #{features_encoding.20} parent=23 // pred_check_branch
        %130 = sbr.rel (%p128) target = $region28
      $region27: #{features_encoding.20} parent=23 // pred_region
        %p131 = scmp.lt.s32.totalorder %s9, 1
        %s132 = scalar_select %p131, %s9, 1
        %s133 = smul.addr %s132, 170
        %s134 = smul.addr %s133, 4
        %s135 = scalar_lea.vmem %s0, %s134
      $region28: #{features_encoding.20} parent=23 // pred_fallthru
        _
    $region24: #{features_encoding.20} parent=5 // pred_fallthru
      _
    %p136 = scmp.le.s32.totalorder 1, %s9
    %p137 = scmp.lt.s32.totalorder %s9, 3
    %p138 = pnand %p136, %p137
    %p139 = pneg %p138
    // Predicated region
    $region29: #{features_encoding.20} parent=5 // pred_check
      _
    $region30: #{features_encoding.20} parent=5 // pred_check_branch
      %141 = sbr.rel (%p138) target = $region32
    $region31: #{features_encoding.20} parent=5 // pred_region
      %s142 = ssub.s32 %s9, 1
      %p143 = scmp.lt.s32.totalorder %s14, 1
      %s144 = scalar_select %p143, %s14, 1
      %s145 = smul.addr %s144, 170
      %s146 = smul.addr %s145, 4
      %s147 = scalar_lea.vmem %s0, %s146
      %p148 = pneg %p35
      %p149 = pneg %p32
      %p150 = pneg %p56
      %p151 = pneg %p53
      %p152 = pneg %p77
      %p153 = pneg %p74
      %p154 = pneg %p103
      %p155 = pneg %p100
      %p156 = scmp.lt.s32.totalorder %s14, 1
      %s157 = scalar_select %p156, %s14, 1
      %s158 = smul.addr %s157, 128
      %s159 = smul.addr %s158, 4
      %s160 = scalar_lea.vmem %s3, %s159
      %p161 = scmp.lt.s32.totalorder %s14, 1
      %s162 = scalar_select %p161, %s14, 1
      %s163 = smul.addr %s162, 170
      %s164 = smul.addr %s163, 4
      %s165 = scalar_lea.vmem %s0, %s164
      %p166 = scmp.lt.s32.totalorder %s14, 1
      %s167 = scalar_select %p166, %s14, 1
      %s168 = smul.addr %s167, 128
      %s169 = smul.addr %s168, 4
      %s170 = scalar_lea.vmem %s3, %s169
      loop: start=0, step=1, limit=32
      $region33: #{features_encoding.20} parent=31 // loop_pre_header
        _
      $region34: #{features_encoding.20} parent=31 // loop_header
        %s172 = sphi 0, %s176
        %p173 = scmp.ge.s32.totalorder %s172, 32
      $region35: #{features_encoding.20} parent=31 // loop_header_branch
        %175 = sbr.rel (%p173) target = $region39
      $region36: #{features_encoding.20} parent=31 // loop_body
        %s177 = smul.u32 %s172, 5
        %s178 = smul.addr %s177, 4
        %s179 = scalar_lea.vmem %s165, %s178
        %v180 = vld [vmem:[%s179] sm:$0xf]
        %v181 = vld [vmem:[%s179 + $0x4] sm:$0xf]
        %v182 = vld [vmem:[%s179 + $0x8] sm:$0xf]
        %v183 = vld [vmem:[%s179 + $0xc] sm:$0xf]
        %v184 = vld [vmem:[%s179 + $0x10] sm:$0x1]
        %v185 = vld [vmem:[%s179 + $0x14] sm:$0xf]
        %v186 = vld [vmem:[%s179 + $0x18] sm:$0xf]
        %v187 = vld [vmem:[%s179 + $0x1c] sm:$0xf]
        %v188 = vld [vmem:[%s179 + $0x20] sm:$0xf]
        %v189 = vld [vmem:[%s179 + $0x24] sm:$0x1]
        %v190 = vld [vmem:[%s179 + $0x28] sm:$0xf]
        %v191 = vld [vmem:[%s179 + $0x2c] sm:$0xf]
        %v192 = vld [vmem:[%s179 + $0x30] sm:$0xf]
        %v193 = vld [vmem:[%s179 + $0x34] sm:$0xf]
        %v194 = vld [vmem:[%s179 + $0x38] sm:$0x1]
        %v195 = vld [vmem:[%s1] sm:$0xf]
        %v196 = vld [vmem:[%s1 + $0x4] sm:$0xf]
        %v197 = vld [vmem:[%s1 + $0x8] sm:$0xf]
        %v198 = vld [vmem:[%s1 + $0xc] sm:$0xf]
        %v199 = vld [vmem:[%s1 + $0x10] sm:$0xf]
        %v200 = vld [vmem:[%s1 + $0x14] sm:$0xf]
        %v201 = vld [vmem:[%s1 + $0x18] sm:$0xf]
        %v202 = vld [vmem:[%s1 + $0x1c] sm:$0xf]
        %v203 = vld [vmem:[%s1 + $0x20] sm:$0xf]
        %v204 = vld [vmem:[%s1 + $0x24] sm:$0xf]
        %v205 = vld [vmem:[%s1 + $0x28] sm:$0xf]
        %v206 = vld [vmem:[%s1 + $0x2c] sm:$0xf]
        %v207 = vld [vmem:[%s1 + $0x30] sm:$0xf]
        %v208 = vld [vmem:[%s1 + $0x34] sm:$0xf]
        %v209 = vld [vmem:[%s1 + $0x38] sm:$0xf]
        %v210 = vld [vmem:[%s1 + $0x3c] sm:$0xf]
        %v216 = vunpack.c.l.b16 %v180
        %v217 = vunpack.c.l.b16 %v181
        %v218 = vunpack.c.l.b16 %v182
        %v219 = vunpack.c.l.b16 %v183
        %v220 = vunpack.c.l.b16 %v184
        %v221 = vpack.c.b16 %v217, %v216
        %v222 = vpack.c.b16 %v219, %v218
        %v223 = vpack.c.b16 %v220, %v220
        %v243 = vunpack.c.l.b16 %v195
        %v244 = vunpack.c.l.b16 %v196
        %v245 = vunpack.c.l.b16 %v197
        %v246 = vunpack.c.l.b16 %v198
        %v247 = vunpack.c.l.b16 %v199
        %v248 = vunpack.c.l.b16 %v200
        %v249 = vunpack.c.l.b16 %v201
        %v250 = vunpack.c.l.b16 %v202
        %v251 = vunpack.c.l.b16 %v203
        %v252 = vunpack.c.l.b16 %v204
        %v253 = vunpack.c.l.b16 %v205
        %v254 = vunpack.c.l.b16 %v206
        %v255 = vunpack.c.l.b16 %v207
        %v256 = vunpack.c.l.b16 %v208
        %v257 = vunpack.c.l.b16 %v209
        %v258 = vunpack.c.l.b16 %v210
        %v259 = vpack.c.b16 %v244, %v243
        %v260 = vpack.c.b16 %v246, %v245
        %v261 = vpack.c.b16 %v248, %v247
        %v262 = vpack.c.b16 %v250, %v249
        %v263 = vpack.c.b16 %v252, %v251
        %v264 = vpack.c.b16 %v254, %v253
        %v265 = vpack.c.b16 %v256, %v255
        %v266 = vpack.c.b16 %v258, %v257
        %275 = vmatpush.bf16.msra.mxu0 %v266
        %276 = vmatpush.bf16.msra.mxu0 %v265
        %277 = vmatpush.bf16.msra.mxu0 %v264
        %278 = vmatpush.bf16.msra.mxu0 %v263
        %279 = vmatpush.bf16.msra.mxu0 %v262
        %280 = vmatpush.bf16.msra.mxu0 %v261
        %281 = vmatpush.bf16.msra.mxu0 %v260
        %282 = vmatpush.bf16.msra.mxu0 %v259
        %283 = vmatmul.bf16.gmra.mxu0 %v221
        %v284 = vpop.f32.mrf.mxu0
        %v285 = vadd.f32 0.0, %v284
        %v286 = vpop.f32.mrf.mxu0
        %v287 = vadd.f32 0.0, %v286
        %288 = vmatmul.bf16.gmra.mxu0 %v222
        %v289 = vpop.f32.mrf.mxu0
        %v290 = vadd.f32 0.0, %v289
        %v291 = vpop.f32.mrf.mxu0
        %v292 = vadd.f32 0.0, %v291
        %293 = vmatmul.bf16.gmra.mxu0 %v223
        %v294 = vpop.f32.mrf.mxu0
        %v295 = vpop.f32.mrf.mxu0
        %296 = vdwg.mxu0
        %v297 = vadd.f32 %v285, 0.0
        %v298 = vadd.f32 %v287, 0.0
        %v299 = vadd.f32 %v290, 0.0
        %v300 = vadd.f32 %v292, 0.0
        %s301 = scalar_lea.vmem %s1, 64
        %v302 = vld [vmem:[%s301] sm:$0xf]
        %v303 = vld [vmem:[%s301 + $0x4] sm:$0xf]
        %v304 = vld [vmem:[%s301 + $0x8] sm:$0xf]
        %v305 = vld [vmem:[%s301 + $0xc] sm:$0xf]
        %v306 = vld [vmem:[%s301 + $0x10] sm:$0xf]
        %v307 = vld [vmem:[%s301 + $0x14] sm:$0xf]
        %v308 = vld [vmem:[%s301 + $0x18] sm:$0xf]
        %v309 = vld [vmem:[%s301 + $0x1c] sm:$0xf]
        %v310 = vld [vmem:[%s301 + $0x20] sm:$0xf]
        %v311 = vld [vmem:[%s301 + $0x24] sm:$0xf]
        %v312 = vld [vmem:[%s301 + $0x28] sm:$0xf]
        %v313 = vld [vmem:[%s301 + $0x2c] sm:$0xf]
        %v314 = vld [vmem:[%s301 + $0x30] sm:$0xf]
        %v315 = vld [vmem:[%s301 + $0x34] sm:$0xf]
        %v316 = vld [vmem:[%s301 + $0x38] sm:$0xf]
        %v317 = vld [vmem:[%s301 + $0x3c] sm:$0xf]
        %v334 = vunpack.c.l.b16 %v302
        %v335 = vunpack.c.l.b16 %v303
        %v336 = vunpack.c.l.b16 %v304
        %v337 = vunpack.c.l.b16 %v305
        %v338 = vunpack.c.l.b16 %v306
        %v339 = vunpack.c.l.b16 %v307
        %v340 = vunpack.c.l.b16 %v308
        %v341 = vunpack.c.l.b16 %v309
        %v342 = vunpack.c.l.b16 %v310
        %v343 = vunpack.c.l.b16 %v311
        %v344 = vunpack.c.l.b16 %v312
        %v345 = vunpack.c.l.b16 %v313
        %v346 = vunpack.c.l.b16 %v314
        %v347 = vunpack.c.l.b16 %v315
        %v348 = vunpack.c.l.b16 %v316
        %v349 = vunpack.c.l.b16 %v317
        %v350 = vpack.c.b16 %v335, %v334
        %v351 = vpack.c.b16 %v337, %v336
        %v352 = vpack.c.b16 %v339, %v338
        %v353 = vpack.c.b16 %v341, %v340
        %v354 = vpack.c.b16 %v343, %v342
        %v355 = vpack.c.b16 %v345, %v344
        %v356 = vpack.c.b16 %v347, %v346
        %v357 = vpack.c.b16 %v349, %v348
        %366 = vmatpush.bf16.msra.mxu0 %v357
        %367 = vmatpush.bf16.msra.mxu0 %v356
        %368 = vmatpush.bf16.msra.mxu0 %v355
        %369 = vmatpush.bf16.msra.mxu0 %v354
        %370 = vmatpush.bf16.msra.mxu0 %v353
        %371 = vmatpush.bf16.msra.mxu0 %v352
        %372 = vmatpush.bf16.msra.mxu0 %v351
        %373 = vmatpush.bf16.msra.mxu0 %v350
        %374 = vmatmul.bf16.gmra.mxu0 %v221
        %v375 = vpop.f32.mrf.mxu0
        %v376 = vadd.f32 0.0, %v375
        %v377 = vpop.f32.mrf.mxu0
        %v378 = vadd.f32 0.0, %v377
        %379 = vmatmul.bf16.gmra.mxu0 %v222
        %v380 = vpop.f32.mrf.mxu0
        %v381 = vadd.f32 0.0, %v380
        %v382 = vpop.f32.mrf.mxu0
        %v383 = vadd.f32 0.0, %v382
        %384 = vmatmul.bf16.gmra.mxu0 %v223
        %v385 = vpop.f32.mrf.mxu0
        %v386 = vadd.f32 0.0, %v385
        %v387 = vpop.f32.mrf.mxu0
        %388 = vdwg.mxu0
        %vm394 = vcmask 1046528
        %v395 = vrot.slane %v376, 1
        %v396 = vrot.slane %v378, 1
        %v397 = vsel %vm394, %v395, %v396
        %v398 = vrot.slane %v381, 1
        %v399 = vsel %vm394, %v396, %v398
        %v400 = vrot.slane %v383, 1
        %v401 = vsel %vm394, %v398, %v400
        %v402 = vrot.slane %v386, 1
        %v403 = vsel %vm394, %v400, %v402
        %v408 = vadd.f32 %v297, %v397
        %v409 = vadd.f32 %v298, %v399
        %v410 = vadd.f32 %v299, %v401
        %v411 = vadd.f32 %v300, %v403
        %s412 = scalar_lea.vmem %s1, 128
        %v413 = vld [vmem:[%s412] sm:$0xf]
        %v414 = vld [vmem:[%s412 + $0x4] sm:$0xf]
        %v415 = vld [vmem:[%s412 + $0x8] sm:$0xf]
        %v416 = vld [vmem:[%s412 + $0xc] sm:$0xf]
        %v417 = vld [vmem:[%s412 + $0x10] sm:$0xf]
        %v418 = vld [vmem:[%s412 + $0x14] sm:$0xf]
        %v419 = vld [vmem:[%s412 + $0x18] sm:$0xf]
        %v420 = vld [vmem:[%s412 + $0x1c] sm:$0xf]
        %v421 = vld [vmem:[%s412 + $0x20] sm:$0xf]
        %v422 = vld [vmem:[%s412 + $0x24] sm:$0xf]
        %v423 = vld [vmem:[%s412 + $0x28] sm:$0xf]
        %v424 = vld [vmem:[%s412 + $0x2c] sm:$0xf]
        %v425 = vld [vmem:[%s412 + $0x30] sm:$0xf]
        %v426 = vld [vmem:[%s412 + $0x34] sm:$0xf]
        %v427 = vld [vmem:[%s412 + $0x38] sm:$0xf]
        %v428 = vld [vmem:[%s412 + $0x3c] sm:$0xf]
        %v445 = vunpack.c.l.b16 %v413
        %v446 = vunpack.c.l.b16 %v414
        %v447 = vunpack.c.l.b16 %v415
        %v448 = vunpack.c.l.b16 %v416
        %v449 = vunpack.c.l.b16 %v417
        %v450 = vunpack.c.l.b16 %v418
        %v451 = vunpack.c.l.b16 %v419
        %v452 = vunpack.c.l.b16 %v420
        %v453 = vunpack.c.l.b16 %v421
        %v454 = vunpack.c.l.b16 %v422
        %v455 = vunpack.c.l.b16 %v423
        %v456 = vunpack.c.l.b16 %v424
        %v457 = vunpack.c.l.b16 %v425
        %v458 = vunpack.c.l.b16 %v426
        %v459 = vunpack.c.l.b16 %v427
        %v460 = vunpack.c.l.b16 %v428
        %v461 = vpack.c.b16 %v446, %v445
        %v462 = vpack.c.b16 %v448, %v447
        %v463 = vpack.c.b16 %v450, %v449
        %v464 = vpack.c.b16 %v452, %v451
        %v465 = vpack.c.b16 %v454, %v453
        %v466 = vpack.c.b16 %v456, %v455
        %v467 = vpack.c.b16 %v458, %v457
        %v468 = vpack.c.b16 %v460, %v459
        %477 = vmatpush.bf16.msra.mxu0 %v468
        %478 = vmatpush.bf16.msra.mxu0 %v467
        %479 = vmatpush.bf16.msra.mxu0 %v466
        %480 = vmatpush.bf16.msra.mxu0 %v465
        %481 = vmatpush.bf16.msra.mxu0 %v464
        %482 = vmatpush.bf16.msra.mxu0 %v463
        %483 = vmatpush.bf16.msra.mxu0 %v462
        %484 = vmatpush.bf16.msra.mxu0 %v461
        %485 = vmatmul.bf16.gmra.mxu0 %v221
        %v486 = vpop.f32.mrf.mxu0
        %v487 = vadd.f32 0.0, %v486
        %v488 = vpop.f32.mrf.mxu0
        %v489 = vadd.f32 0.0, %v488
        %490 = vmatmul.bf16.gmra.mxu0 %v222
        %v491 = vpop.f32.mrf.mxu0
        %v492 = vadd.f32 0.0, %v491
        %v493 = vpop.f32.mrf.mxu0
        %v494 = vadd.f32 0.0, %v493
        %495 = vmatmul.bf16.gmra.mxu0 %v223
        %v496 = vpop.f32.mrf.mxu0
        %v497 = vadd.f32 0.0, %v496
        %v498 = vpop.f32.mrf.mxu0
        %499 = vdwg.mxu0
        %vm505 = vcmask 1045504
        %v506 = vrot.slane %v487, 2
        %v507 = vrot.slane %v489, 2
        %v508 = vsel %vm505, %v506, %v507
        %v509 = vrot.slane %v492, 2
        %v510 = vsel %vm505, %v507, %v509
        %v511 = vrot.slane %v494, 2
        %v512 = vsel %vm505, %v509, %v511
        %v513 = vrot.slane %v497, 2
        %v514 = vsel %vm505, %v511, %v513
        %v519 = vadd.f32 %v408, %v508
        %v520 = vadd.f32 %v409, %v510
        %v521 = vadd.f32 %v410, %v512
        %v522 = vadd.f32 %v411, %v514
        %s523 = scalar_lea.vmem %s1, 192
        %v524 = vld [vmem:[%s523] sm:$0xf]
        %v525 = vld [vmem:[%s523 + $0x4] sm:$0xf]
        %v526 = vld [vmem:[%s523 + $0x8] sm:$0xf]
        %v527 = vld [vmem:[%s523 + $0xc] sm:$0xf]
        %v528 = vld [vmem:[%s523 + $0x10] sm:$0xf]
        %v529 = vld [vmem:[%s523 + $0x14] sm:$0xf]
        %v530 = vld [vmem:[%s523 + $0x18] sm:$0xf]
        %v531 = vld [vmem:[%s523 + $0x1c] sm:$0xf]
        %v532 = vld [vmem:[%s523 + $0x20] sm:$0xf]
        %v533 = vld [vmem:[%s523 + $0x24] sm:$0xf]
        %v534 = vld [vmem:[%s523 + $0x28] sm:$0xf]
        %v535 = vld [vmem:[%s523 + $0x2c] sm:$0xf]
        %v536 = vld [vmem:[%s523 + $0x30] sm:$0xf]
        %v537 = vld [vmem:[%s523 + $0x34] sm:$0xf]
        %v538 = vld [vmem:[%s523 + $0x38] sm:$0xf]
        %v539 = vld [vmem:[%s523 + $0x3c] sm:$0xf]
        %v545 = vunpack.c.l.b16 %v185
        %v546 = vunpack.c.l.b16 %v186
        %v547 = vunpack.c.l.b16 %v187
        %v548 = vunpack.c.l.b16 %v188
        %v549 = vunpack.c.l.b16 %v189
        %v550 = vpack.c.b16 %v546, %v545
        %v551 = vpack.c.b16 %v548, %v547
        %v552 = vpack.c.b16 %v549, %v549
        %v572 = vunpack.c.l.b16 %v524
        %v573 = vunpack.c.l.b16 %v525
        %v574 = vunpack.c.l.b16 %v526
        %v575 = vunpack.c.l.b16 %v527
        %v576 = vunpack.c.l.b16 %v528
        %v577 = vunpack.c.l.b16 %v529
        %v578 = vunpack.c.l.b16 %v530
        %v579 = vunpack.c.l.b16 %v531
        %v580 = vunpack.c.l.b16 %v532
        %v581 = vunpack.c.l.b16 %v533
        %v582 = vunpack.c.l.b16 %v534
        %v583 = vunpack.c.l.b16 %v535
        %v584 = vunpack.c.l.b16 %v536
        %v585 = vunpack.c.l.b16 %v537
        %v586 = vunpack.c.l.b16 %v538
        %v587 = vunpack.c.l.b16 %v539
        %v588 = vpack.c.b16 %v573, %v572
        %v589 = vpack.c.b16 %v575, %v574
        %v590 = vpack.c.b16 %v577, %v576
        %v591 = vpack.c.b16 %v579, %v578
        %v592 = vpack.c.b16 %v581, %v580
        %v593 = vpack.c.b16 %v583, %v582
        %v594 = vpack.c.b16 %v585, %v584
        %v595 = vpack.c.b16 %v587, %v586
        %604 = vmatpush.bf16.msra.mxu0 %v595
        %605 = vmatpush.bf16.msra.mxu0 %v594
        %606 = vmatpush.bf16.msra.mxu0 %v593
        %607 = vmatpush.bf16.msra.mxu0 %v592
        %608 = vmatpush.bf16.msra.mxu0 %v591
        %609 = vmatpush.bf16.msra.mxu0 %v590
        %610 = vmatpush.bf16.msra.mxu0 %v589
        %611 = vmatpush.bf16.msra.mxu0 %v588
        %612 = vmatmul.bf16.gmra.mxu0 %v550
        %v613 = vpop.f32.mrf.mxu0
        %v614 = vadd.f32 0.0, %v613
        %v615 = vpop.f32.mrf.mxu0
        %v616 = vadd.f32 0.0, %v615
        %617 = vmatmul.bf16.gmra.mxu0 %v551
        %v618 = vpop.f32.mrf.mxu0
        %v619 = vadd.f32 0.0, %v618
        %v620 = vpop.f32.mrf.mxu0
        %v621 = vadd.f32 0.0, %v620
        %622 = vmatmul.bf16.gmra.mxu0 %v552
        %v623 = vpop.f32.mrf.mxu0
        %v624 = vpop.f32.mrf.mxu0
        %625 = vdwg.mxu0
        %v626 = vadd.f32 %v519, %v614
        %v627 = vadd.f32 %v520, %v616
        %v628 = vadd.f32 %v521, %v619
        %v629 = vadd.f32 %v522, %v621
        %s630 = scalar_lea.vmem %s1, 256
        %v631 = vld [vmem:[%s630] sm:$0xf]
        %v632 = vld [vmem:[%s630 + $0x4] sm:$0xf]
        %v633 = vld [vmem:[%s630 + $0x8] sm:$0xf]
        %v634 = vld [vmem:[%s630 + $0xc] sm:$0xf]
        %v635 = vld [vmem:[%s630 + $0x10] sm:$0xf]
        %v636 = vld [vmem:[%s630 + $0x14] sm:$0xf]
        %v637 = vld [vmem:[%s630 + $0x18] sm:$0xf]
        %v638 = vld [vmem:[%s630 + $0x1c] sm:$0xf]
        %v639 = vld [vmem:[%s630 + $0x20] sm:$0xf]
        %v640 = vld [vmem:[%s630 + $0x24] sm:$0xf]
        %v641 = vld [vmem:[%s630 + $0x28] sm:$0xf]
        %v642 = vld [vmem:[%s630 + $0x2c] sm:$0xf]
        %v643 = vld [vmem:[%s630 + $0x30] sm:$0xf]
        %v644 = vld [vmem:[%s630 + $0x34] sm:$0xf]
        %v645 = vld [vmem:[%s630 + $0x38] sm:$0xf]
        %v646 = vld [vmem:[%s630 + $0x3c] sm:$0xf]
        %v663 = vunpack.c.l.b16 %v631
        %v664 = vunpack.c.l.b16 %v632
        %v665 = vunpack.c.l.b16 %v633
        %v666 = vunpack.c.l.b16 %v634
        %v667 = vunpack.c.l.b16 %v635
        %v668 = vunpack.c.l.b16 %v636
        %v669 = vunpack.c.l.b16 %v637
        %v670 = vunpack.c.l.b16 %v638
        %v671 = vunpack.c.l.b16 %v639
        %v672 = vunpack.c.l.b16 %v640
        %v673 = vunpack.c.l.b16 %v641
        %v674 = vunpack.c.l.b16 %v642
        %v675 = vunpack.c.l.b16 %v643
        %v676 = vunpack.c.l.b16 %v644
        %v677 = vunpack.c.l.b16 %v645
        %v678 = vunpack.c.l.b16 %v646
        %v679 = vpack.c.b16 %v664, %v663
        %v680 = vpack.c.b16 %v666, %v665
        %v681 = vpack.c.b16 %v668, %v667
        %v682 = vpack.c.b16 %v670, %v669
        %v683 = vpack.c.b16 %v672, %v671
        %v684 = vpack.c.b16 %v674, %v673
        %v685 = vpack.c.b16 %v676, %v675
        %v686 = vpack.c.b16 %v678, %v677
        %695 = vmatpush.bf16.msra.mxu0 %v686
        %696 = vmatpush.bf16.msra.mxu0 %v685
        %697 = vmatpush.bf16.msra.mxu0 %v684
        %698 = vmatpush.bf16.msra.mxu0 %v683
        %699 = vmatpush.bf16.msra.mxu0 %v682
        %700 = vmatpush.bf16.msra.mxu0 %v681
        %701 = vmatpush.bf16.msra.mxu0 %v680
        %702 = vmatpush.bf16.msra.mxu0 %v679
        %703 = vmatmul.bf16.gmra.mxu0 %v550
        %v704 = vpop.f32.mrf.mxu0
        %v705 = vadd.f32 0.0, %v704
        %v706 = vpop.f32.mrf.mxu0
        %v707 = vadd.f32 0.0, %v706
        %708 = vmatmul.bf16.gmra.mxu0 %v551
        %v709 = vpop.f32.mrf.mxu0
        %v710 = vadd.f32 0.0, %v709
        %v711 = vpop.f32.mrf.mxu0
        %v712 = vadd.f32 0.0, %v711
        %713 = vmatmul.bf16.gmra.mxu0 %v552
        %v714 = vpop.f32.mrf.mxu0
        %v715 = vadd.f32 0.0, %v714
        %v716 = vpop.f32.mrf.mxu0
        %717 = vdwg.mxu0
        %v723 = vrot.slane %v705, 1
        %v724 = vrot.slane %v707, 1
        %v725 = vsel %vm394, %v723, %v724
        %v726 = vrot.slane %v710, 1
        %v727 = vsel %vm394, %v724, %v726
        %v728 = vrot.slane %v712, 1
        %v729 = vsel %vm394, %v726, %v728
        %v730 = vrot.slane %v715, 1
        %v731 = vsel %vm394, %v728, %v730
        %v736 = vadd.f32 %v626, %v725
        %v737 = vadd.f32 %v627, %v727
        %v738 = vadd.f32 %v628, %v729
        %v739 = vadd.f32 %v629, %v731
        %s740 = scalar_lea.vmem %s1, 320
        %v741 = vld [vmem:[%s740] sm:$0xf]
        %v742 = vld [vmem:[%s740 + $0x4] sm:$0xf]
        %v743 = vld [vmem:[%s740 + $0x8] sm:$0xf]
        %v744 = vld [vmem:[%s740 + $0xc] sm:$0xf]
        %v745 = vld [vmem:[%s740 + $0x10] sm:$0xf]
        %v746 = vld [vmem:[%s740 + $0x14] sm:$0xf]
        %v747 = vld [vmem:[%s740 + $0x18] sm:$0xf]
        %v748 = vld [vmem:[%s740 + $0x1c] sm:$0xf]
        %v749 = vld [vmem:[%s740 + $0x20] sm:$0xf]
        %v750 = vld [vmem:[%s740 + $0x24] sm:$0xf]
        %v751 = vld [vmem:[%s740 + $0x28] sm:$0xf]
        %v752 = vld [vmem:[%s740 + $0x2c] sm:$0xf]
        %v753 = vld [vmem:[%s740 + $0x30] sm:$0xf]
        %v754 = vld [vmem:[%s740 + $0x34] sm:$0xf]
        %v755 = vld [vmem:[%s740 + $0x38] sm:$0xf]
        %v756 = vld [vmem:[%s740 + $0x3c] sm:$0xf]
        %v773 = vunpack.c.l.b16 %v741
        %v774 = vunpack.c.l.b16 %v742
        %v775 = vunpack.c.l.b16 %v743
        %v776 = vunpack.c.l.b16 %v744
        %v777 = vunpack.c.l.b16 %v745
        %v778 = vunpack.c.l.b16 %v746
        %v779 = vunpack.c.l.b16 %v747
        %v780 = vunpack.c.l.b16 %v748
        %v781 = vunpack.c.l.b16 %v749
        %v782 = vunpack.c.l.b16 %v750
        %v783 = vunpack.c.l.b16 %v751
        %v784 = vunpack.c.l.b16 %v752
        %v785 = vunpack.c.l.b16 %v753
        %v786 = vunpack.c.l.b16 %v754
        %v787 = vunpack.c.l.b16 %v755
        %v788 = vunpack.c.l.b16 %v756
        %v789 = vpack.c.b16 %v774, %v773
        %v790 = vpack.c.b16 %v776, %v775
        %v791 = vpack.c.b16 %v778, %v777
        %v792 = vpack.c.b16 %v780, %v779
        %v793 = vpack.c.b16 %v782, %v781
        %v794 = vpack.c.b16 %v784, %v783
        %v795 = vpack.c.b16 %v786, %v785
        %v796 = vpack.c.b16 %v788, %v787
        %805 = vmatpush.bf16.msra.mxu0 %v796
        %806 = vmatpush.bf16.msra.mxu0 %v795
        %807 = vmatpush.bf16.msra.mxu0 %v794
        %808 = vmatpush.bf16.msra.mxu0 %v793
        %809 = vmatpush.bf16.msra.mxu0 %v792
        %810 = vmatpush.bf16.msra.mxu0 %v791
        %811 = vmatpush.bf16.msra.mxu0 %v790
        %812 = vmatpush.bf16.msra.mxu0 %v789
        %813 = vmatmul.bf16.gmra.mxu0 %v550
        %v814 = vpop.f32.mrf.mxu0
        %v815 = vadd.f32 0.0, %v814
        %v816 = vpop.f32.mrf.mxu0
        %v817 = vadd.f32 0.0, %v816
        %818 = vmatmul.bf16.gmra.mxu0 %v551
        %v819 = vpop.f32.mrf.mxu0
        %v820 = vadd.f32 0.0, %v819
        %v821 = vpop.f32.mrf.mxu0
        %v822 = vadd.f32 0.0, %v821
        %823 = vmatmul.bf16.gmra.mxu0 %v552
        %v824 = vpop.f32.mrf.mxu0
        %v825 = vadd.f32 0.0, %v824
        %v826 = vpop.f32.mrf.mxu0
        %827 = vdwg.mxu0
        %v833 = vrot.slane %v815, 2
        %v834 = vrot.slane %v817, 2
        %v835 = vsel %vm505, %v833, %v834
        %v836 = vrot.slane %v820, 2
        %v837 = vsel %vm505, %v834, %v836
        %v838 = vrot.slane %v822, 2
        %v839 = vsel %vm505, %v836, %v838
        %v840 = vrot.slane %v825, 2
        %v841 = vsel %vm505, %v838, %v840
        %v846 = vadd.f32 %v736, %v835
        %v847 = vadd.f32 %v737, %v837
        %v848 = vadd.f32 %v738, %v839
        %v849 = vadd.f32 %v739, %v841
        %s850 = scalar_lea.vmem %s1, 384
        %v851 = vld [vmem:[%s850] sm:$0xf]
        %v852 = vld [vmem:[%s850 + $0x4] sm:$0xf]
        %v853 = vld [vmem:[%s850 + $0x8] sm:$0xf]
        %v854 = vld [vmem:[%s850 + $0xc] sm:$0xf]
        %v855 = vld [vmem:[%s850 + $0x10] sm:$0xf]
        %v856 = vld [vmem:[%s850 + $0x14] sm:$0xf]
        %v857 = vld [vmem:[%s850 + $0x18] sm:$0xf]
        %v858 = vld [vmem:[%s850 + $0x1c] sm:$0xf]
        %v859 = vld [vmem:[%s850 + $0x20] sm:$0xf]
        %v860 = vld [vmem:[%s850 + $0x24] sm:$0xf]
        %v861 = vld [vmem:[%s850 + $0x28] sm:$0xf]
        %v862 = vld [vmem:[%s850 + $0x2c] sm:$0xf]
        %v863 = vld [vmem:[%s850 + $0x30] sm:$0xf]
        %v864 = vld [vmem:[%s850 + $0x34] sm:$0xf]
        %v865 = vld [vmem:[%s850 + $0x38] sm:$0xf]
        %v866 = vld [vmem:[%s850 + $0x3c] sm:$0xf]
        %v872 = vunpack.c.l.b16 %v190
        %v873 = vunpack.c.l.b16 %v191
        %v874 = vunpack.c.l.b16 %v192
        %v875 = vunpack.c.l.b16 %v193
        %v876 = vunpack.c.l.b16 %v194
        %v877 = vpack.c.b16 %v873, %v872
        %v878 = vpack.c.b16 %v875, %v874
        %v879 = vpack.c.b16 %v876, %v876
        %v899 = vunpack.c.l.b16 %v851
        %v900 = vunpack.c.l.b16 %v852
        %v901 = vunpack.c.l.b16 %v853
        %v902 = vunpack.c.l.b16 %v854
        %v903 = vunpack.c.l.b16 %v855
        %v904 = vunpack.c.l.b16 %v856
        %v905 = vunpack.c.l.b16 %v857
        %v906 = vunpack.c.l.b16 %v858
        %v907 = vunpack.c.l.b16 %v859
        %v908 = vunpack.c.l.b16 %v860
        %v909 = vunpack.c.l.b16 %v861
        %v910 = vunpack.c.l.b16 %v862
        %v911 = vunpack.c.l.b16 %v863
        %v912 = vunpack.c.l.b16 %v864
        %v913 = vunpack.c.l.b16 %v865
        %v914 = vunpack.c.l.b16 %v866
        %v915 = vpack.c.b16 %v900, %v899
        %v916 = vpack.c.b16 %v902, %v901
        %v917 = vpack.c.b16 %v904, %v903
        %v918 = vpack.c.b16 %v906, %v905
        %v919 = vpack.c.b16 %v908, %v907
        %v920 = vpack.c.b16 %v910, %v909
        %v921 = vpack.c.b16 %v912, %v911
        %v922 = vpack.c.b16 %v914, %v913
        %931 = vmatpush.bf16.msra.mxu0 %v922
        %932 = vmatpush.bf16.msra.mxu0 %v921
        %933 = vmatpush.bf16.msra.mxu0 %v920
        %934 = vmatpush.bf16.msra.mxu0 %v919
        %935 = vmatpush.bf16.msra.mxu0 %v918
        %936 = vmatpush.bf16.msra.mxu0 %v917
        %937 = vmatpush.bf16.msra.mxu0 %v916
        %938 = vmatpush.bf16.msra.mxu0 %v915
        %939 = vmatmul.bf16.gmra.mxu0 %v877
        %v940 = vpop.f32.mrf.mxu0
        %v941 = vadd.f32 0.0, %v940
        %v942 = vpop.f32.mrf.mxu0
        %v943 = vadd.f32 0.0, %v942
        %944 = vmatmul.bf16.gmra.mxu0 %v878
        %v945 = vpop.f32.mrf.mxu0
        %v946 = vadd.f32 0.0, %v945
        %v947 = vpop.f32.mrf.mxu0
        %v948 = vadd.f32 0.0, %v947
        %949 = vmatmul.bf16.gmra.mxu0 %v879
        %v950 = vpop.f32.mrf.mxu0
        %v951 = vpop.f32.mrf.mxu0
        %952 = vdwg.mxu0
        %v953 = vadd.f32 %v846, %v941
        %v954 = vadd.f32 %v847, %v943
        %v955 = vadd.f32 %v848, %v946
        %v956 = vadd.f32 %v849, %v948
        %s957 = scalar_lea.vmem %s1, 448
        %v958 = vld [vmem:[%s957] sm:$0xf]
        %v959 = vld [vmem:[%s957 + $0x4] sm:$0xf]
        %v960 = vld [vmem:[%s957 + $0x8] sm:$0xf]
        %v961 = vld [vmem:[%s957 + $0xc] sm:$0xf]
        %v962 = vld [vmem:[%s957 + $0x10] sm:$0xf]
        %v963 = vld [vmem:[%s957 + $0x14] sm:$0xf]
        %v964 = vld [vmem:[%s957 + $0x18] sm:$0xf]
        %v965 = vld [vmem:[%s957 + $0x1c] sm:$0xf]
        %v966 = vld [vmem:[%s957 + $0x20] sm:$0xf]
        %v967 = vld [vmem:[%s957 + $0x24] sm:$0xf]
        %v968 = vld [vmem:[%s957 + $0x28] sm:$0xf]
        %v969 = vld [vmem:[%s957 + $0x2c] sm:$0xf]
        %v970 = vld [vmem:[%s957 + $0x30] sm:$0xf]
        %v971 = vld [vmem:[%s957 + $0x34] sm:$0xf]
        %v972 = vld [vmem:[%s957 + $0x38] sm:$0xf]
        %v973 = vld [vmem:[%s957 + $0x3c] sm:$0xf]
        %v990 = vunpack.c.l.b16 %v958
        %v991 = vunpack.c.l.b16 %v959
        %v992 = vunpack.c.l.b16 %v960
        %v993 = vunpack.c.l.b16 %v961
        %v994 = vunpack.c.l.b16 %v962
        %v995 = vunpack.c.l.b16 %v963
        %v996 = vunpack.c.l.b16 %v964
        %v997 = vunpack.c.l.b16 %v965
        %v998 = vunpack.c.l.b16 %v966
        %v999 = vunpack.c.l.b16 %v967
        %v1000 = vunpack.c.l.b16 %v968
        %v1001 = vunpack.c.l.b16 %v969
        %v1002 = vunpack.c.l.b16 %v970
        %v1003 = vunpack.c.l.b16 %v971
        %v1004 = vunpack.c.l.b16 %v972
        %v1005 = vunpack.c.l.b16 %v973
        %v1006 = vpack.c.b16 %v991, %v990
        %v1007 = vpack.c.b16 %v993, %v992
        %v1008 = vpack.c.b16 %v995, %v994
        %v1009 = vpack.c.b16 %v997, %v996
        %v1010 = vpack.c.b16 %v999, %v998
        %v1011 = vpack.c.b16 %v1001, %v1000
        %v1012 = vpack.c.b16 %v1003, %v1002
        %v1013 = vpack.c.b16 %v1005, %v1004
        %1022 = vmatpush.bf16.msra.mxu0 %v1013
        %1023 = vmatpush.bf16.msra.mxu0 %v1012
        %1024 = vmatpush.bf16.msra.mxu0 %v1011
        %1025 = vmatpush.bf16.msra.mxu0 %v1010
        %1026 = vmatpush.bf16.msra.mxu0 %v1009
        %1027 = vmatpush.bf16.msra.mxu0 %v1008
        %1028 = vmatpush.bf16.msra.mxu0 %v1007
        %1029 = vmatpush.bf16.msra.mxu0 %v1006
        %1030 = vmatmul.bf16.gmra.mxu0 %v877
        %v1031 = vpop.f32.mrf.mxu0
        %v1032 = vadd.f32 0.0, %v1031
        %v1033 = vpop.f32.mrf.mxu0
        %v1034 = vadd.f32 0.0, %v1033
        %1035 = vmatmul.bf16.gmra.mxu0 %v878
        %v1036 = vpop.f32.mrf.mxu0
        %v1037 = vadd.f32 0.0, %v1036
        %v1038 = vpop.f32.mrf.mxu0
        %v1039 = vadd.f32 0.0, %v1038
        %1040 = vmatmul.bf16.gmra.mxu0 %v879
        %v1041 = vpop.f32.mrf.mxu0
        %v1042 = vadd.f32 0.0, %v1041
        %v1043 = vpop.f32.mrf.mxu0
        %1044 = vdwg.mxu0
        %v1050 = vrot.slane %v1032, 1
        %v1051 = vrot.slane %v1034, 1
        %v1052 = vsel %vm394, %v1050, %v1051
        %v1053 = vrot.slane %v1037, 1
        %v1054 = vsel %vm394, %v1051, %v1053
        %v1055 = vrot.slane %v1039, 1
        %v1056 = vsel %vm394, %v1053, %v1055
        %v1057 = vrot.slane %v1042, 1
        %v1058 = vsel %vm394, %v1055, %v1057
        %v1063 = vadd.f32 %v953, %v1052
        %v1064 = vadd.f32 %v954, %v1054
        %v1065 = vadd.f32 %v955, %v1056
        %v1066 = vadd.f32 %v956, %v1058
        %s1067 = scalar_lea.vmem %s1, 512
        %v1068 = vld [vmem:[%s1067] sm:$0xf]
        %v1069 = vld [vmem:[%s1067 + $0x4] sm:$0xf]
        %v1070 = vld [vmem:[%s1067 + $0x8] sm:$0xf]
        %v1071 = vld [vmem:[%s1067 + $0xc] sm:$0xf]
        %v1072 = vld [vmem:[%s1067 + $0x10] sm:$0xf]
        %v1073 = vld [vmem:[%s1067 + $0x14] sm:$0xf]
        %v1074 = vld [vmem:[%s1067 + $0x18] sm:$0xf]
        %v1075 = vld [vmem:[%s1067 + $0x1c] sm:$0xf]
        %v1076 = vld [vmem:[%s1067 + $0x20] sm:$0xf]
        %v1077 = vld [vmem:[%s1067 + $0x24] sm:$0xf]
        %v1078 = vld [vmem:[%s1067 + $0x28] sm:$0xf]
        %v1079 = vld [vmem:[%s1067 + $0x2c] sm:$0xf]
        %v1080 = vld [vmem:[%s1067 + $0x30] sm:$0xf]
        %v1081 = vld [vmem:[%s1067 + $0x34] sm:$0xf]
        %v1082 = vld [vmem:[%s1067 + $0x38] sm:$0xf]
        %v1083 = vld [vmem:[%s1067 + $0x3c] sm:$0xf]
        %v1100 = vunpack.c.l.b16 %v1068
        %v1101 = vunpack.c.l.b16 %v1069
        %v1102 = vunpack.c.l.b16 %v1070
        %v1103 = vunpack.c.l.b16 %v1071
        %v1104 = vunpack.c.l.b16 %v1072
        %v1105 = vunpack.c.l.b16 %v1073
        %v1106 = vunpack.c.l.b16 %v1074
        %v1107 = vunpack.c.l.b16 %v1075
        %v1108 = vunpack.c.l.b16 %v1076
        %v1109 = vunpack.c.l.b16 %v1077
        %v1110 = vunpack.c.l.b16 %v1078
        %v1111 = vunpack.c.l.b16 %v1079
        %v1112 = vunpack.c.l.b16 %v1080
        %v1113 = vunpack.c.l.b16 %v1081
        %v1114 = vunpack.c.l.b16 %v1082
        %v1115 = vunpack.c.l.b16 %v1083
        %v1116 = vpack.c.b16 %v1101, %v1100
        %v1117 = vpack.c.b16 %v1103, %v1102
        %v1118 = vpack.c.b16 %v1105, %v1104
        %v1119 = vpack.c.b16 %v1107, %v1106
        %v1120 = vpack.c.b16 %v1109, %v1108
        %v1121 = vpack.c.b16 %v1111, %v1110
        %v1122 = vpack.c.b16 %v1113, %v1112
        %v1123 = vpack.c.b16 %v1115, %v1114
        %1132 = vmatpush.bf16.msra.mxu0 %v1123
        %1133 = vmatpush.bf16.msra.mxu0 %v1122
        %1134 = vmatpush.bf16.msra.mxu0 %v1121
        %1135 = vmatpush.bf16.msra.mxu0 %v1120
        %1136 = vmatpush.bf16.msra.mxu0 %v1119
        %1137 = vmatpush.bf16.msra.mxu0 %v1118
        %1138 = vmatpush.bf16.msra.mxu0 %v1117
        %1139 = vmatpush.bf16.msra.mxu0 %v1116
        %1140 = vmatmul.bf16.gmra.mxu0 %v877
        %v1141 = vpop.f32.mrf.mxu0
        %v1142 = vadd.f32 0.0, %v1141
        %v1143 = vpop.f32.mrf.mxu0
        %v1144 = vadd.f32 0.0, %v1143
        %1145 = vmatmul.bf16.gmra.mxu0 %v878
        %v1146 = vpop.f32.mrf.mxu0
        %v1147 = vadd.f32 0.0, %v1146
        %v1148 = vpop.f32.mrf.mxu0
        %v1149 = vadd.f32 0.0, %v1148
        %1150 = vmatmul.bf16.gmra.mxu0 %v879
        %v1151 = vpop.f32.mrf.mxu0
        %v1152 = vadd.f32 0.0, %v1151
        %v1153 = vpop.f32.mrf.mxu0
        %1154 = vdwg.mxu0
        %v1160 = vrot.slane %v1142, 2
        %v1161 = vrot.slane %v1144, 2
        %v1162 = vsel %vm505, %v1160, %v1161
        %v1163 = vrot.slane %v1147, 2
        %v1164 = vsel %vm505, %v1161, %v1163
        %v1165 = vrot.slane %v1149, 2
        %v1166 = vsel %vm505, %v1163, %v1165
        %v1167 = vrot.slane %v1152, 2
        %v1168 = vsel %vm505, %v1165, %v1167
        %v1173 = vadd.f32 %v1063, %v1162
        %v1174 = vadd.f32 %v1064, %v1164
        %v1175 = vadd.f32 %v1065, %v1166
        %v1176 = vadd.f32 %v1066, %v1168
        %v1177 = vld [vmem:[%s2] sm:$0x1]
        %v1179 = vperm.slane %v1177, 0
        %v1181 = vadd.f32 %v1173, %v1179
        %v1182 = vadd.f32 %v1174, %v1179
        %v1183 = vadd.f32 %v1175, %v1179
        %v1184 = vadd.f32 %v1176, %v1179
        %v1185 = vmax.f32 %v1181, 0.0
        %v1186 = vmax.f32 %v1182, 0.0
        %v1187 = vmax.f32 %v1183, 0.0
        %v1188 = vmax.f32 %v1184, 0.0
        %v1189 = vpack.c.bf16 %v1185, %v1185
        %v1190 = vpack.c.bf16 %v1186, %v1186
        %v1191 = vpack.c.bf16 %v1187, %v1187
        %v1192 = vpack.c.bf16 %v1188, %v1188
        %s1193 = smul.u32 %s172, 4
        %s1194 = smul.addr %s1193, 4
        %s1195 = scalar_lea.vmem %s170, %s1194
        %1196 = vst [vmem:[%s1195] sm:$0xf] %v1189
        %1197 = vst [vmem:[%s1195 + $0x4] sm:$0xf] %v1190
        %1198 = vst [vmem:[%s1195 + $0x8] sm:$0xf] %v1191
        %1199 = vst [vmem:[%s1195 + $0xc] sm:$0xf] %v1192
      $region37: #{features_encoding.20} parent=31 // loop_footer
        %s176 = sadd.s32 1, %s172
      $region38: #{features_encoding.20} parent=31 // loop_footer_branch
        %171 = sbr.rel target = $region34
      $region39: #{features_encoding.20} parent=31 // loop_exit
        _
      %p1200 = scmp.lt.s32.totalorder %s14, 1
      %s1201 = scalar_select %p1200, %s14, 1
      %s1202 = smul.addr %s1201, 128
      %s1203 = smul.addr %s1202, 4
      %s1204 = scalar_lea.vmem %s3, %s1203
      // Predicated region
      $region40: #{features_encoding.20} parent=31 // pred_check
        %p1205 = pneg %p100
      $region41: #{features_encoding.20} parent=31 // pred_check_branch
        %1207 = sbr.rel (%p1205) target = $region43
      $region42: #{features_encoding.20} parent=31 // pred_region
        _
      $region43: #{features_encoding.20} parent=31 // pred_fallthru
        _
    $region32: #{features_encoding.20} parent=5 // pred_fallthru
      _
    %p1208 = scmp.le.s32.totalorder 2, %s9
    // Predicated region
    $region44: #{features_encoding.20} parent=5 // pred_check
      %p1209 = pneg %p1208
    $region45: #{features_encoding.20} parent=5 // pred_check_branch
      %1211 = sbr.rel (%p1209) target = $region47
    $region46: #{features_encoding.20} parent=5 // pred_region
      %s1212 = ssub.s32 %s9, 2
      // Predicated region
      $region48: #{features_encoding.20} parent=46 // pred_check
        %p1213 = pneg %p106
      $region49: #{features_encoding.20} parent=46 // pred_check_branch
        %1215 = sbr.rel (%p1213) target = $region51
      $region50: #{features_encoding.20} parent=46 // pred_region
        %p1216 = scmp.lt.s32.totalorder %s15, 1
        %s1217 = scalar_select %p1216, %s15, 1
        %s1218 = smul.addr %s1217, 128
        %s1219 = smul.addr %s1218, 4
        %s1220 = scalar_lea.vmem %s3, %s1219
      $region51: #{features_encoding.20} parent=46 // pred_fallthru
        _
    $region47: #{features_encoding.20} parent=5 // pred_fallthru
      _
  $region6: #{features_encoding.20} parent=0 // loop_footer
    %s13 = sadd.s32 1, %s9
  $region7: #{features_encoding.20} parent=0 // loop_footer_branch
    %8 = sbr.rel target = $region3
  $region8: #{features_encoding.20} parent=0 // loop_exit
    _

// kernel: features_encoding.22
$region0: #{features_encoding.22}
  #allocation0 [shape = 'u32[]', space=smem, size = 0x4, offset = 0x4, fixed_abs, tag = 'smem constant byte address 0x4 - core index']
  #allocation1 [shape = 'u32[72,128]{1,0:T(1,128)}', space=vmem, size = 0x9000, scoped, tag = 'internal scratch']
  %s0 = inlined_call_operand.vmem [shape: bf16[64,16,2,128], index: 0, kind: input, shape index: {}]
  %s1 = inlined_call_operand.vmem [shape: bf16[32,16,128], index: 1, kind: output, shape index: {}]
  %s2 = sld [smem:[#allocation0]]
  $region37: #{features_encoding.22} parent=0
    _
  %s4 = ssub.s32 1, %s2
  %s5 = scalar_select 0, %s4, %s2
  loop: start=0, step=1, limit=34
  $region2: #{features_encoding.22} parent=0 // loop_pre_header
    _
  $region3: #{features_encoding.22} parent=0 // loop_header
    %s7 = sphi 0, %s11
    %p8 = scmp.ge.s32.totalorder %s7, 34
    %s17 = sphi 0, %s19
    %s20 = sphi 0, %s17
    %s21 = sphi 0, %s20
    %s37 = sphi 0, %s21
    %s43 = sphi 0, %s45
    %s46 = sphi 0, %s43
    %s47 = sphi 0, %s46
    %s63 = sphi 0, %s47
  $region4: #{features_encoding.22} parent=0 // loop_header_branch
    %10 = sbr.rel (%p8) target = $region8
  $region5: #{features_encoding.22} parent=0 // loop_body
    %s12 = ssub.s32 %s7, 1
    %s13 = ssub.s32 %s7, 2
    %s14 = sadd.s32 %s7, 1
    %s15 = ssub.s32 %s7, %s14
    %p16 = scmp.eq.s32.totalorder %s15, 0
    %s18 = sadd.s32 %s17, 1
    %s19 = scalar_select %p16, %s17, %s18
    %p22 = pneg %p16
    %p23 = scmp.eq.s32.totalorder %s7, 31
    %p24 = por %p22, %p23
    %p25 = scmp.ne.s32.totalorder %s17, %s20
    %p26 = scmp.eq.s32.totalorder %s7, 0
    %p27 = por %p25, %p26
    %p28 = scmp.ne.s32.totalorder %s17, %s20
    %p29 = scmp.eq.s32.totalorder %s12, 31
    %p30 = por %p28, %p29
    %p31 = scmp.ne.s32.totalorder %s20, %s21
    %p32 = scmp.eq.s32.totalorder %s12, 0
    %p33 = por %p31, %p32
    %p34 = scmp.ne.s32.totalorder %s20, %s21
    %p35 = scmp.eq.s32.totalorder %s13, 31
    %p36 = por %p34, %p35
    %p38 = scmp.ne.s32.totalorder %s21, %s37
    %p39 = scmp.eq.s32.totalorder %s13, 0
    %p40 = por %p38, %p39
    %s41 = ssub.s32 %s7, %s14
    %p42 = scmp.eq.s32.totalorder %s41, 0
    %s44 = sadd.s32 %s43, 1
    %s45 = scalar_select %p42, %s43, %s44
    %p48 = pneg %p42
    %p49 = scmp.eq.s32.totalorder %s7, 31
    %p50 = por %p48, %p49
    %p51 = scmp.ne.s32.totalorder %s43, %s46
    %p52 = scmp.eq.s32.totalorder %s7, 0
    %p53 = por %p51, %p52
    %p54 = scmp.ne.s32.totalorder %s43, %s46
    %p55 = scmp.eq.s32.totalorder %s12, 31
    %p56 = por %p54, %p55
    %p57 = scmp.ne.s32.totalorder %s46, %s47
    %p58 = scmp.eq.s32.totalorder %s12, 0
    %p59 = por %p57, %p58
    %p60 = scmp.ne.s32.totalorder %s46, %s47
    %p61 = scmp.eq.s32.totalorder %s13, 31
    %p62 = por %p60, %p61
    %p64 = scmp.ne.s32.totalorder %s47, %s63
    %p65 = scmp.eq.s32.totalorder %s13, 0
    %p66 = por %p64, %p65
    %p67 = scmp.le.s32.totalorder 1, %s7
    %p68 = scmp.lt.s32.totalorder %s7, 33
    %p69 = pnand %p67, %p68
    %p70 = pneg %p69
    // Predicated region
    $region9: #{features_encoding.22} parent=5 // pred_check
      _
    $region10: #{features_encoding.22} parent=5 // pred_check_branch
      %72 = sbr.rel (%p69) target = $region12
    $region11: #{features_encoding.22} parent=5 // pred_region
      %s73 = ssub.s32 %s7, 1
    $region12: #{features_encoding.22} parent=5 // pred_fallthru
      _
    %p74 = scmp.lt.s32.totalorder %s7, 32
    // Predicated region
    $region13: #{features_encoding.22} parent=5 // pred_check
      %p75 = pneg %p74
    $region14: #{features_encoding.22} parent=5 // pred_check_branch
      %77 = sbr.rel (%p75) target = $region16
    $region15: #{features_encoding.22} parent=5 // pred_region
      // Predicated region
      $region17: #{features_encoding.22} parent=15 // pred_check
        %p78 = pneg %p27
      $region18: #{features_encoding.22} parent=15 // pred_check_branch
        %80 = sbr.rel (%p78) target = $region20
      $region19: #{features_encoding.22} parent=15 // pred_region
        %s81 = smul.u32 2, %s7
        %p82 = scmp.lt.s32.totalorder %s81, 63
        %s83 = scalar_select %p82, %s81, 63
        %s84 = smul.addr %s83, 16
        %s85 = scalar_lea.vmem %s0, %s84
        %s86 = smul.u32 2, %s7
      $region20: #{features_encoding.22} parent=15 // pred_fallthru
        _
    $region16: #{features_encoding.22} parent=5 // pred_fallthru
      _
    %p87 = scmp.le.s32.totalorder 1, %s7
    %p88 = scmp.lt.s32.totalorder %s7, 33
    %p89 = pnand %p87, %p88
    %p90 = pneg %p89
    // Predicated region
    $region21: #{features_encoding.22} parent=5 // pred_check
      _
    $region22: #{features_encoding.22} parent=5 // pred_check_branch
      %92 = sbr.rel (%p89) target = $region24
    $region23: #{features_encoding.22} parent=5 // pred_region
      %s93 = ssub.s32 %s7, 1
      %s94 = smul.u32 2, %s12
      %p95 = scmp.lt.s32.totalorder %s94, 63
      %s96 = scalar_select %p95, %s94, 63
      %s97 = smul.addr %s96, 16
      %s98 = scalar_lea.vmem %s0, %s97
      %p99 = pneg %p33
      %p100 = pneg %p30
      %p101 = pneg %p59
      %p102 = pneg %p56
      %p103 = scmp.lt.s32.totalorder %s12, 31
      %s104 = scalar_select %p103, %s12, 31
      %s105 = smul.addr %s104, 2
      %s106 = smul.addr %s105, 4
      %s107 = scalar_lea.vmem %s1, %s106
      %s108 = smul.u32 2, %s12
      %p109 = scmp.lt.s32.totalorder %s108, 63
      %s110 = scalar_select %p109, %s108, 63
      %s111 = smul.addr %s110, 16
      %s112 = scalar_lea.vmem %s0, %s111
      %s113 = smul.u32 2, %s12
      %p114 = scmp.lt.s32.totalorder %s12, 31
      %s115 = scalar_select %p114, %s12, 31
      %s116 = smul.addr %s115, 2
      %s117 = smul.addr %s116, 4
      %s118 = scalar_lea.vmem %s1, %s117
      %v119 = vld [vmem:[%s112] sm:$0x1]
      %v120 = vld [vmem:[%s112 + $0x1] sm:$0x1]
      %v121 = vld [vmem:[%s112 + $0x2] sm:$0x1]
      %v122 = vld [vmem:[%s112 + $0x3] sm:$0x1]
      %v123 = vld [vmem:[%s112 + $0x4] sm:$0x1]
      %v124 = vld [vmem:[%s112 + $0x5] sm:$0x1]
      %v125 = vld [vmem:[%s112 + $0x6] sm:$0x1]
      %v126 = vld [vmem:[%s112 + $0x7] sm:$0x1]
      %v127 = vld [vmem:[%s112 + $0x8] sm:$0x1]
      %v128 = vld [vmem:[%s112 + $0x9] sm:$0x1]
      %v129 = vld [vmem:[%s112 + $0xa] sm:$0x1]
      %v130 = vld [vmem:[%s112 + $0xb] sm:$0x1]
      %v131 = vld [vmem:[%s112 + $0xc] sm:$0x1]
      %v132 = vld [vmem:[%s112 + $0xd] sm:$0x1]
      %v133 = vld [vmem:[%s112 + $0xe] sm:$0x1]
      %v134 = vld [vmem:[%s112 + $0xf] sm:$0x1]
      %v135 = vld [vmem:[%s112 + $0x10] sm:$0x1]
      %v136 = vld [vmem:[%s112 + $0x11] sm:$0x1]
      %v137 = vld [vmem:[%s112 + $0x12] sm:$0x1]
      %v138 = vld [vmem:[%s112 + $0x13] sm:$0x1]
      %v139 = vld [vmem:[%s112 + $0x14] sm:$0x1]
      %v140 = vld [vmem:[%s112 + $0x15] sm:$0x1]
      %v141 = vld [vmem:[%s112 + $0x16] sm:$0x1]
      %v142 = vld [vmem:[%s112 + $0x17] sm:$0x1]
      %v143 = vld [vmem:[%s112 + $0x18] sm:$0x1]
      %v144 = vld [vmem:[%s112 + $0x19] sm:$0x1]
      %v145 = vld [vmem:[%s112 + $0x1a] sm:$0x1]
      %v146 = vld [vmem:[%s112 + $0x1b] sm:$0x1]
      %v147 = vld [vmem:[%s112 + $0x1c] sm:$0x1]
      %v148 = vld [vmem:[%s112 + $0x1d] sm:$0x1]
      %v149 = vld [vmem:[%s112 + $0x1e] sm:$0x1]
      %v150 = vld [vmem:[%s112 + $0x1f] sm:$0x1]
      %v151 = vunpack.c.l.bf16 %v119
      %v152 = vunpack.c.l.bf16 %v120
      %v153 = vunpack.c.l.bf16 %v121
      %v154 = vunpack.c.l.bf16 %v122
      %v155 = vunpack.c.l.bf16 %v123
      %v156 = vunpack.c.l.bf16 %v124
      %v157 = vunpack.c.l.bf16 %v125
      %v158 = vunpack.c.l.bf16 %v126
      %v159 = vunpack.c.l.bf16 %v127
      %v160 = vunpack.c.l.bf16 %v128
      %v161 = vunpack.c.l.bf16 %v129
      %v162 = vunpack.c.l.bf16 %v130
      %v163 = vunpack.c.l.bf16 %v131
      %v164 = vunpack.c.l.bf16 %v132
      %v165 = vunpack.c.l.bf16 %v133
      %v166 = vunpack.c.l.bf16 %v134
      %v167 = vunpack.c.l.bf16 %v135
      %v168 = vunpack.c.l.bf16 %v136
      %v169 = vunpack.c.l.bf16 %v137
      %v170 = vunpack.c.l.bf16 %v138
      %v171 = vunpack.c.l.bf16 %v139
      %v172 = vunpack.c.l.bf16 %v140
      %v173 = vunpack.c.l.bf16 %v141
      %v174 = vunpack.c.l.bf16 %v142
      %v175 = vunpack.c.l.bf16 %v143
      %v176 = vunpack.c.l.bf16 %v144
      %v177 = vunpack.c.l.bf16 %v145
      %v178 = vunpack.c.l.bf16 %v146
      %v179 = vunpack.c.l.bf16 %v147
      %v180 = vunpack.c.l.bf16 %v148
      %v181 = vunpack.c.l.bf16 %v149
      %v182 = vunpack.c.l.bf16 %v150
      %v183 = vmax.f32 %v151, %v167
      %v184 = vmax.f32 %v152, %v168
      %v185 = vmax.f32 %v153, %v169
      %v186 = vmax.f32 %v154, %v170
      %v187 = vmax.f32 %v155, %v171
      %v188 = vmax.f32 %v156, %v172
      %v189 = vmax.f32 %v157, %v173
      %v190 = vmax.f32 %v158, %v174
      %v191 = vmax.f32 %v159, %v175
      %v192 = vmax.f32 %v160, %v176
      %v193 = vmax.f32 %v161, %v177
      %v194 = vmax.f32 %v162, %v178
      %v195 = vmax.f32 %v163, %v179
      %v196 = vmax.f32 %v164, %v180
      %v197 = vmax.f32 %v165, %v181
      %v198 = vmax.f32 %v166, %v182
      %v199 = vpack.c.bf16 %v183, %v183
      %v200 = vpack.c.bf16 %v184, %v184
      %v201 = vpack.c.bf16 %v185, %v185
      %v202 = vpack.c.bf16 %v186, %v186
      %v203 = vpack.c.bf16 %v187, %v187
      %v204 = vpack.c.bf16 %v188, %v188
      %v205 = vpack.c.bf16 %v189, %v189
      %v206 = vpack.c.bf16 %v190, %v190
      %v207 = vpack.c.bf16 %v191, %v191
      %v208 = vpack.c.bf16 %v192, %v192
      %v209 = vpack.c.bf16 %v193, %v193
      %v210 = vpack.c.bf16 %v194, %v194
      %v211 = vpack.c.bf16 %v195, %v195
      %v212 = vpack.c.bf16 %v196, %v196
      %v213 = vpack.c.bf16 %v197, %v197
      %v214 = vpack.c.bf16 %v198, %v198
      %v215 = vunpack.c.l.bf16 %v199
      %v216 = vunpack.c.l.bf16 %v200
      %v217 = vunpack.c.l.bf16 %v201
      %v218 = vunpack.c.l.bf16 %v202
      %v219 = vunpack.c.l.bf16 %v203
      %v220 = vunpack.c.l.bf16 %v204
      %v221 = vunpack.c.l.bf16 %v205
      %v222 = vunpack.c.l.bf16 %v206
      %v223 = vunpack.c.l.bf16 %v207
      %v224 = vunpack.c.l.bf16 %v208
      %v225 = vunpack.c.l.bf16 %v209
      %v226 = vunpack.c.l.bf16 %v210
      %v227 = vunpack.c.l.bf16 %v211
      %v228 = vunpack.c.l.bf16 %v212
      %v229 = vunpack.c.l.bf16 %v213
      %v230 = vunpack.c.l.bf16 %v214
      %vm231 = vcmask 1041408
      %v232 = vsel %vm231, %v215, -inf
      %v233 = vrot.slane %v232, 4
      %v234 = vmax.f32 %v232, %v233
      %v235 = vrot.slane %v234, 2
      %v236 = vmax.f32 %v234, %v235
      %v237 = vrot.slane %v236, 1
      %v238 = vmax.f32 %v236, %v237
      %v239 = vsel %vm231, %v216, -inf
      %v240 = vrot.slane %v239, 4
      %v241 = vmax.f32 %v239, %v240
      %v242 = vrot.slane %v241, 2
      %v243 = vmax.f32 %v241, %v242
      %v244 = vrot.slane %v243, 1
      %v245 = vmax.f32 %v243, %v244
      %v246 = vsel %vm231, %v217, -inf
      %v247 = vrot.slane %v246, 4
      %v248 = vmax.f32 %v246, %v247
      %v249 = vrot.slane %v248, 2
      %v250 = vmax.f32 %v248, %v249
      %v251 = vrot.slane %v250, 1
      %v252 = vmax.f32 %v250, %v251
      %v253 = vsel %vm231, %v218, -inf
      %v254 = vrot.slane %v253, 4
      %v255 = vmax.f32 %v253, %v254
      %v256 = vrot.slane %v255, 2
      %v257 = vmax.f32 %v255, %v256
      %v258 = vrot.slane %v257, 1
      %v259 = vmax.f32 %v257, %v258
      %v260 = vsel %vm231, %v219, -inf
      %v261 = vrot.slane %v260, 4
      %v262 = vmax.f32 %v260, %v261
      %v263 = vrot.slane %v262, 2
      %v264 = vmax.f32 %v262, %v263
      %v265 = vrot.slane %v264, 1
      %v266 = vmax.f32 %v264, %v265
      %v267 = vsel %vm231, %v220, -inf
      %v268 = vrot.slane %v267, 4
      %v269 = vmax.f32 %v267, %v268
      %v270 = vrot.slane %v269, 2
      %v271 = vmax.f32 %v269, %v270
      %v272 = vrot.slane %v271, 1
      %v273 = vmax.f32 %v271, %v272
      %v274 = vsel %vm231, %v221, -inf
      %v275 = vrot.slane %v274, 4
      %v276 = vmax.f32 %v274, %v275
      %v277 = vrot.slane %v276, 2
      %v278 = vmax.f32 %v276, %v277
      %v279 = vrot.slane %v278, 1
      %v280 = vmax.f32 %v278, %v279
      %v281 = vsel %vm231, %v222, -inf
      %v282 = vrot.slane %v281, 4
      %v283 = vmax.f32 %v281, %v282
      %v284 = vrot.slane %v283, 2
      %v285 = vmax.f32 %v283, %v284
      %v286 = vrot.slane %v285, 1
      %v287 = vmax.f32 %v285, %v286
      %v288 = vsel %vm231, %v223, -inf
      %v289 = vrot.slane %v288, 4
      %v290 = vmax.f32 %v288, %v289
      %v291 = vrot.slane %v290, 2
      %v292 = vmax.f32 %v290, %v291
      %v293 = vrot.slane %v292, 1
      %v294 = vmax.f32 %v292, %v293
      %v295 = vsel %vm231, %v224, -inf
      %v296 = vrot.slane %v295, 4
      %v297 = vmax.f32 %v295, %v296
      %v298 = vrot.slane %v297, 2
      %v299 = vmax.f32 %v297, %v298
      %v300 = vrot.slane %v299, 1
      %v301 = vmax.f32 %v299, %v300
      %v302 = vsel %vm231, %v225, -inf
      %v303 = vrot.slane %v302, 4
      %v304 = vmax.f32 %v302, %v303
      %v305 = vrot.slane %v304, 2
      %v306 = vmax.f32 %v304, %v305
      %v307 = vrot.slane %v306, 1
      %v308 = vmax.f32 %v306, %v307
      %v309 = vsel %vm231, %v226, -inf
      %v310 = vrot.slane %v309, 4
      %v311 = vmax.f32 %v309, %v310
      %v312 = vrot.slane %v311, 2
      %v313 = vmax.f32 %v311, %v312
      %v314 = vrot.slane %v313, 1
      %v315 = vmax.f32 %v313, %v314
      %v316 = vsel %vm231, %v227, -inf
      %v317 = vrot.slane %v316, 4
      %v318 = vmax.f32 %v316, %v317
      %v319 = vrot.slane %v318, 2
      %v320 = vmax.f32 %v318, %v319
      %v321 = vrot.slane %v320, 1
      %v322 = vmax.f32 %v320, %v321
      %v323 = vsel %vm231, %v228, -inf
      %v324 = vrot.slane %v323, 4
      %v325 = vmax.f32 %v323, %v324
      %v326 = vrot.slane %v325, 2
      %v327 = vmax.f32 %v325, %v326
      %v328 = vrot.slane %v327, 1
      %v329 = vmax.f32 %v327, %v328
      %v330 = vsel %vm231, %v229, -inf
      %v331 = vrot.slane %v330, 4
      %v332 = vmax.f32 %v330, %v331
      %v333 = vrot.slane %v332, 2
      %v334 = vmax.f32 %v332, %v333
      %v335 = vrot.slane %v334, 1
      %v336 = vmax.f32 %v334, %v335
      %v337 = vsel %vm231, %v230, -inf
      %v338 = vrot.slane %v337, 4
      %v339 = vmax.f32 %v337, %v338
      %v340 = vrot.slane %v339, 2
      %v341 = vmax.f32 %v339, %v340
      %v342 = vrot.slane %v341, 1
      %v343 = vmax.f32 %v341, %v342
      %v344 = vpack.c.bf16 %v238, %v238
      %v345 = vpack.c.bf16 %v245, %v245
      %v346 = vpack.c.bf16 %v252, %v252
      %v347 = vpack.c.bf16 %v259, %v259
      %v348 = vpack.c.bf16 %v266, %v266
      %v349 = vpack.c.bf16 %v273, %v273
      %v350 = vpack.c.bf16 %v280, %v280
      %v351 = vpack.c.bf16 %v287, %v287
      %v352 = vpack.c.bf16 %v294, %v294
      %v353 = vpack.c.bf16 %v301, %v301
      %v354 = vpack.c.bf16 %v308, %v308
      %v355 = vpack.c.bf16 %v315, %v315
      %v356 = vpack.c.bf16 %v322, %v322
      %v357 = vpack.c.bf16 %v329, %v329
      %v358 = vpack.c.bf16 %v336, %v336
      %v359 = vpack.c.bf16 %v343, %v343
      %v376 = vunpack.c.l.b16 %v344
      %v377 = vunpack.c.l.b16 %v345
      %v378 = vunpack.c.l.b16 %v346
      %v379 = vunpack.c.l.b16 %v347
      %v380 = vunpack.c.l.b16 %v348
      %v381 = vunpack.c.l.b16 %v349
      %v382 = vunpack.c.l.b16 %v350
      %v383 = vunpack.c.l.b16 %v351
      %v384 = vunpack.c.l.b16 %v352
      %v385 = vunpack.c.l.b16 %v353
      %v386 = vunpack.c.l.b16 %v354
      %v387 = vunpack.c.l.b16 %v355
      %v388 = vunpack.c.l.b16 %v356
      %v389 = vunpack.c.l.b16 %v357
      %v390 = vunpack.c.l.b16 %v358
      %v391 = vunpack.c.l.b16 %v359
      %vm392 = vcmask 1041409
      %v393 = vsel %vm392, %v377, %v376
      %vm394 = vcmask 1042434
      %v395 = vsel %vm394, %v378, %v393
      %vm396 = vcmask 1043459
      %v397 = vsel %vm396, %v379, %v395
      %vm398 = vcmask 1044484
      %v399 = vsel %vm398, %v380, %v397
      %vm400 = vcmask 1045509
      %v401 = vsel %vm400, %v381, %v399
      %vm402 = vcmask 1046534
      %v403 = vsel %vm402, %v382, %v401
      %vm404 = vcmask 1047559
      %v405 = vsel %vm404, %v383, %v403
      %v406 = vsel %vm392, %v385, %v384
      %v407 = vsel %vm394, %v386, %v406
      %v408 = vsel %vm396, %v387, %v407
      %v409 = vsel %vm398, %v388, %v408
      %v410 = vsel %vm400, %v389, %v409
      %v411 = vsel %vm402, %v390, %v410
      %v412 = vsel %vm404, %v391, %v411
      %v413 = vpack.c.b16 %v405, %v405
      %v414 = vpack.c.b16 %v412, %v412
      %417 = vst [vmem:[%s118] sm:$0xf] %v413
      %418 = vst [vmem:[%s118 + $0x4] sm:$0xf] %v414
      %p419 = scmp.lt.s32.totalorder %s12, 31
      %s420 = scalar_select %p419, %s12, 31
      %s421 = smul.addr %s420, 2
      %s422 = smul.addr %s421, 4
      %s423 = scalar_lea.vmem %s1, %s422
      // Predicated region
      $region25: #{features_encoding.22} parent=23 // pred_check
        %p424 = pneg %p56
      $region26: #{features_encoding.22} parent=23 // pred_check_branch
        %426 = sbr.rel (%p424) target = $region28
      $region27: #{features_encoding.22} parent=23 // pred_region
        _
      $region28: #{features_encoding.22} parent=23 // pred_fallthru
        _
    $region24: #{features_encoding.22} parent=5 // pred_fallthru
      _
    %p427 = scmp.le.s32.totalorder 2, %s7
    // Predicated region
    $region29: #{features_encoding.22} parent=5 // pred_check
      %p428 = pneg %p427
    $region30: #{features_encoding.22} parent=5 // pred_check_branch
      %430 = sbr.rel (%p428) target = $region32
    $region31: #{features_encoding.22} parent=5 // pred_region
      %s431 = ssub.s32 %s7, 2
      // Predicated region
      $region33: #{features_encoding.22} parent=31 // pred_check
        %p432 = pneg %p62
      $region34: #{features_encoding.22} parent=31 // pred_check_branch
        %434 = sbr.rel (%p432) target = $region36
      $region35: #{features_encoding.22} parent=31 // pred_region
        %p435 = scmp.lt.s32.totalorder %s13, 31
        %s436 = scalar_select %p435, %s13, 31
        %s437 = smul.addr %s436, 2
        %s438 = smul.addr %s437, 4
        %s439 = scalar_lea.vmem %s1, %s438
      $region36: #{features_encoding.22} parent=31 // pred_fallthru
        _
    $region32: #{features_encoding.22} parent=5 // pred_fallthru
      _
  $region6: #{features_encoding.22} parent=0 // loop_footer
    %s11 = sadd.s32 1, %s7
  $region7: #{features_encoding.22} parent=0 // loop_footer_branch
    %6 = sbr.rel target = $region3
  $region8: #{features_encoding.22} parent=0 // loop_exit
    _

// kernel: features_encoding.25
$region0: #{features_encoding.25}
  #allocation0 [shape = 'u32[]', space=smem, size = 0x4, offset = 0x4, fixed_abs, tag = 'smem constant byte address 0x4 - core index']
  #allocation1 [shape = 'u32[72,128]{1,0:T(1,128)}', space=vmem, size = 0x9000, scoped, tag = 'internal scratch']
  %s0 = inlined_call_operand.vmem [shape: bf16[32,8,2,128], index: 0, kind: input, shape index: {}]
  %s1 = inlined_call_operand.vmem [shape: bf16[16,8,128], index: 1, kind: output, shape index: {}]
  %s2 = sld [smem:[#allocation0]]
  $region37: #{features_encoding.25} parent=0
    _
  %s4 = ssub.s32 1, %s2
  %s5 = scalar_select 0, %s4, %s2
  loop: start=0, step=1, limit=18
  $region2: #{features_encoding.25} parent=0 // loop_pre_header
    _
  $region3: #{features_encoding.25} parent=0 // loop_header
    %s7 = sphi 0, %s11
    %p8 = scmp.ge.s32.totalorder %s7, 18
    %s17 = sphi 0, %s19
    %s20 = sphi 0, %s17
    %s21 = sphi 0, %s20
    %s37 = sphi 0, %s21
    %s43 = sphi 0, %s45
    %s46 = sphi 0, %s43
    %s47 = sphi 0, %s46
    %s63 = sphi 0, %s47
  $region4: #{features_encoding.25} parent=0 // loop_header_branch
    %10 = sbr.rel (%p8) target = $region8
  $region5: #{features_encoding.25} parent=0 // loop_body
    %s12 = ssub.s32 %s7, 1
    %s13 = ssub.s32 %s7, 2
    %s14 = sadd.s32 %s7, 1
    %s15 = ssub.s32 %s7, %s14
    %p16 = scmp.eq.s32.totalorder %s15, 0
    %s18 = sadd.s32 %s17, 1
    %s19 = scalar_select %p16, %s17, %s18
    %p22 = pneg %p16
    %p23 = scmp.eq.s32.totalorder %s7, 15
    %p24 = por %p22, %p23
    %p25 = scmp.ne.s32.totalorder %s17, %s20
    %p26 = scmp.eq.s32.totalorder %s7, 0
    %p27 = por %p25, %p26
    %p28 = scmp.ne.s32.totalorder %s17, %s20
    %p29 = scmp.eq.s32.totalorder %s12, 15
    %p30 = por %p28, %p29
    %p31 = scmp.ne.s32.totalorder %s20, %s21
    %p32 = scmp.eq.s32.totalorder %s12, 0
    %p33 = por %p31, %p32
    %p34 = scmp.ne.s32.totalorder %s20, %s21
    %p35 = scmp.eq.s32.totalorder %s13, 15
    %p36 = por %p34, %p35
    %p38 = scmp.ne.s32.totalorder %s21, %s37
    %p39 = scmp.eq.s32.totalorder %s13, 0
    %p40 = por %p38, %p39
    %s41 = ssub.s32 %s7, %s14
    %p42 = scmp.eq.s32.totalorder %s41, 0
    %s44 = sadd.s32 %s43, 1
    %s45 = scalar_select %p42, %s43, %s44
    %p48 = pneg %p42
    %p49 = scmp.eq.s32.totalorder %s7, 15
    %p50 = por %p48, %p49
    %p51 = scmp.ne.s32.totalorder %s43, %s46
    %p52 = scmp.eq.s32.totalorder %s7, 0
    %p53 = por %p51, %p52
    %p54 = scmp.ne.s32.totalorder %s43, %s46
    %p55 = scmp.eq.s32.totalorder %s12, 15
    %p56 = por %p54, %p55
    %p57 = scmp.ne.s32.totalorder %s46, %s47
    %p58 = scmp.eq.s32.totalorder %s12, 0
    %p59 = por %p57, %p58
    %p60 = scmp.ne.s32.totalorder %s46, %s47
    %p61 = scmp.eq.s32.totalorder %s13, 15
    %p62 = por %p60, %p61
    %p64 = scmp.ne.s32.totalorder %s47, %s63
    %p65 = scmp.eq.s32.totalorder %s13, 0
    %p66 = por %p64, %p65
    %p67 = scmp.le.s32.totalorder 1, %s7
    %p68 = scmp.lt.s32.totalorder %s7, 17
    %p69 = pnand %p67, %p68
    %p70 = pneg %p69
    // Predicated region
    $region9: #{features_encoding.25} parent=5 // pred_check
      _
    $region10: #{features_encoding.25} parent=5 // pred_check_branch
      %72 = sbr.rel (%p69) target = $region12
    $region11: #{features_encoding.25} parent=5 // pred_region
      %s73 = ssub.s32 %s7, 1
    $region12: #{features_encoding.25} parent=5 // pred_fallthru
      _
    %p74 = scmp.lt.s32.totalorder %s7, 16
    // Predicated region
    $region13: #{features_encoding.25} parent=5 // pred_check
      %p75 = pneg %p74
    $region14: #{features_encoding.25} parent=5 // pred_check_branch
      %77 = sbr.rel (%p75) target = $region16
    $region15: #{features_encoding.25} parent=5 // pred_region
      // Predicated region
      $region17: #{features_encoding.25} parent=15 // pred_check
        %p78 = pneg %p27
      $region18: #{features_encoding.25} parent=15 // pred_check_branch
        %80 = sbr.rel (%p78) target = $region20
      $region19: #{features_encoding.25} parent=15 // pred_region
        %s81 = smul.u32 2, %s7
        %p82 = scmp.lt.s32.totalorder %s81, 31
        %s83 = scalar_select %p82, %s81, 31
        %s84 = smul.addr %s83, 8
        %s85 = scalar_lea.vmem %s0, %s84
        %s86 = smul.u32 2, %s7
      $region20: #{features_encoding.25} parent=15 // pred_fallthru
        _
    $region16: #{features_encoding.25} parent=5 // pred_fallthru
      _
    %p87 = scmp.le.s32.totalorder 1, %s7
    %p88 = scmp.lt.s32.totalorder %s7, 17
    %p89 = pnand %p87, %p88
    %p90 = pneg %p89
    // Predicated region
    $region21: #{features_encoding.25} parent=5 // pred_check
      _
    $region22: #{features_encoding.25} parent=5 // pred_check_branch
      %92 = sbr.rel (%p89) target = $region24
    $region23: #{features_encoding.25} parent=5 // pred_region
      %s93 = ssub.s32 %s7, 1
      %s94 = smul.u32 2, %s12
      %p95 = scmp.lt.s32.totalorder %s94, 31
      %s96 = scalar_select %p95, %s94, 31
      %s97 = smul.addr %s96, 8
      %s98 = scalar_lea.vmem %s0, %s97
      %p99 = pneg %p33
      %p100 = pneg %p30
      %p101 = pneg %p59
      %p102 = pneg %p56
      %p103 = scmp.lt.s32.totalorder %s12, 15
      %s104 = scalar_select %p103, %s12, 15
      %s105 = smul.addr %s104, 4
      %s106 = scalar_lea.vmem %s1, %s105
      %s107 = smul.u32 2, %s12
      %p108 = scmp.lt.s32.totalorder %s107, 31
      %s109 = scalar_select %p108, %s107, 31
      %s110 = smul.addr %s109, 8
      %s111 = scalar_lea.vmem %s0, %s110
      %s112 = smul.u32 2, %s12
      %p113 = scmp.lt.s32.totalorder %s12, 15
      %s114 = scalar_select %p113, %s12, 15
      %s115 = smul.addr %s114, 4
      %s116 = scalar_lea.vmem %s1, %s115
      %v117 = vld [vmem:[%s111] sm:$0x1]
      %v118 = vld [vmem:[%s111 + $0x1] sm:$0x1]
      %v119 = vld [vmem:[%s111 + $0x2] sm:$0x1]
      %v120 = vld [vmem:[%s111 + $0x3] sm:$0x1]
      %v121 = vld [vmem:[%s111 + $0x4] sm:$0x1]
      %v122 = vld [vmem:[%s111 + $0x5] sm:$0x1]
      %v123 = vld [vmem:[%s111 + $0x6] sm:$0x1]
      %v124 = vld [vmem:[%s111 + $0x7] sm:$0x1]
      %v125 = vld [vmem:[%s111 + $0x8] sm:$0x1]
      %v126 = vld [vmem:[%s111 + $0x9] sm:$0x1]
      %v127 = vld [vmem:[%s111 + $0xa] sm:$0x1]
      %v128 = vld [vmem:[%s111 + $0xb] sm:$0x1]
      %v129 = vld [vmem:[%s111 + $0xc] sm:$0x1]
      %v130 = vld [vmem:[%s111 + $0xd] sm:$0x1]
      %v131 = vld [vmem:[%s111 + $0xe] sm:$0x1]
      %v132 = vld [vmem:[%s111 + $0xf] sm:$0x1]
      %v133 = vunpack.c.l.bf16 %v117
      %v134 = vunpack.c.l.bf16 %v118
      %v135 = vunpack.c.l.bf16 %v119
      %v136 = vunpack.c.l.bf16 %v120
      %v137 = vunpack.c.l.bf16 %v121
      %v138 = vunpack.c.l.bf16 %v122
      %v139 = vunpack.c.l.bf16 %v123
      %v140 = vunpack.c.l.bf16 %v124
      %v141 = vunpack.c.l.bf16 %v125
      %v142 = vunpack.c.l.bf16 %v126
      %v143 = vunpack.c.l.bf16 %v127
      %v144 = vunpack.c.l.bf16 %v128
      %v145 = vunpack.c.l.bf16 %v129
      %v146 = vunpack.c.l.bf16 %v130
      %v147 = vunpack.c.l.bf16 %v131
      %v148 = vunpack.c.l.bf16 %v132
      %v149 = vmax.f32 %v133, %v141
      %v150 = vmax.f32 %v134, %v142
      %v151 = vmax.f32 %v135, %v143
      %v152 = vmax.f32 %v136, %v144
      %v153 = vmax.f32 %v137, %v145
      %v154 = vmax.f32 %v138, %v146
      %v155 = vmax.f32 %v139, %v147
      %v156 = vmax.f32 %v140, %v148
      %v157 = vpack.c.bf16 %v149, %v149
      %v158 = vpack.c.bf16 %v150, %v150
      %v159 = vpack.c.bf16 %v151, %v151
      %v160 = vpack.c.bf16 %v152, %v152
      %v161 = vpack.c.bf16 %v153, %v153
      %v162 = vpack.c.bf16 %v154, %v154
      %v163 = vpack.c.bf16 %v155, %v155
      %v164 = vpack.c.bf16 %v156, %v156
      %v165 = vunpack.c.l.bf16 %v157
      %v166 = vunpack.c.l.bf16 %v158
      %v167 = vunpack.c.l.bf16 %v159
      %v168 = vunpack.c.l.bf16 %v160
      %v169 = vunpack.c.l.bf16 %v161
      %v170 = vunpack.c.l.bf16 %v162
      %v171 = vunpack.c.l.bf16 %v163
      %v172 = vunpack.c.l.bf16 %v164
      %vm173 = vcmask 1041408
      %v174 = vsel %vm173, %v165, -inf
      %v175 = vrot.slane %v174, 4
      %v176 = vmax.f32 %v174, %v175
      %v177 = vrot.slane %v176, 2
      %v178 = vmax.f32 %v176, %v177
      %v179 = vrot.slane %v178, 1
      %v180 = vmax.f32 %v178, %v179
      %v181 = vsel %vm173, %v166, -inf
      %v182 = vrot.slane %v181, 4
      %v183 = vmax.f32 %v181, %v182
      %v184 = vrot.slane %v183, 2
      %v185 = vmax.f32 %v183, %v184
      %v186 = vrot.slane %v185, 1
      %v187 = vmax.f32 %v185, %v186
      %v188 = vsel %vm173, %v167, -inf
      %v189 = vrot.slane %v188, 4
      %v190 = vmax.f32 %v188, %v189
      %v191 = vrot.slane %v190, 2
      %v192 = vmax.f32 %v190, %v191
      %v193 = vrot.slane %v192, 1
      %v194 = vmax.f32 %v192, %v193
      %v195 = vsel %vm173, %v168, -inf
      %v196 = vrot.slane %v195, 4
      %v197 = vmax.f32 %v195, %v196
      %v198 = vrot.slane %v197, 2
      %v199 = vmax.f32 %v197, %v198
      %v200 = vrot.slane %v199, 1
      %v201 = vmax.f32 %v199, %v200
      %v202 = vsel %vm173, %v169, -inf
      %v203 = vrot.slane %v202, 4
      %v204 = vmax.f32 %v202, %v203
      %v205 = vrot.slane %v204, 2
      %v206 = vmax.f32 %v204, %v205
      %v207 = vrot.slane %v206, 1
      %v208 = vmax.f32 %v206, %v207
      %v209 = vsel %vm173, %v170, -inf
      %v210 = vrot.slane %v209, 4
      %v211 = vmax.f32 %v209, %v210
      %v212 = vrot.slane %v211, 2
      %v213 = vmax.f32 %v211, %v212
      %v214 = vrot.slane %v213, 1
      %v215 = vmax.f32 %v213, %v214
      %v216 = vsel %vm173, %v171, -inf
      %v217 = vrot.slane %v216, 4
      %v218 = vmax.f32 %v216, %v217
      %v219 = vrot.slane %v218, 2
      %v220 = vmax.f32 %v218, %v219
      %v221 = vrot.slane %v220, 1
      %v222 = vmax.f32 %v220, %v221
      %v223 = vsel %vm173, %v172, -inf
      %v224 = vrot.slane %v223, 4
      %v225 = vmax.f32 %v223, %v224
      %v226 = vrot.slane %v225, 2
      %v227 = vmax.f32 %v225, %v226
      %v228 = vrot.slane %v227, 1
      %v229 = vmax.f32 %v227, %v228
      %v230 = vpack.c.bf16 %v180, %v180
      %v231 = vpack.c.bf16 %v187, %v187
      %v232 = vpack.c.bf16 %v194, %v194
      %v233 = vpack.c.bf16 %v201, %v201
      %v234 = vpack.c.bf16 %v208, %v208
      %v235 = vpack.c.bf16 %v215, %v215
      %v236 = vpack.c.bf16 %v222, %v222
      %v237 = vpack.c.bf16 %v229, %v229
      %v246 = vunpack.c.l.b16 %v230
      %v247 = vunpack.c.l.b16 %v231
      %v248 = vunpack.c.l.b16 %v232
      %v249 = vunpack.c.l.b16 %v233
      %v250 = vunpack.c.l.b16 %v234
      %v251 = vunpack.c.l.b16 %v235
      %v252 = vunpack.c.l.b16 %v236
      %v253 = vunpack.c.l.b16 %v237
      %vm254 = vcmask 1041409
      %v255 = vsel %vm254, %v247, %v246
      %vm256 = vcmask 1042434
      %v257 = vsel %vm256, %v248, %v255
      %vm258 = vcmask 1043459
      %v259 = vsel %vm258, %v249, %v257
      %vm260 = vcmask 1044484
      %v261 = vsel %vm260, %v250, %v259
      %vm262 = vcmask 1045509
      %v263 = vsel %vm262, %v251, %v261
      %vm264 = vcmask 1046534
      %v265 = vsel %vm264, %v252, %v263
      %vm266 = vcmask 1047559
      %v267 = vsel %vm266, %v253, %v265
      %v268 = vpack.c.b16 %v267, %v267
      %270 = vst [vmem:[%s116] sm:$0xf] %v268
      %p271 = scmp.lt.s32.totalorder %s12, 15
      %s272 = scalar_select %p271, %s12, 15
      %s273 = smul.addr %s272, 4
      %s274 = scalar_lea.vmem %s1, %s273
      // Predicated region
      $region25: #{features_encoding.25} parent=23 // pred_check
        %p275 = pneg %p56
      $region26: #{features_encoding.25} parent=23 // pred_check_branch
        %277 = sbr.rel (%p275) target = $region28
      $region27: #{features_encoding.25} parent=23 // pred_region
        _
      $region28: #{features_encoding.25} parent=23 // pred_fallthru
        _
    $region24: #{features_encoding.25} parent=5 // pred_fallthru
      _
    %p278 = scmp.le.s32.totalorder 2, %s7
    // Predicated region
    $region29: #{features_encoding.25} parent=5 // pred_check
      %p279 = pneg %p278
    $region30: #{features_encoding.25} parent=5 // pred_check_branch
      %281 = sbr.rel (%p279) target = $region32
    $region31: #{features_encoding.25} parent=5 // pred_region
      %s282 = ssub.s32 %s7, 2
      // Predicated region
      $region33: #{features_encoding.25} parent=31 // pred_check
        %p283 = pneg %p62
      $region34: #{features_encoding.25} parent=31 // pred_check_branch
        %285 = sbr.rel (%p283) target = $region36
      $region35: #{features_encoding.25} parent=31 // pred_region
        %p286 = scmp.lt.s32.totalorder %s13, 15
        %s287 = scalar_select %p286, %s13, 15
        %s288 = smul.addr %s287, 4
        %s289 = scalar_lea.vmem %s1, %s288
      $region36: #{features_encoding.25} parent=31 // pred_fallthru
        _
    $region32: #{features_encoding.25} parent=5 // pred_fallthru
      _
  $region6: #{features_encoding.25} parent=0 // loop_footer
    %s11 = sadd.s32 1, %s7
  $region7: #{features_encoding.25} parent=0 // loop_footer_branch
    %6 = sbr.rel target = $region3
  $region8: #{features_encoding.25} parent=0 // loop_exit
    _

// kernel: features_encoding.23
$region0: #{features_encoding.23}
  #allocation0 [shape = 'u32[]', space=smem, size = 0x4, offset = 0x4, fixed_abs, tag = 'smem constant byte address 0x4 - core index']
  #allocation1 [shape = 'u32[72,128]{1,0:T(1,128)}', space=vmem, size = 0x9000, scoped, tag = 'internal scratch']
  %s0 = inlined_call_operand.vmem [shape: bf16[2,18,18,128], index: 0, kind: input, shape index: {}]
  %s1 = inlined_call_operand.vmem [shape: bf16[9,128,128], index: 1, kind: input, shape index: {}]
  %s2 = inlined_call_operand.vmem [shape: f32[1,128], index: 2, kind: input, shape index: {}]
  %s3 = inlined_call_operand.vmem [shape: bf16[2,16,16,128], index: 3, kind: output, shape index: {}]
  %s4 = sld [smem:[#allocation0]]
  $region52: #{features_encoding.23} parent=0
    _
  %s6 = ssub.s32 1, %s4
  %s7 = scalar_select 0, %s6, %s4
  loop: start=0, step=1, limit=4
  $region2: #{features_encoding.23} parent=0 // loop_pre_header
    _
  $region3: #{features_encoding.23} parent=0 // loop_header
    %s9 = sphi 0, %s13
    %p10 = scmp.ge.s32.totalorder %s9, 4
    %s19 = sphi 0, %s21
    %s22 = sphi 0, %s19
    %s23 = sphi 0, %s22
    %s39 = sphi 0, %s23
    %s43 = sphi 0, %s43
    %s45 = sphi 0, %s43
    %s46 = sphi 0, %s45
    %s60 = sphi 0, %s46
    %s64 = sphi 0, %s64
    %s66 = sphi 0, %s64
    %s67 = sphi 0, %s66
    %s81 = sphi 0, %s67
    %s87 = sphi 0, %s89
    %s90 = sphi 0, %s87
    %s91 = sphi 0, %s90
    %s107 = sphi 0, %s91
  $region4: #{features_encoding.23} parent=0 // loop_header_branch
    %12 = sbr.rel (%p10) target = $region8
  $region5: #{features_encoding.23} parent=0 // loop_body
    %s14 = ssub.s32 %s9, 1
    %s15 = ssub.s32 %s9, 2
    %s16 = sadd.s32 %s9, 1
    %s17 = ssub.s32 %s9, %s16
    %p18 = scmp.eq.s32.totalorder %s17, 0
    %s20 = sadd.s32 %s19, 1
    %s21 = scalar_select %p18, %s19, %s20
    %p24 = pneg %p18
    %p25 = scmp.eq.s32.totalorder %s9, 1
    %p26 = por %p24, %p25
    %p27 = scmp.ne.s32.totalorder %s19, %s22
    %p28 = scmp.eq.s32.totalorder %s9, 0
    %p29 = por %p27, %p28
    %p30 = scmp.ne.s32.totalorder %s19, %s22
    %p31 = scmp.eq.s32.totalorder %s14, 1
    %p32 = por %p30, %p31
    %p33 = scmp.ne.s32.totalorder %s22, %s23
    %p34 = scmp.eq.s32.totalorder %s14, 0
    %p35 = por %p33, %p34
    %p36 = scmp.ne.s32.totalorder %s22, %s23
    %p37 = scmp.eq.s32.totalorder %s15, 1
    %p38 = por %p36, %p37
    %p40 = scmp.ne.s32.totalorder %s23, %s39
    %p41 = scmp.eq.s32.totalorder %s15, 0
    %p42 = por %p40, %p41
    %s44 = sadd.s32 %s43, 1
    %p47 = scmp.eq.s32.totalorder %s9, 1
    %p48 = scmp.ne.s32.totalorder %s43, %s45
    %p49 = scmp.eq.s32.totalorder %s9, 0
    %p50 = por %p48, %p49
    %p51 = scmp.ne.s32.totalorder %s43, %s45
    %p52 = scmp.eq.s32.totalorder %s14, 1
    %p53 = por %p51, %p52
    %p54 = scmp.ne.s32.totalorder %s45, %s46
    %p55 = scmp.eq.s32.totalorder %s14, 0
    %p56 = por %p54, %p55
    %p57 = scmp.ne.s32.totalorder %s45, %s46
    %p58 = scmp.eq.s32.totalorder %s15, 1
    %p59 = por %p57, %p58
    %p61 = scmp.ne.s32.totalorder %s46, %s60
    %p62 = scmp.eq.s32.totalorder %s15, 0
    %p63 = por %p61, %p62
    %s65 = sadd.s32 %s64, 1
    %p68 = scmp.eq.s32.totalorder %s9, 1
    %p69 = scmp.ne.s32.totalorder %s64, %s66
    %p70 = scmp.eq.s32.totalorder %s9, 0
    %p71 = por %p69, %p70
    %p72 = scmp.ne.s32.totalorder %s64, %s66
    %p73 = scmp.eq.s32.totalorder %s14, 1
    %p74 = por %p72, %p73
    %p75 = scmp.ne.s32.totalorder %s66, %s67
    %p76 = scmp.eq.s32.totalorder %s14, 0
    %p77 = por %p75, %p76
    %p78 = scmp.ne.s32.totalorder %s66, %s67
    %p79 = scmp.eq.s32.totalorder %s15, 1
    %p80 = por %p78, %p79
    %p82 = scmp.ne.s32.totalorder %s67, %s81
    %p83 = scmp.eq.s32.totalorder %s15, 0
    %p84 = por %p82, %p83
    %s85 = ssub.s32 %s9, %s16
    %p86 = scmp.eq.s32.totalorder %s85, 0
    %s88 = sadd.s32 %s87, 1
    %s89 = scalar_select %p86, %s87, %s88
    %p92 = pneg %p86
    %p93 = scmp.eq.s32.totalorder %s9, 1
    %p94 = por %p92, %p93
    %p95 = scmp.ne.s32.totalorder %s87, %s90
    %p96 = scmp.eq.s32.totalorder %s9, 0
    %p97 = por %p95, %p96
    %p98 = scmp.ne.s32.totalorder %s87, %s90
    %p99 = scmp.eq.s32.totalorder %s14, 1
    %p100 = por %p98, %p99
    %p101 = scmp.ne.s32.totalorder %s90, %s91
    %p102 = scmp.eq.s32.totalorder %s14, 0
    %p103 = por %p101, %p102
    %p104 = scmp.ne.s32.totalorder %s90, %s91
    %p105 = scmp.eq.s32.totalorder %s15, 1
    %p106 = por %p104, %p105
    %p108 = scmp.ne.s32.totalorder %s91, %s107
    %p109 = scmp.eq.s32.totalorder %s15, 0
    %p110 = por %p108, %p109
    %p111 = scmp.le.s32.totalorder 1, %s9
    %p112 = scmp.lt.s32.totalorder %s9, 3
    %p113 = pnand %p111, %p112
    %p114 = pneg %p113
    // Predicated region
    $region9: #{features_encoding.23} parent=5 // pred_check
      _
    $region10: #{features_encoding.23} parent=5 // pred_check_branch
      %116 = sbr.rel (%p113) target = $region12
    $region11: #{features_encoding.23} parent=5 // pred_region
      %s117 = ssub.s32 %s9, 1
      // Predicated region
      $region13: #{features_encoding.23} parent=11 // pred_check
        %p118 = pneg %p56
      $region14: #{features_encoding.23} parent=11 // pred_check_branch
        %120 = sbr.rel (%p118) target = $region16
      $region15: #{features_encoding.23} parent=11 // pred_region
        _
      $region16: #{features_encoding.23} parent=11 // pred_fallthru
        _
      // Predicated region
      $region17: #{features_encoding.23} parent=11 // pred_check
        %p121 = pneg %p77
      $region18: #{features_encoding.23} parent=11 // pred_check_branch
        %123 = sbr.rel (%p121) target = $region20
      $region19: #{features_encoding.23} parent=11 // pred_region
        _
      $region20: #{features_encoding.23} parent=11 // pred_fallthru
        _
    $region12: #{features_encoding.23} parent=5 // pred_fallthru
      _
    %p124 = scmp.lt.s32.totalorder %s9, 2
    // Predicated region
    $region21: #{features_encoding.23} parent=5 // pred_check
      %p125 = pneg %p124
    $region22: #{features_encoding.23} parent=5 // pred_check_branch
      %127 = sbr.rel (%p125) target = $region24
    $region23: #{features_encoding.23} parent=5 // pred_region
      // Predicated region
      $region25: #{features_encoding.23} parent=23 // pred_check
        %p128 = pneg %p29
      $region26: #{features_encoding.23} parent=23 // pred_check_branch
        %130 = sbr.rel (%p128) target = $region28
      $region27: #{features_encoding.23} parent=23 // pred_region
        %p131 = scmp.lt.s32.totalorder %s9, 1
        %s132 = scalar_select %p131, %s9, 1
        %s133 = smul.addr %s132, 54
        %s134 = smul.addr %s133, 4
        %s135 = scalar_lea.vmem %s0, %s134
      $region28: #{features_encoding.23} parent=23 // pred_fallthru
        _
    $region24: #{features_encoding.23} parent=5 // pred_fallthru
      _
    %p136 = scmp.le.s32.totalorder 1, %s9
    %p137 = scmp.lt.s32.totalorder %s9, 3
    %p138 = pnand %p136, %p137
    %p139 = pneg %p138
    // Predicated region
    $region29: #{features_encoding.23} parent=5 // pred_check
      _
    $region30: #{features_encoding.23} parent=5 // pred_check_branch
      %141 = sbr.rel (%p138) target = $region32
    $region31: #{features_encoding.23} parent=5 // pred_region
      %s142 = ssub.s32 %s9, 1
      %p143 = scmp.lt.s32.totalorder %s14, 1
      %s144 = scalar_select %p143, %s14, 1
      %s145 = smul.addr %s144, 54
      %s146 = smul.addr %s145, 4
      %s147 = scalar_lea.vmem %s0, %s146
      %p148 = pneg %p35
      %p149 = pneg %p32
      %p150 = pneg %p56
      %p151 = pneg %p53
      %p152 = pneg %p77
      %p153 = pneg %p74
      %p154 = pneg %p103
      %p155 = pneg %p100
      %p156 = scmp.lt.s32.totalorder %s14, 1
      %s157 = scalar_select %p156, %s14, 1
      %s158 = smul.addr %s157, 32
      %s159 = smul.addr %s158, 4
      %s160 = scalar_lea.vmem %s3, %s159
      %p161 = scmp.lt.s32.totalorder %s14, 1
      %s162 = scalar_select %p161, %s14, 1
      %s163 = smul.addr %s162, 54
      %s164 = smul.addr %s163, 4
      %s165 = scalar_lea.vmem %s0, %s164
      %p166 = scmp.lt.s32.totalorder %s14, 1
      %s167 = scalar_select %p166, %s14, 1
      %s168 = smul.addr %s167, 32
      %s169 = smul.addr %s168, 4
      %s170 = scalar_lea.vmem %s3, %s169
      loop: start=0, step=1, limit=16
      $region33: #{features_encoding.23} parent=31 // loop_pre_header
        _
      $region34: #{features_encoding.23} parent=31 // loop_header
        %s172 = sphi 0, %s176
        %p173 = scmp.ge.s32.totalorder %s172, 16
      $region35: #{features_encoding.23} parent=31 // loop_header_branch
        %175 = sbr.rel (%p173) target = $region39
      $region36: #{features_encoding.23} parent=31 // loop_body
        %s177 = smul.u32 %s172, 3
        %s178 = smul.addr %s177, 4
        %s179 = scalar_lea.vmem %s165, %s178
        %v180 = vld [vmem:[%s179] sm:$0xf]
        %v181 = vld [vmem:[%s179 + $0x4] sm:$0xf]
        %v182 = vld [vmem:[%s179 + $0x8] sm:$0x1]
        %v183 = vld [vmem:[%s179 + $0xc] sm:$0xf]
        %v184 = vld [vmem:[%s179 + $0x10] sm:$0xf]
        %v185 = vld [vmem:[%s179 + $0x14] sm:$0x1]
        %v186 = vld [vmem:[%s179 + $0x18] sm:$0xf]
        %v187 = vld [vmem:[%s179 + $0x1c] sm:$0xf]
        %v188 = vld [vmem:[%s179 + $0x20] sm:$0x1]
        %v189 = vld [vmem:[%s1] sm:$0xf]
        %v190 = vld [vmem:[%s1 + $0x4] sm:$0xf]
        %v191 = vld [vmem:[%s1 + $0x8] sm:$0xf]
        %v192 = vld [vmem:[%s1 + $0xc] sm:$0xf]
        %v193 = vld [vmem:[%s1 + $0x10] sm:$0xf]
        %v194 = vld [vmem:[%s1 + $0x14] sm:$0xf]
        %v195 = vld [vmem:[%s1 + $0x18] sm:$0xf]
        %v196 = vld [vmem:[%s1 + $0x1c] sm:$0xf]
        %v197 = vld [vmem:[%s1 + $0x20] sm:$0xf]
        %v198 = vld [vmem:[%s1 + $0x24] sm:$0xf]
        %v199 = vld [vmem:[%s1 + $0x28] sm:$0xf]
        %v200 = vld [vmem:[%s1 + $0x2c] sm:$0xf]
        %v201 = vld [vmem:[%s1 + $0x30] sm:$0xf]
        %v202 = vld [vmem:[%s1 + $0x34] sm:$0xf]
        %v203 = vld [vmem:[%s1 + $0x38] sm:$0xf]
        %v204 = vld [vmem:[%s1 + $0x3c] sm:$0xf]
        %v208 = vunpack.c.l.b16 %v180
        %v209 = vunpack.c.l.b16 %v181
        %v210 = vunpack.c.l.b16 %v182
        %v211 = vpack.c.b16 %v209, %v208
        %v212 = vpack.c.b16 %v210, %v210
        %v231 = vunpack.c.l.b16 %v189
        %v232 = vunpack.c.l.b16 %v190
        %v233 = vunpack.c.l.b16 %v191
        %v234 = vunpack.c.l.b16 %v192
        %v235 = vunpack.c.l.b16 %v193
        %v236 = vunpack.c.l.b16 %v194
        %v237 = vunpack.c.l.b16 %v195
        %v238 = vunpack.c.l.b16 %v196
        %v239 = vunpack.c.l.b16 %v197
        %v240 = vunpack.c.l.b16 %v198
        %v241 = vunpack.c.l.b16 %v199
        %v242 = vunpack.c.l.b16 %v200
        %v243 = vunpack.c.l.b16 %v201
        %v244 = vunpack.c.l.b16 %v202
        %v245 = vunpack.c.l.b16 %v203
        %v246 = vunpack.c.l.b16 %v204
        %v247 = vpack.c.b16 %v232, %v231
        %v248 = vpack.c.b16 %v234, %v233
        %v249 = vpack.c.b16 %v236, %v235
        %v250 = vpack.c.b16 %v238, %v237
        %v251 = vpack.c.b16 %v240, %v239
        %v252 = vpack.c.b16 %v242, %v241
        %v253 = vpack.c.b16 %v244, %v243
        %v254 = vpack.c.b16 %v246, %v245
        %263 = vmatpush.bf16.msra.mxu0 %v254
        %264 = vmatpush.bf16.msra.mxu0 %v253
        %265 = vmatpush.bf16.msra.mxu0 %v252
        %266 = vmatpush.bf16.msra.mxu0 %v251
        %267 = vmatpush.bf16.msra.mxu0 %v250
        %268 = vmatpush.bf16.msra.mxu0 %v249
        %269 = vmatpush.bf16.msra.mxu0 %v248
        %270 = vmatpush.bf16.msra.mxu0 %v247
        %271 = vmatmul.bf16.gmra.mxu0 %v211
        %v272 = vpop.f32.mrf.mxu0
        %v273 = vadd.f32 0.0, %v272
        %v274 = vpop.f32.mrf.mxu0
        %v275 = vadd.f32 0.0, %v274
        %276 = vmatmul.bf16.gmra.mxu0 %v212
        %v277 = vpop.f32.mrf.mxu0
        %v278 = vpop.f32.mrf.mxu0
        %279 = vdwg.mxu0
        %v280 = vadd.f32 %v273, 0.0
        %v281 = vadd.f32 %v275, 0.0
        %s282 = scalar_lea.vmem %s1, 64
        %v283 = vld [vmem:[%s282] sm:$0xf]
        %v284 = vld [vmem:[%s282 + $0x4] sm:$0xf]
        %v285 = vld [vmem:[%s282 + $0x8] sm:$0xf]
        %v286 = vld [vmem:[%s282 + $0xc] sm:$0xf]
        %v287 = vld [vmem:[%s282 + $0x10] sm:$0xf]
        %v288 = vld [vmem:[%s282 + $0x14] sm:$0xf]
        %v289 = vld [vmem:[%s282 + $0x18] sm:$0xf]
        %v290 = vld [vmem:[%s282 + $0x1c] sm:$0xf]
        %v291 = vld [vmem:[%s282 + $0x20] sm:$0xf]
        %v292 = vld [vmem:[%s282 + $0x24] sm:$0xf]
        %v293 = vld [vmem:[%s282 + $0x28] sm:$0xf]
        %v294 = vld [vmem:[%s282 + $0x2c] sm:$0xf]
        %v295 = vld [vmem:[%s282 + $0x30] sm:$0xf]
        %v296 = vld [vmem:[%s282 + $0x34] sm:$0xf]
        %v297 = vld [vmem:[%s282 + $0x38] sm:$0xf]
        %v298 = vld [vmem:[%s282 + $0x3c] sm:$0xf]
        %v315 = vunpack.c.l.b16 %v283
        %v316 = vunpack.c.l.b16 %v284
        %v317 = vunpack.c.l.b16 %v285
        %v318 = vunpack.c.l.b16 %v286
        %v319 = vunpack.c.l.b16 %v287
        %v320 = vunpack.c.l.b16 %v288
        %v321 = vunpack.c.l.b16 %v289
        %v322 = vunpack.c.l.b16 %v290
        %v323 = vunpack.c.l.b16 %v291
        %v324 = vunpack.c.l.b16 %v292
        %v325 = vunpack.c.l.b16 %v293
        %v326 = vunpack.c.l.b16 %v294
        %v327 = vunpack.c.l.b16 %v295
        %v328 = vunpack.c.l.b16 %v296
        %v329 = vunpack.c.l.b16 %v297
        %v330 = vunpack.c.l.b16 %v298
        %v331 = vpack.c.b16 %v316, %v315
        %v332 = vpack.c.b16 %v318, %v317
        %v333 = vpack.c.b16 %v320, %v319
        %v334 = vpack.c.b16 %v322, %v321
        %v335 = vpack.c.b16 %v324, %v323
        %v336 = vpack.c.b16 %v326, %v325
        %v337 = vpack.c.b16 %v328, %v327
        %v338 = vpack.c.b16 %v330, %v329
        %347 = vmatpush.bf16.msra.mxu0 %v338
        %348 = vmatpush.bf16.msra.mxu0 %v337
        %349 = vmatpush.bf16.msra.mxu0 %v336
        %350 = vmatpush.bf16.msra.mxu0 %v335
        %351 = vmatpush.bf16.msra.mxu0 %v334
        %352 = vmatpush.bf16.msra.mxu0 %v333
        %353 = vmatpush.bf16.msra.mxu0 %v332
        %354 = vmatpush.bf16.msra.mxu0 %v331
        %355 = vmatmul.bf16.gmra.mxu0 %v211
        %v356 = vpop.f32.mrf.mxu0
        %v357 = vadd.f32 0.0, %v356
        %v358 = vpop.f32.mrf.mxu0
        %v359 = vadd.f32 0.0, %v358
        %360 = vmatmul.bf16.gmra.mxu0 %v212
        %v361 = vpop.f32.mrf.mxu0
        %v362 = vadd.f32 0.0, %v361
        %v363 = vpop.f32.mrf.mxu0
        %364 = vdwg.mxu0
        %vm368 = vcmask 1046528
        %v369 = vrot.slane %v357, 1
        %v370 = vrot.slane %v359, 1
        %v371 = vsel %vm368, %v369, %v370
        %v372 = vrot.slane %v362, 1
        %v373 = vsel %vm368, %v370, %v372
        %v376 = vadd.f32 %v280, %v371
        %v377 = vadd.f32 %v281, %v373
        %s378 = scalar_lea.vmem %s1, 128
        %v379 = vld [vmem:[%s378] sm:$0xf]
        %v380 = vld [vmem:[%s378 + $0x4] sm:$0xf]
        %v381 = vld [vmem:[%s378 + $0x8] sm:$0xf]
        %v382 = vld [vmem:[%s378 + $0xc] sm:$0xf]
        %v383 = vld [vmem:[%s378 + $0x10] sm:$0xf]
        %v384 = vld [vmem:[%s378 + $0x14] sm:$0xf]
        %v385 = vld [vmem:[%s378 + $0x18] sm:$0xf]
        %v386 = vld [vmem:[%s378 + $0x1c] sm:$0xf]
        %v387 = vld [vmem:[%s378 + $0x20] sm:$0xf]
        %v388 = vld [vmem:[%s378 + $0x24] sm:$0xf]
        %v389 = vld [vmem:[%s378 + $0x28] sm:$0xf]
        %v390 = vld [vmem:[%s378 + $0x2c] sm:$0xf]
        %v391 = vld [vmem:[%s378 + $0x30] sm:$0xf]
        %v392 = vld [vmem:[%s378 + $0x34] sm:$0xf]
        %v393 = vld [vmem:[%s378 + $0x38] sm:$0xf]
        %v394 = vld [vmem:[%s378 + $0x3c] sm:$0xf]
        %v411 = vunpack.c.l.b16 %v379
        %v412 = vunpack.c.l.b16 %v380
        %v413 = vunpack.c.l.b16 %v381
        %v414 = vunpack.c.l.b16 %v382
        %v415 = vunpack.c.l.b16 %v383
        %v416 = vunpack.c.l.b16 %v384
        %v417 = vunpack.c.l.b16 %v385
        %v418 = vunpack.c.l.b16 %v386
        %v419 = vunpack.c.l.b16 %v387
        %v420 = vunpack.c.l.b16 %v388
        %v421 = vunpack.c.l.b16 %v389
        %v422 = vunpack.c.l.b16 %v390
        %v423 = vunpack.c.l.b16 %v391
        %v424 = vunpack.c.l.b16 %v392
        %v425 = vunpack.c.l.b16 %v393
        %v426 = vunpack.c.l.b16 %v394
        %v427 = vpack.c.b16 %v412, %v411
        %v428 = vpack.c.b16 %v414, %v413
        %v429 = vpack.c.b16 %v416, %v415
        %v430 = vpack.c.b16 %v418, %v417
        %v431 = vpack.c.b16 %v420, %v419
        %v432 = vpack.c.b16 %v422, %v421
        %v433 = vpack.c.b16 %v424, %v423
        %v434 = vpack.c.b16 %v426, %v425
        %443 = vmatpush.bf16.msra.mxu0 %v434
        %444 = vmatpush.bf16.msra.mxu0 %v433
        %445 = vmatpush.bf16.msra.mxu0 %v432
        %446 = vmatpush.bf16.msra.mxu0 %v431
        %447 = vmatpush.bf16.msra.mxu0 %v430
        %448 = vmatpush.bf16.msra.mxu0 %v429
        %449 = vmatpush.bf16.msra.mxu0 %v428
        %450 = vmatpush.bf16.msra.mxu0 %v427
        %451 = vmatmul.bf16.gmra.mxu0 %v211
        %v452 = vpop.f32.mrf.mxu0
        %v453 = vadd.f32 0.0, %v452
        %v454 = vpop.f32.mrf.mxu0
        %v455 = vadd.f32 0.0, %v454
        %456 = vmatmul.bf16.gmra.mxu0 %v212
        %v457 = vpop.f32.mrf.mxu0
        %v458 = vadd.f32 0.0, %v457
        %v459 = vpop.f32.mrf.mxu0
        %460 = vdwg.mxu0
        %vm464 = vcmask 1045504
        %v465 = vrot.slane %v453, 2
        %v466 = vrot.slane %v455, 2
        %v467 = vsel %vm464, %v465, %v466
        %v468 = vrot.slane %v458, 2
        %v469 = vsel %vm464, %v466, %v468
        %v472 = vadd.f32 %v376, %v467
        %v473 = vadd.f32 %v377, %v469
        %s474 = scalar_lea.vmem %s1, 192
        %v475 = vld [vmem:[%s474] sm:$0xf]
        %v476 = vld [vmem:[%s474 + $0x4] sm:$0xf]
        %v477 = vld [vmem:[%s474 + $0x8] sm:$0xf]
        %v478 = vld [vmem:[%s474 + $0xc] sm:$0xf]
        %v479 = vld [vmem:[%s474 + $0x10] sm:$0xf]
        %v480 = vld [vmem:[%s474 + $0x14] sm:$0xf]
        %v481 = vld [vmem:[%s474 + $0x18] sm:$0xf]
        %v482 = vld [vmem:[%s474 + $0x1c] sm:$0xf]
        %v483 = vld [vmem:[%s474 + $0x20] sm:$0xf]
        %v484 = vld [vmem:[%s474 + $0x24] sm:$0xf]
        %v485 = vld [vmem:[%s474 + $0x28] sm:$0xf]
        %v486 = vld [vmem:[%s474 + $0x2c] sm:$0xf]
        %v487 = vld [vmem:[%s474 + $0x30] sm:$0xf]
        %v488 = vld [vmem:[%s474 + $0x34] sm:$0xf]
        %v489 = vld [vmem:[%s474 + $0x38] sm:$0xf]
        %v490 = vld [vmem:[%s474 + $0x3c] sm:$0xf]
        %v494 = vunpack.c.l.b16 %v183
        %v495 = vunpack.c.l.b16 %v184
        %v496 = vunpack.c.l.b16 %v185
        %v497 = vpack.c.b16 %v495, %v494
        %v498 = vpack.c.b16 %v496, %v496
        %v517 = vunpack.c.l.b16 %v475
        %v518 = vunpack.c.l.b16 %v476
        %v519 = vunpack.c.l.b16 %v477
        %v520 = vunpack.c.l.b16 %v478
        %v521 = vunpack.c.l.b16 %v479
        %v522 = vunpack.c.l.b16 %v480
        %v523 = vunpack.c.l.b16 %v481
        %v524 = vunpack.c.l.b16 %v482
        %v525 = vunpack.c.l.b16 %v483
        %v526 = vunpack.c.l.b16 %v484
        %v527 = vunpack.c.l.b16 %v485
        %v528 = vunpack.c.l.b16 %v486
        %v529 = vunpack.c.l.b16 %v487
        %v530 = vunpack.c.l.b16 %v488
        %v531 = vunpack.c.l.b16 %v489
        %v532 = vunpack.c.l.b16 %v490
        %v533 = vpack.c.b16 %v518, %v517
        %v534 = vpack.c.b16 %v520, %v519
        %v535 = vpack.c.b16 %v522, %v521
        %v536 = vpack.c.b16 %v524, %v523
        %v537 = vpack.c.b16 %v526, %v525
        %v538 = vpack.c.b16 %v528, %v527
        %v539 = vpack.c.b16 %v530, %v529
        %v540 = vpack.c.b16 %v532, %v531
        %549 = vmatpush.bf16.msra.mxu0 %v540
        %550 = vmatpush.bf16.msra.mxu0 %v539
        %551 = vmatpush.bf16.msra.mxu0 %v538
        %552 = vmatpush.bf16.msra.mxu0 %v537
        %553 = vmatpush.bf16.msra.mxu0 %v536
        %554 = vmatpush.bf16.msra.mxu0 %v535
        %555 = vmatpush.bf16.msra.mxu0 %v534
        %556 = vmatpush.bf16.msra.mxu0 %v533
        %557 = vmatmul.bf16.gmra.mxu0 %v497
        %v558 = vpop.f32.mrf.mxu0
        %v559 = vadd.f32 0.0, %v558
        %v560 = vpop.f32.mrf.mxu0
        %v561 = vadd.f32 0.0, %v560
        %562 = vmatmul.bf16.gmra.mxu0 %v498
        %v563 = vpop.f32.mrf.mxu0
        %v564 = vpop.f32.mrf.mxu0
        %565 = vdwg.mxu0
        %v566 = vadd.f32 %v472, %v559
        %v567 = vadd.f32 %v473, %v561
        %s568 = scalar_lea.vmem %s1, 256
        %v569 = vld [vmem:[%s568] sm:$0xf]
        %v570 = vld [vmem:[%s568 + $0x4] sm:$0xf]
        %v571 = vld [vmem:[%s568 + $0x8] sm:$0xf]
        %v572 = vld [vmem:[%s568 + $0xc] sm:$0xf]
        %v573 = vld [vmem:[%s568 + $0x10] sm:$0xf]
        %v574 = vld [vmem:[%s568 + $0x14] sm:$0xf]
        %v575 = vld [vmem:[%s568 + $0x18] sm:$0xf]
        %v576 = vld [vmem:[%s568 + $0x1c] sm:$0xf]
        %v577 = vld [vmem:[%s568 + $0x20] sm:$0xf]
        %v578 = vld [vmem:[%s568 + $0x24] sm:$0xf]
        %v579 = vld [vmem:[%s568 + $0x28] sm:$0xf]
        %v580 = vld [vmem:[%s568 + $0x2c] sm:$0xf]
        %v581 = vld [vmem:[%s568 + $0x30] sm:$0xf]
        %v582 = vld [vmem:[%s568 + $0x34] sm:$0xf]
        %v583 = vld [vmem:[%s568 + $0x38] sm:$0xf]
        %v584 = vld [vmem:[%s568 + $0x3c] sm:$0xf]
        %v601 = vunpack.c.l.b16 %v569
        %v602 = vunpack.c.l.b16 %v570
        %v603 = vunpack.c.l.b16 %v571
        %v604 = vunpack.c.l.b16 %v572
        %v605 = vunpack.c.l.b16 %v573
        %v606 = vunpack.c.l.b16 %v574
        %v607 = vunpack.c.l.b16 %v575
        %v608 = vunpack.c.l.b16 %v576
        %v609 = vunpack.c.l.b16 %v577
        %v610 = vunpack.c.l.b16 %v578
        %v611 = vunpack.c.l.b16 %v579
        %v612 = vunpack.c.l.b16 %v580
        %v613 = vunpack.c.l.b16 %v581
        %v614 = vunpack.c.l.b16 %v582
        %v615 = vunpack.c.l.b16 %v583
        %v616 = vunpack.c.l.b16 %v584
        %v617 = vpack.c.b16 %v602, %v601
        %v618 = vpack.c.b16 %v604, %v603
        %v619 = vpack.c.b16 %v606, %v605
        %v620 = vpack.c.b16 %v608, %v607
        %v621 = vpack.c.b16 %v610, %v609
        %v622 = vpack.c.b16 %v612, %v611
        %v623 = vpack.c.b16 %v614, %v613
        %v624 = vpack.c.b16 %v616, %v615
        %633 = vmatpush.bf16.msra.mxu0 %v624
        %634 = vmatpush.bf16.msra.mxu0 %v623
        %635 = vmatpush.bf16.msra.mxu0 %v622
        %636 = vmatpush.bf16.msra.mxu0 %v621
        %637 = vmatpush.bf16.msra.mxu0 %v620
        %638 = vmatpush.bf16.msra.mxu0 %v619
        %639 = vmatpush.bf16.msra.mxu0 %v618
        %640 = vmatpush.bf16.msra.mxu0 %v617
        %641 = vmatmul.bf16.gmra.mxu0 %v497
        %v642 = vpop.f32.mrf.mxu0
        %v643 = vadd.f32 0.0, %v642
        %v644 = vpop.f32.mrf.mxu0
        %v645 = vadd.f32 0.0, %v644
        %646 = vmatmul.bf16.gmra.mxu0 %v498
        %v647 = vpop.f32.mrf.mxu0
        %v648 = vadd.f32 0.0, %v647
        %v649 = vpop.f32.mrf.mxu0
        %650 = vdwg.mxu0
        %v654 = vrot.slane %v643, 1
        %v655 = vrot.slane %v645, 1
        %v656 = vsel %vm368, %v654, %v655
        %v657 = vrot.slane %v648, 1
        %v658 = vsel %vm368, %v655, %v657
        %v661 = vadd.f32 %v566, %v656
        %v662 = vadd.f32 %v567, %v658
        %s663 = scalar_lea.vmem %s1, 320
        %v664 = vld [vmem:[%s663] sm:$0xf]
        %v665 = vld [vmem:[%s663 + $0x4] sm:$0xf]
        %v666 = vld [vmem:[%s663 + $0x8] sm:$0xf]
        %v667 = vld [vmem:[%s663 + $0xc] sm:$0xf]
        %v668 = vld [vmem:[%s663 + $0x10] sm:$0xf]
        %v669 = vld [vmem:[%s663 + $0x14] sm:$0xf]
        %v670 = vld [vmem:[%s663 + $0x18] sm:$0xf]
        %v671 = vld [vmem:[%s663 + $0x1c] sm:$0xf]
        %v672 = vld [vmem:[%s663 + $0x20] sm:$0xf]
        %v673 = vld [vmem:[%s663 + $0x24] sm:$0xf]
        %v674 = vld [vmem:[%s663 + $0x28] sm:$0xf]
        %v675 = vld [vmem:[%s663 + $0x2c] sm:$0xf]
        %v676 = vld [vmem:[%s663 + $0x30] sm:$0xf]
        %v677 = vld [vmem:[%s663 + $0x34] sm:$0xf]
        %v678 = vld [vmem:[%s663 + $0x38] sm:$0xf]
        %v679 = vld [vmem:[%s663 + $0x3c] sm:$0xf]
        %v696 = vunpack.c.l.b16 %v664
        %v697 = vunpack.c.l.b16 %v665
        %v698 = vunpack.c.l.b16 %v666
        %v699 = vunpack.c.l.b16 %v667
        %v700 = vunpack.c.l.b16 %v668
        %v701 = vunpack.c.l.b16 %v669
        %v702 = vunpack.c.l.b16 %v670
        %v703 = vunpack.c.l.b16 %v671
        %v704 = vunpack.c.l.b16 %v672
        %v705 = vunpack.c.l.b16 %v673
        %v706 = vunpack.c.l.b16 %v674
        %v707 = vunpack.c.l.b16 %v675
        %v708 = vunpack.c.l.b16 %v676
        %v709 = vunpack.c.l.b16 %v677
        %v710 = vunpack.c.l.b16 %v678
        %v711 = vunpack.c.l.b16 %v679
        %v712 = vpack.c.b16 %v697, %v696
        %v713 = vpack.c.b16 %v699, %v698
        %v714 = vpack.c.b16 %v701, %v700
        %v715 = vpack.c.b16 %v703, %v702
        %v716 = vpack.c.b16 %v705, %v704
        %v717 = vpack.c.b16 %v707, %v706
        %v718 = vpack.c.b16 %v709, %v708
        %v719 = vpack.c.b16 %v711, %v710
        %728 = vmatpush.bf16.msra.mxu0 %v719
        %729 = vmatpush.bf16.msra.mxu0 %v718
        %730 = vmatpush.bf16.msra.mxu0 %v717
        %731 = vmatpush.bf16.msra.mxu0 %v716
        %732 = vmatpush.bf16.msra.mxu0 %v715
        %733 = vmatpush.bf16.msra.mxu0 %v714
        %734 = vmatpush.bf16.msra.mxu0 %v713
        %735 = vmatpush.bf16.msra.mxu0 %v712
        %736 = vmatmul.bf16.gmra.mxu0 %v497
        %v737 = vpop.f32.mrf.mxu0
        %v738 = vadd.f32 0.0, %v737
        %v739 = vpop.f32.mrf.mxu0
        %v740 = vadd.f32 0.0, %v739
        %741 = vmatmul.bf16.gmra.mxu0 %v498
        %v742 = vpop.f32.mrf.mxu0
        %v743 = vadd.f32 0.0, %v742
        %v744 = vpop.f32.mrf.mxu0
        %745 = vdwg.mxu0
        %v749 = vrot.slane %v738, 2
        %v750 = vrot.slane %v740, 2
        %v751 = vsel %vm464, %v749, %v750
        %v752 = vrot.slane %v743, 2
        %v753 = vsel %vm464, %v750, %v752
        %v756 = vadd.f32 %v661, %v751
        %v757 = vadd.f32 %v662, %v753
        %s758 = scalar_lea.vmem %s1, 384
        %v759 = vld [vmem:[%s758] sm:$0xf]
        %v760 = vld [vmem:[%s758 + $0x4] sm:$0xf]
        %v761 = vld [vmem:[%s758 + $0x8] sm:$0xf]
        %v762 = vld [vmem:[%s758 + $0xc] sm:$0xf]
        %v763 = vld [vmem:[%s758 + $0x10] sm:$0xf]
        %v764 = vld [vmem:[%s758 + $0x14] sm:$0xf]
        %v765 = vld [vmem:[%s758 + $0x18] sm:$0xf]
        %v766 = vld [vmem:[%s758 + $0x1c] sm:$0xf]
        %v767 = vld [vmem:[%s758 + $0x20] sm:$0xf]
        %v768 = vld [vmem:[%s758 + $0x24] sm:$0xf]
        %v769 = vld [vmem:[%s758 + $0x28] sm:$0xf]
        %v770 = vld [vmem:[%s758 + $0x2c] sm:$0xf]
        %v771 = vld [vmem:[%s758 + $0x30] sm:$0xf]
        %v772 = vld [vmem:[%s758 + $0x34] sm:$0xf]
        %v773 = vld [vmem:[%s758 + $0x38] sm:$0xf]
        %v774 = vld [vmem:[%s758 + $0x3c] sm:$0xf]
        %v778 = vunpack.c.l.b16 %v186
        %v779 = vunpack.c.l.b16 %v187
        %v780 = vunpack.c.l.b16 %v188
        %v781 = vpack.c.b16 %v779, %v778
        %v782 = vpack.c.b16 %v780, %v780
        %v801 = vunpack.c.l.b16 %v759
        %v802 = vunpack.c.l.b16 %v760
        %v803 = vunpack.c.l.b16 %v761
        %v804 = vunpack.c.l.b16 %v762
        %v805 = vunpack.c.l.b16 %v763
        %v806 = vunpack.c.l.b16 %v764
        %v807 = vunpack.c.l.b16 %v765
        %v808 = vunpack.c.l.b16 %v766
        %v809 = vunpack.c.l.b16 %v767
        %v810 = vunpack.c.l.b16 %v768
        %v811 = vunpack.c.l.b16 %v769
        %v812 = vunpack.c.l.b16 %v770
        %v813 = vunpack.c.l.b16 %v771
        %v814 = vunpack.c.l.b16 %v772
        %v815 = vunpack.c.l.b16 %v773
        %v816 = vunpack.c.l.b16 %v774
        %v817 = vpack.c.b16 %v802, %v801
        %v818 = vpack.c.b16 %v804, %v803
        %v819 = vpack.c.b16 %v806, %v805
        %v820 = vpack.c.b16 %v808, %v807
        %v821 = vpack.c.b16 %v810, %v809
        %v822 = vpack.c.b16 %v812, %v811
        %v823 = vpack.c.b16 %v814, %v813
        %v824 = vpack.c.b16 %v816, %v815
        %833 = vmatpush.bf16.msra.mxu0 %v824
        %834 = vmatpush.bf16.msra.mxu0 %v823
        %835 = vmatpush.bf16.msra.mxu0 %v822
        %836 = vmatpush.bf16.msra.mxu0 %v821
        %837 = vmatpush.bf16.msra.mxu0 %v820
        %838 = vmatpush.bf16.msra.mxu0 %v819
        %839 = vmatpush.bf16.msra.mxu0 %v818
        %840 = vmatpush.bf16.msra.mxu0 %v817
        %841 = vmatmul.bf16.gmra.mxu0 %v781
        %v842 = vpop.f32.mrf.mxu0
        %v843 = vadd.f32 0.0, %v842
        %v844 = vpop.f32.mrf.mxu0
        %v845 = vadd.f32 0.0, %v844
        %846 = vmatmul.bf16.gmra.mxu0 %v782
        %v847 = vpop.f32.mrf.mxu0
        %v848 = vpop.f32.mrf.mxu0
        %849 = vdwg.mxu0
        %v850 = vadd.f32 %v756, %v843
        %v851 = vadd.f32 %v757, %v845
        %s852 = scalar_lea.vmem %s1, 448
        %v853 = vld [vmem:[%s852] sm:$0xf]
        %v854 = vld [vmem:[%s852 + $0x4] sm:$0xf]
        %v855 = vld [vmem:[%s852 + $0x8] sm:$0xf]
        %v856 = vld [vmem:[%s852 + $0xc] sm:$0xf]
        %v857 = vld [vmem:[%s852 + $0x10] sm:$0xf]
        %v858 = vld [vmem:[%s852 + $0x14] sm:$0xf]
        %v859 = vld [vmem:[%s852 + $0x18] sm:$0xf]
        %v860 = vld [vmem:[%s852 + $0x1c] sm:$0xf]
        %v861 = vld [vmem:[%s852 + $0x20] sm:$0xf]
        %v862 = vld [vmem:[%s852 + $0x24] sm:$0xf]
        %v863 = vld [vmem:[%s852 + $0x28] sm:$0xf]
        %v864 = vld [vmem:[%s852 + $0x2c] sm:$0xf]
        %v865 = vld [vmem:[%s852 + $0x30] sm:$0xf]
        %v866 = vld [vmem:[%s852 + $0x34] sm:$0xf]
        %v867 = vld [vmem:[%s852 + $0x38] sm:$0xf]
        %v868 = vld [vmem:[%s852 + $0x3c] sm:$0xf]
        %v885 = vunpack.c.l.b16 %v853
        %v886 = vunpack.c.l.b16 %v854
        %v887 = vunpack.c.l.b16 %v855
        %v888 = vunpack.c.l.b16 %v856
        %v889 = vunpack.c.l.b16 %v857
        %v890 = vunpack.c.l.b16 %v858
        %v891 = vunpack.c.l.b16 %v859
        %v892 = vunpack.c.l.b16 %v860
        %v893 = vunpack.c.l.b16 %v861
        %v894 = vunpack.c.l.b16 %v862
        %v895 = vunpack.c.l.b16 %v863
        %v896 = vunpack.c.l.b16 %v864
        %v897 = vunpack.c.l.b16 %v865
        %v898 = vunpack.c.l.b16 %v866
        %v899 = vunpack.c.l.b16 %v867
        %v900 = vunpack.c.l.b16 %v868
        %v901 = vpack.c.b16 %v886, %v885
        %v902 = vpack.c.b16 %v888, %v887
        %v903 = vpack.c.b16 %v890, %v889
        %v904 = vpack.c.b16 %v892, %v891
        %v905 = vpack.c.b16 %v894, %v893
        %v906 = vpack.c.b16 %v896, %v895
        %v907 = vpack.c.b16 %v898, %v897
        %v908 = vpack.c.b16 %v900, %v899
        %917 = vmatpush.bf16.msra.mxu0 %v908
        %918 = vmatpush.bf16.msra.mxu0 %v907
        %919 = vmatpush.bf16.msra.mxu0 %v906
        %920 = vmatpush.bf16.msra.mxu0 %v905
        %921 = vmatpush.bf16.msra.mxu0 %v904
        %922 = vmatpush.bf16.msra.mxu0 %v903
        %923 = vmatpush.bf16.msra.mxu0 %v902
        %924 = vmatpush.bf16.msra.mxu0 %v901
        %925 = vmatmul.bf16.gmra.mxu0 %v781
        %v926 = vpop.f32.mrf.mxu0
        %v927 = vadd.f32 0.0, %v926
        %v928 = vpop.f32.mrf.mxu0
        %v929 = vadd.f32 0.0, %v928
        %930 = vmatmul.bf16.gmra.mxu0 %v782
        %v931 = vpop.f32.mrf.mxu0
        %v932 = vadd.f32 0.0, %v931
        %v933 = vpop.f32.mrf.mxu0
        %934 = vdwg.mxu0
        %v938 = vrot.slane %v927, 1
        %v939 = vrot.slane %v929, 1
        %v940 = vsel %vm368, %v938, %v939
        %v941 = vrot.slane %v932, 1
        %v942 = vsel %vm368, %v939, %v941
        %v945 = vadd.f32 %v850, %v940
        %v946 = vadd.f32 %v851, %v942
        %s947 = scalar_lea.vmem %s1, 512
        %v948 = vld [vmem:[%s947] sm:$0xf]
        %v949 = vld [vmem:[%s947 + $0x4] sm:$0xf]
        %v950 = vld [vmem:[%s947 + $0x8] sm:$0xf]
        %v951 = vld [vmem:[%s947 + $0xc] sm:$0xf]
        %v952 = vld [vmem:[%s947 + $0x10] sm:$0xf]
        %v953 = vld [vmem:[%s947 + $0x14] sm:$0xf]
        %v954 = vld [vmem:[%s947 + $0x18] sm:$0xf]
        %v955 = vld [vmem:[%s947 + $0x1c] sm:$0xf]
        %v956 = vld [vmem:[%s947 + $0x20] sm:$0xf]
        %v957 = vld [vmem:[%s947 + $0x24] sm:$0xf]
        %v958 = vld [vmem:[%s947 + $0x28] sm:$0xf]
        %v959 = vld [vmem:[%s947 + $0x2c] sm:$0xf]
        %v960 = vld [vmem:[%s947 + $0x30] sm:$0xf]
        %v961 = vld [vmem:[%s947 + $0x34] sm:$0xf]
        %v962 = vld [vmem:[%s947 + $0x38] sm:$0xf]
        %v963 = vld [vmem:[%s947 + $0x3c] sm:$0xf]
        %v980 = vunpack.c.l.b16 %v948
        %v981 = vunpack.c.l.b16 %v949
        %v982 = vunpack.c.l.b16 %v950
        %v983 = vunpack.c.l.b16 %v951
        %v984 = vunpack.c.l.b16 %v952
        %v985 = vunpack.c.l.b16 %v953
        %v986 = vunpack.c.l.b16 %v954
        %v987 = vunpack.c.l.b16 %v955
        %v988 = vunpack.c.l.b16 %v956
        %v989 = vunpack.c.l.b16 %v957
        %v990 = vunpack.c.l.b16 %v958
        %v991 = vunpack.c.l.b16 %v959
        %v992 = vunpack.c.l.b16 %v960
        %v993 = vunpack.c.l.b16 %v961
        %v994 = vunpack.c.l.b16 %v962
        %v995 = vunpack.c.l.b16 %v963
        %v996 = vpack.c.b16 %v981, %v980
        %v997 = vpack.c.b16 %v983, %v982
        %v998 = vpack.c.b16 %v985, %v984
        %v999 = vpack.c.b16 %v987, %v986
        %v1000 = vpack.c.b16 %v989, %v988
        %v1001 = vpack.c.b16 %v991, %v990
        %v1002 = vpack.c.b16 %v993, %v992
        %v1003 = vpack.c.b16 %v995, %v994
        %1012 = vmatpush.bf16.msra.mxu0 %v1003
        %1013 = vmatpush.bf16.msra.mxu0 %v1002
        %1014 = vmatpush.bf16.msra.mxu0 %v1001
        %1015 = vmatpush.bf16.msra.mxu0 %v1000
        %1016 = vmatpush.bf16.msra.mxu0 %v999
        %1017 = vmatpush.bf16.msra.mxu0 %v998
        %1018 = vmatpush.bf16.msra.mxu0 %v997
        %1019 = vmatpush.bf16.msra.mxu0 %v996
        %1020 = vmatmul.bf16.gmra.mxu0 %v781
        %v1021 = vpop.f32.mrf.mxu0
        %v1022 = vadd.f32 0.0, %v1021
        %v1023 = vpop.f32.mrf.mxu0
        %v1024 = vadd.f32 0.0, %v1023
        %1025 = vmatmul.bf16.gmra.mxu0 %v782
        %v1026 = vpop.f32.mrf.mxu0
        %v1027 = vadd.f32 0.0, %v1026
        %v1028 = vpop.f32.mrf.mxu0
        %1029 = vdwg.mxu0
        %v1033 = vrot.slane %v1022, 2
        %v1034 = vrot.slane %v1024, 2
        %v1035 = vsel %vm464, %v1033, %v1034
        %v1036 = vrot.slane %v1027, 2
        %v1037 = vsel %vm464, %v1034, %v1036
        %v1040 = vadd.f32 %v945, %v1035
        %v1041 = vadd.f32 %v946, %v1037
        %v1042 = vld [vmem:[%s2] sm:$0x1]
        %v1044 = vperm.slane %v1042, 0
        %v1046 = vadd.f32 %v1040, %v1044
        %v1047 = vadd.f32 %v1041, %v1044
        %v1048 = vmax.f32 %v1046, 0.0
        %v1049 = vmax.f32 %v1047, 0.0
        %v1050 = vpack.c.bf16 %v1048, %v1048
        %v1051 = vpack.c.bf16 %v1049, %v1049
        %s1052 = smul.u32 %s172, 2
        %s1053 = smul.addr %s1052, 4
        %s1054 = scalar_lea.vmem %s170, %s1053
        %1055 = vst [vmem:[%s1054] sm:$0xf] %v1050
        %1056 = vst [vmem:[%s1054 + $0x4] sm:$0xf] %v1051
      $region37: #{features_encoding.23} parent=31 // loop_footer
        %s176 = sadd.s32 1, %s172
      $region38: #{features_encoding.23} parent=31 // loop_footer_branch
        %171 = sbr.rel target = $region34
      $region39: #{features_encoding.23} parent=31 // loop_exit
        _
      %p1057 = scmp.lt.s32.totalorder %s14, 1
      %s1058 = scalar_select %p1057, %s14, 1
      %s1059 = smul.addr %s1058, 32
      %s1060 = smul.addr %s1059, 4
      %s1061 = scalar_lea.vmem %s3, %s1060
      // Predicated region
      $region40: #{features_encoding.23} parent=31 // pred_check
        %p1062 = pneg %p100
      $region41: #{features_encoding.23} parent=31 // pred_check_branch
        %1064 = sbr.rel (%p1062) target = $region43
      $region42: #{features_encoding.23} parent=31 // pred_region
        _
      $region43: #{features_encoding.23} parent=31 // pred_fallthru
        _
    $region32: #{features_encoding.23} parent=5 // pred_fallthru
      _
    %p1065 = scmp.le.s32.totalorder 2, %s9
    // Predicated region
    $region44: #{features_encoding.23} parent=5 // pred_check
      %p1066 = pneg %p1065
    $region45: #{features_encoding.23} parent=5 // pred_check_branch
      %1068 = sbr.rel (%p1066) target = $region47
    $region46: #{features_encoding.23} parent=5 // pred_region
      %s1069 = ssub.s32 %s9, 2
      // Predicated region
      $region48: #{features_encoding.23} parent=46 // pred_check
        %p1070 = pneg %p106
      $region49: #{features_encoding.23} parent=46 // pred_check_branch
        %1072 = sbr.rel (%p1070) target = $region51
      $region50: #{features_encoding.23} parent=46 // pred_region
        %p1073 = scmp.lt.s32.totalorder %s15, 1
        %s1074 = scalar_select %p1073, %s15, 1
        %s1075 = smul.addr %s1074, 32
        %s1076 = smul.addr %s1075, 4
        %s1077 = scalar_lea.vmem %s3, %s1076
      $region51: #{features_encoding.23} parent=46 // pred_fallthru
        _
    $region47: #{features_encoding.23} parent=5 // pred_fallthru
      _
  $region6: #{features_encoding.23} parent=0 // loop_footer
    %s13 = sadd.s32 1, %s9
  $region7: #{features_encoding.23} parent=0 // loop_footer_branch
    %8 = sbr.rel target = $region3
  $region8: #{features_encoding.23} parent=0 // loop_exit
    _

// kernel: features_encoding.29
$region0: #{features_encoding.29}
  #allocation0 [shape = 'u32[]', space=smem, size = 0x4, offset = 0x4, fixed_abs, tag = 'smem constant byte address 0x4 - core index']
  #allocation1 [shape = 'u32[72,128]{1,0:T(1,128)}', space=vmem, size = 0x9000, scoped, tag = 'internal scratch']
  %s0 = inlined_call_operand.vmem [shape: bf16[16,4,2,128], index: 0, kind: input, shape index: {}]
  %s1 = inlined_call_operand.vmem [shape: bf16[8,4,128], index: 1, kind: output, shape index: {}]
  %s2 = sld [smem:[#allocation0]]
  $region37: #{features_encoding.29} parent=0
    _
  %s4 = ssub.s32 1, %s2
  %s5 = scalar_select 0, %s4, %s2
  loop: start=0, step=1, limit=10
  $region2: #{features_encoding.29} parent=0 // loop_pre_header
    _
  $region3: #{features_encoding.29} parent=0 // loop_header
    %s7 = sphi 0, %s11
    %p8 = scmp.ge.s32.totalorder %s7, 10
    %s17 = sphi 0, %s19
    %s20 = sphi 0, %s17
    %s21 = sphi 0, %s20
    %s37 = sphi 0, %s21
    %s43 = sphi 0, %s45
    %s46 = sphi 0, %s43
    %s47 = sphi 0, %s46
    %s63 = sphi 0, %s47
  $region4: #{features_encoding.29} parent=0 // loop_header_branch
    %10 = sbr.rel (%p8) target = $region8
  $region5: #{features_encoding.29} parent=0 // loop_body
    %s12 = ssub.s32 %s7, 1
    %s13 = ssub.s32 %s7, 2
    %s14 = sadd.s32 %s7, 1
    %s15 = ssub.s32 %s7, %s14
    %p16 = scmp.eq.s32.totalorder %s15, 0
    %s18 = sadd.s32 %s17, 1
    %s19 = scalar_select %p16, %s17, %s18
    %p22 = pneg %p16
    %p23 = scmp.eq.s32.totalorder %s7, 7
    %p24 = por %p22, %p23
    %p25 = scmp.ne.s32.totalorder %s17, %s20
    %p26 = scmp.eq.s32.totalorder %s7, 0
    %p27 = por %p25, %p26
    %p28 = scmp.ne.s32.totalorder %s17, %s20
    %p29 = scmp.eq.s32.totalorder %s12, 7
    %p30 = por %p28, %p29
    %p31 = scmp.ne.s32.totalorder %s20, %s21
    %p32 = scmp.eq.s32.totalorder %s12, 0
    %p33 = por %p31, %p32
    %p34 = scmp.ne.s32.totalorder %s20, %s21
    %p35 = scmp.eq.s32.totalorder %s13, 7
    %p36 = por %p34, %p35
    %p38 = scmp.ne.s32.totalorder %s21, %s37
    %p39 = scmp.eq.s32.totalorder %s13, 0
    %p40 = por %p38, %p39
    %s41 = ssub.s32 %s7, %s14
    %p42 = scmp.eq.s32.totalorder %s41, 0
    %s44 = sadd.s32 %s43, 1
    %s45 = scalar_select %p42, %s43, %s44
    %p48 = pneg %p42
    %p49 = scmp.eq.s32.totalorder %s7, 7
    %p50 = por %p48, %p49
    %p51 = scmp.ne.s32.totalorder %s43, %s46
    %p52 = scmp.eq.s32.totalorder %s7, 0
    %p53 = por %p51, %p52
    %p54 = scmp.ne.s32.totalorder %s43, %s46
    %p55 = scmp.eq.s32.totalorder %s12, 7
    %p56 = por %p54, %p55
    %p57 = scmp.ne.s32.totalorder %s46, %s47
    %p58 = scmp.eq.s32.totalorder %s12, 0
    %p59 = por %p57, %p58
    %p60 = scmp.ne.s32.totalorder %s46, %s47
    %p61 = scmp.eq.s32.totalorder %s13, 7
    %p62 = por %p60, %p61
    %p64 = scmp.ne.s32.totalorder %s47, %s63
    %p65 = scmp.eq.s32.totalorder %s13, 0
    %p66 = por %p64, %p65
    %p67 = scmp.le.s32.totalorder 1, %s7
    %p68 = scmp.lt.s32.totalorder %s7, 9
    %p69 = pnand %p67, %p68
    %p70 = pneg %p69
    // Predicated region
    $region9: #{features_encoding.29} parent=5 // pred_check
      _
    $region10: #{features_encoding.29} parent=5 // pred_check_branch
      %72 = sbr.rel (%p69) target = $region12
    $region11: #{features_encoding.29} parent=5 // pred_region
      %s73 = ssub.s32 %s7, 1
    $region12: #{features_encoding.29} parent=5 // pred_fallthru
      _
    %p74 = scmp.lt.s32.totalorder %s7, 8
    // Predicated region
    $region13: #{features_encoding.29} parent=5 // pred_check
      %p75 = pneg %p74
    $region14: #{features_encoding.29} parent=5 // pred_check_branch
      %77 = sbr.rel (%p75) target = $region16
    $region15: #{features_encoding.29} parent=5 // pred_region
      // Predicated region
      $region17: #{features_encoding.29} parent=15 // pred_check
        %p78 = pneg %p27
      $region18: #{features_encoding.29} parent=15 // pred_check_branch
        %80 = sbr.rel (%p78) target = $region20
      $region19: #{features_encoding.29} parent=15 // pred_region
        %s81 = smul.u32 2, %s7
        %p82 = scmp.lt.s32.totalorder %s81, 15
        %s83 = scalar_select %p82, %s81, 15
        %s84 = smul.addr %s83, 4
        %s85 = scalar_lea.vmem %s0, %s84
        %s86 = smul.u32 2, %s7
      $region20: #{features_encoding.29} parent=15 // pred_fallthru
        _
    $region16: #{features_encoding.29} parent=5 // pred_fallthru
      _
    %p87 = scmp.le.s32.totalorder 1, %s7
    %p88 = scmp.lt.s32.totalorder %s7, 9
    %p89 = pnand %p87, %p88
    %p90 = pneg %p89
    // Predicated region
    $region21: #{features_encoding.29} parent=5 // pred_check
      _
    $region22: #{features_encoding.29} parent=5 // pred_check_branch
      %92 = sbr.rel (%p89) target = $region24
    $region23: #{features_encoding.29} parent=5 // pred_region
      %s93 = ssub.s32 %s7, 1
      %s94 = smul.u32 2, %s12
      %p95 = scmp.lt.s32.totalorder %s94, 15
      %s96 = scalar_select %p95, %s94, 15
      %s97 = smul.addr %s96, 4
      %s98 = scalar_lea.vmem %s0, %s97
      %p99 = pneg %p33
      %p100 = pneg %p30
      %p101 = pneg %p59
      %p102 = pneg %p56
      %p103 = scmp.lt.s32.totalorder %s12, 7
      %s104 = scalar_select %p103, %s12, 7
      %s105 = smul.addr %s104, 2
      %s106 = scalar_lea.vmem %s1, %s105
      %s107 = smul.u32 2, %s12
      %p108 = scmp.lt.s32.totalorder %s107, 15
      %s109 = scalar_select %p108, %s107, 15
      %s110 = smul.addr %s109, 4
      %s111 = scalar_lea.vmem %s0, %s110
      %s112 = smul.u32 2, %s12
      %p113 = scmp.lt.s32.totalorder %s12, 7
      %s114 = scalar_select %p113, %s12, 7
      %s115 = smul.addr %s114, 2
      %s116 = scalar_lea.vmem %s1, %s115
      %v117 = vld [vmem:[%s111] sm:$0x1]
      %v118 = vld [vmem:[%s111 + $0x1] sm:$0x1]
      %v119 = vld [vmem:[%s111 + $0x2] sm:$0x1]
      %v120 = vld [vmem:[%s111 + $0x3] sm:$0x1]
      %v121 = vld [vmem:[%s111 + $0x4] sm:$0x1]
      %v122 = vld [vmem:[%s111 + $0x5] sm:$0x1]
      %v123 = vld [vmem:[%s111 + $0x6] sm:$0x1]
      %v124 = vld [vmem:[%s111 + $0x7] sm:$0x1]
      %v125 = vunpack.c.l.bf16 %v117
      %v126 = vunpack.c.l.bf16 %v118
      %v127 = vunpack.c.l.bf16 %v119
      %v128 = vunpack.c.l.bf16 %v120
      %v129 = vunpack.c.l.bf16 %v121
      %v130 = vunpack.c.l.bf16 %v122
      %v131 = vunpack.c.l.bf16 %v123
      %v132 = vunpack.c.l.bf16 %v124
      %v133 = vmax.f32 %v125, %v129
      %v134 = vmax.f32 %v126, %v130
      %v135 = vmax.f32 %v127, %v131
      %v136 = vmax.f32 %v128, %v132
      %v137 = vpack.c.bf16 %v133, %v133
      %v138 = vpack.c.bf16 %v134, %v134
      %v139 = vpack.c.bf16 %v135, %v135
      %v140 = vpack.c.bf16 %v136, %v136
      %v141 = vunpack.c.l.bf16 %v137
      %v142 = vunpack.c.l.bf16 %v138
      %v143 = vunpack.c.l.bf16 %v139
      %v144 = vunpack.c.l.bf16 %v140
      %vm145 = vcmask 1041408
      %v146 = vsel %vm145, %v141, -inf
      %v147 = vrot.slane %v146, 4
      %v148 = vmax.f32 %v146, %v147
      %v149 = vrot.slane %v148, 2
      %v150 = vmax.f32 %v148, %v149
      %v151 = vrot.slane %v150, 1
      %v152 = vmax.f32 %v150, %v151
      %v153 = vsel %vm145, %v142, -inf
      %v154 = vrot.slane %v153, 4
      %v155 = vmax.f32 %v153, %v154
      %v156 = vrot.slane %v155, 2
      %v157 = vmax.f32 %v155, %v156
      %v158 = vrot.slane %v157, 1
      %v159 = vmax.f32 %v157, %v158
      %v160 = vsel %vm145, %v143, -inf
      %v161 = vrot.slane %v160, 4
      %v162 = vmax.f32 %v160, %v161
      %v163 = vrot.slane %v162, 2
      %v164 = vmax.f32 %v162, %v163
      %v165 = vrot.slane %v164, 1
      %v166 = vmax.f32 %v164, %v165
      %v167 = vsel %vm145, %v144, -inf
      %v168 = vrot.slane %v167, 4
      %v169 = vmax.f32 %v167, %v168
      %v170 = vrot.slane %v169, 2
      %v171 = vmax.f32 %v169, %v170
      %v172 = vrot.slane %v171, 1
      %v173 = vmax.f32 %v171, %v172
      %v174 = vpack.c.bf16 %v152, %v152
      %v175 = vpack.c.bf16 %v159, %v159
      %v176 = vpack.c.bf16 %v166, %v166
      %v177 = vpack.c.bf16 %v173, %v173
      %v182 = vrot.slane %v174, 2
      %v183 = vrot.slane %v175, 2
      %v184 = vrot.slane %v176, 2
      %v185 = vrot.slane %v177, 2
      %v188 = vsel %vm145, %v174, %v182
      %v191 = vsel %vm145, %v175, %v183
      %v194 = vsel %vm145, %v176, %v184
      %v197 = vsel %vm145, %v177, %v185
      %198 = vst [vmem:[#allocation1] ss:$2 sm:$0xff] %v188
      %v199 = vld.sshfl [vmem:[#allocation1] sm:$0xff pattern:$0x75643120]
      %s201 = scalar_lea.vmem [#allocation1], 16
      %202 = vst [vmem:[%s201] ss:$2 sm:$0xff] %v191
      %v203 = vld.sshfl [vmem:[#allocation1 + $0x10] sm:$0xff pattern:$0x75643120]
      %s205 = scalar_lea.vmem [#allocation1], 32
      %206 = vst [vmem:[%s205] ss:$2 sm:$0xff] %v194
      %v207 = vld.sshfl [vmem:[#allocation1 + $0x20] sm:$0xff pattern:$0x75643120]
      %s209 = scalar_lea.vmem [#allocation1], 48
      %210 = vst [vmem:[%s209] ss:$2 sm:$0xff] %v197
      %v211 = vld.sshfl [vmem:[#allocation1 + $0x30] sm:$0xff pattern:$0x75643120]
      %v213 = vunpack.c.l.b16 %v199
      %v214 = vunpack.c.l.b16 %v203
      %v215 = vunpack.c.l.b16 %v207
      %v216 = vunpack.c.l.b16 %v211
      %v217 = vrot.slane %v214, 7
      %vm218 = vcmask 1041409
      %v219 = vsel %vm218, %v217, %v213
      %v220 = vrot.slane %v215, 6
      %vm221 = vcmask 1042434
      %v222 = vsel %vm221, %v220, %v219
      %v223 = vrot.slane %v216, 5
      %vm224 = vcmask 1043459
      %v225 = vsel %vm224, %v223, %v222
      %v226 = vpack.c.b16 %v225, %v225
      %v227 = vrot.slane %v226, 2
      %v230 = vsel %vm145, %v226, %v227
      %232 = vst [vmem:[%s116] sm:$0x3] %v230
      %p233 = scmp.lt.s32.totalorder %s12, 7
      %s234 = scalar_select %p233, %s12, 7
      %s235 = smul.addr %s234, 2
      %s236 = scalar_lea.vmem %s1, %s235
      // Predicated region
      $region25: #{features_encoding.29} parent=23 // pred_check
        %p237 = pneg %p56
      $region26: #{features_encoding.29} parent=23 // pred_check_branch
        %239 = sbr.rel (%p237) target = $region28
      $region27: #{features_encoding.29} parent=23 // pred_region
        _
      $region28: #{features_encoding.29} parent=23 // pred_fallthru
        _
    $region24: #{features_encoding.29} parent=5 // pred_fallthru
      _
    %p240 = scmp.le.s32.totalorder 2, %s7
    // Predicated region
    $region29: #{features_encoding.29} parent=5 // pred_check
      %p241 = pneg %p240
    $region30: #{features_encoding.29} parent=5 // pred_check_branch
      %243 = sbr.rel (%p241) target = $region32
    $region31: #{features_encoding.29} parent=5 // pred_region
      %s244 = ssub.s32 %s7, 2
      // Predicated region
      $region33: #{features_encoding.29} parent=31 // pred_check
        %p245 = pneg %p62
      $region34: #{features_encoding.29} parent=31 // pred_check_branch
        %247 = sbr.rel (%p245) target = $region36
      $region35: #{features_encoding.29} parent=31 // pred_region
        %p248 = scmp.lt.s32.totalorder %s13, 7
        %s249 = scalar_select %p248, %s13, 7
        %s250 = smul.addr %s249, 2
        %s251 = scalar_lea.vmem %s1, %s250
      $region36: #{features_encoding.29} parent=31 // pred_fallthru
        _
    $region32: #{features_encoding.29} parent=5 // pred_fallthru
      _
  $region6: #{features_encoding.29} parent=0 // loop_footer
    %s11 = sadd.s32 1, %s7
  $region7: #{features_encoding.29} parent=0 // loop_footer_branch
    %6 = sbr.rel target = $region3
  $region8: #{features_encoding.29} parent=0 // loop_exit
    _

// kernel: features_encoding.26
$region0: #{features_encoding.26}
  #allocation0 [shape = 'u32[]', space=smem, size = 0x4, offset = 0x4, fixed_abs, tag = 'smem constant byte address 0x4 - core index']
  #allocation1 [shape = 'u32[72,128]{1,0:T(1,128)}', space=vmem, size = 0x9000, scoped, tag = 'internal scratch']
  %s0 = inlined_call_operand.vmem [shape: bf16[2,10,10,128], index: 0, kind: input, shape index: {}]
  %s1 = inlined_call_operand.vmem [shape: bf16[9,128,128], index: 1, kind: input, shape index: {}]
  %s2 = inlined_call_operand.vmem [shape: f32[1,128], index: 2, kind: input, shape index: {}]
  %s3 = inlined_call_operand.vmem [shape: bf16[2,8,8,128], index: 3, kind: output, shape index: {}]
  %s4 = sld [smem:[#allocation0]]
  $region52: #{features_encoding.26} parent=0
    _
  %s6 = ssub.s32 1, %s4
  %s7 = scalar_select 0, %s6, %s4
  loop: start=0, step=1, limit=4
  $region2: #{features_encoding.26} parent=0 // loop_pre_header
    _
  $region3: #{features_encoding.26} parent=0 // loop_header
    %s9 = sphi 0, %s13
    %p10 = scmp.ge.s32.totalorder %s9, 4
    %s19 = sphi 0, %s21
    %s22 = sphi 0, %s19
    %s23 = sphi 0, %s22
    %s39 = sphi 0, %s23
    %s43 = sphi 0, %s43
    %s45 = sphi 0, %s43
    %s46 = sphi 0, %s45
    %s60 = sphi 0, %s46
    %s64 = sphi 0, %s64
    %s66 = sphi 0, %s64
    %s67 = sphi 0, %s66
    %s81 = sphi 0, %s67
    %s87 = sphi 0, %s89
    %s90 = sphi 0, %s87
    %s91 = sphi 0, %s90
    %s107 = sphi 0, %s91
  $region4: #{features_encoding.26} parent=0 // loop_header_branch
    %12 = sbr.rel (%p10) target = $region8
  $region5: #{features_encoding.26} parent=0 // loop_body
    %s14 = ssub.s32 %s9, 1
    %s15 = ssub.s32 %s9, 2
    %s16 = sadd.s32 %s9, 1
    %s17 = ssub.s32 %s9, %s16
    %p18 = scmp.eq.s32.totalorder %s17, 0
    %s20 = sadd.s32 %s19, 1
    %s21 = scalar_select %p18, %s19, %s20
    %p24 = pneg %p18
    %p25 = scmp.eq.s32.totalorder %s9, 1
    %p26 = por %p24, %p25
    %p27 = scmp.ne.s32.totalorder %s19, %s22
    %p28 = scmp.eq.s32.totalorder %s9, 0
    %p29 = por %p27, %p28
    %p30 = scmp.ne.s32.totalorder %s19, %s22
    %p31 = scmp.eq.s32.totalorder %s14, 1
    %p32 = por %p30, %p31
    %p33 = scmp.ne.s32.totalorder %s22, %s23
    %p34 = scmp.eq.s32.totalorder %s14, 0
    %p35 = por %p33, %p34
    %p36 = scmp.ne.s32.totalorder %s22, %s23
    %p37 = scmp.eq.s32.totalorder %s15, 1
    %p38 = por %p36, %p37
    %p40 = scmp.ne.s32.totalorder %s23, %s39
    %p41 = scmp.eq.s32.totalorder %s15, 0
    %p42 = por %p40, %p41
    %s44 = sadd.s32 %s43, 1
    %p47 = scmp.eq.s32.totalorder %s9, 1
    %p48 = scmp.ne.s32.totalorder %s43, %s45
    %p49 = scmp.eq.s32.totalorder %s9, 0
    %p50 = por %p48, %p49
    %p51 = scmp.ne.s32.totalorder %s43, %s45
    %p52 = scmp.eq.s32.totalorder %s14, 1
    %p53 = por %p51, %p52
    %p54 = scmp.ne.s32.totalorder %s45, %s46
    %p55 = scmp.eq.s32.totalorder %s14, 0
    %p56 = por %p54, %p55
    %p57 = scmp.ne.s32.totalorder %s45, %s46
    %p58 = scmp.eq.s32.totalorder %s15, 1
    %p59 = por %p57, %p58
    %p61 = scmp.ne.s32.totalorder %s46, %s60
    %p62 = scmp.eq.s32.totalorder %s15, 0
    %p63 = por %p61, %p62
    %s65 = sadd.s32 %s64, 1
    %p68 = scmp.eq.s32.totalorder %s9, 1
    %p69 = scmp.ne.s32.totalorder %s64, %s66
    %p70 = scmp.eq.s32.totalorder %s9, 0
    %p71 = por %p69, %p70
    %p72 = scmp.ne.s32.totalorder %s64, %s66
    %p73 = scmp.eq.s32.totalorder %s14, 1
    %p74 = por %p72, %p73
    %p75 = scmp.ne.s32.totalorder %s66, %s67
    %p76 = scmp.eq.s32.totalorder %s14, 0
    %p77 = por %p75, %p76
    %p78 = scmp.ne.s32.totalorder %s66, %s67
    %p79 = scmp.eq.s32.totalorder %s15, 1
    %p80 = por %p78, %p79
    %p82 = scmp.ne.s32.totalorder %s67, %s81
    %p83 = scmp.eq.s32.totalorder %s15, 0
    %p84 = por %p82, %p83
    %s85 = ssub.s32 %s9, %s16
    %p86 = scmp.eq.s32.totalorder %s85, 0
    %s88 = sadd.s32 %s87, 1
    %s89 = scalar_select %p86, %s87, %s88
    %p92 = pneg %p86
    %p93 = scmp.eq.s32.totalorder %s9, 1
    %p94 = por %p92, %p93
    %p95 = scmp.ne.s32.totalorder %s87, %s90
    %p96 = scmp.eq.s32.totalorder %s9, 0
    %p97 = por %p95, %p96
    %p98 = scmp.ne.s32.totalorder %s87, %s90
    %p99 = scmp.eq.s32.totalorder %s14, 1
    %p100 = por %p98, %p99
    %p101 = scmp.ne.s32.totalorder %s90, %s91
    %p102 = scmp.eq.s32.totalorder %s14, 0
    %p103 = por %p101, %p102
    %p104 = scmp.ne.s32.totalorder %s90, %s91
    %p105 = scmp.eq.s32.totalorder %s15, 1
    %p106 = por %p104, %p105
    %p108 = scmp.ne.s32.totalorder %s91, %s107
    %p109 = scmp.eq.s32.totalorder %s15, 0
    %p110 = por %p108, %p109
    %p111 = scmp.le.s32.totalorder 1, %s9
    %p112 = scmp.lt.s32.totalorder %s9, 3
    %p113 = pnand %p111, %p112
    %p114 = pneg %p113
    // Predicated region
    $region9: #{features_encoding.26} parent=5 // pred_check
      _
    $region10: #{features_encoding.26} parent=5 // pred_check_branch
      %116 = sbr.rel (%p113) target = $region12
    $region11: #{features_encoding.26} parent=5 // pred_region
      %s117 = ssub.s32 %s9, 1
      // Predicated region
      $region13: #{features_encoding.26} parent=11 // pred_check
        %p118 = pneg %p56
      $region14: #{features_encoding.26} parent=11 // pred_check_branch
        %120 = sbr.rel (%p118) target = $region16
      $region15: #{features_encoding.26} parent=11 // pred_region
        _
      $region16: #{features_encoding.26} parent=11 // pred_fallthru
        _
      // Predicated region
      $region17: #{features_encoding.26} parent=11 // pred_check
        %p121 = pneg %p77
      $region18: #{features_encoding.26} parent=11 // pred_check_branch
        %123 = sbr.rel (%p121) target = $region20
      $region19: #{features_encoding.26} parent=11 // pred_region
        _
      $region20: #{features_encoding.26} parent=11 // pred_fallthru
        _
    $region12: #{features_encoding.26} parent=5 // pred_fallthru
      _
    %p124 = scmp.lt.s32.totalorder %s9, 2
    // Predicated region
    $region21: #{features_encoding.26} parent=5 // pred_check
      %p125 = pneg %p124
    $region22: #{features_encoding.26} parent=5 // pred_check_branch
      %127 = sbr.rel (%p125) target = $region24
    $region23: #{features_encoding.26} parent=5 // pred_region
      // Predicated region
      $region25: #{features_encoding.26} parent=23 // pred_check
        %p128 = pneg %p29
      $region26: #{features_encoding.26} parent=23 // pred_check_branch
        %130 = sbr.rel (%p128) target = $region28
      $region27: #{features_encoding.26} parent=23 // pred_region
        %p131 = scmp.lt.s32.totalorder %s9, 1
        %s132 = scalar_select %p131, %s9, 1
        %s133 = smul.addr %s132, 20
        %s134 = smul.addr %s133, 4
        %s135 = scalar_lea.vmem %s0, %s134
      $region28: #{features_encoding.26} parent=23 // pred_fallthru
        _
    $region24: #{features_encoding.26} parent=5 // pred_fallthru
      _
    %p136 = scmp.le.s32.totalorder 1, %s9
    %p137 = scmp.lt.s32.totalorder %s9, 3
    %p138 = pnand %p136, %p137
    %p139 = pneg %p138
    // Predicated region
    $region29: #{features_encoding.26} parent=5 // pred_check
      _
    $region30: #{features_encoding.26} parent=5 // pred_check_branch
      %141 = sbr.rel (%p138) target = $region32
    $region31: #{features_encoding.26} parent=5 // pred_region
      %s142 = ssub.s32 %s9, 1
      %p143 = scmp.lt.s32.totalorder %s14, 1
      %s144 = scalar_select %p143, %s14, 1
      %s145 = smul.addr %s144, 20
      %s146 = smul.addr %s145, 4
      %s147 = scalar_lea.vmem %s0, %s146
      %p148 = pneg %p35
      %p149 = pneg %p32
      %p150 = pneg %p56
      %p151 = pneg %p53
      %p152 = pneg %p77
      %p153 = pneg %p74
      %p154 = pneg %p103
      %p155 = pneg %p100
      %p156 = scmp.lt.s32.totalorder %s14, 1
      %s157 = scalar_select %p156, %s14, 1
      %s158 = smul.addr %s157, 8
      %s159 = smul.addr %s158, 4
      %s160 = scalar_lea.vmem %s3, %s159
      %p161 = scmp.lt.s32.totalorder %s14, 1
      %s162 = scalar_select %p161, %s14, 1
      %s163 = smul.addr %s162, 20
      %s164 = smul.addr %s163, 4
      %s165 = scalar_lea.vmem %s0, %s164
      %p166 = scmp.lt.s32.totalorder %s14, 1
      %s167 = scalar_select %p166, %s14, 1
      %s168 = smul.addr %s167, 8
      %s169 = smul.addr %s168, 4
      %s170 = scalar_lea.vmem %s3, %s169
      loop: start=0, step=1, limit=8
      $region33: #{features_encoding.26} parent=31 // loop_pre_header
        _
      $region34: #{features_encoding.26} parent=31 // loop_header
        %s172 = sphi 0, %s176
        %p173 = scmp.ge.s32.totalorder %s172, 8
      $region35: #{features_encoding.26} parent=31 // loop_header_branch
        %175 = sbr.rel (%p173) target = $region39
      $region36: #{features_encoding.26} parent=31 // loop_body
        %s177 = smul.u32 %s172, 2
        %s178 = smul.addr %s177, 4
        %s179 = scalar_lea.vmem %s165, %s178
        %v180 = vld [vmem:[%s179] sm:$0xf]
        %v181 = vld [vmem:[%s179 + $0x4] sm:$0x1]
        %v182 = vld [vmem:[%s179 + $0x8] sm:$0xf]
        %v183 = vld [vmem:[%s179 + $0xc] sm:$0x1]
        %v184 = vld [vmem:[%s179 + $0x10] sm:$0xf]
        %v185 = vld [vmem:[%s179 + $0x14] sm:$0x1]
        %v186 = vld [vmem:[%s1] sm:$0xf]
        %v187 = vld [vmem:[%s1 + $0x4] sm:$0xf]
        %v188 = vld [vmem:[%s1 + $0x8] sm:$0xf]
        %v189 = vld [vmem:[%s1 + $0xc] sm:$0xf]
        %v190 = vld [vmem:[%s1 + $0x10] sm:$0xf]
        %v191 = vld [vmem:[%s1 + $0x14] sm:$0xf]
        %v192 = vld [vmem:[%s1 + $0x18] sm:$0xf]
        %v193 = vld [vmem:[%s1 + $0x1c] sm:$0xf]
        %v194 = vld [vmem:[%s1 + $0x20] sm:$0xf]
        %v195 = vld [vmem:[%s1 + $0x24] sm:$0xf]
        %v196 = vld [vmem:[%s1 + $0x28] sm:$0xf]
        %v197 = vld [vmem:[%s1 + $0x2c] sm:$0xf]
        %v198 = vld [vmem:[%s1 + $0x30] sm:$0xf]
        %v199 = vld [vmem:[%s1 + $0x34] sm:$0xf]
        %v200 = vld [vmem:[%s1 + $0x38] sm:$0xf]
        %v201 = vld [vmem:[%s1 + $0x3c] sm:$0xf]
        %v204 = vunpack.c.l.b16 %v180
        %v205 = vunpack.c.l.b16 %v181
        %v206 = vpack.c.b16 %v205, %v204
        %v224 = vunpack.c.l.b16 %v186
        %v225 = vunpack.c.l.b16 %v187
        %v226 = vunpack.c.l.b16 %v188
        %v227 = vunpack.c.l.b16 %v189
        %v228 = vunpack.c.l.b16 %v190
        %v229 = vunpack.c.l.b16 %v191
        %v230 = vunpack.c.l.b16 %v192
        %v231 = vunpack.c.l.b16 %v193
        %v232 = vunpack.c.l.b16 %v194
        %v233 = vunpack.c.l.b16 %v195
        %v234 = vunpack.c.l.b16 %v196
        %v235 = vunpack.c.l.b16 %v197
        %v236 = vunpack.c.l.b16 %v198
        %v237 = vunpack.c.l.b16 %v199
        %v238 = vunpack.c.l.b16 %v200
        %v239 = vunpack.c.l.b16 %v201
        %v240 = vpack.c.b16 %v225, %v224
        %v241 = vpack.c.b16 %v227, %v226
        %v242 = vpack.c.b16 %v229, %v228
        %v243 = vpack.c.b16 %v231, %v230
        %v244 = vpack.c.b16 %v233, %v232
        %v245 = vpack.c.b16 %v235, %v234
        %v246 = vpack.c.b16 %v237, %v236
        %v247 = vpack.c.b16 %v239, %v238
        %256 = vmatpush.bf16.msra.mxu0 %v247
        %257 = vmatpush.bf16.msra.mxu0 %v246
        %258 = vmatpush.bf16.msra.mxu0 %v245
        %259 = vmatpush.bf16.msra.mxu0 %v244
        %260 = vmatpush.bf16.msra.mxu0 %v243
        %261 = vmatpush.bf16.msra.mxu0 %v242
        %262 = vmatpush.bf16.msra.mxu0 %v241
        %263 = vmatpush.bf16.msra.mxu0 %v240
        %264 = vmatmul.bf16.gmra.mxu0 %v206
        %v265 = vpop.f32.mrf.mxu0
        %v266 = vadd.f32 0.0, %v265
        %v267 = vpop.f32.mrf.mxu0
        %268 = vdwg.mxu0
        %v269 = vadd.f32 %v266, 0.0
        %s270 = scalar_lea.vmem %s1, 64
        %v271 = vld [vmem:[%s270] sm:$0xf]
        %v272 = vld [vmem:[%s270 + $0x4] sm:$0xf]
        %v273 = vld [vmem:[%s270 + $0x8] sm:$0xf]
        %v274 = vld [vmem:[%s270 + $0xc] sm:$0xf]
        %v275 = vld [vmem:[%s270 + $0x10] sm:$0xf]
        %v276 = vld [vmem:[%s270 + $0x14] sm:$0xf]
        %v277 = vld [vmem:[%s270 + $0x18] sm:$0xf]
        %v278 = vld [vmem:[%s270 + $0x1c] sm:$0xf]
        %v279 = vld [vmem:[%s270 + $0x20] sm:$0xf]
        %v280 = vld [vmem:[%s270 + $0x24] sm:$0xf]
        %v281 = vld [vmem:[%s270 + $0x28] sm:$0xf]
        %v282 = vld [vmem:[%s270 + $0x2c] sm:$0xf]
        %v283 = vld [vmem:[%s270 + $0x30] sm:$0xf]
        %v284 = vld [vmem:[%s270 + $0x34] sm:$0xf]
        %v285 = vld [vmem:[%s270 + $0x38] sm:$0xf]
        %v286 = vld [vmem:[%s270 + $0x3c] sm:$0xf]
        %v303 = vunpack.c.l.b16 %v271
        %v304 = vunpack.c.l.b16 %v272
        %v305 = vunpack.c.l.b16 %v273
        %v306 = vunpack.c.l.b16 %v274
        %v307 = vunpack.c.l.b16 %v275
        %v308 = vunpack.c.l.b16 %v276
        %v309 = vunpack.c.l.b16 %v277
        %v310 = vunpack.c.l.b16 %v278
        %v311 = vunpack.c.l.b16 %v279
        %v312 = vunpack.c.l.b16 %v280
        %v313 = vunpack.c.l.b16 %v281
        %v314 = vunpack.c.l.b16 %v282
        %v315 = vunpack.c.l.b16 %v283
        %v316 = vunpack.c.l.b16 %v284
        %v317 = vunpack.c.l.b16 %v285
        %v318 = vunpack.c.l.b16 %v286
        %v319 = vpack.c.b16 %v304, %v303
        %v320 = vpack.c.b16 %v306, %v305
        %v321 = vpack.c.b16 %v308, %v307
        %v322 = vpack.c.b16 %v310, %v309
        %v323 = vpack.c.b16 %v312, %v311
        %v324 = vpack.c.b16 %v314, %v313
        %v325 = vpack.c.b16 %v316, %v315
        %v326 = vpack.c.b16 %v318, %v317
        %335 = vmatpush.bf16.msra.mxu0 %v326
        %336 = vmatpush.bf16.msra.mxu0 %v325
        %337 = vmatpush.bf16.msra.mxu0 %v324
        %338 = vmatpush.bf16.msra.mxu0 %v323
        %339 = vmatpush.bf16.msra.mxu0 %v322
        %340 = vmatpush.bf16.msra.mxu0 %v321
        %341 = vmatpush.bf16.msra.mxu0 %v320
        %342 = vmatpush.bf16.msra.mxu0 %v319
        %343 = vmatmul.bf16.gmra.mxu0 %v206
        %v344 = vpop.f32.mrf.mxu0
        %v345 = vadd.f32 0.0, %v344
        %v346 = vpop.f32.mrf.mxu0
        %v347 = vadd.f32 0.0, %v346
        %348 = vdwg.mxu0
        %vm351 = vcmask 1046528
        %v352 = vrot.slane %v345, 1
        %v353 = vrot.slane %v347, 1
        %v354 = vsel %vm351, %v352, %v353
        %v356 = vadd.f32 %v269, %v354
        %s357 = scalar_lea.vmem %s1, 128
        %v358 = vld [vmem:[%s357] sm:$0xf]
        %v359 = vld [vmem:[%s357 + $0x4] sm:$0xf]
        %v360 = vld [vmem:[%s357 + $0x8] sm:$0xf]
        %v361 = vld [vmem:[%s357 + $0xc] sm:$0xf]
        %v362 = vld [vmem:[%s357 + $0x10] sm:$0xf]
        %v363 = vld [vmem:[%s357 + $0x14] sm:$0xf]
        %v364 = vld [vmem:[%s357 + $0x18] sm:$0xf]
        %v365 = vld [vmem:[%s357 + $0x1c] sm:$0xf]
        %v366 = vld [vmem:[%s357 + $0x20] sm:$0xf]
        %v367 = vld [vmem:[%s357 + $0x24] sm:$0xf]
        %v368 = vld [vmem:[%s357 + $0x28] sm:$0xf]
        %v369 = vld [vmem:[%s357 + $0x2c] sm:$0xf]
        %v370 = vld [vmem:[%s357 + $0x30] sm:$0xf]
        %v371 = vld [vmem:[%s357 + $0x34] sm:$0xf]
        %v372 = vld [vmem:[%s357 + $0x38] sm:$0xf]
        %v373 = vld [vmem:[%s357 + $0x3c] sm:$0xf]
        %v390 = vunpack.c.l.b16 %v358
        %v391 = vunpack.c.l.b16 %v359
        %v392 = vunpack.c.l.b16 %v360
        %v393 = vunpack.c.l.b16 %v361
        %v394 = vunpack.c.l.b16 %v362
        %v395 = vunpack.c.l.b16 %v363
        %v396 = vunpack.c.l.b16 %v364
        %v397 = vunpack.c.l.b16 %v365
        %v398 = vunpack.c.l.b16 %v366
        %v399 = vunpack.c.l.b16 %v367
        %v400 = vunpack.c.l.b16 %v368
        %v401 = vunpack.c.l.b16 %v369
        %v402 = vunpack.c.l.b16 %v370
        %v403 = vunpack.c.l.b16 %v371
        %v404 = vunpack.c.l.b16 %v372
        %v405 = vunpack.c.l.b16 %v373
        %v406 = vpack.c.b16 %v391, %v390
        %v407 = vpack.c.b16 %v393, %v392
        %v408 = vpack.c.b16 %v395, %v394
        %v409 = vpack.c.b16 %v397, %v396
        %v410 = vpack.c.b16 %v399, %v398
        %v411 = vpack.c.b16 %v401, %v400
        %v412 = vpack.c.b16 %v403, %v402
        %v413 = vpack.c.b16 %v405, %v404
        %422 = vmatpush.bf16.msra.mxu0 %v413
        %423 = vmatpush.bf16.msra.mxu0 %v412
        %424 = vmatpush.bf16.msra.mxu0 %v411
        %425 = vmatpush.bf16.msra.mxu0 %v410
        %426 = vmatpush.bf16.msra.mxu0 %v409
        %427 = vmatpush.bf16.msra.mxu0 %v408
        %428 = vmatpush.bf16.msra.mxu0 %v407
        %429 = vmatpush.bf16.msra.mxu0 %v406
        %430 = vmatmul.bf16.gmra.mxu0 %v206
        %v431 = vpop.f32.mrf.mxu0
        %v432 = vadd.f32 0.0, %v431
        %v433 = vpop.f32.mrf.mxu0
        %v434 = vadd.f32 0.0, %v433
        %435 = vdwg.mxu0
        %vm438 = vcmask 1045504
        %v439 = vrot.slane %v432, 2
        %v440 = vrot.slane %v434, 2
        %v441 = vsel %vm438, %v439, %v440
        %v443 = vadd.f32 %v356, %v441
        %s444 = scalar_lea.vmem %s1, 192
        %v445 = vld [vmem:[%s444] sm:$0xf]
        %v446 = vld [vmem:[%s444 + $0x4] sm:$0xf]
        %v447 = vld [vmem:[%s444 + $0x8] sm:$0xf]
        %v448 = vld [vmem:[%s444 + $0xc] sm:$0xf]
        %v449 = vld [vmem:[%s444 + $0x10] sm:$0xf]
        %v450 = vld [vmem:[%s444 + $0x14] sm:$0xf]
        %v451 = vld [vmem:[%s444 + $0x18] sm:$0xf]
        %v452 = vld [vmem:[%s444 + $0x1c] sm:$0xf]
        %v453 = vld [vmem:[%s444 + $0x20] sm:$0xf]
        %v454 = vld [vmem:[%s444 + $0x24] sm:$0xf]
        %v455 = vld [vmem:[%s444 + $0x28] sm:$0xf]
        %v456 = vld [vmem:[%s444 + $0x2c] sm:$0xf]
        %v457 = vld [vmem:[%s444 + $0x30] sm:$0xf]
        %v458 = vld [vmem:[%s444 + $0x34] sm:$0xf]
        %v459 = vld [vmem:[%s444 + $0x38] sm:$0xf]
        %v460 = vld [vmem:[%s444 + $0x3c] sm:$0xf]
        %v463 = vunpack.c.l.b16 %v182
        %v464 = vunpack.c.l.b16 %v183
        %v465 = vpack.c.b16 %v464, %v463
        %v483 = vunpack.c.l.b16 %v445
        %v484 = vunpack.c.l.b16 %v446
        %v485 = vunpack.c.l.b16 %v447
        %v486 = vunpack.c.l.b16 %v448
        %v487 = vunpack.c.l.b16 %v449
        %v488 = vunpack.c.l.b16 %v450
        %v489 = vunpack.c.l.b16 %v451
        %v490 = vunpack.c.l.b16 %v452
        %v491 = vunpack.c.l.b16 %v453
        %v492 = vunpack.c.l.b16 %v454
        %v493 = vunpack.c.l.b16 %v455
        %v494 = vunpack.c.l.b16 %v456
        %v495 = vunpack.c.l.b16 %v457
        %v496 = vunpack.c.l.b16 %v458
        %v497 = vunpack.c.l.b16 %v459
        %v498 = vunpack.c.l.b16 %v460
        %v499 = vpack.c.b16 %v484, %v483
        %v500 = vpack.c.b16 %v486, %v485
        %v501 = vpack.c.b16 %v488, %v487
        %v502 = vpack.c.b16 %v490, %v489
        %v503 = vpack.c.b16 %v492, %v491
        %v504 = vpack.c.b16 %v494, %v493
        %v505 = vpack.c.b16 %v496, %v495
        %v506 = vpack.c.b16 %v498, %v497
        %515 = vmatpush.bf16.msra.mxu0 %v506
        %516 = vmatpush.bf16.msra.mxu0 %v505
        %517 = vmatpush.bf16.msra.mxu0 %v504
        %518 = vmatpush.bf16.msra.mxu0 %v503
        %519 = vmatpush.bf16.msra.mxu0 %v502
        %520 = vmatpush.bf16.msra.mxu0 %v501
        %521 = vmatpush.bf16.msra.mxu0 %v500
        %522 = vmatpush.bf16.msra.mxu0 %v499
        %523 = vmatmul.bf16.gmra.mxu0 %v465
        %v524 = vpop.f32.mrf.mxu0
        %v525 = vadd.f32 0.0, %v524
        %v526 = vpop.f32.mrf.mxu0
        %527 = vdwg.mxu0
        %v528 = vadd.f32 %v443, %v525
        %s529 = scalar_lea.vmem %s1, 256
        %v530 = vld [vmem:[%s529] sm:$0xf]
        %v531 = vld [vmem:[%s529 + $0x4] sm:$0xf]
        %v532 = vld [vmem:[%s529 + $0x8] sm:$0xf]
        %v533 = vld [vmem:[%s529 + $0xc] sm:$0xf]
        %v534 = vld [vmem:[%s529 + $0x10] sm:$0xf]
        %v535 = vld [vmem:[%s529 + $0x14] sm:$0xf]
        %v536 = vld [vmem:[%s529 + $0x18] sm:$0xf]
        %v537 = vld [vmem:[%s529 + $0x1c] sm:$0xf]
        %v538 = vld [vmem:[%s529 + $0x20] sm:$0xf]
        %v539 = vld [vmem:[%s529 + $0x24] sm:$0xf]
        %v540 = vld [vmem:[%s529 + $0x28] sm:$0xf]
        %v541 = vld [vmem:[%s529 + $0x2c] sm:$0xf]
        %v542 = vld [vmem:[%s529 + $0x30] sm:$0xf]
        %v543 = vld [vmem:[%s529 + $0x34] sm:$0xf]
        %v544 = vld [vmem:[%s529 + $0x38] sm:$0xf]
        %v545 = vld [vmem:[%s529 + $0x3c] sm:$0xf]
        %v562 = vunpack.c.l.b16 %v530
        %v563 = vunpack.c.l.b16 %v531
        %v564 = vunpack.c.l.b16 %v532
        %v565 = vunpack.c.l.b16 %v533
        %v566 = vunpack.c.l.b16 %v534
        %v567 = vunpack.c.l.b16 %v535
        %v568 = vunpack.c.l.b16 %v536
        %v569 = vunpack.c.l.b16 %v537
        %v570 = vunpack.c.l.b16 %v538
        %v571 = vunpack.c.l.b16 %v539
        %v572 = vunpack.c.l.b16 %v540
        %v573 = vunpack.c.l.b16 %v541
        %v574 = vunpack.c.l.b16 %v542
        %v575 = vunpack.c.l.b16 %v543
        %v576 = vunpack.c.l.b16 %v544
        %v577 = vunpack.c.l.b16 %v545
        %v578 = vpack.c.b16 %v563, %v562
        %v579 = vpack.c.b16 %v565, %v564
        %v580 = vpack.c.b16 %v567, %v566
        %v581 = vpack.c.b16 %v569, %v568
        %v582 = vpack.c.b16 %v571, %v570
        %v583 = vpack.c.b16 %v573, %v572
        %v584 = vpack.c.b16 %v575, %v574
        %v585 = vpack.c.b16 %v577, %v576
        %594 = vmatpush.bf16.msra.mxu0 %v585
        %595 = vmatpush.bf16.msra.mxu0 %v584
        %596 = vmatpush.bf16.msra.mxu0 %v583
        %597 = vmatpush.bf16.msra.mxu0 %v582
        %598 = vmatpush.bf16.msra.mxu0 %v581
        %599 = vmatpush.bf16.msra.mxu0 %v580
        %600 = vmatpush.bf16.msra.mxu0 %v579
        %601 = vmatpush.bf16.msra.mxu0 %v578
        %602 = vmatmul.bf16.gmra.mxu0 %v465
        %v603 = vpop.f32.mrf.mxu0
        %v604 = vadd.f32 0.0, %v603
        %v605 = vpop.f32.mrf.mxu0
        %v606 = vadd.f32 0.0, %v605
        %607 = vdwg.mxu0
        %v610 = vrot.slane %v604, 1
        %v611 = vrot.slane %v606, 1
        %v612 = vsel %vm351, %v610, %v611
        %v614 = vadd.f32 %v528, %v612
        %s615 = scalar_lea.vmem %s1, 320
        %v616 = vld [vmem:[%s615] sm:$0xf]
        %v617 = vld [vmem:[%s615 + $0x4] sm:$0xf]
        %v618 = vld [vmem:[%s615 + $0x8] sm:$0xf]
        %v619 = vld [vmem:[%s615 + $0xc] sm:$0xf]
        %v620 = vld [vmem:[%s615 + $0x10] sm:$0xf]
        %v621 = vld [vmem:[%s615 + $0x14] sm:$0xf]
        %v622 = vld [vmem:[%s615 + $0x18] sm:$0xf]
        %v623 = vld [vmem:[%s615 + $0x1c] sm:$0xf]
        %v624 = vld [vmem:[%s615 + $0x20] sm:$0xf]
        %v625 = vld [vmem:[%s615 + $0x24] sm:$0xf]
        %v626 = vld [vmem:[%s615 + $0x28] sm:$0xf]
        %v627 = vld [vmem:[%s615 + $0x2c] sm:$0xf]
        %v628 = vld [vmem:[%s615 + $0x30] sm:$0xf]
        %v629 = vld [vmem:[%s615 + $0x34] sm:$0xf]
        %v630 = vld [vmem:[%s615 + $0x38] sm:$0xf]
        %v631 = vld [vmem:[%s615 + $0x3c] sm:$0xf]
        %v648 = vunpack.c.l.b16 %v616
        %v649 = vunpack.c.l.b16 %v617
        %v650 = vunpack.c.l.b16 %v618
        %v651 = vunpack.c.l.b16 %v619
        %v652 = vunpack.c.l.b16 %v620
        %v653 = vunpack.c.l.b16 %v621
        %v654 = vunpack.c.l.b16 %v622
        %v655 = vunpack.c.l.b16 %v623
        %v656 = vunpack.c.l.b16 %v624
        %v657 = vunpack.c.l.b16 %v625
        %v658 = vunpack.c.l.b16 %v626
        %v659 = vunpack.c.l.b16 %v627
        %v660 = vunpack.c.l.b16 %v628
        %v661 = vunpack.c.l.b16 %v629
        %v662 = vunpack.c.l.b16 %v630
        %v663 = vunpack.c.l.b16 %v631
        %v664 = vpack.c.b16 %v649, %v648
        %v665 = vpack.c.b16 %v651, %v650
        %v666 = vpack.c.b16 %v653, %v652
        %v667 = vpack.c.b16 %v655, %v654
        %v668 = vpack.c.b16 %v657, %v656
        %v669 = vpack.c.b16 %v659, %v658
        %v670 = vpack.c.b16 %v661, %v660
        %v671 = vpack.c.b16 %v663, %v662
        %680 = vmatpush.bf16.msra.mxu0 %v671
        %681 = vmatpush.bf16.msra.mxu0 %v670
        %682 = vmatpush.bf16.msra.mxu0 %v669
        %683 = vmatpush.bf16.msra.mxu0 %v668
        %684 = vmatpush.bf16.msra.mxu0 %v667
        %685 = vmatpush.bf16.msra.mxu0 %v666
        %686 = vmatpush.bf16.msra.mxu0 %v665
        %687 = vmatpush.bf16.msra.mxu0 %v664
        %688 = vmatmul.bf16.gmra.mxu0 %v465
        %v689 = vpop.f32.mrf.mxu0
        %v690 = vadd.f32 0.0, %v689
        %v691 = vpop.f32.mrf.mxu0
        %v692 = vadd.f32 0.0, %v691
        %693 = vdwg.mxu0
        %v696 = vrot.slane %v690, 2
        %v697 = vrot.slane %v692, 2
        %v698 = vsel %vm438, %v696, %v697
        %v700 = vadd.f32 %v614, %v698
        %s701 = scalar_lea.vmem %s1, 384
        %v702 = vld [vmem:[%s701] sm:$0xf]
        %v703 = vld [vmem:[%s701 + $0x4] sm:$0xf]
        %v704 = vld [vmem:[%s701 + $0x8] sm:$0xf]
        %v705 = vld [vmem:[%s701 + $0xc] sm:$0xf]
        %v706 = vld [vmem:[%s701 + $0x10] sm:$0xf]
        %v707 = vld [vmem:[%s701 + $0x14] sm:$0xf]
        %v708 = vld [vmem:[%s701 + $0x18] sm:$0xf]
        %v709 = vld [vmem:[%s701 + $0x1c] sm:$0xf]
        %v710 = vld [vmem:[%s701 + $0x20] sm:$0xf]
        %v711 = vld [vmem:[%s701 + $0x24] sm:$0xf]
        %v712 = vld [vmem:[%s701 + $0x28] sm:$0xf]
        %v713 = vld [vmem:[%s701 + $0x2c] sm:$0xf]
        %v714 = vld [vmem:[%s701 + $0x30] sm:$0xf]
        %v715 = vld [vmem:[%s701 + $0x34] sm:$0xf]
        %v716 = vld [vmem:[%s701 + $0x38] sm:$0xf]
        %v717 = vld [vmem:[%s701 + $0x3c] sm:$0xf]
        %v720 = vunpack.c.l.b16 %v184
        %v721 = vunpack.c.l.b16 %v185
        %v722 = vpack.c.b16 %v721, %v720
        %v740 = vunpack.c.l.b16 %v702
        %v741 = vunpack.c.l.b16 %v703
        %v742 = vunpack.c.l.b16 %v704
        %v743 = vunpack.c.l.b16 %v705
        %v744 = vunpack.c.l.b16 %v706
        %v745 = vunpack.c.l.b16 %v707
        %v746 = vunpack.c.l.b16 %v708
        %v747 = vunpack.c.l.b16 %v709
        %v748 = vunpack.c.l.b16 %v710
        %v749 = vunpack.c.l.b16 %v711
        %v750 = vunpack.c.l.b16 %v712
        %v751 = vunpack.c.l.b16 %v713
        %v752 = vunpack.c.l.b16 %v714
        %v753 = vunpack.c.l.b16 %v715
        %v754 = vunpack.c.l.b16 %v716
        %v755 = vunpack.c.l.b16 %v717
        %v756 = vpack.c.b16 %v741, %v740
        %v757 = vpack.c.b16 %v743, %v742
        %v758 = vpack.c.b16 %v745, %v744
        %v759 = vpack.c.b16 %v747, %v746
        %v760 = vpack.c.b16 %v749, %v748
        %v761 = vpack.c.b16 %v751, %v750
        %v762 = vpack.c.b16 %v753, %v752
        %v763 = vpack.c.b16 %v755, %v754
        %772 = vmatpush.bf16.msra.mxu0 %v763
        %773 = vmatpush.bf16.msra.mxu0 %v762
        %774 = vmatpush.bf16.msra.mxu0 %v761
        %775 = vmatpush.bf16.msra.mxu0 %v760
        %776 = vmatpush.bf16.msra.mxu0 %v759
        %777 = vmatpush.bf16.msra.mxu0 %v758
        %778 = vmatpush.bf16.msra.mxu0 %v757
        %779 = vmatpush.bf16.msra.mxu0 %v756
        %780 = vmatmul.bf16.gmra.mxu0 %v722
        %v781 = vpop.f32.mrf.mxu0
        %v782 = vadd.f32 0.0, %v781
        %v783 = vpop.f32.mrf.mxu0
        %784 = vdwg.mxu0
        %v785 = vadd.f32 %v700, %v782
        %s786 = scalar_lea.vmem %s1, 448
        %v787 = vld [vmem:[%s786] sm:$0xf]
        %v788 = vld [vmem:[%s786 + $0x4] sm:$0xf]
        %v789 = vld [vmem:[%s786 + $0x8] sm:$0xf]
        %v790 = vld [vmem:[%s786 + $0xc] sm:$0xf]
        %v791 = vld [vmem:[%s786 + $0x10] sm:$0xf]
        %v792 = vld [vmem:[%s786 + $0x14] sm:$0xf]
        %v793 = vld [vmem:[%s786 + $0x18] sm:$0xf]
        %v794 = vld [vmem:[%s786 + $0x1c] sm:$0xf]
        %v795 = vld [vmem:[%s786 + $0x20] sm:$0xf]
        %v796 = vld [vmem:[%s786 + $0x24] sm:$0xf]
        %v797 = vld [vmem:[%s786 + $0x28] sm:$0xf]
        %v798 = vld [vmem:[%s786 + $0x2c] sm:$0xf]
        %v799 = vld [vmem:[%s786 + $0x30] sm:$0xf]
        %v800 = vld [vmem:[%s786 + $0x34] sm:$0xf]
        %v801 = vld [vmem:[%s786 + $0x38] sm:$0xf]
        %v802 = vld [vmem:[%s786 + $0x3c] sm:$0xf]
        %v819 = vunpack.c.l.b16 %v787
        %v820 = vunpack.c.l.b16 %v788
        %v821 = vunpack.c.l.b16 %v789
        %v822 = vunpack.c.l.b16 %v790
        %v823 = vunpack.c.l.b16 %v791
        %v824 = vunpack.c.l.b16 %v792
        %v825 = vunpack.c.l.b16 %v793
        %v826 = vunpack.c.l.b16 %v794
        %v827 = vunpack.c.l.b16 %v795
        %v828 = vunpack.c.l.b16 %v796
        %v829 = vunpack.c.l.b16 %v797
        %v830 = vunpack.c.l.b16 %v798
        %v831 = vunpack.c.l.b16 %v799
        %v832 = vunpack.c.l.b16 %v800
        %v833 = vunpack.c.l.b16 %v801
        %v834 = vunpack.c.l.b16 %v802
        %v835 = vpack.c.b16 %v820, %v819
        %v836 = vpack.c.b16 %v822, %v821
        %v837 = vpack.c.b16 %v824, %v823
        %v838 = vpack.c.b16 %v826, %v825
        %v839 = vpack.c.b16 %v828, %v827
        %v840 = vpack.c.b16 %v830, %v829
        %v841 = vpack.c.b16 %v832, %v831
        %v842 = vpack.c.b16 %v834, %v833
        %851 = vmatpush.bf16.msra.mxu0 %v842
        %852 = vmatpush.bf16.msra.mxu0 %v841
        %853 = vmatpush.bf16.msra.mxu0 %v840
        %854 = vmatpush.bf16.msra.mxu0 %v839
        %855 = vmatpush.bf16.msra.mxu0 %v838
        %856 = vmatpush.bf16.msra.mxu0 %v837
        %857 = vmatpush.bf16.msra.mxu0 %v836
        %858 = vmatpush.bf16.msra.mxu0 %v835
        %859 = vmatmul.bf16.gmra.mxu0 %v722
        %v860 = vpop.f32.mrf.mxu0
        %v861 = vadd.f32 0.0, %v860
        %v862 = vpop.f32.mrf.mxu0
        %v863 = vadd.f32 0.0, %v862
        %864 = vdwg.mxu0
        %v867 = vrot.slane %v861, 1
        %v868 = vrot.slane %v863, 1
        %v869 = vsel %vm351, %v867, %v868
        %v871 = vadd.f32 %v785, %v869
        %s872 = scalar_lea.vmem %s1, 512
        %v873 = vld [vmem:[%s872] sm:$0xf]
        %v874 = vld [vmem:[%s872 + $0x4] sm:$0xf]
        %v875 = vld [vmem:[%s872 + $0x8] sm:$0xf]
        %v876 = vld [vmem:[%s872 + $0xc] sm:$0xf]
        %v877 = vld [vmem:[%s872 + $0x10] sm:$0xf]
        %v878 = vld [vmem:[%s872 + $0x14] sm:$0xf]
        %v879 = vld [vmem:[%s872 + $0x18] sm:$0xf]
        %v880 = vld [vmem:[%s872 + $0x1c] sm:$0xf]
        %v881 = vld [vmem:[%s872 + $0x20] sm:$0xf]
        %v882 = vld [vmem:[%s872 + $0x24] sm:$0xf]
        %v883 = vld [vmem:[%s872 + $0x28] sm:$0xf]
        %v884 = vld [vmem:[%s872 + $0x2c] sm:$0xf]
        %v885 = vld [vmem:[%s872 + $0x30] sm:$0xf]
        %v886 = vld [vmem:[%s872 + $0x34] sm:$0xf]
        %v887 = vld [vmem:[%s872 + $0x38] sm:$0xf]
        %v888 = vld [vmem:[%s872 + $0x3c] sm:$0xf]
        %v905 = vunpack.c.l.b16 %v873
        %v906 = vunpack.c.l.b16 %v874
        %v907 = vunpack.c.l.b16 %v875
        %v908 = vunpack.c.l.b16 %v876
        %v909 = vunpack.c.l.b16 %v877
        %v910 = vunpack.c.l.b16 %v878
        %v911 = vunpack.c.l.b16 %v879
        %v912 = vunpack.c.l.b16 %v880
        %v913 = vunpack.c.l.b16 %v881
        %v914 = vunpack.c.l.b16 %v882
        %v915 = vunpack.c.l.b16 %v883
        %v916 = vunpack.c.l.b16 %v884
        %v917 = vunpack.c.l.b16 %v885
        %v918 = vunpack.c.l.b16 %v886
        %v919 = vunpack.c.l.b16 %v887
        %v920 = vunpack.c.l.b16 %v888
        %v921 = vpack.c.b16 %v906, %v905
        %v922 = vpack.c.b16 %v908, %v907
        %v923 = vpack.c.b16 %v910, %v909
        %v924 = vpack.c.b16 %v912, %v911
        %v925 = vpack.c.b16 %v914, %v913
        %v926 = vpack.c.b16 %v916, %v915
        %v927 = vpack.c.b16 %v918, %v917
        %v928 = vpack.c.b16 %v920, %v919
        %937 = vmatpush.bf16.msra.mxu0 %v928
        %938 = vmatpush.bf16.msra.mxu0 %v927
        %939 = vmatpush.bf16.msra.mxu0 %v926
        %940 = vmatpush.bf16.msra.mxu0 %v925
        %941 = vmatpush.bf16.msra.mxu0 %v924
        %942 = vmatpush.bf16.msra.mxu0 %v923
        %943 = vmatpush.bf16.msra.mxu0 %v922
        %944 = vmatpush.bf16.msra.mxu0 %v921
        %945 = vmatmul.bf16.gmra.mxu0 %v722
        %v946 = vpop.f32.mrf.mxu0
        %v947 = vadd.f32 0.0, %v946
        %v948 = vpop.f32.mrf.mxu0
        %v949 = vadd.f32 0.0, %v948
        %950 = vdwg.mxu0
        %v953 = vrot.slane %v947, 2
        %v954 = vrot.slane %v949, 2
        %v955 = vsel %vm438, %v953, %v954
        %v957 = vadd.f32 %v871, %v955
        %v958 = vld [vmem:[%s2] sm:$0x1]
        %v960 = vperm.slane %v958, 0
        %v962 = vadd.f32 %v957, %v960
        %v963 = vmax.f32 %v962, 0.0
        %v964 = vpack.c.bf16 %v963, %v963
        %s965 = smul.addr %s172, 4
        %s966 = scalar_lea.vmem %s170, %s965
        %967 = vst [vmem:[%s966] sm:$0xf] %v964
      $region37: #{features_encoding.26} parent=31 // loop_footer
        %s176 = sadd.s32 1, %s172
      $region38: #{features_encoding.26} parent=31 // loop_footer_branch
        %171 = sbr.rel target = $region34
      $region39: #{features_encoding.26} parent=31 // loop_exit
        _
      %p968 = scmp.lt.s32.totalorder %s14, 1
      %s969 = scalar_select %p968, %s14, 1
      %s970 = smul.addr %s969, 8
      %s971 = smul.addr %s970, 4
      %s972 = scalar_lea.vmem %s3, %s971
      // Predicated region
      $region40: #{features_encoding.26} parent=31 // pred_check
        %p973 = pneg %p100
      $region41: #{features_encoding.26} parent=31 // pred_check_branch
        %975 = sbr.rel (%p973) target = $region43
      $region42: #{features_encoding.26} parent=31 // pred_region
        _
      $region43: #{features_encoding.26} parent=31 // pred_fallthru
        _
    $region32: #{features_encoding.26} parent=5 // pred_fallthru
      _
    %p976 = scmp.le.s32.totalorder 2, %s9
    // Predicated region
    $region44: #{features_encoding.26} parent=5 // pred_check
      %p977 = pneg %p976
    $region45: #{features_encoding.26} parent=5 // pred_check_branch
      %979 = sbr.rel (%p977) target = $region47
    $region46: #{features_encoding.26} parent=5 // pred_region
      %s980 = ssub.s32 %s9, 2
      // Predicated region
      $region48: #{features_encoding.26} parent=46 // pred_check
        %p981 = pneg %p106
      $region49: #{features_encoding.26} parent=46 // pred_check_branch
        %983 = sbr.rel (%p981) target = $region51
      $region50: #{features_encoding.26} parent=46 // pred_region
        %p984 = scmp.lt.s32.totalorder %s15, 1
        %s985 = scalar_select %p984, %s15, 1
        %s986 = smul.addr %s985, 8
        %s987 = smul.addr %s986, 4
        %s988 = scalar_lea.vmem %s3, %s987
      $region51: #{features_encoding.26} parent=46 // pred_fallthru
        _
    $region47: #{features_encoding.26} parent=5 // pred_fallthru
      _
  $region6: #{features_encoding.26} parent=0 // loop_footer
    %s13 = sadd.s32 1, %s9
  $region7: #{features_encoding.26} parent=0 // loop_footer_branch
    %8 = sbr.rel target = $region3
  $region8: #{features_encoding.26} parent=0 // loop_exit
    _

// kernel: features_encoding.33
$region0: #{features_encoding.33}
  #allocation0 [shape = 'u32[]', space=smem, size = 0x4, offset = 0x4, fixed_abs, tag = 'smem constant byte address 0x4 - core index']
  #allocation1 [shape = 'u32[72,128]{1,0:T(1,128)}', space=vmem, size = 0x9000, scoped, tag = 'internal scratch']
  %s0 = inlined_call_operand.vmem [shape: bf16[8,2,2,128], index: 0, kind: input, shape index: {}]
  %s1 = inlined_call_operand.vmem [shape: bf16[4,2,128], index: 1, kind: output, shape index: {}]
  %s2 = sld [smem:[#allocation0]]
  $region37: #{features_encoding.33} parent=0
    _
  %s4 = ssub.s32 1, %s2
  %s5 = scalar_select 0, %s4, %s2
  loop: start=0, step=1, limit=6
  $region2: #{features_encoding.33} parent=0 // loop_pre_header
    _
  $region3: #{features_encoding.33} parent=0 // loop_header
    %s7 = sphi 0, %s11
    %p8 = scmp.ge.s32.totalorder %s7, 6
    %s17 = sphi 0, %s19
    %s20 = sphi 0, %s17
    %s21 = sphi 0, %s20
    %s37 = sphi 0, %s21
    %s43 = sphi 0, %s45
    %s46 = sphi 0, %s43
    %s47 = sphi 0, %s46
    %s63 = sphi 0, %s47
  $region4: #{features_encoding.33} parent=0 // loop_header_branch
    %10 = sbr.rel (%p8) target = $region8
  $region5: #{features_encoding.33} parent=0 // loop_body
    %s12 = ssub.s32 %s7, 1
    %s13 = ssub.s32 %s7, 2
    %s14 = sadd.s32 %s7, 1
    %s15 = ssub.s32 %s7, %s14
    %p16 = scmp.eq.s32.totalorder %s15, 0
    %s18 = sadd.s32 %s17, 1
    %s19 = scalar_select %p16, %s17, %s18
    %p22 = pneg %p16
    %p23 = scmp.eq.s32.totalorder %s7, 3
    %p24 = por %p22, %p23
    %p25 = scmp.ne.s32.totalorder %s17, %s20
    %p26 = scmp.eq.s32.totalorder %s7, 0
    %p27 = por %p25, %p26
    %p28 = scmp.ne.s32.totalorder %s17, %s20
    %p29 = scmp.eq.s32.totalorder %s12, 3
    %p30 = por %p28, %p29
    %p31 = scmp.ne.s32.totalorder %s20, %s21
    %p32 = scmp.eq.s32.totalorder %s12, 0
    %p33 = por %p31, %p32
    %p34 = scmp.ne.s32.totalorder %s20, %s21
    %p35 = scmp.eq.s32.totalorder %s13, 3
    %p36 = por %p34, %p35
    %p38 = scmp.ne.s32.totalorder %s21, %s37
    %p39 = scmp.eq.s32.totalorder %s13, 0
    %p40 = por %p38, %p39
    %s41 = ssub.s32 %s7, %s14
    %p42 = scmp.eq.s32.totalorder %s41, 0
    %s44 = sadd.s32 %s43, 1
    %s45 = scalar_select %p42, %s43, %s44
    %p48 = pneg %p42
    %p49 = scmp.eq.s32.totalorder %s7, 3
    %p50 = por %p48, %p49
    %p51 = scmp.ne.s32.totalorder %s43, %s46
    %p52 = scmp.eq.s32.totalorder %s7, 0
    %p53 = por %p51, %p52
    %p54 = scmp.ne.s32.totalorder %s43, %s46
    %p55 = scmp.eq.s32.totalorder %s12, 3
    %p56 = por %p54, %p55
    %p57 = scmp.ne.s32.totalorder %s46, %s47
    %p58 = scmp.eq.s32.totalorder %s12, 0
    %p59 = por %p57, %p58
    %p60 = scmp.ne.s32.totalorder %s46, %s47
    %p61 = scmp.eq.s32.totalorder %s13, 3
    %p62 = por %p60, %p61
    %p64 = scmp.ne.s32.totalorder %s47, %s63
    %p65 = scmp.eq.s32.totalorder %s13, 0
    %p66 = por %p64, %p65
    %p67 = scmp.le.s32.totalorder 1, %s7
    %p68 = scmp.lt.s32.totalorder %s7, 5
    %p69 = pnand %p67, %p68
    %p70 = pneg %p69
    // Predicated region
    $region9: #{features_encoding.33} parent=5 // pred_check
      _
    $region10: #{features_encoding.33} parent=5 // pred_check_branch
      %72 = sbr.rel (%p69) target = $region12
    $region11: #{features_encoding.33} parent=5 // pred_region
      %s73 = ssub.s32 %s7, 1
    $region12: #{features_encoding.33} parent=5 // pred_fallthru
      _
    %p74 = scmp.lt.s32.totalorder %s7, 4
    // Predicated region
    $region13: #{features_encoding.33} parent=5 // pred_check
      %p75 = pneg %p74
    $region14: #{features_encoding.33} parent=5 // pred_check_branch
      %77 = sbr.rel (%p75) target = $region16
    $region15: #{features_encoding.33} parent=5 // pred_region
      // Predicated region
      $region17: #{features_encoding.33} parent=15 // pred_check
        %p78 = pneg %p27
      $region18: #{features_encoding.33} parent=15 // pred_check_branch
        %80 = sbr.rel (%p78) target = $region20
      $region19: #{features_encoding.33} parent=15 // pred_region
        %s81 = smul.u32 2, %s7
        %p82 = scmp.lt.s32.totalorder %s81, 7
        %s83 = scalar_select %p82, %s81, 7
        %s84 = smul.addr %s83, 2
        %s85 = scalar_lea.vmem %s0, %s84
        %s86 = smul.u32 2, %s7
      $region20: #{features_encoding.33} parent=15 // pred_fallthru
        _
    $region16: #{features_encoding.33} parent=5 // pred_fallthru
      _
    %p87 = scmp.le.s32.totalorder 1, %s7
    %p88 = scmp.lt.s32.totalorder %s7, 5
    %p89 = pnand %p87, %p88
    %p90 = pneg %p89
    // Predicated region
    $region21: #{features_encoding.33} parent=5 // pred_check
      _
    $region22: #{features_encoding.33} parent=5 // pred_check_branch
      %92 = sbr.rel (%p89) target = $region24
    $region23: #{features_encoding.33} parent=5 // pred_region
      %s93 = ssub.s32 %s7, 1
      %s94 = smul.u32 2, %s12
      %p95 = scmp.lt.s32.totalorder %s94, 7
      %s96 = scalar_select %p95, %s94, 7
      %s97 = smul.addr %s96, 2
      %s98 = scalar_lea.vmem %s0, %s97
      %p99 = pneg %p33
      %p100 = pneg %p30
      %p101 = pneg %p59
      %p102 = pneg %p56
      %p103 = scmp.lt.s32.totalorder %s12, 3
      %s104 = scalar_select %p103, %s12, 3
      %s105 = scalar_lea.vmem %s1, %s104
      %s106 = smul.u32 2, %s12
      %p107 = scmp.lt.s32.totalorder %s106, 7
      %s108 = scalar_select %p107, %s106, 7
      %s109 = smul.addr %s108, 2
      %s110 = scalar_lea.vmem %s0, %s109
      %s111 = smul.u32 2, %s12
      %p112 = scmp.lt.s32.totalorder %s12, 3
      %s113 = scalar_select %p112, %s12, 3
      %s114 = scalar_lea.vmem %s1, %s113
      %v115 = vld [vmem:[%s110] sm:$0x1]
      %v116 = vld [vmem:[%s110 + $0x1] sm:$0x1]
      %v117 = vld [vmem:[%s110 + $0x2] sm:$0x1]
      %v118 = vld [vmem:[%s110 + $0x3] sm:$0x1]
      %v119 = vunpack.c.l.bf16 %v115
      %v120 = vunpack.c.l.bf16 %v116
      %v121 = vunpack.c.l.bf16 %v117
      %v122 = vunpack.c.l.bf16 %v118
      %v123 = vmax.f32 %v119, %v121
      %v124 = vmax.f32 %v120, %v122
      %v125 = vpack.c.bf16 %v123, %v123
      %v126 = vpack.c.bf16 %v124, %v124
      %v127 = vunpack.c.l.bf16 %v125
      %v128 = vunpack.c.l.bf16 %v126
      %vm129 = vcmask 1041408
      %v130 = vsel %vm129, %v127, -inf
      %v131 = vrot.slane %v130, 4
      %v132 = vmax.f32 %v130, %v131
      %v133 = vrot.slane %v132, 2
      %v134 = vmax.f32 %v132, %v133
      %v135 = vrot.slane %v134, 1
      %v136 = vmax.f32 %v134, %v135
      %v137 = vsel %vm129, %v128, -inf
      %v138 = vrot.slane %v137, 4
      %v139 = vmax.f32 %v137, %v138
      %v140 = vrot.slane %v139, 2
      %v141 = vmax.f32 %v139, %v140
      %v142 = vrot.slane %v141, 1
      %v143 = vmax.f32 %v141, %v142
      %v144 = vpack.c.bf16 %v136, %v136
      %v145 = vpack.c.bf16 %v143, %v143
      %v148 = vrot.slane %v144, 3
      %v149 = vrot.slane %v145, 3
      %vm150 = vcmask 1040384
      %v153 = vsel %vm150, %v144, %v148
      %v156 = vsel %vm150, %v145, %v149
      %157 = vst [vmem:[#allocation1] ss:$4 sm:$0xff] %v153
      %v158 = vld [vmem:[#allocation1] sm:$0xff]
      %s160 = scalar_lea.vmem [#allocation1], 32
      %161 = vst [vmem:[%s160] ss:$4 sm:$0xff] %v156
      %v162 = vld [vmem:[#allocation1 + $0x20] sm:$0xff]
      %v164 = vunpack.c.l.b16 %v158
      %v165 = vunpack.c.l.b16 %v162
      %v166 = vrot.slane %v165, 7
      %vm167 = vcmask 1041409
      %v168 = vsel %vm167, %v166, %v164
      %v169 = vpack.c.b16 %v168, %v168
      %v170 = vrot.slane %v169, 3
      %v173 = vsel %vm150, %v169, %v170
      %175 = vst [vmem:[%s114] sm:$0x1] %v173
      %p176 = scmp.lt.s32.totalorder %s12, 3
      %s177 = scalar_select %p176, %s12, 3
      %s178 = scalar_lea.vmem %s1, %s177
      // Predicated region
      $region25: #{features_encoding.33} parent=23 // pred_check
        %p179 = pneg %p56
      $region26: #{features_encoding.33} parent=23 // pred_check_branch
        %181 = sbr.rel (%p179) target = $region28
      $region27: #{features_encoding.33} parent=23 // pred_region
        _
      $region28: #{features_encoding.33} parent=23 // pred_fallthru
        _
    $region24: #{features_encoding.33} parent=5 // pred_fallthru
      _
    %p182 = scmp.le.s32.totalorder 2, %s7
    // Predicated region
    $region29: #{features_encoding.33} parent=5 // pred_check
      %p183 = pneg %p182
    $region30: #{features_encoding.33} parent=5 // pred_check_branch
      %185 = sbr.rel (%p183) target = $region32
    $region31: #{features_encoding.33} parent=5 // pred_region
      %s186 = ssub.s32 %s7, 2
      // Predicated region
      $region33: #{features_encoding.33} parent=31 // pred_check
        %p187 = pneg %p62
      $region34: #{features_encoding.33} parent=31 // pred_check_branch
        %189 = sbr.rel (%p187) target = $region36
      $region35: #{features_encoding.33} parent=31 // pred_region
        %p190 = scmp.lt.s32.totalorder %s13, 3
        %s191 = scalar_select %p190, %s13, 3
        %s192 = scalar_lea.vmem %s1, %s191
      $region36: #{features_encoding.33} parent=31 // pred_fallthru
        _
    $region32: #{features_encoding.33} parent=5 // pred_fallthru
      _
  $region6: #{features_encoding.33} parent=0 // loop_footer
    %s11 = sadd.s32 1, %s7
  $region7: #{features_encoding.33} parent=0 // loop_footer_branch
    %6 = sbr.rel target = $region3
  $region8: #{features_encoding.33} parent=0 // loop_exit
    _

// kernel: features_encoding.37
$region0: #{features_encoding.37}
  #allocation0 [shape = 'u32[]', space=smem, size = 0x4, offset = 0x4, fixed_abs, tag = 'smem constant byte address 0x4 - core index']
  #allocation1 [shape = 'u32[72,128]{1,0:T(1,128)}', space=vmem, size = 0x9000, scoped, tag = 'internal scratch']
  %s0 = inlined_call_operand.vmem [shape: bf16[4,1,2,128], index: 0, kind: input, shape index: {}]
  %s1 = inlined_call_operand.vmem [shape: bf16[2,1,128], index: 1, kind: output, shape index: {}]
  %s2 = sld [smem:[#allocation0]]
  $region37: #{features_encoding.37} parent=0
    _
  %s4 = ssub.s32 1, %s2
  %s5 = scalar_select 0, %s4, %s2
  loop: start=0, step=1, limit=4
  $region2: #{features_encoding.37} parent=0 // loop_pre_header
    _
  $region3: #{features_encoding.37} parent=0 // loop_header
    %s7 = sphi 0, %s11
    %p8 = scmp.ge.s32.totalorder %s7, 4
    %s17 = sphi 0, %s19
    %s20 = sphi 0, %s17
    %s21 = sphi 0, %s20
    %s37 = sphi 0, %s21
    %s43 = sphi 0, %s45
    %s46 = sphi 0, %s43
    %s47 = sphi 0, %s46
    %s63 = sphi 0, %s47
  $region4: #{features_encoding.37} parent=0 // loop_header_branch
    %10 = sbr.rel (%p8) target = $region8
  $region5: #{features_encoding.37} parent=0 // loop_body
    %s12 = ssub.s32 %s7, 1
    %s13 = ssub.s32 %s7, 2
    %s14 = sadd.s32 %s7, 1
    %s15 = ssub.s32 %s7, %s14
    %p16 = scmp.eq.s32.totalorder %s15, 0
    %s18 = sadd.s32 %s17, 1
    %s19 = scalar_select %p16, %s17, %s18
    %p22 = pneg %p16
    %p23 = scmp.eq.s32.totalorder %s7, 1
    %p24 = por %p22, %p23
    %p25 = scmp.ne.s32.totalorder %s17, %s20
    %p26 = scmp.eq.s32.totalorder %s7, 0
    %p27 = por %p25, %p26
    %p28 = scmp.ne.s32.totalorder %s17, %s20
    %p29 = scmp.eq.s32.totalorder %s12, 1
    %p30 = por %p28, %p29
    %p31 = scmp.ne.s32.totalorder %s20, %s21
    %p32 = scmp.eq.s32.totalorder %s12, 0
    %p33 = por %p31, %p32
    %p34 = scmp.ne.s32.totalorder %s20, %s21
    %p35 = scmp.eq.s32.totalorder %s13, 1
    %p36 = por %p34, %p35
    %p38 = scmp.ne.s32.totalorder %s21, %s37
    %p39 = scmp.eq.s32.totalorder %s13, 0
    %p40 = por %p38, %p39
    %s41 = ssub.s32 %s7, %s14
    %p42 = scmp.eq.s32.totalorder %s41, 0
    %s44 = sadd.s32 %s43, 1
    %s45 = scalar_select %p42, %s43, %s44
    %p48 = pneg %p42
    %p49 = scmp.eq.s32.totalorder %s7, 1
    %p50 = por %p48, %p49
    %p51 = scmp.ne.s32.totalorder %s43, %s46
    %p52 = scmp.eq.s32.totalorder %s7, 0
    %p53 = por %p51, %p52
    %p54 = scmp.ne.s32.totalorder %s43, %s46
    %p55 = scmp.eq.s32.totalorder %s12, 1
    %p56 = por %p54, %p55
    %p57 = scmp.ne.s32.totalorder %s46, %s47
    %p58 = scmp.eq.s32.totalorder %s12, 0
    %p59 = por %p57, %p58
    %p60 = scmp.ne.s32.totalorder %s46, %s47
    %p61 = scmp.eq.s32.totalorder %s13, 1
    %p62 = por %p60, %p61
    %p64 = scmp.ne.s32.totalorder %s47, %s63
    %p65 = scmp.eq.s32.totalorder %s13, 0
    %p66 = por %p64, %p65
    %p67 = scmp.le.s32.totalorder 1, %s7
    %p68 = scmp.lt.s32.totalorder %s7, 3
    %p69 = pnand %p67, %p68
    %p70 = pneg %p69
    // Predicated region
    $region9: #{features_encoding.37} parent=5 // pred_check
      _
    $region10: #{features_encoding.37} parent=5 // pred_check_branch
      %72 = sbr.rel (%p69) target = $region12
    $region11: #{features_encoding.37} parent=5 // pred_region
      %s73 = ssub.s32 %s7, 1
    $region12: #{features_encoding.37} parent=5 // pred_fallthru
      _
    %p74 = scmp.lt.s32.totalorder %s7, 2
    // Predicated region
    $region13: #{features_encoding.37} parent=5 // pred_check
      %p75 = pneg %p74
    $region14: #{features_encoding.37} parent=5 // pred_check_branch
      %77 = sbr.rel (%p75) target = $region16
    $region15: #{features_encoding.37} parent=5 // pred_region
      // Predicated region
      $region17: #{features_encoding.37} parent=15 // pred_check
        %p78 = pneg %p27
      $region18: #{features_encoding.37} parent=15 // pred_check_branch
        %80 = sbr.rel (%p78) target = $region20
      $region19: #{features_encoding.37} parent=15 // pred_region
        %s81 = smul.u32 2, %s7
        %p82 = scmp.lt.s32.totalorder %s81, 3
        %s83 = scalar_select %p82, %s81, 3
        %s84 = scalar_lea.vmem %s0, %s83
        %s85 = smul.u32 2, %s7
      $region20: #{features_encoding.37} parent=15 // pred_fallthru
        _
    $region16: #{features_encoding.37} parent=5 // pred_fallthru
      _
    %p86 = scmp.le.s32.totalorder 1, %s7
    %p87 = scmp.lt.s32.totalorder %s7, 3
    %p88 = pnand %p86, %p87
    %p89 = pneg %p88
    // Predicated region
    $region21: #{features_encoding.37} parent=5 // pred_check
      _
    $region22: #{features_encoding.37} parent=5 // pred_check_branch
      %91 = sbr.rel (%p88) target = $region24
    $region23: #{features_encoding.37} parent=5 // pred_region
      %s92 = ssub.s32 %s7, 1
      %s93 = smul.u32 2, %s12
      %p94 = scmp.lt.s32.totalorder %s93, 3
      %s95 = scalar_select %p94, %s93, 3
      %s96 = scalar_lea.vmem %s0, %s95
      %p97 = pneg %p33
      %p98 = pneg %p30
      %p99 = pneg %p59
      %p100 = pneg %p56
      %p101 = scmp.lt.s32.totalorder %s12, 1
      %s102 = scalar_select %p101, %s12, 1
      %s103 = scalar_lea.vmem %s1, %s102
      %s104 = smul.u32 2, %s12
      %p105 = scmp.lt.s32.totalorder %s104, 3
      %s106 = scalar_select %p105, %s104, 3
      %s107 = scalar_lea.vmem %s0, %s106
      %s108 = smul.u32 2, %s12
      %p109 = scmp.lt.s32.totalorder %s12, 1
      %s110 = scalar_select %p109, %s12, 1
      %s111 = scalar_lea.vmem %s1, %s110
      %v112 = vld [vmem:[%s107] sm:$0x1]
      %v113 = vld [vmem:[%s107 + $0x1] sm:$0x1]
      %v114 = vunpack.c.l.bf16 %v112
      %v115 = vunpack.c.l.bf16 %v113
      %v116 = vmax.f32 %v114, %v115
      %v117 = vpack.c.bf16 %v116, %v116
      %v118 = vunpack.c.l.bf16 %v117
      %vm119 = vcmask 1041408
      %v120 = vsel %vm119, %v118, -inf
      %v121 = vrot.slane %v120, 4
      %v122 = vmax.f32 %v120, %v121
      %v123 = vrot.slane %v122, 2
      %v124 = vmax.f32 %v122, %v123
      %v125 = vrot.slane %v124, 1
      %v126 = vmax.f32 %v124, %v125
      %v127 = vpack.c.bf16 %v126, %v126
      %vm128 = vcmask 1040384
      %vm129 = vsmask.f32 256
      %vm130 = vmand %vm128, %vm129
      %v131 = vld [vmem:[%s111] sm:$0x1]
      %v132 = vsel %vm130, %v127, %v131
      %133 = vst [vmem:[%s111] sm:$0x1] %v132
      %p134 = scmp.lt.s32.totalorder %s12, 1
      %s135 = scalar_select %p134, %s12, 1
      %s136 = scalar_lea.vmem %s1, %s135
      // Predicated region
      $region25: #{features_encoding.37} parent=23 // pred_check
        %p137 = pneg %p56
      $region26: #{features_encoding.37} parent=23 // pred_check_branch
        %139 = sbr.rel (%p137) target = $region28
      $region27: #{features_encoding.37} parent=23 // pred_region
        _
      $region28: #{features_encoding.37} parent=23 // pred_fallthru
        _
    $region24: #{features_encoding.37} parent=5 // pred_fallthru
      _
    %p140 = scmp.le.s32.totalorder 2, %s7
    // Predicated region
    $region29: #{features_encoding.37} parent=5 // pred_check
      %p141 = pneg %p140
    $region30: #{features_encoding.37} parent=5 // pred_check_branch
      %143 = sbr.rel (%p141) target = $region32
    $region31: #{features_encoding.37} parent=5 // pred_region
      %s144 = ssub.s32 %s7, 2
      // Predicated region
      $region33: #{features_encoding.37} parent=31 // pred_check
        %p145 = pneg %p62
      $region34: #{features_encoding.37} parent=31 // pred_check_branch
        %147 = sbr.rel (%p145) target = $region36
      $region35: #{features_encoding.37} parent=31 // pred_region
        %p148 = scmp.lt.s32.totalorder %s13, 1
        %s149 = scalar_select %p148, %s13, 1
        %s150 = scalar_lea.vmem %s1, %s149
      $region36: #{features_encoding.37} parent=31 // pred_fallthru
        _
    $region32: #{features_encoding.37} parent=5 // pred_fallthru
      _
  $region6: #{features_encoding.37} parent=0 // loop_footer
    %s11 = sadd.s32 1, %s7
  $region7: #{features_encoding.37} parent=0 // loop_footer_branch
    %6 = sbr.rel target = $region3
  $region8: #{features_encoding.37} parent=0 // loop_exit
    _

// kernel: features_encoding.30
$region0: #{features_encoding.30}
  #allocation0 [shape = 'u32[]', space=smem, size = 0x4, offset = 0x4, fixed_abs, tag = 'smem constant byte address 0x4 - core index']
  #allocation1 [shape = 'u32[72,128]{1,0:T(1,128)}', space=vmem, size = 0x9000, scoped, tag = 'internal scratch']
  %s0 = inlined_call_operand.vmem [shape: bf16[2,6,6,128], index: 0, kind: input, shape index: {}]
  %s1 = inlined_call_operand.vmem [shape: bf16[9,128,128], index: 1, kind: input, shape index: {}]
  %s2 = inlined_call_operand.vmem [shape: f32[1,128], index: 2, kind: input, shape index: {}]
  %s3 = inlined_call_operand.vmem [shape: bf16[2,4,4,128], index: 3, kind: output, shape index: {}]
  %s4 = sld [smem:[#allocation0]]
  $region52: #{features_encoding.30} parent=0
    _
  %s6 = ssub.s32 1, %s4
  %s7 = scalar_select 0, %s6, %s4
  loop: start=0, step=1, limit=4
  $region2: #{features_encoding.30} parent=0 // loop_pre_header
    _
  $region3: #{features_encoding.30} parent=0 // loop_header
    %s9 = sphi 0, %s13
    %p10 = scmp.ge.s32.totalorder %s9, 4
    %s19 = sphi 0, %s21
    %s22 = sphi 0, %s19
    %s23 = sphi 0, %s22
    %s39 = sphi 0, %s23
    %s43 = sphi 0, %s43
    %s45 = sphi 0, %s43
    %s46 = sphi 0, %s45
    %s60 = sphi 0, %s46
    %s64 = sphi 0, %s64
    %s66 = sphi 0, %s64
    %s67 = sphi 0, %s66
    %s81 = sphi 0, %s67
    %s87 = sphi 0, %s89
    %s90 = sphi 0, %s87
    %s91 = sphi 0, %s90
    %s107 = sphi 0, %s91
  $region4: #{features_encoding.30} parent=0 // loop_header_branch
    %12 = sbr.rel (%p10) target = $region8
  $region5: #{features_encoding.30} parent=0 // loop_body
    %s14 = ssub.s32 %s9, 1
    %s15 = ssub.s32 %s9, 2
    %s16 = sadd.s32 %s9, 1
    %s17 = ssub.s32 %s9, %s16
    %p18 = scmp.eq.s32.totalorder %s17, 0
    %s20 = sadd.s32 %s19, 1
    %s21 = scalar_select %p18, %s19, %s20
    %p24 = pneg %p18
    %p25 = scmp.eq.s32.totalorder %s9, 1
    %p26 = por %p24, %p25
    %p27 = scmp.ne.s32.totalorder %s19, %s22
    %p28 = scmp.eq.s32.totalorder %s9, 0
    %p29 = por %p27, %p28
    %p30 = scmp.ne.s32.totalorder %s19, %s22
    %p31 = scmp.eq.s32.totalorder %s14, 1
    %p32 = por %p30, %p31
    %p33 = scmp.ne.s32.totalorder %s22, %s23
    %p34 = scmp.eq.s32.totalorder %s14, 0
    %p35 = por %p33, %p34
    %p36 = scmp.ne.s32.totalorder %s22, %s23
    %p37 = scmp.eq.s32.totalorder %s15, 1
    %p38 = por %p36, %p37
    %p40 = scmp.ne.s32.totalorder %s23, %s39
    %p41 = scmp.eq.s32.totalorder %s15, 0
    %p42 = por %p40, %p41
    %s44 = sadd.s32 %s43, 1
    %p47 = scmp.eq.s32.totalorder %s9, 1
    %p48 = scmp.ne.s32.totalorder %s43, %s45
    %p49 = scmp.eq.s32.totalorder %s9, 0
    %p50 = por %p48, %p49
    %p51 = scmp.ne.s32.totalorder %s43, %s45
    %p52 = scmp.eq.s32.totalorder %s14, 1
    %p53 = por %p51, %p52
    %p54 = scmp.ne.s32.totalorder %s45, %s46
    %p55 = scmp.eq.s32.totalorder %s14, 0
    %p56 = por %p54, %p55
    %p57 = scmp.ne.s32.totalorder %s45, %s46
    %p58 = scmp.eq.s32.totalorder %s15, 1
    %p59 = por %p57, %p58
    %p61 = scmp.ne.s32.totalorder %s46, %s60
    %p62 = scmp.eq.s32.totalorder %s15, 0
    %p63 = por %p61, %p62
    %s65 = sadd.s32 %s64, 1
    %p68 = scmp.eq.s32.totalorder %s9, 1
    %p69 = scmp.ne.s32.totalorder %s64, %s66
    %p70 = scmp.eq.s32.totalorder %s9, 0
    %p71 = por %p69, %p70
    %p72 = scmp.ne.s32.totalorder %s64, %s66
    %p73 = scmp.eq.s32.totalorder %s14, 1
    %p74 = por %p72, %p73
    %p75 = scmp.ne.s32.totalorder %s66, %s67
    %p76 = scmp.eq.s32.totalorder %s14, 0
    %p77 = por %p75, %p76
    %p78 = scmp.ne.s32.totalorder %s66, %s67
    %p79 = scmp.eq.s32.totalorder %s15, 1
    %p80 = por %p78, %p79
    %p82 = scmp.ne.s32.totalorder %s67, %s81
    %p83 = scmp.eq.s32.totalorder %s15, 0
    %p84 = por %p82, %p83
    %s85 = ssub.s32 %s9, %s16
    %p86 = scmp.eq.s32.totalorder %s85, 0
    %s88 = sadd.s32 %s87, 1
    %s89 = scalar_select %p86, %s87, %s88
    %p92 = pneg %p86
    %p93 = scmp.eq.s32.totalorder %s9, 1
    %p94 = por %p92, %p93
    %p95 = scmp.ne.s32.totalorder %s87, %s90
    %p96 = scmp.eq.s32.totalorder %s9, 0
    %p97 = por %p95, %p96
    %p98 = scmp.ne.s32.totalorder %s87, %s90
    %p99 = scmp.eq.s32.totalorder %s14, 1
    %p100 = por %p98, %p99
    %p101 = scmp.ne.s32.totalorder %s90, %s91
    %p102 = scmp.eq.s32.totalorder %s14, 0
    %p103 = por %p101, %p102
    %p104 = scmp.ne.s32.totalorder %s90, %s91
    %p105 = scmp.eq.s32.totalorder %s15, 1
    %p106 = por %p104, %p105
    %p108 = scmp.ne.s32.totalorder %s91, %s107
    %p109 = scmp.eq.s32.totalorder %s15, 0
    %p110 = por %p108, %p109
    %p111 = scmp.le.s32.totalorder 1, %s9
    %p112 = scmp.lt.s32.totalorder %s9, 3
    %p113 = pnand %p111, %p112
    %p114 = pneg %p113
    // Predicated region
    $region9: #{features_encoding.30} parent=5 // pred_check
      _
    $region10: #{features_encoding.30} parent=5 // pred_check_branch
      %116 = sbr.rel (%p113) target = $region12
    $region11: #{features_encoding.30} parent=5 // pred_region
      %s117 = ssub.s32 %s9, 1
      // Predicated region
      $region13: #{features_encoding.30} parent=11 // pred_check
        %p118 = pneg %p56
      $region14: #{features_encoding.30} parent=11 // pred_check_branch
        %120 = sbr.rel (%p118) target = $region16
      $region15: #{features_encoding.30} parent=11 // pred_region
        _
      $region16: #{features_encoding.30} parent=11 // pred_fallthru
        _
      // Predicated region
      $region17: #{features_encoding.30} parent=11 // pred_check
        %p121 = pneg %p77
      $region18: #{features_encoding.30} parent=11 // pred_check_branch
        %123 = sbr.rel (%p121) target = $region20
      $region19: #{features_encoding.30} parent=11 // pred_region
        _
      $region20: #{features_encoding.30} parent=11 // pred_fallthru
        _
    $region12: #{features_encoding.30} parent=5 // pred_fallthru
      _
    %p124 = scmp.lt.s32.totalorder %s9, 2
    // Predicated region
    $region21: #{features_encoding.30} parent=5 // pred_check
      %p125 = pneg %p124
    $region22: #{features_encoding.30} parent=5 // pred_check_branch
      %127 = sbr.rel (%p125) target = $region24
    $region23: #{features_encoding.30} parent=5 // pred_region
      // Predicated region
      $region25: #{features_encoding.30} parent=23 // pred_check
        %p128 = pneg %p29
      $region26: #{features_encoding.30} parent=23 // pred_check_branch
        %130 = sbr.rel (%p128) target = $region28
      $region27: #{features_encoding.30} parent=23 // pred_region
        %p131 = scmp.lt.s32.totalorder %s9, 1
        %s132 = scalar_select %p131, %s9, 1
        %s133 = smul.addr %s132, 6
        %s134 = smul.addr %s133, 4
        %s135 = scalar_lea.vmem %s0, %s134
      $region28: #{features_encoding.30} parent=23 // pred_fallthru
        _
    $region24: #{features_encoding.30} parent=5 // pred_fallthru
      _
    %p136 = scmp.le.s32.totalorder 1, %s9
    %p137 = scmp.lt.s32.totalorder %s9, 3
    %p138 = pnand %p136, %p137
    %p139 = pneg %p138
    // Predicated region
    $region29: #{features_encoding.30} parent=5 // pred_check
      _
    $region30: #{features_encoding.30} parent=5 // pred_check_branch
      %141 = sbr.rel (%p138) target = $region32
    $region31: #{features_encoding.30} parent=5 // pred_region
      %s142 = ssub.s32 %s9, 1
      %p143 = scmp.lt.s32.totalorder %s14, 1
      %s144 = scalar_select %p143, %s14, 1
      %s145 = smul.addr %s144, 6
      %s146 = smul.addr %s145, 4
      %s147 = scalar_lea.vmem %s0, %s146
      %p148 = pneg %p35
      %p149 = pneg %p32
      %p150 = pneg %p56
      %p151 = pneg %p53
      %p152 = pneg %p77
      %p153 = pneg %p74
      %p154 = pneg %p103
      %p155 = pneg %p100
      %p156 = scmp.lt.s32.totalorder %s14, 1
      %s157 = scalar_select %p156, %s14, 1
      %s158 = smul.addr %s157, 4
      %s159 = smul.addr %s158, 2
      %s160 = scalar_lea.vmem %s3, %s159
      %p161 = scmp.lt.s32.totalorder %s14, 1
      %s162 = scalar_select %p161, %s14, 1
      %s163 = smul.addr %s162, 6
      %s164 = smul.addr %s163, 4
      %s165 = scalar_lea.vmem %s0, %s164
      %p166 = scmp.lt.s32.totalorder %s14, 1
      %s167 = scalar_select %p166, %s14, 1
      %s168 = smul.addr %s167, 4
      %s169 = smul.addr %s168, 2
      %s170 = scalar_lea.vmem %s3, %s169
      loop: start=0, step=1, limit=4
      $region33: #{features_encoding.30} parent=31 // loop_pre_header
        _
      $region34: #{features_encoding.30} parent=31 // loop_header
        %s172 = sphi 0, %s176
        %p173 = scmp.ge.s32.totalorder %s172, 4
      $region35: #{features_encoding.30} parent=31 // loop_header_branch
        %175 = sbr.rel (%p173) target = $region39
      $region36: #{features_encoding.30} parent=31 // loop_body
        %s177 = smul.addr %s172, 4
        %s178 = scalar_lea.vmem %s165, %s177
        %v179 = vld [vmem:[%s178] sm:$0x7]
        %v180 = vld [vmem:[%s178 + $0x4] sm:$0x7]
        %v181 = vld [vmem:[%s178 + $0x8] sm:$0x7]
        %v182 = vld [vmem:[%s1] sm:$0xf]
        %v183 = vld [vmem:[%s1 + $0x4] sm:$0xf]
        %v184 = vld [vmem:[%s1 + $0x8] sm:$0xf]
        %v185 = vld [vmem:[%s1 + $0xc] sm:$0xf]
        %v186 = vld [vmem:[%s1 + $0x10] sm:$0xf]
        %v187 = vld [vmem:[%s1 + $0x14] sm:$0xf]
        %v188 = vld [vmem:[%s1 + $0x18] sm:$0xf]
        %v189 = vld [vmem:[%s1 + $0x1c] sm:$0xf]
        %v190 = vld [vmem:[%s1 + $0x20] sm:$0xf]
        %v191 = vld [vmem:[%s1 + $0x24] sm:$0xf]
        %v192 = vld [vmem:[%s1 + $0x28] sm:$0xf]
        %v193 = vld [vmem:[%s1 + $0x2c] sm:$0xf]
        %v194 = vld [vmem:[%s1 + $0x30] sm:$0xf]
        %v195 = vld [vmem:[%s1 + $0x34] sm:$0xf]
        %v196 = vld [vmem:[%s1 + $0x38] sm:$0xf]
        %v197 = vld [vmem:[%s1 + $0x3c] sm:$0xf]
        %v214 = vunpack.c.l.b16 %v182
        %v215 = vunpack.c.l.b16 %v183
        %v216 = vunpack.c.l.b16 %v184
        %v217 = vunpack.c.l.b16 %v185
        %v218 = vunpack.c.l.b16 %v186
        %v219 = vunpack.c.l.b16 %v187
        %v220 = vunpack.c.l.b16 %v188
        %v221 = vunpack.c.l.b16 %v189
        %v222 = vunpack.c.l.b16 %v190
        %v223 = vunpack.c.l.b16 %v191
        %v224 = vunpack.c.l.b16 %v192
        %v225 = vunpack.c.l.b16 %v193
        %v226 = vunpack.c.l.b16 %v194
        %v227 = vunpack.c.l.b16 %v195
        %v228 = vunpack.c.l.b16 %v196
        %v229 = vunpack.c.l.b16 %v197
        %v230 = vpack.c.b16 %v215, %v214
        %v231 = vpack.c.b16 %v217, %v216
        %v232 = vpack.c.b16 %v219, %v218
        %v233 = vpack.c.b16 %v221, %v220
        %v234 = vpack.c.b16 %v223, %v222
        %v235 = vpack.c.b16 %v225, %v224
        %v236 = vpack.c.b16 %v227, %v226
        %v237 = vpack.c.b16 %v229, %v228
        %246 = vmatpush.bf16.msra.mxu0 %v237
        %247 = vmatpush.bf16.msra.mxu0 %v236
        %248 = vmatpush.bf16.msra.mxu0 %v235
        %249 = vmatpush.bf16.msra.mxu0 %v234
        %250 = vmatpush.bf16.msra.mxu0 %v233
        %251 = vmatpush.bf16.msra.mxu0 %v232
        %252 = vmatpush.bf16.msra.mxu0 %v231
        %253 = vmatpush.bf16.msra.mxu0 %v230
        %254 = vmatmul.bf16.gmra.mxu0 %v179
        %v255 = vpop.f32.mrf.mxu0
        %v256 = vadd.f32 0.0, %v255
        %v257 = vpop.f32.mrf.mxu0
        %258 = vdwg.mxu0
        %v259 = vadd.f32 %v256, 0.0
        %s260 = scalar_lea.vmem %s1, 64
        %v261 = vld [vmem:[%s260] sm:$0xf]
        %v262 = vld [vmem:[%s260 + $0x4] sm:$0xf]
        %v263 = vld [vmem:[%s260 + $0x8] sm:$0xf]
        %v264 = vld [vmem:[%s260 + $0xc] sm:$0xf]
        %v265 = vld [vmem:[%s260 + $0x10] sm:$0xf]
        %v266 = vld [vmem:[%s260 + $0x14] sm:$0xf]
        %v267 = vld [vmem:[%s260 + $0x18] sm:$0xf]
        %v268 = vld [vmem:[%s260 + $0x1c] sm:$0xf]
        %v269 = vld [vmem:[%s260 + $0x20] sm:$0xf]
        %v270 = vld [vmem:[%s260 + $0x24] sm:$0xf]
        %v271 = vld [vmem:[%s260 + $0x28] sm:$0xf]
        %v272 = vld [vmem:[%s260 + $0x2c] sm:$0xf]
        %v273 = vld [vmem:[%s260 + $0x30] sm:$0xf]
        %v274 = vld [vmem:[%s260 + $0x34] sm:$0xf]
        %v275 = vld [vmem:[%s260 + $0x38] sm:$0xf]
        %v276 = vld [vmem:[%s260 + $0x3c] sm:$0xf]
        %v293 = vunpack.c.l.b16 %v261
        %v294 = vunpack.c.l.b16 %v262
        %v295 = vunpack.c.l.b16 %v263
        %v296 = vunpack.c.l.b16 %v264
        %v297 = vunpack.c.l.b16 %v265
        %v298 = vunpack.c.l.b16 %v266
        %v299 = vunpack.c.l.b16 %v267
        %v300 = vunpack.c.l.b16 %v268
        %v301 = vunpack.c.l.b16 %v269
        %v302 = vunpack.c.l.b16 %v270
        %v303 = vunpack.c.l.b16 %v271
        %v304 = vunpack.c.l.b16 %v272
        %v305 = vunpack.c.l.b16 %v273
        %v306 = vunpack.c.l.b16 %v274
        %v307 = vunpack.c.l.b16 %v275
        %v308 = vunpack.c.l.b16 %v276
        %v309 = vpack.c.b16 %v294, %v293
        %v310 = vpack.c.b16 %v296, %v295
        %v311 = vpack.c.b16 %v298, %v297
        %v312 = vpack.c.b16 %v300, %v299
        %v313 = vpack.c.b16 %v302, %v301
        %v314 = vpack.c.b16 %v304, %v303
        %v315 = vpack.c.b16 %v306, %v305
        %v316 = vpack.c.b16 %v308, %v307
        %325 = vmatpush.bf16.msra.mxu0 %v316
        %326 = vmatpush.bf16.msra.mxu0 %v315
        %327 = vmatpush.bf16.msra.mxu0 %v314
        %328 = vmatpush.bf16.msra.mxu0 %v313
        %329 = vmatpush.bf16.msra.mxu0 %v312
        %330 = vmatpush.bf16.msra.mxu0 %v311
        %331 = vmatpush.bf16.msra.mxu0 %v310
        %332 = vmatpush.bf16.msra.mxu0 %v309
        %333 = vmatmul.bf16.gmra.mxu0 %v179
        %v334 = vpop.f32.mrf.mxu0
        %v335 = vadd.f32 0.0, %v334
        %v336 = vpop.f32.mrf.mxu0
        %337 = vdwg.mxu0
        %v339 = vrot.slane %v335, 1
        %v341 = vadd.f32 %v259, %v339
        %s342 = scalar_lea.vmem %s1, 128
        %v343 = vld [vmem:[%s342] sm:$0xf]
        %v344 = vld [vmem:[%s342 + $0x4] sm:$0xf]
        %v345 = vld [vmem:[%s342 + $0x8] sm:$0xf]
        %v346 = vld [vmem:[%s342 + $0xc] sm:$0xf]
        %v347 = vld [vmem:[%s342 + $0x10] sm:$0xf]
        %v348 = vld [vmem:[%s342 + $0x14] sm:$0xf]
        %v349 = vld [vmem:[%s342 + $0x18] sm:$0xf]
        %v350 = vld [vmem:[%s342 + $0x1c] sm:$0xf]
        %v351 = vld [vmem:[%s342 + $0x20] sm:$0xf]
        %v352 = vld [vmem:[%s342 + $0x24] sm:$0xf]
        %v353 = vld [vmem:[%s342 + $0x28] sm:$0xf]
        %v354 = vld [vmem:[%s342 + $0x2c] sm:$0xf]
        %v355 = vld [vmem:[%s342 + $0x30] sm:$0xf]
        %v356 = vld [vmem:[%s342 + $0x34] sm:$0xf]
        %v357 = vld [vmem:[%s342 + $0x38] sm:$0xf]
        %v358 = vld [vmem:[%s342 + $0x3c] sm:$0xf]
        %v375 = vunpack.c.l.b16 %v343
        %v376 = vunpack.c.l.b16 %v344
        %v377 = vunpack.c.l.b16 %v345
        %v378 = vunpack.c.l.b16 %v346
        %v379 = vunpack.c.l.b16 %v347
        %v380 = vunpack.c.l.b16 %v348
        %v381 = vunpack.c.l.b16 %v349
        %v382 = vunpack.c.l.b16 %v350
        %v383 = vunpack.c.l.b16 %v351
        %v384 = vunpack.c.l.b16 %v352
        %v385 = vunpack.c.l.b16 %v353
        %v386 = vunpack.c.l.b16 %v354
        %v387 = vunpack.c.l.b16 %v355
        %v388 = vunpack.c.l.b16 %v356
        %v389 = vunpack.c.l.b16 %v357
        %v390 = vunpack.c.l.b16 %v358
        %v391 = vpack.c.b16 %v376, %v375
        %v392 = vpack.c.b16 %v378, %v377
        %v393 = vpack.c.b16 %v380, %v379
        %v394 = vpack.c.b16 %v382, %v381
        %v395 = vpack.c.b16 %v384, %v383
        %v396 = vpack.c.b16 %v386, %v385
        %v397 = vpack.c.b16 %v388, %v387
        %v398 = vpack.c.b16 %v390, %v389
        %407 = vmatpush.bf16.msra.mxu0 %v398
        %408 = vmatpush.bf16.msra.mxu0 %v397
        %409 = vmatpush.bf16.msra.mxu0 %v396
        %410 = vmatpush.bf16.msra.mxu0 %v395
        %411 = vmatpush.bf16.msra.mxu0 %v394
        %412 = vmatpush.bf16.msra.mxu0 %v393
        %413 = vmatpush.bf16.msra.mxu0 %v392
        %414 = vmatpush.bf16.msra.mxu0 %v391
        %415 = vmatmul.bf16.gmra.mxu0 %v179
        %v416 = vpop.f32.mrf.mxu0
        %v417 = vadd.f32 0.0, %v416
        %v418 = vpop.f32.mrf.mxu0
        %419 = vdwg.mxu0
        %v421 = vrot.slane %v417, 2
        %v423 = vadd.f32 %v341, %v421
        %s424 = scalar_lea.vmem %s1, 192
        %v425 = vld [vmem:[%s424] sm:$0xf]
        %v426 = vld [vmem:[%s424 + $0x4] sm:$0xf]
        %v427 = vld [vmem:[%s424 + $0x8] sm:$0xf]
        %v428 = vld [vmem:[%s424 + $0xc] sm:$0xf]
        %v429 = vld [vmem:[%s424 + $0x10] sm:$0xf]
        %v430 = vld [vmem:[%s424 + $0x14] sm:$0xf]
        %v431 = vld [vmem:[%s424 + $0x18] sm:$0xf]
        %v432 = vld [vmem:[%s424 + $0x1c] sm:$0xf]
        %v433 = vld [vmem:[%s424 + $0x20] sm:$0xf]
        %v434 = vld [vmem:[%s424 + $0x24] sm:$0xf]
        %v435 = vld [vmem:[%s424 + $0x28] sm:$0xf]
        %v436 = vld [vmem:[%s424 + $0x2c] sm:$0xf]
        %v437 = vld [vmem:[%s424 + $0x30] sm:$0xf]
        %v438 = vld [vmem:[%s424 + $0x34] sm:$0xf]
        %v439 = vld [vmem:[%s424 + $0x38] sm:$0xf]
        %v440 = vld [vmem:[%s424 + $0x3c] sm:$0xf]
        %v457 = vunpack.c.l.b16 %v425
        %v458 = vunpack.c.l.b16 %v426
        %v459 = vunpack.c.l.b16 %v427
        %v460 = vunpack.c.l.b16 %v428
        %v461 = vunpack.c.l.b16 %v429
        %v462 = vunpack.c.l.b16 %v430
        %v463 = vunpack.c.l.b16 %v431
        %v464 = vunpack.c.l.b16 %v432
        %v465 = vunpack.c.l.b16 %v433
        %v466 = vunpack.c.l.b16 %v434
        %v467 = vunpack.c.l.b16 %v435
        %v468 = vunpack.c.l.b16 %v436
        %v469 = vunpack.c.l.b16 %v437
        %v470 = vunpack.c.l.b16 %v438
        %v471 = vunpack.c.l.b16 %v439
        %v472 = vunpack.c.l.b16 %v440
        %v473 = vpack.c.b16 %v458, %v457
        %v474 = vpack.c.b16 %v460, %v459
        %v475 = vpack.c.b16 %v462, %v461
        %v476 = vpack.c.b16 %v464, %v463
        %v477 = vpack.c.b16 %v466, %v465
        %v478 = vpack.c.b16 %v468, %v467
        %v479 = vpack.c.b16 %v470, %v469
        %v480 = vpack.c.b16 %v472, %v471
        %489 = vmatpush.bf16.msra.mxu0 %v480
        %490 = vmatpush.bf16.msra.mxu0 %v479
        %491 = vmatpush.bf16.msra.mxu0 %v478
        %492 = vmatpush.bf16.msra.mxu0 %v477
        %493 = vmatpush.bf16.msra.mxu0 %v476
        %494 = vmatpush.bf16.msra.mxu0 %v475
        %495 = vmatpush.bf16.msra.mxu0 %v474
        %496 = vmatpush.bf16.msra.mxu0 %v473
        %497 = vmatmul.bf16.gmra.mxu0 %v180
        %v498 = vpop.f32.mrf.mxu0
        %v499 = vadd.f32 0.0, %v498
        %v500 = vpop.f32.mrf.mxu0
        %501 = vdwg.mxu0
        %v502 = vadd.f32 %v423, %v499
        %s503 = scalar_lea.vmem %s1, 256
        %v504 = vld [vmem:[%s503] sm:$0xf]
        %v505 = vld [vmem:[%s503 + $0x4] sm:$0xf]
        %v506 = vld [vmem:[%s503 + $0x8] sm:$0xf]
        %v507 = vld [vmem:[%s503 + $0xc] sm:$0xf]
        %v508 = vld [vmem:[%s503 + $0x10] sm:$0xf]
        %v509 = vld [vmem:[%s503 + $0x14] sm:$0xf]
        %v510 = vld [vmem:[%s503 + $0x18] sm:$0xf]
        %v511 = vld [vmem:[%s503 + $0x1c] sm:$0xf]
        %v512 = vld [vmem:[%s503 + $0x20] sm:$0xf]
        %v513 = vld [vmem:[%s503 + $0x24] sm:$0xf]
        %v514 = vld [vmem:[%s503 + $0x28] sm:$0xf]
        %v515 = vld [vmem:[%s503 + $0x2c] sm:$0xf]
        %v516 = vld [vmem:[%s503 + $0x30] sm:$0xf]
        %v517 = vld [vmem:[%s503 + $0x34] sm:$0xf]
        %v518 = vld [vmem:[%s503 + $0x38] sm:$0xf]
        %v519 = vld [vmem:[%s503 + $0x3c] sm:$0xf]
        %v536 = vunpack.c.l.b16 %v504
        %v537 = vunpack.c.l.b16 %v505
        %v538 = vunpack.c.l.b16 %v506
        %v539 = vunpack.c.l.b16 %v507
        %v540 = vunpack.c.l.b16 %v508
        %v541 = vunpack.c.l.b16 %v509
        %v542 = vunpack.c.l.b16 %v510
        %v543 = vunpack.c.l.b16 %v511
        %v544 = vunpack.c.l.b16 %v512
        %v545 = vunpack.c.l.b16 %v513
        %v546 = vunpack.c.l.b16 %v514
        %v547 = vunpack.c.l.b16 %v515
        %v548 = vunpack.c.l.b16 %v516
        %v549 = vunpack.c.l.b16 %v517
        %v550 = vunpack.c.l.b16 %v518
        %v551 = vunpack.c.l.b16 %v519
        %v552 = vpack.c.b16 %v537, %v536
        %v553 = vpack.c.b16 %v539, %v538
        %v554 = vpack.c.b16 %v541, %v540
        %v555 = vpack.c.b16 %v543, %v542
        %v556 = vpack.c.b16 %v545, %v544
        %v557 = vpack.c.b16 %v547, %v546
        %v558 = vpack.c.b16 %v549, %v548
        %v559 = vpack.c.b16 %v551, %v550
        %568 = vmatpush.bf16.msra.mxu0 %v559
        %569 = vmatpush.bf16.msra.mxu0 %v558
        %570 = vmatpush.bf16.msra.mxu0 %v557
        %571 = vmatpush.bf16.msra.mxu0 %v556
        %572 = vmatpush.bf16.msra.mxu0 %v555
        %573 = vmatpush.bf16.msra.mxu0 %v554
        %574 = vmatpush.bf16.msra.mxu0 %v553
        %575 = vmatpush.bf16.msra.mxu0 %v552
        %576 = vmatmul.bf16.gmra.mxu0 %v180
        %v577 = vpop.f32.mrf.mxu0
        %v578 = vadd.f32 0.0, %v577
        %v579 = vpop.f32.mrf.mxu0
        %580 = vdwg.mxu0
        %v582 = vrot.slane %v578, 1
        %v584 = vadd.f32 %v502, %v582
        %s585 = scalar_lea.vmem %s1, 320
        %v586 = vld [vmem:[%s585] sm:$0xf]
        %v587 = vld [vmem:[%s585 + $0x4] sm:$0xf]
        %v588 = vld [vmem:[%s585 + $0x8] sm:$0xf]
        %v589 = vld [vmem:[%s585 + $0xc] sm:$0xf]
        %v590 = vld [vmem:[%s585 + $0x10] sm:$0xf]
        %v591 = vld [vmem:[%s585 + $0x14] sm:$0xf]
        %v592 = vld [vmem:[%s585 + $0x18] sm:$0xf]
        %v593 = vld [vmem:[%s585 + $0x1c] sm:$0xf]
        %v594 = vld [vmem:[%s585 + $0x20] sm:$0xf]
        %v595 = vld [vmem:[%s585 + $0x24] sm:$0xf]
        %v596 = vld [vmem:[%s585 + $0x28] sm:$0xf]
        %v597 = vld [vmem:[%s585 + $0x2c] sm:$0xf]
        %v598 = vld [vmem:[%s585 + $0x30] sm:$0xf]
        %v599 = vld [vmem:[%s585 + $0x34] sm:$0xf]
        %v600 = vld [vmem:[%s585 + $0x38] sm:$0xf]
        %v601 = vld [vmem:[%s585 + $0x3c] sm:$0xf]
        %v618 = vunpack.c.l.b16 %v586
        %v619 = vunpack.c.l.b16 %v587
        %v620 = vunpack.c.l.b16 %v588
        %v621 = vunpack.c.l.b16 %v589
        %v622 = vunpack.c.l.b16 %v590
        %v623 = vunpack.c.l.b16 %v591
        %v624 = vunpack.c.l.b16 %v592
        %v625 = vunpack.c.l.b16 %v593
        %v626 = vunpack.c.l.b16 %v594
        %v627 = vunpack.c.l.b16 %v595
        %v628 = vunpack.c.l.b16 %v596
        %v629 = vunpack.c.l.b16 %v597
        %v630 = vunpack.c.l.b16 %v598
        %v631 = vunpack.c.l.b16 %v599
        %v632 = vunpack.c.l.b16 %v600
        %v633 = vunpack.c.l.b16 %v601
        %v634 = vpack.c.b16 %v619, %v618
        %v635 = vpack.c.b16 %v621, %v620
        %v636 = vpack.c.b16 %v623, %v622
        %v637 = vpack.c.b16 %v625, %v624
        %v638 = vpack.c.b16 %v627, %v626
        %v639 = vpack.c.b16 %v629, %v628
        %v640 = vpack.c.b16 %v631, %v630
        %v641 = vpack.c.b16 %v633, %v632
        %650 = vmatpush.bf16.msra.mxu0 %v641
        %651 = vmatpush.bf16.msra.mxu0 %v640
        %652 = vmatpush.bf16.msra.mxu0 %v639
        %653 = vmatpush.bf16.msra.mxu0 %v638
        %654 = vmatpush.bf16.msra.mxu0 %v637
        %655 = vmatpush.bf16.msra.mxu0 %v636
        %656 = vmatpush.bf16.msra.mxu0 %v635
        %657 = vmatpush.bf16.msra.mxu0 %v634
        %658 = vmatmul.bf16.gmra.mxu0 %v180
        %v659 = vpop.f32.mrf.mxu0
        %v660 = vadd.f32 0.0, %v659
        %v661 = vpop.f32.mrf.mxu0
        %662 = vdwg.mxu0
        %v664 = vrot.slane %v660, 2
        %v666 = vadd.f32 %v584, %v664
        %s667 = scalar_lea.vmem %s1, 384
        %v668 = vld [vmem:[%s667] sm:$0xf]
        %v669 = vld [vmem:[%s667 + $0x4] sm:$0xf]
        %v670 = vld [vmem:[%s667 + $0x8] sm:$0xf]
        %v671 = vld [vmem:[%s667 + $0xc] sm:$0xf]
        %v672 = vld [vmem:[%s667 + $0x10] sm:$0xf]
        %v673 = vld [vmem:[%s667 + $0x14] sm:$0xf]
        %v674 = vld [vmem:[%s667 + $0x18] sm:$0xf]
        %v675 = vld [vmem:[%s667 + $0x1c] sm:$0xf]
        %v676 = vld [vmem:[%s667 + $0x20] sm:$0xf]
        %v677 = vld [vmem:[%s667 + $0x24] sm:$0xf]
        %v678 = vld [vmem:[%s667 + $0x28] sm:$0xf]
        %v679 = vld [vmem:[%s667 + $0x2c] sm:$0xf]
        %v680 = vld [vmem:[%s667 + $0x30] sm:$0xf]
        %v681 = vld [vmem:[%s667 + $0x34] sm:$0xf]
        %v682 = vld [vmem:[%s667 + $0x38] sm:$0xf]
        %v683 = vld [vmem:[%s667 + $0x3c] sm:$0xf]
        %v700 = vunpack.c.l.b16 %v668
        %v701 = vunpack.c.l.b16 %v669
        %v702 = vunpack.c.l.b16 %v670
        %v703 = vunpack.c.l.b16 %v671
        %v704 = vunpack.c.l.b16 %v672
        %v705 = vunpack.c.l.b16 %v673
        %v706 = vunpack.c.l.b16 %v674
        %v707 = vunpack.c.l.b16 %v675
        %v708 = vunpack.c.l.b16 %v676
        %v709 = vunpack.c.l.b16 %v677
        %v710 = vunpack.c.l.b16 %v678
        %v711 = vunpack.c.l.b16 %v679
        %v712 = vunpack.c.l.b16 %v680
        %v713 = vunpack.c.l.b16 %v681
        %v714 = vunpack.c.l.b16 %v682
        %v715 = vunpack.c.l.b16 %v683
        %v716 = vpack.c.b16 %v701, %v700
        %v717 = vpack.c.b16 %v703, %v702
        %v718 = vpack.c.b16 %v705, %v704
        %v719 = vpack.c.b16 %v707, %v706
        %v720 = vpack.c.b16 %v709, %v708
        %v721 = vpack.c.b16 %v711, %v710
        %v722 = vpack.c.b16 %v713, %v712
        %v723 = vpack.c.b16 %v715, %v714
        %732 = vmatpush.bf16.msra.mxu0 %v723
        %733 = vmatpush.bf16.msra.mxu0 %v722
        %734 = vmatpush.bf16.msra.mxu0 %v721
        %735 = vmatpush.bf16.msra.mxu0 %v720
        %736 = vmatpush.bf16.msra.mxu0 %v719
        %737 = vmatpush.bf16.msra.mxu0 %v718
        %738 = vmatpush.bf16.msra.mxu0 %v717
        %739 = vmatpush.bf16.msra.mxu0 %v716
        %740 = vmatmul.bf16.gmra.mxu0 %v181
        %v741 = vpop.f32.mrf.mxu0
        %v742 = vadd.f32 0.0, %v741
        %v743 = vpop.f32.mrf.mxu0
        %744 = vdwg.mxu0
        %v745 = vadd.f32 %v666, %v742
        %s746 = scalar_lea.vmem %s1, 448
        %v747 = vld [vmem:[%s746] sm:$0xf]
        %v748 = vld [vmem:[%s746 + $0x4] sm:$0xf]
        %v749 = vld [vmem:[%s746 + $0x8] sm:$0xf]
        %v750 = vld [vmem:[%s746 + $0xc] sm:$0xf]
        %v751 = vld [vmem:[%s746 + $0x10] sm:$0xf]
        %v752 = vld [vmem:[%s746 + $0x14] sm:$0xf]
        %v753 = vld [vmem:[%s746 + $0x18] sm:$0xf]
        %v754 = vld [vmem:[%s746 + $0x1c] sm:$0xf]
        %v755 = vld [vmem:[%s746 + $0x20] sm:$0xf]
        %v756 = vld [vmem:[%s746 + $0x24] sm:$0xf]
        %v757 = vld [vmem:[%s746 + $0x28] sm:$0xf]
        %v758 = vld [vmem:[%s746 + $0x2c] sm:$0xf]
        %v759 = vld [vmem:[%s746 + $0x30] sm:$0xf]
        %v760 = vld [vmem:[%s746 + $0x34] sm:$0xf]
        %v761 = vld [vmem:[%s746 + $0x38] sm:$0xf]
        %v762 = vld [vmem:[%s746 + $0x3c] sm:$0xf]
        %v779 = vunpack.c.l.b16 %v747
        %v780 = vunpack.c.l.b16 %v748
        %v781 = vunpack.c.l.b16 %v749
        %v782 = vunpack.c.l.b16 %v750
        %v783 = vunpack.c.l.b16 %v751
        %v784 = vunpack.c.l.b16 %v752
        %v785 = vunpack.c.l.b16 %v753
        %v786 = vunpack.c.l.b16 %v754
        %v787 = vunpack.c.l.b16 %v755
        %v788 = vunpack.c.l.b16 %v756
        %v789 = vunpack.c.l.b16 %v757
        %v790 = vunpack.c.l.b16 %v758
        %v791 = vunpack.c.l.b16 %v759
        %v792 = vunpack.c.l.b16 %v760
        %v793 = vunpack.c.l.b16 %v761
        %v794 = vunpack.c.l.b16 %v762
        %v795 = vpack.c.b16 %v780, %v779
        %v796 = vpack.c.b16 %v782, %v781
        %v797 = vpack.c.b16 %v784, %v783
        %v798 = vpack.c.b16 %v786, %v785
        %v799 = vpack.c.b16 %v788, %v787
        %v800 = vpack.c.b16 %v790, %v789
        %v801 = vpack.c.b16 %v792, %v791
        %v802 = vpack.c.b16 %v794, %v793
        %811 = vmatpush.bf16.msra.mxu0 %v802
        %812 = vmatpush.bf16.msra.mxu0 %v801
        %813 = vmatpush.bf16.msra.mxu0 %v800
        %814 = vmatpush.bf16.msra.mxu0 %v799
        %815 = vmatpush.bf16.msra.mxu0 %v798
        %816 = vmatpush.bf16.msra.mxu0 %v797
        %817 = vmatpush.bf16.msra.mxu0 %v796
        %818 = vmatpush.bf16.msra.mxu0 %v795
        %819 = vmatmul.bf16.gmra.mxu0 %v181
        %v820 = vpop.f32.mrf.mxu0
        %v821 = vadd.f32 0.0, %v820
        %v822 = vpop.f32.mrf.mxu0
        %823 = vdwg.mxu0
        %v825 = vrot.slane %v821, 1
        %v827 = vadd.f32 %v745, %v825
        %s828 = scalar_lea.vmem %s1, 512
        %v829 = vld [vmem:[%s828] sm:$0xf]
        %v830 = vld [vmem:[%s828 + $0x4] sm:$0xf]
        %v831 = vld [vmem:[%s828 + $0x8] sm:$0xf]
        %v832 = vld [vmem:[%s828 + $0xc] sm:$0xf]
        %v833 = vld [vmem:[%s828 + $0x10] sm:$0xf]
        %v834 = vld [vmem:[%s828 + $0x14] sm:$0xf]
        %v835 = vld [vmem:[%s828 + $0x18] sm:$0xf]
        %v836 = vld [vmem:[%s828 + $0x1c] sm:$0xf]
        %v837 = vld [vmem:[%s828 + $0x20] sm:$0xf]
        %v838 = vld [vmem:[%s828 + $0x24] sm:$0xf]
        %v839 = vld [vmem:[%s828 + $0x28] sm:$0xf]
        %v840 = vld [vmem:[%s828 + $0x2c] sm:$0xf]
        %v841 = vld [vmem:[%s828 + $0x30] sm:$0xf]
        %v842 = vld [vmem:[%s828 + $0x34] sm:$0xf]
        %v843 = vld [vmem:[%s828 + $0x38] sm:$0xf]
        %v844 = vld [vmem:[%s828 + $0x3c] sm:$0xf]
        %v861 = vunpack.c.l.b16 %v829
        %v862 = vunpack.c.l.b16 %v830
        %v863 = vunpack.c.l.b16 %v831
        %v864 = vunpack.c.l.b16 %v832
        %v865 = vunpack.c.l.b16 %v833
        %v866 = vunpack.c.l.b16 %v834
        %v867 = vunpack.c.l.b16 %v835
        %v868 = vunpack.c.l.b16 %v836
        %v869 = vunpack.c.l.b16 %v837
        %v870 = vunpack.c.l.b16 %v838
        %v871 = vunpack.c.l.b16 %v839
        %v872 = vunpack.c.l.b16 %v840
        %v873 = vunpack.c.l.b16 %v841
        %v874 = vunpack.c.l.b16 %v842
        %v875 = vunpack.c.l.b16 %v843
        %v876 = vunpack.c.l.b16 %v844
        %v877 = vpack.c.b16 %v862, %v861
        %v878 = vpack.c.b16 %v864, %v863
        %v879 = vpack.c.b16 %v866, %v865
        %v880 = vpack.c.b16 %v868, %v867
        %v881 = vpack.c.b16 %v870, %v869
        %v882 = vpack.c.b16 %v872, %v871
        %v883 = vpack.c.b16 %v874, %v873
        %v884 = vpack.c.b16 %v876, %v875
        %893 = vmatpush.bf16.msra.mxu0 %v884
        %894 = vmatpush.bf16.msra.mxu0 %v883
        %895 = vmatpush.bf16.msra.mxu0 %v882
        %896 = vmatpush.bf16.msra.mxu0 %v881
        %897 = vmatpush.bf16.msra.mxu0 %v880
        %898 = vmatpush.bf16.msra.mxu0 %v879
        %899 = vmatpush.bf16.msra.mxu0 %v878
        %900 = vmatpush.bf16.msra.mxu0 %v877
        %901 = vmatmul.bf16.gmra.mxu0 %v181
        %v902 = vpop.f32.mrf.mxu0
        %v903 = vadd.f32 0.0, %v902
        %v904 = vpop.f32.mrf.mxu0
        %905 = vdwg.mxu0
        %v907 = vrot.slane %v903, 2
        %v909 = vadd.f32 %v827, %v907
        %v910 = vld [vmem:[%s2] sm:$0x1]
        %v912 = vperm.slane %v910, 0
        %v914 = vadd.f32 %v909, %v912
        %v915 = vmax.f32 %v914, 0.0
        %v916 = vpack.c.bf16 %v915, %v915
        %s917 = smul.addr %s172, 2
        %s918 = scalar_lea.vmem %s170, %s917
        %919 = vst [vmem:[%s918] sm:$0x3] %v916
      $region37: #{features_encoding.30} parent=31 // loop_footer
        %s176 = sadd.s32 1, %s172
      $region38: #{features_encoding.30} parent=31 // loop_footer_branch
        %171 = sbr.rel target = $region34
      $region39: #{features_encoding.30} parent=31 // loop_exit
        _
      %p920 = scmp.lt.s32.totalorder %s14, 1
      %s921 = scalar_select %p920, %s14, 1
      %s922 = smul.addr %s921, 4
      %s923 = smul.addr %s922, 2
      %s924 = scalar_lea.vmem %s3, %s923
      // Predicated region
      $region40: #{features_encoding.30} parent=31 // pred_check
        %p925 = pneg %p100
      $region41: #{features_encoding.30} parent=31 // pred_check_branch
        %927 = sbr.rel (%p925) target = $region43
      $region42: #{features_encoding.30} parent=31 // pred_region
        _
      $region43: #{features_encoding.30} parent=31 // pred_fallthru
        _
    $region32: #{features_encoding.30} parent=5 // pred_fallthru
      _
    %p928 = scmp.le.s32.totalorder 2, %s9
    // Predicated region
    $region44: #{features_encoding.30} parent=5 // pred_check
      %p929 = pneg %p928
    $region45: #{features_encoding.30} parent=5 // pred_check_branch
      %931 = sbr.rel (%p929) target = $region47
    $region46: #{features_encoding.30} parent=5 // pred_region
      %s932 = ssub.s32 %s9, 2
      // Predicated region
      $region48: #{features_encoding.30} parent=46 // pred_check
        %p933 = pneg %p106
      $region49: #{features_encoding.30} parent=46 // pred_check_branch
        %935 = sbr.rel (%p933) target = $region51
      $region50: #{features_encoding.30} parent=46 // pred_region
        %p936 = scmp.lt.s32.totalorder %s15, 1
        %s937 = scalar_select %p936, %s15, 1
        %s938 = smul.addr %s937, 4
        %s939 = smul.addr %s938, 2
        %s940 = scalar_lea.vmem %s3, %s939
      $region51: #{features_encoding.30} parent=46 // pred_fallthru
        _
    $region47: #{features_encoding.30} parent=5 // pred_fallthru
      _
  $region6: #{features_encoding.30} parent=0 // loop_footer
    %s13 = sadd.s32 1, %s9
  $region7: #{features_encoding.30} parent=0 // loop_footer_branch
    %8 = sbr.rel target = $region3
  $region8: #{features_encoding.30} parent=0 // loop_exit
    _

// kernel: features_encoding.34
$region0: #{features_encoding.34}
  #allocation0 [shape = 'u32[]', space=smem, size = 0x4, offset = 0x4, fixed_abs, tag = 'smem constant byte address 0x4 - core index']
  #allocation1 [shape = 'u32[72,128]{1,0:T(1,128)}', space=vmem, size = 0x9000, scoped, tag = 'internal scratch']
  %s0 = inlined_call_operand.vmem [shape: bf16[2,4,4,128], index: 0, kind: input, shape index: {}]
  %s1 = inlined_call_operand.vmem [shape: bf16[9,128,128], index: 1, kind: input, shape index: {}]
  %s2 = inlined_call_operand.vmem [shape: f32[1,128], index: 2, kind: input, shape index: {}]
  %s3 = inlined_call_operand.vmem [shape: bf16[2,2,2,128], index: 3, kind: output, shape index: {}]
  %s4 = sld [smem:[#allocation0]]
  $region52: #{features_encoding.34} parent=0
    _
  %s6 = ssub.s32 1, %s4
  %s7 = scalar_select 0, %s6, %s4
  loop: start=0, step=1, limit=4
  $region2: #{features_encoding.34} parent=0 // loop_pre_header
    _
  $region3: #{features_encoding.34} parent=0 // loop_header
    %s9 = sphi 0, %s13
    %p10 = scmp.ge.s32.totalorder %s9, 4
    %s19 = sphi 0, %s21
    %s22 = sphi 0, %s19
    %s23 = sphi 0, %s22
    %s39 = sphi 0, %s23
    %s43 = sphi 0, %s43
    %s45 = sphi 0, %s43
    %s46 = sphi 0, %s45
    %s60 = sphi 0, %s46
    %s64 = sphi 0, %s64
    %s66 = sphi 0, %s64
    %s67 = sphi 0, %s66
    %s81 = sphi 0, %s67
    %s87 = sphi 0, %s89
    %s90 = sphi 0, %s87
    %s91 = sphi 0, %s90
    %s107 = sphi 0, %s91
  $region4: #{features_encoding.34} parent=0 // loop_header_branch
    %12 = sbr.rel (%p10) target = $region8
  $region5: #{features_encoding.34} parent=0 // loop_body
    %s14 = ssub.s32 %s9, 1
    %s15 = ssub.s32 %s9, 2
    %s16 = sadd.s32 %s9, 1
    %s17 = ssub.s32 %s9, %s16
    %p18 = scmp.eq.s32.totalorder %s17, 0
    %s20 = sadd.s32 %s19, 1
    %s21 = scalar_select %p18, %s19, %s20
    %p24 = pneg %p18
    %p25 = scmp.eq.s32.totalorder %s9, 1
    %p26 = por %p24, %p25
    %p27 = scmp.ne.s32.totalorder %s19, %s22
    %p28 = scmp.eq.s32.totalorder %s9, 0
    %p29 = por %p27, %p28
    %p30 = scmp.ne.s32.totalorder %s19, %s22
    %p31 = scmp.eq.s32.totalorder %s14, 1
    %p32 = por %p30, %p31
    %p33 = scmp.ne.s32.totalorder %s22, %s23
    %p34 = scmp.eq.s32.totalorder %s14, 0
    %p35 = por %p33, %p34
    %p36 = scmp.ne.s32.totalorder %s22, %s23
    %p37 = scmp.eq.s32.totalorder %s15, 1
    %p38 = por %p36, %p37
    %p40 = scmp.ne.s32.totalorder %s23, %s39
    %p41 = scmp.eq.s32.totalorder %s15, 0
    %p42 = por %p40, %p41
    %s44 = sadd.s32 %s43, 1
    %p47 = scmp.eq.s32.totalorder %s9, 1
    %p48 = scmp.ne.s32.totalorder %s43, %s45
    %p49 = scmp.eq.s32.totalorder %s9, 0
    %p50 = por %p48, %p49
    %p51 = scmp.ne.s32.totalorder %s43, %s45
    %p52 = scmp.eq.s32.totalorder %s14, 1
    %p53 = por %p51, %p52
    %p54 = scmp.ne.s32.totalorder %s45, %s46
    %p55 = scmp.eq.s32.totalorder %s14, 0
    %p56 = por %p54, %p55
    %p57 = scmp.ne.s32.totalorder %s45, %s46
    %p58 = scmp.eq.s32.totalorder %s15, 1
    %p59 = por %p57, %p58
    %p61 = scmp.ne.s32.totalorder %s46, %s60
    %p62 = scmp.eq.s32.totalorder %s15, 0
    %p63 = por %p61, %p62
    %s65 = sadd.s32 %s64, 1
    %p68 = scmp.eq.s32.totalorder %s9, 1
    %p69 = scmp.ne.s32.totalorder %s64, %s66
    %p70 = scmp.eq.s32.totalorder %s9, 0
    %p71 = por %p69, %p70
    %p72 = scmp.ne.s32.totalorder %s64, %s66
    %p73 = scmp.eq.s32.totalorder %s14, 1
    %p74 = por %p72, %p73
    %p75 = scmp.ne.s32.totalorder %s66, %s67
    %p76 = scmp.eq.s32.totalorder %s14, 0
    %p77 = por %p75, %p76
    %p78 = scmp.ne.s32.totalorder %s66, %s67
    %p79 = scmp.eq.s32.totalorder %s15, 1
    %p80 = por %p78, %p79
    %p82 = scmp.ne.s32.totalorder %s67, %s81
    %p83 = scmp.eq.s32.totalorder %s15, 0
    %p84 = por %p82, %p83
    %s85 = ssub.s32 %s9, %s16
    %p86 = scmp.eq.s32.totalorder %s85, 0
    %s88 = sadd.s32 %s87, 1
    %s89 = scalar_select %p86, %s87, %s88
    %p92 = pneg %p86
    %p93 = scmp.eq.s32.totalorder %s9, 1
    %p94 = por %p92, %p93
    %p95 = scmp.ne.s32.totalorder %s87, %s90
    %p96 = scmp.eq.s32.totalorder %s9, 0
    %p97 = por %p95, %p96
    %p98 = scmp.ne.s32.totalorder %s87, %s90
    %p99 = scmp.eq.s32.totalorder %s14, 1
    %p100 = por %p98, %p99
    %p101 = scmp.ne.s32.totalorder %s90, %s91
    %p102 = scmp.eq.s32.totalorder %s14, 0
    %p103 = por %p101, %p102
    %p104 = scmp.ne.s32.totalorder %s90, %s91
    %p105 = scmp.eq.s32.totalorder %s15, 1
    %p106 = por %p104, %p105
    %p108 = scmp.ne.s32.totalorder %s91, %s107
    %p109 = scmp.eq.s32.totalorder %s15, 0
    %p110 = por %p108, %p109
    %p111 = scmp.le.s32.totalorder 1, %s9
    %p112 = scmp.lt.s32.totalorder %s9, 3
    %p113 = pnand %p111, %p112
    %p114 = pneg %p113
    // Predicated region
    $region9: #{features_encoding.34} parent=5 // pred_check
      _
    $region10: #{features_encoding.34} parent=5 // pred_check_branch
      %116 = sbr.rel (%p113) target = $region12
    $region11: #{features_encoding.34} parent=5 // pred_region
      %s117 = ssub.s32 %s9, 1
      // Predicated region
      $region13: #{features_encoding.34} parent=11 // pred_check
        %p118 = pneg %p56
      $region14: #{features_encoding.34} parent=11 // pred_check_branch
        %120 = sbr.rel (%p118) target = $region16
      $region15: #{features_encoding.34} parent=11 // pred_region
        _
      $region16: #{features_encoding.34} parent=11 // pred_fallthru
        _
      // Predicated region
      $region17: #{features_encoding.34} parent=11 // pred_check
        %p121 = pneg %p77
      $region18: #{features_encoding.34} parent=11 // pred_check_branch
        %123 = sbr.rel (%p121) target = $region20
      $region19: #{features_encoding.34} parent=11 // pred_region
        _
      $region20: #{features_encoding.34} parent=11 // pred_fallthru
        _
    $region12: #{features_encoding.34} parent=5 // pred_fallthru
      _
    %p124 = scmp.lt.s32.totalorder %s9, 2
    // Predicated region
    $region21: #{features_encoding.34} parent=5 // pred_check
      %p125 = pneg %p124
    $region22: #{features_encoding.34} parent=5 // pred_check_branch
      %127 = sbr.rel (%p125) target = $region24
    $region23: #{features_encoding.34} parent=5 // pred_region
      // Predicated region
      $region25: #{features_encoding.34} parent=23 // pred_check
        %p128 = pneg %p29
      $region26: #{features_encoding.34} parent=23 // pred_check_branch
        %130 = sbr.rel (%p128) target = $region28
      $region27: #{features_encoding.34} parent=23 // pred_region
        %p131 = scmp.lt.s32.totalorder %s9, 1
        %s132 = scalar_select %p131, %s9, 1
        %s133 = smul.addr %s132, 4
        %s134 = smul.addr %s133, 2
        %s135 = scalar_lea.vmem %s0, %s134
      $region28: #{features_encoding.34} parent=23 // pred_fallthru
        _
    $region24: #{features_encoding.34} parent=5 // pred_fallthru
      _
    %p136 = scmp.le.s32.totalorder 1, %s9
    %p137 = scmp.lt.s32.totalorder %s9, 3
    %p138 = pnand %p136, %p137
    %p139 = pneg %p138
    // Predicated region
    $region29: #{features_encoding.34} parent=5 // pred_check
      _
    $region30: #{features_encoding.34} parent=5 // pred_check_branch
      %141 = sbr.rel (%p138) target = $region32
    $region31: #{features_encoding.34} parent=5 // pred_region
      %s142 = ssub.s32 %s9, 1
      %p143 = scmp.lt.s32.totalorder %s14, 1
      %s144 = scalar_select %p143, %s14, 1
      %s145 = smul.addr %s144, 4
      %s146 = smul.addr %s145, 2
      %s147 = scalar_lea.vmem %s0, %s146
      %p148 = pneg %p35
      %p149 = pneg %p32
      %p150 = pneg %p56
      %p151 = pneg %p53
      %p152 = pneg %p77
      %p153 = pneg %p74
      %p154 = pneg %p103
      %p155 = pneg %p100
      %p156 = scmp.lt.s32.totalorder %s14, 1
      %s157 = scalar_select %p156, %s14, 1
      %s158 = smul.addr %s157, 2
      %s159 = scalar_lea.vmem %s3, %s158
      %p160 = scmp.lt.s32.totalorder %s14, 1
      %s161 = scalar_select %p160, %s14, 1
      %s162 = smul.addr %s161, 4
      %s163 = smul.addr %s162, 2
      %s164 = scalar_lea.vmem %s0, %s163
      %p165 = scmp.lt.s32.totalorder %s14, 1
      %s166 = scalar_select %p165, %s14, 1
      %s167 = smul.addr %s166, 2
      %s168 = scalar_lea.vmem %s3, %s167
      loop: start=0, step=1, limit=2
      $region33: #{features_encoding.34} parent=31 // loop_pre_header
        _
      $region34: #{features_encoding.34} parent=31 // loop_header
        %s170 = sphi 0, %s174
        %p171 = scmp.ge.s32.totalorder %s170, 2
      $region35: #{features_encoding.34} parent=31 // loop_header_branch
        %173 = sbr.rel (%p171) target = $region39
      $region36: #{features_encoding.34} parent=31 // loop_body
        %s175 = smul.addr %s170, 2
        %s176 = scalar_lea.vmem %s164, %s175
        %v177 = vld [vmem:[%s176] sm:$0x3]
        %v178 = vld [vmem:[%s176 + $0x2] sm:$0x3]
        %v179 = vld [vmem:[%s176 + $0x4] sm:$0x3]
        %v180 = vld [vmem:[%s1] sm:$0xf]
        %v181 = vld [vmem:[%s1 + $0x4] sm:$0xf]
        %v182 = vld [vmem:[%s1 + $0x8] sm:$0xf]
        %v183 = vld [vmem:[%s1 + $0xc] sm:$0xf]
        %v184 = vld [vmem:[%s1 + $0x10] sm:$0xf]
        %v185 = vld [vmem:[%s1 + $0x14] sm:$0xf]
        %v186 = vld [vmem:[%s1 + $0x18] sm:$0xf]
        %v187 = vld [vmem:[%s1 + $0x1c] sm:$0xf]
        %v188 = vld [vmem:[%s1 + $0x20] sm:$0xf]
        %v189 = vld [vmem:[%s1 + $0x24] sm:$0xf]
        %v190 = vld [vmem:[%s1 + $0x28] sm:$0xf]
        %v191 = vld [vmem:[%s1 + $0x2c] sm:$0xf]
        %v192 = vld [vmem:[%s1 + $0x30] sm:$0xf]
        %v193 = vld [vmem:[%s1 + $0x34] sm:$0xf]
        %v194 = vld [vmem:[%s1 + $0x38] sm:$0xf]
        %v195 = vld [vmem:[%s1 + $0x3c] sm:$0xf]
        %v212 = vunpack.c.l.b16 %v180
        %v213 = vunpack.c.l.b16 %v181
        %v214 = vunpack.c.l.b16 %v182
        %v215 = vunpack.c.l.b16 %v183
        %v216 = vunpack.c.l.b16 %v184
        %v217 = vunpack.c.l.b16 %v185
        %v218 = vunpack.c.l.b16 %v186
        %v219 = vunpack.c.l.b16 %v187
        %v220 = vunpack.c.l.b16 %v188
        %v221 = vunpack.c.l.b16 %v189
        %v222 = vunpack.c.l.b16 %v190
        %v223 = vunpack.c.l.b16 %v191
        %v224 = vunpack.c.l.b16 %v192
        %v225 = vunpack.c.l.b16 %v193
        %v226 = vunpack.c.l.b16 %v194
        %v227 = vunpack.c.l.b16 %v195
        %v228 = vpack.c.b16 %v213, %v212
        %v229 = vpack.c.b16 %v215, %v214
        %v230 = vpack.c.b16 %v217, %v216
        %v231 = vpack.c.b16 %v219, %v218
        %v232 = vpack.c.b16 %v221, %v220
        %v233 = vpack.c.b16 %v223, %v222
        %v234 = vpack.c.b16 %v225, %v224
        %v235 = vpack.c.b16 %v227, %v226
        %244 = vmatpush.bf16.msra.mxu0 %v235
        %245 = vmatpush.bf16.msra.mxu0 %v234
        %246 = vmatpush.bf16.msra.mxu0 %v233
        %247 = vmatpush.bf16.msra.mxu0 %v232
        %248 = vmatpush.bf16.msra.mxu0 %v231
        %249 = vmatpush.bf16.msra.mxu0 %v230
        %250 = vmatpush.bf16.msra.mxu0 %v229
        %251 = vmatpush.bf16.msra.mxu0 %v228
        %252 = vmatmul.bf16.gmra.mxu0 %v177
        %v253 = vpop.f32.mrf.mxu0
        %v254 = vadd.f32 0.0, %v253
        %v255 = vpop.f32.mrf.mxu0
        %256 = vdwg.mxu0
        %v257 = vadd.f32 %v254, 0.0
        %s258 = scalar_lea.vmem %s1, 64
        %v259 = vld [vmem:[%s258] sm:$0xf]
        %v260 = vld [vmem:[%s258 + $0x4] sm:$0xf]
        %v261 = vld [vmem:[%s258 + $0x8] sm:$0xf]
        %v262 = vld [vmem:[%s258 + $0xc] sm:$0xf]
        %v263 = vld [vmem:[%s258 + $0x10] sm:$0xf]
        %v264 = vld [vmem:[%s258 + $0x14] sm:$0xf]
        %v265 = vld [vmem:[%s258 + $0x18] sm:$0xf]
        %v266 = vld [vmem:[%s258 + $0x1c] sm:$0xf]
        %v267 = vld [vmem:[%s258 + $0x20] sm:$0xf]
        %v268 = vld [vmem:[%s258 + $0x24] sm:$0xf]
        %v269 = vld [vmem:[%s258 + $0x28] sm:$0xf]
        %v270 = vld [vmem:[%s258 + $0x2c] sm:$0xf]
        %v271 = vld [vmem:[%s258 + $0x30] sm:$0xf]
        %v272 = vld [vmem:[%s258 + $0x34] sm:$0xf]
        %v273 = vld [vmem:[%s258 + $0x38] sm:$0xf]
        %v274 = vld [vmem:[%s258 + $0x3c] sm:$0xf]
        %v291 = vunpack.c.l.b16 %v259
        %v292 = vunpack.c.l.b16 %v260
        %v293 = vunpack.c.l.b16 %v261
        %v294 = vunpack.c.l.b16 %v262
        %v295 = vunpack.c.l.b16 %v263
        %v296 = vunpack.c.l.b16 %v264
        %v297 = vunpack.c.l.b16 %v265
        %v298 = vunpack.c.l.b16 %v266
        %v299 = vunpack.c.l.b16 %v267
        %v300 = vunpack.c.l.b16 %v268
        %v301 = vunpack.c.l.b16 %v269
        %v302 = vunpack.c.l.b16 %v270
        %v303 = vunpack.c.l.b16 %v271
        %v304 = vunpack.c.l.b16 %v272
        %v305 = vunpack.c.l.b16 %v273
        %v306 = vunpack.c.l.b16 %v274
        %v307 = vpack.c.b16 %v292, %v291
        %v308 = vpack.c.b16 %v294, %v293
        %v309 = vpack.c.b16 %v296, %v295
        %v310 = vpack.c.b16 %v298, %v297
        %v311 = vpack.c.b16 %v300, %v299
        %v312 = vpack.c.b16 %v302, %v301
        %v313 = vpack.c.b16 %v304, %v303
        %v314 = vpack.c.b16 %v306, %v305
        %323 = vmatpush.bf16.msra.mxu0 %v314
        %324 = vmatpush.bf16.msra.mxu0 %v313
        %325 = vmatpush.bf16.msra.mxu0 %v312
        %326 = vmatpush.bf16.msra.mxu0 %v311
        %327 = vmatpush.bf16.msra.mxu0 %v310
        %328 = vmatpush.bf16.msra.mxu0 %v309
        %329 = vmatpush.bf16.msra.mxu0 %v308
        %330 = vmatpush.bf16.msra.mxu0 %v307
        %331 = vmatmul.bf16.gmra.mxu0 %v177
        %v332 = vpop.f32.mrf.mxu0
        %v333 = vadd.f32 0.0, %v332
        %v334 = vpop.f32.mrf.mxu0
        %335 = vdwg.mxu0
        %v337 = vrot.slane %v333, 1
        %v339 = vadd.f32 %v257, %v337
        %s340 = scalar_lea.vmem %s1, 128
        %v341 = vld [vmem:[%s340] sm:$0xf]
        %v342 = vld [vmem:[%s340 + $0x4] sm:$0xf]
        %v343 = vld [vmem:[%s340 + $0x8] sm:$0xf]
        %v344 = vld [vmem:[%s340 + $0xc] sm:$0xf]
        %v345 = vld [vmem:[%s340 + $0x10] sm:$0xf]
        %v346 = vld [vmem:[%s340 + $0x14] sm:$0xf]
        %v347 = vld [vmem:[%s340 + $0x18] sm:$0xf]
        %v348 = vld [vmem:[%s340 + $0x1c] sm:$0xf]
        %v349 = vld [vmem:[%s340 + $0x20] sm:$0xf]
        %v350 = vld [vmem:[%s340 + $0x24] sm:$0xf]
        %v351 = vld [vmem:[%s340 + $0x28] sm:$0xf]
        %v352 = vld [vmem:[%s340 + $0x2c] sm:$0xf]
        %v353 = vld [vmem:[%s340 + $0x30] sm:$0xf]
        %v354 = vld [vmem:[%s340 + $0x34] sm:$0xf]
        %v355 = vld [vmem:[%s340 + $0x38] sm:$0xf]
        %v356 = vld [vmem:[%s340 + $0x3c] sm:$0xf]
        %v373 = vunpack.c.l.b16 %v341
        %v374 = vunpack.c.l.b16 %v342
        %v375 = vunpack.c.l.b16 %v343
        %v376 = vunpack.c.l.b16 %v344
        %v377 = vunpack.c.l.b16 %v345
        %v378 = vunpack.c.l.b16 %v346
        %v379 = vunpack.c.l.b16 %v347
        %v380 = vunpack.c.l.b16 %v348
        %v381 = vunpack.c.l.b16 %v349
        %v382 = vunpack.c.l.b16 %v350
        %v383 = vunpack.c.l.b16 %v351
        %v384 = vunpack.c.l.b16 %v352
        %v385 = vunpack.c.l.b16 %v353
        %v386 = vunpack.c.l.b16 %v354
        %v387 = vunpack.c.l.b16 %v355
        %v388 = vunpack.c.l.b16 %v356
        %v389 = vpack.c.b16 %v374, %v373
        %v390 = vpack.c.b16 %v376, %v375
        %v391 = vpack.c.b16 %v378, %v377
        %v392 = vpack.c.b16 %v380, %v379
        %v393 = vpack.c.b16 %v382, %v381
        %v394 = vpack.c.b16 %v384, %v383
        %v395 = vpack.c.b16 %v386, %v385
        %v396 = vpack.c.b16 %v388, %v387
        %405 = vmatpush.bf16.msra.mxu0 %v396
        %406 = vmatpush.bf16.msra.mxu0 %v395
        %407 = vmatpush.bf16.msra.mxu0 %v394
        %408 = vmatpush.bf16.msra.mxu0 %v393
        %409 = vmatpush.bf16.msra.mxu0 %v392
        %410 = vmatpush.bf16.msra.mxu0 %v391
        %411 = vmatpush.bf16.msra.mxu0 %v390
        %412 = vmatpush.bf16.msra.mxu0 %v389
        %413 = vmatmul.bf16.gmra.mxu0 %v177
        %v414 = vpop.f32.mrf.mxu0
        %v415 = vadd.f32 0.0, %v414
        %v416 = vpop.f32.mrf.mxu0
        %417 = vdwg.mxu0
        %v419 = vrot.slane %v415, 2
        %v421 = vadd.f32 %v339, %v419
        %s422 = scalar_lea.vmem %s1, 192
        %v423 = vld [vmem:[%s422] sm:$0xf]
        %v424 = vld [vmem:[%s422 + $0x4] sm:$0xf]
        %v425 = vld [vmem:[%s422 + $0x8] sm:$0xf]
        %v426 = vld [vmem:[%s422 + $0xc] sm:$0xf]
        %v427 = vld [vmem:[%s422 + $0x10] sm:$0xf]
        %v428 = vld [vmem:[%s422 + $0x14] sm:$0xf]
        %v429 = vld [vmem:[%s422 + $0x18] sm:$0xf]
        %v430 = vld [vmem:[%s422 + $0x1c] sm:$0xf]
        %v431 = vld [vmem:[%s422 + $0x20] sm:$0xf]
        %v432 = vld [vmem:[%s422 + $0x24] sm:$0xf]
        %v433 = vld [vmem:[%s422 + $0x28] sm:$0xf]
        %v434 = vld [vmem:[%s422 + $0x2c] sm:$0xf]
        %v435 = vld [vmem:[%s422 + $0x30] sm:$0xf]
        %v436 = vld [vmem:[%s422 + $0x34] sm:$0xf]
        %v437 = vld [vmem:[%s422 + $0x38] sm:$0xf]
        %v438 = vld [vmem:[%s422 + $0x3c] sm:$0xf]
        %v455 = vunpack.c.l.b16 %v423
        %v456 = vunpack.c.l.b16 %v424
        %v457 = vunpack.c.l.b16 %v425
        %v458 = vunpack.c.l.b16 %v426
        %v459 = vunpack.c.l.b16 %v427
        %v460 = vunpack.c.l.b16 %v428
        %v461 = vunpack.c.l.b16 %v429
        %v462 = vunpack.c.l.b16 %v430
        %v463 = vunpack.c.l.b16 %v431
        %v464 = vunpack.c.l.b16 %v432
        %v465 = vunpack.c.l.b16 %v433
        %v466 = vunpack.c.l.b16 %v434
        %v467 = vunpack.c.l.b16 %v435
        %v468 = vunpack.c.l.b16 %v436
        %v469 = vunpack.c.l.b16 %v437
        %v470 = vunpack.c.l.b16 %v438
        %v471 = vpack.c.b16 %v456, %v455
        %v472 = vpack.c.b16 %v458, %v457
        %v473 = vpack.c.b16 %v460, %v459
        %v474 = vpack.c.b16 %v462, %v461
        %v475 = vpack.c.b16 %v464, %v463
        %v476 = vpack.c.b16 %v466, %v465
        %v477 = vpack.c.b16 %v468, %v467
        %v478 = vpack.c.b16 %v470, %v469
        %487 = vmatpush.bf16.msra.mxu0 %v478
        %488 = vmatpush.bf16.msra.mxu0 %v477
        %489 = vmatpush.bf16.msra.mxu0 %v476
        %490 = vmatpush.bf16.msra.mxu0 %v475
        %491 = vmatpush.bf16.msra.mxu0 %v474
        %492 = vmatpush.bf16.msra.mxu0 %v473
        %493 = vmatpush.bf16.msra.mxu0 %v472
        %494 = vmatpush.bf16.msra.mxu0 %v471
        %495 = vmatmul.bf16.gmra.mxu0 %v178
        %v496 = vpop.f32.mrf.mxu0
        %v497 = vadd.f32 0.0, %v496
        %v498 = vpop.f32.mrf.mxu0
        %499 = vdwg.mxu0
        %v500 = vadd.f32 %v421, %v497
        %s501 = scalar_lea.vmem %s1, 256
        %v502 = vld [vmem:[%s501] sm:$0xf]
        %v503 = vld [vmem:[%s501 + $0x4] sm:$0xf]
        %v504 = vld [vmem:[%s501 + $0x8] sm:$0xf]
        %v505 = vld [vmem:[%s501 + $0xc] sm:$0xf]
        %v506 = vld [vmem:[%s501 + $0x10] sm:$0xf]
        %v507 = vld [vmem:[%s501 + $0x14] sm:$0xf]
        %v508 = vld [vmem:[%s501 + $0x18] sm:$0xf]
        %v509 = vld [vmem:[%s501 + $0x1c] sm:$0xf]
        %v510 = vld [vmem:[%s501 + $0x20] sm:$0xf]
        %v511 = vld [vmem:[%s501 + $0x24] sm:$0xf]
        %v512 = vld [vmem:[%s501 + $0x28] sm:$0xf]
        %v513 = vld [vmem:[%s501 + $0x2c] sm:$0xf]
        %v514 = vld [vmem:[%s501 + $0x30] sm:$0xf]
        %v515 = vld [vmem:[%s501 + $0x34] sm:$0xf]
        %v516 = vld [vmem:[%s501 + $0x38] sm:$0xf]
        %v517 = vld [vmem:[%s501 + $0x3c] sm:$0xf]
        %v534 = vunpack.c.l.b16 %v502
        %v535 = vunpack.c.l.b16 %v503
        %v536 = vunpack.c.l.b16 %v504
        %v537 = vunpack.c.l.b16 %v505
        %v538 = vunpack.c.l.b16 %v506
        %v539 = vunpack.c.l.b16 %v507
        %v540 = vunpack.c.l.b16 %v508
        %v541 = vunpack.c.l.b16 %v509
        %v542 = vunpack.c.l.b16 %v510
        %v543 = vunpack.c.l.b16 %v511
        %v544 = vunpack.c.l.b16 %v512
        %v545 = vunpack.c.l.b16 %v513
        %v546 = vunpack.c.l.b16 %v514
        %v547 = vunpack.c.l.b16 %v515
        %v548 = vunpack.c.l.b16 %v516
        %v549 = vunpack.c.l.b16 %v517
        %v550 = vpack.c.b16 %v535, %v534
        %v551 = vpack.c.b16 %v537, %v536
        %v552 = vpack.c.b16 %v539, %v538
        %v553 = vpack.c.b16 %v541, %v540
        %v554 = vpack.c.b16 %v543, %v542
        %v555 = vpack.c.b16 %v545, %v544
        %v556 = vpack.c.b16 %v547, %v546
        %v557 = vpack.c.b16 %v549, %v548
        %566 = vmatpush.bf16.msra.mxu0 %v557
        %567 = vmatpush.bf16.msra.mxu0 %v556
        %568 = vmatpush.bf16.msra.mxu0 %v555
        %569 = vmatpush.bf16.msra.mxu0 %v554
        %570 = vmatpush.bf16.msra.mxu0 %v553
        %571 = vmatpush.bf16.msra.mxu0 %v552
        %572 = vmatpush.bf16.msra.mxu0 %v551
        %573 = vmatpush.bf16.msra.mxu0 %v550
        %574 = vmatmul.bf16.gmra.mxu0 %v178
        %v575 = vpop.f32.mrf.mxu0
        %v576 = vadd.f32 0.0, %v575
        %v577 = vpop.f32.mrf.mxu0
        %578 = vdwg.mxu0
        %v580 = vrot.slane %v576, 1
        %v582 = vadd.f32 %v500, %v580
        %s583 = scalar_lea.vmem %s1, 320
        %v584 = vld [vmem:[%s583] sm:$0xf]
        %v585 = vld [vmem:[%s583 + $0x4] sm:$0xf]
        %v586 = vld [vmem:[%s583 + $0x8] sm:$0xf]
        %v587 = vld [vmem:[%s583 + $0xc] sm:$0xf]
        %v588 = vld [vmem:[%s583 + $0x10] sm:$0xf]
        %v589 = vld [vmem:[%s583 + $0x14] sm:$0xf]
        %v590 = vld [vmem:[%s583 + $0x18] sm:$0xf]
        %v591 = vld [vmem:[%s583 + $0x1c] sm:$0xf]
        %v592 = vld [vmem:[%s583 + $0x20] sm:$0xf]
        %v593 = vld [vmem:[%s583 + $0x24] sm:$0xf]
        %v594 = vld [vmem:[%s583 + $0x28] sm:$0xf]
        %v595 = vld [vmem:[%s583 + $0x2c] sm:$0xf]
        %v596 = vld [vmem:[%s583 + $0x30] sm:$0xf]
        %v597 = vld [vmem:[%s583 + $0x34] sm:$0xf]
        %v598 = vld [vmem:[%s583 + $0x38] sm:$0xf]
        %v599 = vld [vmem:[%s583 + $0x3c] sm:$0xf]
        %v616 = vunpack.c.l.b16 %v584
        %v617 = vunpack.c.l.b16 %v585
        %v618 = vunpack.c.l.b16 %v586
        %v619 = vunpack.c.l.b16 %v587
        %v620 = vunpack.c.l.b16 %v588
        %v621 = vunpack.c.l.b16 %v589
        %v622 = vunpack.c.l.b16 %v590
        %v623 = vunpack.c.l.b16 %v591
        %v624 = vunpack.c.l.b16 %v592
        %v625 = vunpack.c.l.b16 %v593
        %v626 = vunpack.c.l.b16 %v594
        %v627 = vunpack.c.l.b16 %v595
        %v628 = vunpack.c.l.b16 %v596
        %v629 = vunpack.c.l.b16 %v597
        %v630 = vunpack.c.l.b16 %v598
        %v631 = vunpack.c.l.b16 %v599
        %v632 = vpack.c.b16 %v617, %v616
        %v633 = vpack.c.b16 %v619, %v618
        %v634 = vpack.c.b16 %v621, %v620
        %v635 = vpack.c.b16 %v623, %v622
        %v636 = vpack.c.b16 %v625, %v624
        %v637 = vpack.c.b16 %v627, %v626
        %v638 = vpack.c.b16 %v629, %v628
        %v639 = vpack.c.b16 %v631, %v630
        %648 = vmatpush.bf16.msra.mxu0 %v639
        %649 = vmatpush.bf16.msra.mxu0 %v638
        %650 = vmatpush.bf16.msra.mxu0 %v637
        %651 = vmatpush.bf16.msra.mxu0 %v636
        %652 = vmatpush.bf16.msra.mxu0 %v635
        %653 = vmatpush.bf16.msra.mxu0 %v634
        %654 = vmatpush.bf16.msra.mxu0 %v633
        %655 = vmatpush.bf16.msra.mxu0 %v632
        %656 = vmatmul.bf16.gmra.mxu0 %v178
        %v657 = vpop.f32.mrf.mxu0
        %v658 = vadd.f32 0.0, %v657
        %v659 = vpop.f32.mrf.mxu0
        %660 = vdwg.mxu0
        %v662 = vrot.slane %v658, 2
        %v664 = vadd.f32 %v582, %v662
        %s665 = scalar_lea.vmem %s1, 384
        %v666 = vld [vmem:[%s665] sm:$0xf]
        %v667 = vld [vmem:[%s665 + $0x4] sm:$0xf]
        %v668 = vld [vmem:[%s665 + $0x8] sm:$0xf]
        %v669 = vld [vmem:[%s665 + $0xc] sm:$0xf]
        %v670 = vld [vmem:[%s665 + $0x10] sm:$0xf]
        %v671 = vld [vmem:[%s665 + $0x14] sm:$0xf]
        %v672 = vld [vmem:[%s665 + $0x18] sm:$0xf]
        %v673 = vld [vmem:[%s665 + $0x1c] sm:$0xf]
        %v674 = vld [vmem:[%s665 + $0x20] sm:$0xf]
        %v675 = vld [vmem:[%s665 + $0x24] sm:$0xf]
        %v676 = vld [vmem:[%s665 + $0x28] sm:$0xf]
        %v677 = vld [vmem:[%s665 + $0x2c] sm:$0xf]
        %v678 = vld [vmem:[%s665 + $0x30] sm:$0xf]
        %v679 = vld [vmem:[%s665 + $0x34] sm:$0xf]
        %v680 = vld [vmem:[%s665 + $0x38] sm:$0xf]
        %v681 = vld [vmem:[%s665 + $0x3c] sm:$0xf]
        %v698 = vunpack.c.l.b16 %v666
        %v699 = vunpack.c.l.b16 %v667
        %v700 = vunpack.c.l.b16 %v668
        %v701 = vunpack.c.l.b16 %v669
        %v702 = vunpack.c.l.b16 %v670
        %v703 = vunpack.c.l.b16 %v671
        %v704 = vunpack.c.l.b16 %v672
        %v705 = vunpack.c.l.b16 %v673
        %v706 = vunpack.c.l.b16 %v674
        %v707 = vunpack.c.l.b16 %v675
        %v708 = vunpack.c.l.b16 %v676
        %v709 = vunpack.c.l.b16 %v677
        %v710 = vunpack.c.l.b16 %v678
        %v711 = vunpack.c.l.b16 %v679
        %v712 = vunpack.c.l.b16 %v680
        %v713 = vunpack.c.l.b16 %v681
        %v714 = vpack.c.b16 %v699, %v698
        %v715 = vpack.c.b16 %v701, %v700
        %v716 = vpack.c.b16 %v703, %v702
        %v717 = vpack.c.b16 %v705, %v704
        %v718 = vpack.c.b16 %v707, %v706
        %v719 = vpack.c.b16 %v709, %v708
        %v720 = vpack.c.b16 %v711, %v710
        %v721 = vpack.c.b16 %v713, %v712
        %730 = vmatpush.bf16.msra.mxu0 %v721
        %731 = vmatpush.bf16.msra.mxu0 %v720
        %732 = vmatpush.bf16.msra.mxu0 %v719
        %733 = vmatpush.bf16.msra.mxu0 %v718
        %734 = vmatpush.bf16.msra.mxu0 %v717
        %735 = vmatpush.bf16.msra.mxu0 %v716
        %736 = vmatpush.bf16.msra.mxu0 %v715
        %737 = vmatpush.bf16.msra.mxu0 %v714
        %738 = vmatmul.bf16.gmra.mxu0 %v179
        %v739 = vpop.f32.mrf.mxu0
        %v740 = vadd.f32 0.0, %v739
        %v741 = vpop.f32.mrf.mxu0
        %742 = vdwg.mxu0
        %v743 = vadd.f32 %v664, %v740
        %s744 = scalar_lea.vmem %s1, 448
        %v745 = vld [vmem:[%s744] sm:$0xf]
        %v746 = vld [vmem:[%s744 + $0x4] sm:$0xf]
        %v747 = vld [vmem:[%s744 + $0x8] sm:$0xf]
        %v748 = vld [vmem:[%s744 + $0xc] sm:$0xf]
        %v749 = vld [vmem:[%s744 + $0x10] sm:$0xf]
        %v750 = vld [vmem:[%s744 + $0x14] sm:$0xf]
        %v751 = vld [vmem:[%s744 + $0x18] sm:$0xf]
        %v752 = vld [vmem:[%s744 + $0x1c] sm:$0xf]
        %v753 = vld [vmem:[%s744 + $0x20] sm:$0xf]
        %v754 = vld [vmem:[%s744 + $0x24] sm:$0xf]
        %v755 = vld [vmem:[%s744 + $0x28] sm:$0xf]
        %v756 = vld [vmem:[%s744 + $0x2c] sm:$0xf]
        %v757 = vld [vmem:[%s744 + $0x30] sm:$0xf]
        %v758 = vld [vmem:[%s744 + $0x34] sm:$0xf]
        %v759 = vld [vmem:[%s744 + $0x38] sm:$0xf]
        %v760 = vld [vmem:[%s744 + $0x3c] sm:$0xf]
        %v777 = vunpack.c.l.b16 %v745
        %v778 = vunpack.c.l.b16 %v746
        %v779 = vunpack.c.l.b16 %v747
        %v780 = vunpack.c.l.b16 %v748
        %v781 = vunpack.c.l.b16 %v749
        %v782 = vunpack.c.l.b16 %v750
        %v783 = vunpack.c.l.b16 %v751
        %v784 = vunpack.c.l.b16 %v752
        %v785 = vunpack.c.l.b16 %v753
        %v786 = vunpack.c.l.b16 %v754
        %v787 = vunpack.c.l.b16 %v755
        %v788 = vunpack.c.l.b16 %v756
        %v789 = vunpack.c.l.b16 %v757
        %v790 = vunpack.c.l.b16 %v758
        %v791 = vunpack.c.l.b16 %v759
        %v792 = vunpack.c.l.b16 %v760
        %v793 = vpack.c.b16 %v778, %v777
        %v794 = vpack.c.b16 %v780, %v779
        %v795 = vpack.c.b16 %v782, %v781
        %v796 = vpack.c.b16 %v784, %v783
        %v797 = vpack.c.b16 %v786, %v785
        %v798 = vpack.c.b16 %v788, %v787
        %v799 = vpack.c.b16 %v790, %v789
        %v800 = vpack.c.b16 %v792, %v791
        %809 = vmatpush.bf16.msra.mxu0 %v800
        %810 = vmatpush.bf16.msra.mxu0 %v799
        %811 = vmatpush.bf16.msra.mxu0 %v798
        %812 = vmatpush.bf16.msra.mxu0 %v797
        %813 = vmatpush.bf16.msra.mxu0 %v796
        %814 = vmatpush.bf16.msra.mxu0 %v795
        %815 = vmatpush.bf16.msra.mxu0 %v794
        %816 = vmatpush.bf16.msra.mxu0 %v793
        %817 = vmatmul.bf16.gmra.mxu0 %v179
        %v818 = vpop.f32.mrf.mxu0
        %v819 = vadd.f32 0.0, %v818
        %v820 = vpop.f32.mrf.mxu0
        %821 = vdwg.mxu0
        %v823 = vrot.slane %v819, 1
        %v825 = vadd.f32 %v743, %v823
        %s826 = scalar_lea.vmem %s1, 512
        %v827 = vld [vmem:[%s826] sm:$0xf]
        %v828 = vld [vmem:[%s826 + $0x4] sm:$0xf]
        %v829 = vld [vmem:[%s826 + $0x8] sm:$0xf]
        %v830 = vld [vmem:[%s826 + $0xc] sm:$0xf]
        %v831 = vld [vmem:[%s826 + $0x10] sm:$0xf]
        %v832 = vld [vmem:[%s826 + $0x14] sm:$0xf]
        %v833 = vld [vmem:[%s826 + $0x18] sm:$0xf]
        %v834 = vld [vmem:[%s826 + $0x1c] sm:$0xf]
        %v835 = vld [vmem:[%s826 + $0x20] sm:$0xf]
        %v836 = vld [vmem:[%s826 + $0x24] sm:$0xf]
        %v837 = vld [vmem:[%s826 + $0x28] sm:$0xf]
        %v838 = vld [vmem:[%s826 + $0x2c] sm:$0xf]
        %v839 = vld [vmem:[%s826 + $0x30] sm:$0xf]
        %v840 = vld [vmem:[%s826 + $0x34] sm:$0xf]
        %v841 = vld [vmem:[%s826 + $0x38] sm:$0xf]
        %v842 = vld [vmem:[%s826 + $0x3c] sm:$0xf]
        %v859 = vunpack.c.l.b16 %v827
        %v860 = vunpack.c.l.b16 %v828
        %v861 = vunpack.c.l.b16 %v829
        %v862 = vunpack.c.l.b16 %v830
        %v863 = vunpack.c.l.b16 %v831
        %v864 = vunpack.c.l.b16 %v832
        %v865 = vunpack.c.l.b16 %v833
        %v866 = vunpack.c.l.b16 %v834
        %v867 = vunpack.c.l.b16 %v835
        %v868 = vunpack.c.l.b16 %v836
        %v869 = vunpack.c.l.b16 %v837
        %v870 = vunpack.c.l.b16 %v838
        %v871 = vunpack.c.l.b16 %v839
        %v872 = vunpack.c.l.b16 %v840
        %v873 = vunpack.c.l.b16 %v841
        %v874 = vunpack.c.l.b16 %v842
        %v875 = vpack.c.b16 %v860, %v859
        %v876 = vpack.c.b16 %v862, %v861
        %v877 = vpack.c.b16 %v864, %v863
        %v878 = vpack.c.b16 %v866, %v865
        %v879 = vpack.c.b16 %v868, %v867
        %v880 = vpack.c.b16 %v870, %v869
        %v881 = vpack.c.b16 %v872, %v871
        %v882 = vpack.c.b16 %v874, %v873
        %891 = vmatpush.bf16.msra.mxu0 %v882
        %892 = vmatpush.bf16.msra.mxu0 %v881
        %893 = vmatpush.bf16.msra.mxu0 %v880
        %894 = vmatpush.bf16.msra.mxu0 %v879
        %895 = vmatpush.bf16.msra.mxu0 %v878
        %896 = vmatpush.bf16.msra.mxu0 %v877
        %897 = vmatpush.bf16.msra.mxu0 %v876
        %898 = vmatpush.bf16.msra.mxu0 %v875
        %899 = vmatmul.bf16.gmra.mxu0 %v179
        %v900 = vpop.f32.mrf.mxu0
        %v901 = vadd.f32 0.0, %v900
        %v902 = vpop.f32.mrf.mxu0
        %903 = vdwg.mxu0
        %v905 = vrot.slane %v901, 2
        %v907 = vadd.f32 %v825, %v905
        %v908 = vld [vmem:[%s2] sm:$0x1]
        %v910 = vperm.slane %v908, 0
        %v912 = vadd.f32 %v907, %v910
        %v913 = vmax.f32 %v912, 0.0
        %v914 = vpack.c.bf16 %v913, %v913
        %s915 = scalar_lea.vmem %s168, %s170
        %916 = vst [vmem:[%s915] sm:$0x1] %v914
      $region37: #{features_encoding.34} parent=31 // loop_footer
        %s174 = sadd.s32 1, %s170
      $region38: #{features_encoding.34} parent=31 // loop_footer_branch
        %169 = sbr.rel target = $region34
      $region39: #{features_encoding.34} parent=31 // loop_exit
        _
      %p917 = scmp.lt.s32.totalorder %s14, 1
      %s918 = scalar_select %p917, %s14, 1
      %s919 = smul.addr %s918, 2
      %s920 = scalar_lea.vmem %s3, %s919
      // Predicated region
      $region40: #{features_encoding.34} parent=31 // pred_check
        %p921 = pneg %p100
      $region41: #{features_encoding.34} parent=31 // pred_check_branch
        %923 = sbr.rel (%p921) target = $region43
      $region42: #{features_encoding.34} parent=31 // pred_region
        _
      $region43: #{features_encoding.34} parent=31 // pred_fallthru
        _
    $region32: #{features_encoding.34} parent=5 // pred_fallthru
      _
    %p924 = scmp.le.s32.totalorder 2, %s9
    // Predicated region
    $region44: #{features_encoding.34} parent=5 // pred_check
      %p925 = pneg %p924
    $region45: #{features_encoding.34} parent=5 // pred_check_branch
      %927 = sbr.rel (%p925) target = $region47
    $region46: #{features_encoding.34} parent=5 // pred_region
      %s928 = ssub.s32 %s9, 2
      // Predicated region
      $region48: #{features_encoding.34} parent=46 // pred_check
        %p929 = pneg %p106
      $region49: #{features_encoding.34} parent=46 // pred_check_branch
        %931 = sbr.rel (%p929) target = $region51
      $region50: #{features_encoding.34} parent=46 // pred_region
        %p932 = scmp.lt.s32.totalorder %s15, 1
        %s933 = scalar_select %p932, %s15, 1
        %s934 = smul.addr %s933, 2
        %s935 = scalar_lea.vmem %s3, %s934
      $region51: #{features_encoding.34} parent=46 // pred_fallthru
        _
    $region47: #{features_encoding.34} parent=5 // pred_fallthru
      _
  $region6: #{features_encoding.34} parent=0 // loop_footer
    %s13 = sadd.s32 1, %s9
  $region7: #{features_encoding.34} parent=0 // loop_footer_branch
    %8 = sbr.rel target = $region3
  $region8: #{features_encoding.34} parent=0 // loop_exit
    _

// kernel: features_encoding.38
$region0: #{features_encoding.38}
  #allocation0 [shape = 'u32[]', space=smem, size = 0x4, offset = 0x4, fixed_abs, tag = 'smem constant byte address 0x4 - core index']
  #allocation1 [shape = 'u32[72,128]{1,0:T(1,128)}', space=vmem, size = 0x9000, scoped, tag = 'internal scratch']
  %s0 = inlined_call_operand.vmem [shape: bf16[8,128], index: 0, kind: input, shape index: {}]
  %s1 = inlined_call_operand.vmem [shape: bf16[128,128], index: 1, kind: input, shape index: {}]
  %s2 = inlined_call_operand.vmem [shape: f32[1,128], index: 2, kind: input, shape index: {}]
  %s3 = inlined_call_operand.vmem [shape: f32[8,128], index: 3, kind: output, shape index: {}]
  %s4 = sld [smem:[#allocation0]]
  $region22: #{features_encoding.38} parent=0
    _
  %s6 = ssub.s32 1, %s4
  %s7 = scalar_select 0, %s6, %s4
  // Predicated region
  $region2: #{features_encoding.38} parent=0 // pred_check
    _
  $region3: #{features_encoding.38} parent=0 // pred_check_branch
    %9 = sbr.rel (0) target = $region5
  $region4: #{features_encoding.38} parent=0 // pred_region
    _
  $region5: #{features_encoding.38} parent=0 // pred_fallthru
    _
  // Predicated region
  $region6: #{features_encoding.38} parent=0 // pred_check
    _
  $region7: #{features_encoding.38} parent=0 // pred_check_branch
    %11 = sbr.rel (0) target = $region9
  $region8: #{features_encoding.38} parent=0 // pred_region
    _
  $region9: #{features_encoding.38} parent=0 // pred_fallthru
    _
  // Predicated region
  $region10: #{features_encoding.38} parent=0 // pred_check
    _
  $region11: #{features_encoding.38} parent=0 // pred_check_branch
    %13 = sbr.rel (0) target = $region13
  $region12: #{features_encoding.38} parent=0 // pred_region
    _
  $region13: #{features_encoding.38} parent=0 // pred_fallthru
    _
  %v14 = vld [vmem:[%s0] sm:$0xf]
  %v15 = vld [vmem:[%s1] sm:$0xf]
  %v16 = vld [vmem:[%s1 + $0x4] sm:$0xf]
  %v17 = vld [vmem:[%s1 + $0x8] sm:$0xf]
  %v18 = vld [vmem:[%s1 + $0xc] sm:$0xf]
  %v19 = vld [vmem:[%s1 + $0x10] sm:$0xf]
  %v20 = vld [vmem:[%s1 + $0x14] sm:$0xf]
  %v21 = vld [vmem:[%s1 + $0x18] sm:$0xf]
  %v22 = vld [vmem:[%s1 + $0x1c] sm:$0xf]
  %v23 = vld [vmem:[%s1 + $0x20] sm:$0xf]
  %v24 = vld [vmem:[%s1 + $0x24] sm:$0xf]
  %v25 = vld [vmem:[%s1 + $0x28] sm:$0xf]
  %v26 = vld [vmem:[%s1 + $0x2c] sm:$0xf]
  %v27 = vld [vmem:[%s1 + $0x30] sm:$0xf]
  %v28 = vld [vmem:[%s1 + $0x34] sm:$0xf]
  %v29 = vld [vmem:[%s1 + $0x38] sm:$0xf]
  %v30 = vld [vmem:[%s1 + $0x3c] sm:$0xf]
  %v31 = vld [vmem:[%s2] sm:$0x1]
  %v33 = vperm.slane %v31, 0
  %v51 = vunpack.c.l.b16 %v15
  %v52 = vunpack.c.l.b16 %v16
  %v53 = vunpack.c.l.b16 %v17
  %v54 = vunpack.c.l.b16 %v18
  %v55 = vunpack.c.l.b16 %v19
  %v56 = vunpack.c.l.b16 %v20
  %v57 = vunpack.c.l.b16 %v21
  %v58 = vunpack.c.l.b16 %v22
  %v59 = vunpack.c.l.b16 %v23
  %v60 = vunpack.c.l.b16 %v24
  %v61 = vunpack.c.l.b16 %v25
  %v62 = vunpack.c.l.b16 %v26
  %v63 = vunpack.c.l.b16 %v27
  %v64 = vunpack.c.l.b16 %v28
  %v65 = vunpack.c.l.b16 %v29
  %v66 = vunpack.c.l.b16 %v30
  %v67 = vpack.c.b16 %v52, %v51
  %v68 = vpack.c.b16 %v54, %v53
  %v69 = vpack.c.b16 %v56, %v55
  %v70 = vpack.c.b16 %v58, %v57
  %v71 = vpack.c.b16 %v60, %v59
  %v72 = vpack.c.b16 %v62, %v61
  %v73 = vpack.c.b16 %v64, %v63
  %v74 = vpack.c.b16 %v66, %v65
  %83 = vmatpush.bf16.msra.mxu0 %v74
  %84 = vmatpush.bf16.msra.mxu0 %v73
  %85 = vmatpush.bf16.msra.mxu0 %v72
  %86 = vmatpush.bf16.msra.mxu0 %v71
  %87 = vmatpush.bf16.msra.mxu0 %v70
  %88 = vmatpush.bf16.msra.mxu0 %v69
  %89 = vmatpush.bf16.msra.mxu0 %v68
  %90 = vmatpush.bf16.msra.mxu0 %v67
  %91 = vmatmul.bf16.gmra.mxu0 %v14
  %v92 = vpop.f32.mrf.mxu0
  %v93 = vadd.f32 %v33, %v92
  %v94 = vpop.f32.mrf.mxu0
  %95 = vdwg.mxu0
  %v96 = vmax.f32 %v93, 0.0
  %97 = vst [vmem:[%s3] sm:$0xff] %v96
  // Predicated region
  $region14: #{features_encoding.38} parent=0 // pred_check
    _
  $region15: #{features_encoding.38} parent=0 // pred_check_branch
    %99 = sbr.rel (0) target = $region17
  $region16: #{features_encoding.38} parent=0 // pred_region
    _
  $region17: #{features_encoding.38} parent=0 // pred_fallthru
    _
  // Predicated region
  $region18: #{features_encoding.38} parent=0 // pred_check
    _
  $region19: #{features_encoding.38} parent=0 // pred_check_branch
    %101 = sbr.rel (0) target = $region21
  $region20: #{features_encoding.38} parent=0 // pred_region
    _
  $region21: #{features_encoding.38} parent=0 // pred_fallthru
    _

// kernel: features_encoding.39
$region0: #{features_encoding.39}
  #allocation0 [shape = 'u32[]', space=smem, size = 0x4, offset = 0x4, fixed_abs, tag = 'smem constant byte address 0x4 - core index']
  #allocation1 [shape = 'u32[72,128]{1,0:T(1,128)}', space=vmem, size = 0x9000, scoped, tag = 'internal scratch']
  %s0 = inlined_call_operand.vmem [shape: bf16[8,128], index: 0, kind: input, shape index: {}]
  %s1 = inlined_call_operand.vmem [shape: bf16[128,128], index: 1, kind: input, shape index: {}]
  %s2 = inlined_call_operand.vmem [shape: f32[1,128], index: 2, kind: input, shape index: {}]
  %s3 = inlined_call_operand.vmem [shape: f32[8,128], index: 3, kind: output, shape index: {}]
  %s4 = sld [smem:[#allocation0]]
  $region22: #{features_encoding.39} parent=0
    _
  %s6 = ssub.s32 1, %s4
  %s7 = scalar_select 0, %s6, %s4
  // Predicated region
  $region2: #{features_encoding.39} parent=0 // pred_check
    _
  $region3: #{features_encoding.39} parent=0 // pred_check_branch
    %9 = sbr.rel (0) target = $region5
  $region4: #{features_encoding.39} parent=0 // pred_region
    _
  $region5: #{features_encoding.39} parent=0 // pred_fallthru
    _
  // Predicated region
  $region6: #{features_encoding.39} parent=0 // pred_check
    _
  $region7: #{features_encoding.39} parent=0 // pred_check_branch
    %11 = sbr.rel (0) target = $region9
  $region8: #{features_encoding.39} parent=0 // pred_region
    _
  $region9: #{features_encoding.39} parent=0 // pred_fallthru
    _
  // Predicated region
  $region10: #{features_encoding.39} parent=0 // pred_check
    _
  $region11: #{features_encoding.39} parent=0 // pred_check_branch
    %13 = sbr.rel (0) target = $region13
  $region12: #{features_encoding.39} parent=0 // pred_region
    _
  $region13: #{features_encoding.39} parent=0 // pred_fallthru
    _
  %v14 = vld [vmem:[%s0] sm:$0xf]
  %v15 = vld [vmem:[%s1] sm:$0xf]
  %v16 = vld [vmem:[%s1 + $0x4] sm:$0xf]
  %v17 = vld [vmem:[%s1 + $0x8] sm:$0xf]
  %v18 = vld [vmem:[%s1 + $0xc] sm:$0xf]
  %v19 = vld [vmem:[%s1 + $0x10] sm:$0xf]
  %v20 = vld [vmem:[%s1 + $0x14] sm:$0xf]
  %v21 = vld [vmem:[%s1 + $0x18] sm:$0xf]
  %v22 = vld [vmem:[%s1 + $0x1c] sm:$0xf]
  %v23 = vld [vmem:[%s1 + $0x20] sm:$0xf]
  %v24 = vld [vmem:[%s1 + $0x24] sm:$0xf]
  %v25 = vld [vmem:[%s1 + $0x28] sm:$0xf]
  %v26 = vld [vmem:[%s1 + $0x2c] sm:$0xf]
  %v27 = vld [vmem:[%s1 + $0x30] sm:$0xf]
  %v28 = vld [vmem:[%s1 + $0x34] sm:$0xf]
  %v29 = vld [vmem:[%s1 + $0x38] sm:$0xf]
  %v30 = vld [vmem:[%s1 + $0x3c] sm:$0xf]
  %v31 = vld [vmem:[%s2] sm:$0x1]
  %v33 = vperm.slane %v31, 0
  %v51 = vunpack.c.l.b16 %v15
  %v52 = vunpack.c.l.b16 %v16
  %v53 = vunpack.c.l.b16 %v17
  %v54 = vunpack.c.l.b16 %v18
  %v55 = vunpack.c.l.b16 %v19
  %v56 = vunpack.c.l.b16 %v20
  %v57 = vunpack.c.l.b16 %v21
  %v58 = vunpack.c.l.b16 %v22
  %v59 = vunpack.c.l.b16 %v23
  %v60 = vunpack.c.l.b16 %v24
  %v61 = vunpack.c.l.b16 %v25
  %v62 = vunpack.c.l.b16 %v26
  %v63 = vunpack.c.l.b16 %v27
  %v64 = vunpack.c.l.b16 %v28
  %v65 = vunpack.c.l.b16 %v29
  %v66 = vunpack.c.l.b16 %v30
  %v67 = vpack.c.b16 %v52, %v51
  %v68 = vpack.c.b16 %v54, %v53
  %v69 = vpack.c.b16 %v56, %v55
  %v70 = vpack.c.b16 %v58, %v57
  %v71 = vpack.c.b16 %v60, %v59
  %v72 = vpack.c.b16 %v62, %v61
  %v73 = vpack.c.b16 %v64, %v63
  %v74 = vpack.c.b16 %v66, %v65
  %83 = vmatpush.bf16.msra.mxu0 %v74
  %84 = vmatpush.bf16.msra.mxu0 %v73
  %85 = vmatpush.bf16.msra.mxu0 %v72
  %86 = vmatpush.bf16.msra.mxu0 %v71
  %87 = vmatpush.bf16.msra.mxu0 %v70
  %88 = vmatpush.bf16.msra.mxu0 %v69
  %89 = vmatpush.bf16.msra.mxu0 %v68
  %90 = vmatpush.bf16.msra.mxu0 %v67
  %91 = vmatmul.bf16.gmra.mxu0 %v14
  %v92 = vpop.f32.mrf.mxu0
  %v93 = vadd.f32 %v33, %v92
  %v94 = vpop.f32.mrf.mxu0
  %95 = vdwg.mxu0
  %96 = vst [vmem:[%s3] sm:$0xff] %v93
  // Predicated region
  $region14: #{features_encoding.39} parent=0 // pred_check
    _
  $region15: #{features_encoding.39} parent=0 // pred_check_branch
    %98 = sbr.rel (0) target = $region17
  $region16: #{features_encoding.39} parent=0 // pred_region
    _
  $region17: #{features_encoding.39} parent=0 // pred_fallthru
    _
  // Predicated region
  $region18: #{features_encoding.39} parent=0 // pred_check
    _
  $region19: #{features_encoding.39} parent=0 // pred_check_branch
    %100 = sbr.rel (0) target = $region21
  $region20: #{features_encoding.39} parent=0 // pred_region
    _
  $region21: #{features_encoding.39} parent=0 // pred_fallthru
    _

</llo_original>
